<compile_context>
chip_gen: v7x
topology: tpu7x:2x2x1
jax: 0.10.0
libtpu: 0.0.40
codegen_flags: <defaults>
</compile_context>

<pallas_src>
import jax
import jax.numpy as jnp
from jax.experimental import pallas as pl
from jax.experimental.pallas import tpu as pltpu

POOL_DIM = 2048                          # pool_dim in the PyTorch module
LOW_DIM = 32                             # args.low_dim
LOW_PAD = 128 * pl.cdiv(LOW_DIM, 128)    # latent dim padded to full lanes
EPS = 1e-12                              # F.normalize-style eps (avoids 0/0)

MODALITIES = ("opt", "fil_opt", "sar", "fil_sar")   # PyTorch order


# --------------------------------------------------------------------------
# Fused kernel: backbone projection + global max-pool + latent head + l2norm
# --------------------------------------------------------------------------
def dcmhn_kernel(x_ref, wbb_ref, bbb_ref, wlat_ref, blat_ref,
                 feat_ref, vec_ref, g_scr, xf_scr):
    """
    x_ref    : (TN, C, G3, SUB) bf16  image block; HW split as (G3, SUB)
    wbb_ref  : (C, POOL_DIM)    bf16  stand-in 1x1-conv weight
    bbb_ref  : (1, POOL_DIM)    f32   its bias
    wlat_ref : (POOL_DIM, LOW_PAD) f32 latent weight, zero-padded lanes
    blat_ref : (1, LOW_PAD)     f32
    feat_ref : (TN, POOL_DIM)   f32   l2-normalized pooled feature (out_feat)
    vec_ref  : (TN, LOW_PAD)    f32   l2-normalized latent vector  (out_vec)
    g_scr    : (TN, POOL_DIM)   f32   running spatial max (pre bias/ReLU)
    xf_scr   : (TN, C, G3, SUB) f32   f32 copy of the current x block
    """
    k = pl.program_id(1)
    tn, c_in, g3, sub = x_ref.shape

    @pl.when(k == 0)
    def _init():
        g_scr[...] = jnp.full(g_scr.shape, -jnp.inf, dtype=g_scr.dtype)

    # One bf16 -> f32 conversion of the whole block: the dynamic spatial
    # slicing below then runs on an unpacked f32 ref (elementwise math stays
    # f32, which is also the v5e-safe path).
    xf_scr[...] = x_ref[...].astype(jnp.float32)

    # Hoist the per-channel weight rows out of the spatial loop (JAX does not
    # CSE broadcast_in_dim).
    w_rows = [wbb_ref[pl.ds(c, 1), :].astype(jnp.float32).reshape(1, 1, POOL_DIM)
              for c in range(c_in)]

    def spatial_tile(s, carry):
        # (TN, C, 1, SUB): dynamic offset only on a non-minor (sublane) dim.
        xs = xf_scr[:, :, pl.ds(s, 1), :]
        # Batched over all TN images at once: C broadcast multiply-adds on the
        # VPU building the (TN, SUB, POOL_DIM) scores for SUB spatial points.
        acc = xs[:, 0, 0, :, None] * w_rows[0]
        for c in range(1, c_in):               # static & tiny (C channels)
            acc = acc + xs[:, c, 0, :, None] * w_rows[c]
        # Single full-tile running-max update for the whole image block
        # (no per-image masked (1, 2048) read-modify-writes).
        g_scr[...] = jnp.maximum(g_scr[...], jnp.max(acc, axis=1))
        return carry

    if g3 == 1:
        spatial_tile(0, 0)                     # fully static slice
    else:
        jax.lax.fori_loop(0, g3, spatial_tile, 0)

    @pl.when(k == pl.num_programs(1) - 1)
    def _finalize():
        # bias-add and ReLU commute with the spatial max (both monotone), so
        # they are applied once per image instead of once per spatial point.
        g = jnp.maximum(g_scr[...] + bbb_ref[...], 0.0)        # (TN, POOL_DIM)
        pool = jnp.dot(g, wlat_ref[...],
                       preferred_element_type=jnp.float32) + blat_ref[...]
        feat_ref[...] = g * jax.lax.rsqrt(
            jnp.sum(g * g, axis=1, keepdims=True) + EPS)
        vec_ref[...] = pool * jax.lax.rsqrt(
            jnp.sum(pool * pool, axis=1, keepdims=True) + EPS)


def _pick_tiles(N, HW):
    """Returns (TN images/block, SUB lane tile, n_tiles = HW//SUB, G3 tiles/step)."""
    # Images per block.  Bounded so the (TN, SUB, POOL_DIM) f32 scores block
    # built per inner iteration stays ~4 MiB (v7x has only 64 MiB VMEM), and
    # so the parallel image axis keeps >= 2 grid steps when N allows.
    if N >= 32 and N % 16 == 0:
        tn = 16
    elif N >= 8 and N % 8 == 0:
        tn = 8
    else:
        tn = N
    # Lane-dim spatial tile of the free wrapper reshape HW -> (n_tiles, SUB).
    sub = max(1, min(HW, 512 // max(tn, 1)))
    while HW % sub:
        sub -= 1
    n_tiles = HW // sub
    # Spatial tiles per grid step: ~1-2K spatial points per step so the x DMA
    # has a decent size and the ~0.35us per-step overhead is amortized.  Must
    # be a multiple of 8 (sublane tiling) or the full extent.
    g3 = n_tiles
    if n_tiles > 8:
        for cand in (max(8, 2048 // sub), max(8, 1024 // sub), 8):
            if cand % 8 == 0 and n_tiles % cand == 0:
                g3 = cand
                break
    return tn, sub, n_tiles, g3


def dcmhn_apply(x, w_bb, b_bb, w_lat, b_lat):
    """x: (N, C, HW) float32 (NCHW with H*W flattened -- a free reshape)."""
    N, C, HW = x.shape
    tn, sub, n_tiles, g3 = _pick_tiles(N, HW)

    # Free row-major split of HW; bf16 storage for the two big input streams
    # (the kernel accumulates in f32).
    x4 = x.reshape(N, C, n_tiles, sub).astype(jnp.bfloat16)
    w_bb_b = w_bb.astype(jnp.bfloat16)

    # Latent weights / bias zero-padded to a full 128-lane tile; the padded
    # columns are zero so the L2 norm over LOW_PAD columns equals the norm
    # over the real 32 columns.
    w_lat_p = jnp.zeros((POOL_DIM, LOW_PAD), jnp.float32).at[:, :LOW_DIM].set(w_lat)
    b_lat_p = jnp.zeros((1, LOW_PAD), jnp.float32).at[:, :LOW_DIM].set(
        b_lat.reshape(1, LOW_DIM))

    grid = (N // tn, n_tiles // g3)

    # Explicit VMEM budget (v5e scoped default is only 16 MiB; v7x total is
    # 64 MiB): scores block x4 for elementwise temporaries, double-buffered
    # input/weight/output blocks, plus the two scratches and headroom.
    sub_pad = 128 * pl.cdiv(sub, 128)
    acc_bytes = tn * sub * POOL_DIM * 4
    x_blk = tn * C * g3 * sub_pad * 2
    w_blk = (C * POOL_DIM * 2 + POOL_DIM * 4
             + POOL_DIM * LOW_PAD * 4 + LOW_PAD * 4)
    out_blk = tn * (POOL_DIM + LOW_PAD) * 4
    scratch_bytes = tn * POOL_DIM * 4 + tn * C * g3 * sub_pad * 4
    vmem_limit = int(4 * acc_bytes + 2 * (x_blk + w_blk + out_blk)
                     + scratch_bytes + (8 << 20))
    vmem_limit = min(vmem_limit, 48 << 20)

    cost = pl.CostEstimate(
        flops=int(2 * N * HW * C * POOL_DIM + 2 * N * POOL_DIM * LOW_PAD),
        transcendentals=int(2 * N),
        bytes_accessed=int(N * C * HW * 2 + C * POOL_DIM * 2 + POOL_DIM * 4
                           + POOL_DIM * LOW_PAD * 4 + LOW_PAD * 4
                           + N * (POOL_DIM + LOW_PAD) * 4),
    )

    out_feat, out_vec_p = pl.pallas_call(
        dcmhn_kernel,
        out_shape=(
            jax.ShapeDtypeStruct((N, POOL_DIM), jnp.float32),   # out_feat
            jax.ShapeDtypeStruct((N, LOW_PAD), jnp.float32),    # out_vec (padded)
        ),
        grid_spec=pltpu.PrefetchScalarGridSpec(
            num_scalar_prefetch=0,
            grid=grid,
            in_specs=[
                pl.BlockSpec((tn, C, g3, sub), lambda i, k: (i, 0, k, 0)),
                pl.BlockSpec((C, POOL_DIM), lambda i, k: (0, 0)),
                pl.BlockSpec((1, POOL_DIM), lambda i, k: (0, 0)),
                pl.BlockSpec((POOL_DIM, LOW_PAD), lambda i, k: (0, 0)),
                pl.BlockSpec((1, LOW_PAD), lambda i, k: (0, 0)),
            ],
            out_specs=(
                pl.BlockSpec((tn, POOL_DIM), lambda i, k: (i, 0)),
                pl.BlockSpec((tn, LOW_PAD), lambda i, k: (i, 0)),
            ),
            scratch_shapes=[
                pltpu.VMEM((tn, POOL_DIM), jnp.float32),        # running max
                pltpu.VMEM((tn, C, g3, sub), jnp.float32),      # f32 x block
            ],
        ),
        compiler_params=pltpu.CompilerParams(
            dimension_semantics=("parallel", "arbitrary"),
            vmem_limit_bytes=vmem_limit),
        cost_estimate=cost,
    )(x4, w_bb_b, b_bb, w_lat_p, b_lat_p)
    return out_feat, out_vec_p[:, :LOW_DIM]


# --------------------------------------------------------------------------
# Full forward (training-branch semantics; no batch-dim concat materialized).
# --------------------------------------------------------------------------
def dcmhn_forward(data, params):
    out = {}
    for m in MODALITIES:
        d = data[m]
        x = d["feat"]
        N, C, H, W = x.shape
        feat, vec = dcmhn_apply(x.reshape(N, C, H * W),
                                params["w_bb"], params["b_bb"],
                                params["w_lat"], params["b_lat"])
        out[m] = dict(d, out_feat=feat, out_vec=vec)
    return out


# --------------------------------------------------------------------------
# Pure-JAX reference for the correctness check (same bf16-rounded inputs).
# --------------------------------------------------------------------------
def reference_forward(data, params):
    wb = params["w_bb"].astype(jnp.bfloat16).astype(jnp.float32)
    l2 = lambda v: v / jnp.sqrt(jnp.sum(v * v, axis=1, keepdims=True) + EPS)
    feats, vecs = [], []
    for m in MODALITIES:
        x = data[m]["feat"]
        N, C, H, W = x.shape
        xb = x.reshape(N, C, H * W).astype(jnp.bfloat16).astype(jnp.float32)
        scores = jnp.einsum("nch,cp->nhp", xb, wb)            # (N, HW, 2048)
        act = jnp.maximum(scores + params["b_bb"][0], 0.0)    # conv bias + ReLU
        g = jnp.max(act, axis=1)                              # AdaptiveMaxPool2d
        pool = g @ params["w_lat"] + params["b_lat"][0]
        feats.append(l2(g))
        vecs.append(l2(pool))
    return jnp.concatenate(feats, axis=0), jnp.concatenate(vecs, axis=0)


def _run_case(key, B, C, H, W, params):
    feats = jax.random.normal(key, (4, B, C, H, W), dtype=jnp.float32)
    data = {m: {"feat": feats[i]} for i, m in enumerate(MODALITIES)}

    out = jax.block_until_ready(dcmhn_forward(data, params))

    ref_feat, ref_vec = reference_forward(data, params)
    got_feat = jnp.concatenate([out[m]["out_feat"] for m in MODALITIES], axis=0)
    got_vec = jnp.concatenate([out[m]["out_vec"] for m in MODALITIES], axis=0)
    assert got_feat.shape == (4 * B, POOL_DIM), got_feat.shape
    assert got_vec.shape == (4 * B, LOW_DIM), got_vec.shape
    assert jnp.allclose(got_feat, ref_feat, atol=2e-3, rtol=2e-3), \
        float(jnp.max(jnp.abs(got_feat - ref_feat)))
    assert jnp.allclose(got_vec, ref_vec, atol=2e-3, rtol=2e-3), \
        float(jnp.max(jnp.abs(got_vec - ref_vec)))


if __name__ == "__main__":
    key = jax.random.PRNGKey(0)
    k1, k2, k_wbb, k_bbb, k_wl, k_bl = jax.random.split(key, 6)

    C = 3
    params = {
        "w_bb": jax.random.normal(k_wbb, (C, POOL_DIM), jnp.float32) * 0.1,
        "b_bb": jax.random.normal(k_bbb, (1, POOL_DIM), jnp.float32) * 0.01,
        "w_lat": jax.random.normal(k_wl, (POOL_DIM, LOW_DIM), jnp.float32) * 0.02,
        "b_lat": jax.random.normal(k_bl, (1, LOW_DIM), jnp.float32) * 0.01,
    }

    # Small case: per-modality N = 2, HW = 256 -> grid (1, 1), single static
    # spatial tile.
    _run_case(k1, 2, C, 16, 16, params)
    # Larger case: per-modality N = 4, HW = 1024 -> grid (1, 1) with an
    # 8-iteration in-kernel spatial fori_loop (exercises the running max).
    _run_case(k2, 4, C, 32, 32, params)

    print("KERNEL_OK")
</pallas_src>

<mosaic_0001>
module attributes {stable_mosaic.version = 11 : i64} {
  func.func @dcmhn_kernel(%arg0: i32, %arg1: i32, %arg2: memref<2x3x1x256xbf16, #tpu.memory_space<vmem>>, %arg3: memref<3x2048xbf16, #tpu.memory_space<vmem>>, %arg4: memref<1x2048xf32, #tpu.memory_space<vmem>>, %arg5: memref<2048x128xf32, #tpu.memory_space<vmem>>, %arg6: memref<1x128xf32, #tpu.memory_space<vmem>>, %arg7: memref<2x2048xf32, #tpu.memory_space<vmem>>, %arg8: memref<2x128xf32, #tpu.memory_space<vmem>>, %arg9: memref<2x2048xf32, #tpu.memory_space<vmem>>, %arg10: memref<2x3x1x256xf32, #tpu.memory_space<vmem>>) attributes {dimension_semantics = [#tpu.dimension_semantics<parallel>, #tpu.dimension_semantics<arbitrary>], iteration_bounds = array<i64: 1, 1>, scalar_prefetch = 0 : i64, scratch_operands = 2 : i64, tpu.core_type = #tpu.core_type<tc>, window_params = [{transform_indices = @transform_0, window_bounds = array<i64: 2, 3, 1, 256>}, {pipeline_mode = #tpu.pipeline_mode<synchronous>, transform_indices = @transform_1, window_bounds = array<i64: 3, 2048>}, {pipeline_mode = #tpu.pipeline_mode<synchronous>, transform_indices = @transform_2, window_bounds = array<i64: 1, 2048>}, {pipeline_mode = #tpu.pipeline_mode<synchronous>, transform_indices = @transform_3, window_bounds = array<i64: 2048, 128>}, {pipeline_mode = #tpu.pipeline_mode<synchronous>, transform_indices = @transform_4, window_bounds = array<i64: 1, 128>}, {transform_indices = @transform_5, window_bounds = array<i64: 2, 2048>}, {transform_indices = @transform_6, window_bounds = array<i64: 2, 128>}]} {
    %c0_i32 = arith.constant 0 : i32
    %0 = arith.cmpi eq, %arg1, %c0_i32 : i32
    %1 = arith.extui %0 : i1 to i32
    %c0_i32_0 = arith.constant 0 : i32
    %2 = arith.cmpi ne, %1, %c0_i32_0 : i32
    scf.if %2 {
      %cst_22 = arith.constant 0xFF800000 : f32
      %43 = vector.broadcast %cst_22 : f32 to vector<2x2048xf32>
      %c0_23 = arith.constant 0 : index
      %c0_24 = arith.constant 0 : index
      %44 = vector.load %arg9[%c0_23, %c0_24] : memref<2x2048xf32, #tpu.memory_space<vmem>>, vector<2x2048xf32>
      tpu.vector_store %arg9[%c0_23, %c0_24], %43 {strides = array<i32>} : memref<2x2048xf32, #tpu.memory_space<vmem>>, vector<2x2048xf32>,
    } else {
    }
    %c0 = arith.constant 0 : index
    %c0_1 = arith.constant 0 : index
    %c0_2 = arith.constant 0 : index
    %c0_3 = arith.constant 0 : index
    %3 = vector.load %arg2[%c0, %c0_1, %c0_2, %c0_3] : memref<2x3x1x256xbf16, #tpu.memory_space<vmem>>, vector<2x3x1x256xbf16>
    %4 = arith.extf %3 : vector<2x3x1x256xbf16> to vector<2x3x1x256xf32>
    %c0_4 = arith.constant 0 : index
    %c0_5 = arith.constant 0 : index
    %c0_6 = arith.constant 0 : index
    %c0_7 = arith.constant 0 : index
    %5 = vector.load %arg10[%c0_4, %c0_5, %c0_6, %c0_7] : memref<2x3x1x256xf32, #tpu.memory_space<vmem>>, vector<2x3x1x256xf32>
    tpu.vector_store %arg10[%c0_4, %c0_5, %c0_6, %c0_7], %4 {strides = array<i32>} : memref<2x3x1x256xf32, #tpu.memory_space<vmem>>, vector<2x3x1x256xf32>,
    %c0_8 = arith.constant 0 : index
    %c0_9 = arith.constant 0 : index
    %6 = vector.load %arg3[%c0_8, %c0_9] : memref<3x2048xbf16, #tpu.memory_space<vmem>>, vector<1x2048xbf16>
    %7 = arith.extf %6 : vector<1x2048xbf16> to vector<1x2048xf32>
    %8 = vector.shape_cast %7 : vector<1x2048xf32> to vector<1x1x2048xf32>
    %c1 = arith.constant 1 : index
    %c0_10 = arith.constant 0 : index
    %9 = vector.load %arg3[%c1, %c0_10] : memref<3x2048xbf16, #tpu.memory_space<vmem>>, vector<1x2048xbf16>
    %10 = arith.extf %9 : vector<1x2048xbf16> to vector<1x2048xf32>
    %11 = vector.shape_cast %10 : vector<1x2048xf32> to vector<1x1x2048xf32>
    %c2 = arith.constant 2 : index
    %c0_11 = arith.constant 0 : index
    %12 = vector.load %arg3[%c2, %c0_11] : memref<3x2048xbf16, #tpu.memory_space<vmem>>, vector<1x2048xbf16>
    %13 = arith.extf %12 : vector<1x2048xbf16> to vector<1x2048xf32>
    %14 = vector.shape_cast %13 : vector<1x2048xf32> to vector<1x1x2048xf32>
    %c0_12 = arith.constant 0 : index
    %c0_13 = arith.constant 0 : index
    %c0_14 = arith.constant 0 : index
    %c0_15 = arith.constant 0 : index
    %15 = vector.load %arg10[%c0_12, %c0_13, %c0_14, %c0_15] : memref<2x3x1x256xf32, #tpu.memory_space<vmem>>, vector<2x3x1x256xf32>
    %16 = vector.extract_strided_slice %15 {offsets = [0, 0, 0, 0], sizes = [2, 1, 1, 256], strides = [1, 1, 1, 1]} : vector<2x3x1x256xf32> to vector<2x1x1x256xf32>
    %17 = vector.shape_cast %16 : vector<2x1x1x256xf32> to vector<2x256xf32>
    %18 = vector.shape_cast %17 : vector<2x256xf32> to vector<2x256x1xf32>
    %19 = vector.broadcast %18 : vector<2x256x1xf32> to vector<2x256x2048xf32>
    %20 = vector.broadcast %8 : vector<1x1x2048xf32> to vector<2x256x2048xf32>
    %21 = arith.mulf %19, %20 : vector<2x256x2048xf32>
    %22 = vector.extract_strided_slice %15 {offsets = [0, 1, 0, 0], sizes = [2, 1, 1, 256], strides = [1, 1, 1, 1]} : vector<2x3x1x256xf32> to vector<2x1x1x256xf32>
    %23 = vector.shape_cast %22 : vector<2x1x1x256xf32> to vector<2x256xf32>
    %24 = vector.shape_cast %23 : vector<2x256xf32> to vector<2x256x1xf32>
    %25 = vector.broadcast %24 : vector<2x256x1xf32> to vector<2x256x2048xf32>
    %26 = vector.broadcast %11 : vector<1x1x2048xf32> to vector<2x256x2048xf32>
    %27 = arith.mulf %25, %26 : vector<2x256x2048xf32>
    %28 = arith.addf %21, %27 : vector<2x256x2048xf32>
    %29 = vector.extract_strided_slice %15 {offsets = [0, 2, 0, 0], sizes = [2, 1, 1, 256], strides = [1, 1, 1, 1]} : vector<2x3x1x256xf32> to vector<2x1x1x256xf32>
    %30 = vector.shape_cast %29 : vector<2x1x1x256xf32> to vector<2x256xf32>
    %31 = vector.shape_cast %30 : vector<2x256xf32> to vector<2x256x1xf32>
    %32 = vector.broadcast %31 : vector<2x256x1xf32> to vector<2x256x2048xf32>
    %33 = vector.broadcast %14 : vector<1x1x2048xf32> to vector<2x256x2048xf32>
    %34 = arith.mulf %32, %33 : vector<2x256x2048xf32>
    %35 = arith.addf %28, %34 : vector<2x256x2048xf32>
    %c0_16 = arith.constant 0 : index
    %c0_17 = arith.constant 0 : index
    %36 = vector.load %arg9[%c0_16, %c0_17] : memref<2x2048xf32, #tpu.memory_space<vmem>>, vector<2x2048xf32>
    %cst = arith.constant dense<0xFF800000> : vector<2x2048xf32>
    %37 = vector.multi_reduction <maximumf>, %35, %cst [1] : vector<2x256x2048xf32> to vector<2x2048xf32>
    %38 = arith.maximumf %36, %37 : vector<2x2048xf32>
    %c0_18 = arith.constant 0 : index
    %c0_19 = arith.constant 0 : index
    %39 = vector.load %arg9[%c0_18, %c0_19] : memref<2x2048xf32, #tpu.memory_space<vmem>>, vector<2x2048xf32>
    tpu.vector_store %arg9[%c0_18, %c0_19], %38 {strides = array<i32>} : memref<2x2048xf32, #tpu.memory_space<vmem>>, vector<2x2048xf32>,
    %c0_i32_20 = arith.constant 0 : i32
    %40 = arith.cmpi eq, %arg1, %c0_i32_20 : i32
    %41 = arith.extui %40 : i1 to i32
    %c0_i32_21 = arith.constant 0 : i32
    %42 = arith.cmpi ne, %41, %c0_i32_21 : i32
    scf.if %42 {
      %c0_22 = arith.constant 0 : index
      %c0_23 = arith.constant 0 : index
      %43 = vector.load %arg9[%c0_22, %c0_23] : memref<2x2048xf32, #tpu.memory_space<vmem>>, vector<2x2048xf32>
      %c0_24 = arith.constant 0 : index
      %c0_25 = arith.constant 0 : index
      %44 = vector.load %arg4[%c0_24, %c0_25] : memref<1x2048xf32, #tpu.memory_space<vmem>>, vector<1x2048xf32>
      %45 = vector.broadcast %44 : vector<1x2048xf32> to vector<2x2048xf32>
      %46 = arith.addf %43, %45 : vector<2x2048xf32>
      %cst_26 = arith.constant 0.000000e+00 : f32
      %47 = vector.broadcast %cst_26 : f32 to vector<2x2048xf32>
      %48 = arith.maximumf %46, %47 : vector<2x2048xf32>
      %c0_27 = arith.constant 0 : index
      %c0_28 = arith.constant 0 : index
      %49 = vector.load %arg5[%c0_27, %c0_28] : memref<2048x128xf32, #tpu.memory_space<vmem>>, vector<2048x128xf32>
      %cst_29 = arith.constant dense<0.000000e+00> : vector<2x128xf32>
      %50 = tpu.matmul %48, %49, %cst_29 {dimension_numbers = #tpu.dot_dimension_numbers<[1], [0], [0], [1], [0, 0, 1, 1], [], []>} : vector<2x2048xf32>, vector<2048x128xf32>, vector<2x128xf32> -> vector<2x128xf32>
      %c0_30 = arith.constant 0 : index
      %c0_31 = arith.constant 0 : index
      %51 = vector.load %arg6[%c0_30, %c0_31] : memref<1x128xf32, #tpu.memory_space<vmem>>, vector<1x128xf32>
      %52 = vector.broadcast %51 : vector<1x128xf32> to vector<2x128xf32>
      %53 = arith.addf %50, %52 : vector<2x128xf32>
      %54 = arith.mulf %48, %48 : vector<2x2048xf32>
      %cst_32 = arith.constant dense<0.000000e+00> : vector<2xf32>
      %55 = vector.multi_reduction <add>, %54, %cst_32 [1] : vector<2x2048xf32> to vector<2xf32>
      %56 = vector.shape_cast %55 : vector<2xf32> to vector<2x1xf32>
      %cst_33 = arith.constant 9.99999996E-13 : f32
      %57 = vector.broadcast %cst_33 : f32 to vector<2x1xf32>
      %58 = arith.addf %56, %57 : vector<2x1xf32>
      %59 = math.rsqrt %58 : vector<2x1xf32>
      %60 = vector.broadcast %59 : vector<2x1xf32> to vector<2x2048xf32>
      %61 = arith.mulf %48, %60 : vector<2x2048xf32>
      %c0_34 = arith.constant 0 : index
      %c0_35 = arith.constant 0 : index
      %62 = vector.load %arg7[%c0_34, %c0_35] : memref<2x2048xf32, #tpu.memory_space<vmem>>, vector<2x2048xf32>
      tpu.vector_store %arg7[%c0_34, %c0_35], %61 {strides = array<i32>} : memref<2x2048xf32, #tpu.memory_space<vmem>>, vector<2x2048xf32>,
      %63 = arith.mulf %53, %53 : vector<2x128xf32>
      %cst_36 = arith.constant dense<0.000000e+00> : vector<2xf32>
      %64 = vector.multi_reduction <add>, %63, %cst_36 [1] : vector<2x128xf32> to vector<2xf32>
      %65 = vector.shape_cast %64 : vector<2xf32> to vector<2x1xf32>
      %cst_37 = arith.constant 9.99999996E-13 : f32
      %66 = vector.broadcast %cst_37 : f32 to vector<2x1xf32>
      %67 = arith.addf %65, %66 : vector<2x1xf32>
      %68 = math.rsqrt %67 : vector<2x1xf32>
      %69 = vector.broadcast %68 : vector<2x1xf32> to vector<2x128xf32>
      %70 = arith.mulf %53, %69 : vector<2x128xf32>
      %c0_38 = arith.constant 0 : index
      %c0_39 = arith.constant 0 : index
      %71 = vector.load %arg8[%c0_38, %c0_39] : memref<2x128xf32, #tpu.memory_space<vmem>>, vector<2x128xf32>
      tpu.vector_store %arg8[%c0_38, %c0_39], %70 {strides = array<i32>} : memref<2x128xf32, #tpu.memory_space<vmem>>, vector<2x128xf32>,
    } else {
    }
    return
  }
  func.func @transform_0(%arg0: i32, %arg1: i32) -> (i32, i32, i32, i32) {
    %c0_i32 = arith.constant 0 : i32
    %c0_i32_0 = arith.constant 0 : i32
    %c0_i32_1 = arith.constant 0 : i32
    return %arg0, %c0_i32, %arg1, %c0_i32_0 : i32, i32, i32, i32
  }
  func.func @transform_1(%arg0: i32, %arg1: i32) -> (i32, i32) {
    %c0_i32 = arith.constant 0 : i32
    %c0_i32_0 = arith.constant 0 : i32
    %c0_i32_1 = arith.constant 0 : i32
    return %c0_i32, %c0_i32_0 : i32, i32
  }
  func.func @transform_2(%arg0: i32, %arg1: i32) -> (i32, i32) {
    %c0_i32 = arith.constant 0 : i32
    %c0_i32_0 = arith.constant 0 : i32
    %c0_i32_1 = arith.constant 0 : i32
    return %c0_i32, %c0_i32_0 : i32, i32
  }
  func.func @transform_3(%arg0: i32, %arg1: i32) -> (i32, i32) {
    %c0_i32 = arith.constant 0 : i32
    %c0_i32_0 = arith.constant 0 : i32
    %c0_i32_1 = arith.constant 0 : i32
    return %c0_i32, %c0_i32_0 : i32, i32
  }
  func.func @transform_4(%arg0: i32, %arg1: i32) -> (i32, i32) {
    %c0_i32 = arith.constant 0 : i32
    %c0_i32_0 = arith.constant 0 : i32
    %c0_i32_1 = arith.constant 0 : i32
    return %c0_i32, %c0_i32_0 : i32, i32
  }
  func.func @transform_5(%arg0: i32, %arg1: i32) -> (i32, i32) {
    %c0_i32 = arith.constant 0 : i32
    %c0_i32_0 = arith.constant 0 : i32
    return %arg0, %c0_i32 : i32, i32
  }
  func.func @transform_6(%arg0: i32, %arg1: i32) -> (i32, i32) {
    %c0_i32 = arith.constant 0 : i32
    %c0_i32_0 = arith.constant 0 : i32
    return %arg0, %c0_i32 : i32, i32
  }
}

</mosaic_0001>

<llo_original>
// kernel: tpu_custom_call.1
$region0: #{tpu_custom_call.1}
  #allocation0 [shape = 'u32[]', space=smem, size = 0x4, offset = 0x4, fixed_abs, tag = 'smem constant byte address 0x4 - core index']
  #allocation1 [shape = 'u32[144,128]{1,0:T(1,128)}', space=vmem, size = 0x12000, scoped, tag = 'internal scratch']
  #allocation2 [shape = 'f32[2,2048]{1,0:T(2,128)}', space=vmem, size = 0x4000, scoped, tag = 'scratch operand']
  #allocation3 [shape = 'f32[2,3,1,256]{3,2,1,0:T(1,128)}', space=vmem, size = 0x1800, scoped, tag = 'scratch operand']
  %s0 = inlined_call_operand.vmem [shape: bf16[2,3,1,256], index: 0, kind: input, shape index: {}]
  %s1 = inlined_call_operand.hbm [shape: bf16[3,2048], index: 1, kind: input, shape index: {}]
  %s2 = inlined_call_operand.vmem [shape: f32[1,2048], index: 2, kind: input, shape index: {}]
  %s3 = inlined_call_operand.hbm [shape: f32[2048,128], index: 3, kind: input, shape index: {}]
  %s4 = inlined_call_operand.vmem [shape: f32[1,128], index: 4, kind: input, shape index: {}]
  %s5 = inlined_call_operand.hbm [shape: f32[2,2048], index: 5, kind: output, shape index: {0}]
  %s6 = inlined_call_operand.hbm [shape: f32[2,128], index: 6, kind: output, shape index: {1}]
  %7 = xla_tuple %s5, %s6
  %s8 = sld [smem:[#allocation0]]
  $region54: #{tpu_custom_call.1} parent=0
    _
  %s10 = ssub.s32 1, %s8
  %s11 = scalar_select 0, %s10, %s8
  $region1: #{tpu_custom_call.1} parent=0
    #allocation4 [shape = 'u8[16384]{0}', space=vmem, size = 0x4000, scoped, tag = 'input window, operand 1, single buffered']
    #allocation5 [shape = 's32[1]{0}', space=sflag, size = 0x4, scoped, tag = 'scoped memory for tpu_custom_call.1']
    #allocation6 [shape = 's32[1]{0}', space=sflag, size = 0x4, scoped, tag = 'scoped memory for tpu_custom_call.1']
    #allocation7 [shape = 'u8[1048576]{0}', space=vmem, size = 0x100000, scoped, tag = 'input window, operand 3, single buffered']
    #allocation8 [shape = 's32[1]{0}', space=sflag, size = 0x4, scoped, tag = 'scoped memory for tpu_custom_call.1']
    #allocation9 [shape = 'u8[16384]{0}', space=vmem, size = 0x4000, scoped, tag = 'output window, operand 0, single buffered']
    #allocation10 [shape = 'u8[1024]{0}', space=vmem, size = 0x400, scoped, tag = 'output window, operand 1, single buffered']
    #allocation11 [shape = 's32[1]{0}', space=sflag, size = 0x4, scoped, tag = 'scoped memory for tpu_custom_call.1']
    %12 = vsyncpa [#allocation5], 0
    %13 = vsyncpa [#allocation8], 0
    %14 = vsyncpa [#allocation6], 0
    %15 = vsyncpa [#allocation11], 0
    // Predicated region
    $region2: #{tpu_custom_call.1} parent=1 // pred_check
      _
    $region3: #{tpu_custom_call.1} parent=1 // pred_check_branch
      %17 = sbr.rel (0) target = $region5
    $region4: #{tpu_custom_call.1} parent=1 // pred_region
      _
    $region5: #{tpu_custom_call.1} parent=1 // pred_fallthru
      _
    // Predicated region
    $region6: #{tpu_custom_call.1} parent=1 // pred_check
      _
    $region7: #{tpu_custom_call.1} parent=1 // pred_check_branch
      %19 = sbr.rel (0) target = $region9
    $region8: #{tpu_custom_call.1} parent=1 // pred_region
      %s21 = ssub.s32 512, 512
      %22 = vsyncadd [#allocation5], %s21
      %s24 = sshll.u32 [#allocation4], 4
      %s25 = int_to_ptr.vmem [resolvable:$true] %s24
      %27 = dma.hbm_to_vmem [thread:$0]  %s1, 512, %s25, [#allocation5]
    $region9: #{tpu_custom_call.1} parent=1 // pred_fallthru
      _
    // Predicated region
    $region10: #{tpu_custom_call.1} parent=1 // pred_check
      _
    $region11: #{tpu_custom_call.1} parent=1 // pred_check_branch
      %29 = sbr.rel (0) target = $region13
    $region12: #{tpu_custom_call.1} parent=1 // pred_region
      _
    $region13: #{tpu_custom_call.1} parent=1 // pred_fallthru
      _
    // Predicated region
    $region14: #{tpu_custom_call.1} parent=1 // pred_check
      _
    $region15: #{tpu_custom_call.1} parent=1 // pred_check_branch
      %31 = sbr.rel (0) target = $region17
    $region16: #{tpu_custom_call.1} parent=1 // pred_region
      %s33 = ssub.s32 32768, 32768
      %34 = vsyncadd [#allocation8], %s33
      %s35 = sshll.u32 [#allocation7], 4
      %s36 = int_to_ptr.vmem [resolvable:$true] %s35
      %41 = dma.hbm_to_vmem [thread:$0]  %s3, 32768, %s36, [#allocation8], 128, 128, 8
    $region17: #{tpu_custom_call.1} parent=1 // pred_fallthru
      _
    // Predicated region
    $region18: #{tpu_custom_call.1} parent=1 // pred_check
      _
    $region19: #{tpu_custom_call.1} parent=1 // pred_check_branch
      %43 = sbr.rel (0) target = $region21
    $region20: #{tpu_custom_call.1} parent=1 // pred_region
      _
    $region21: #{tpu_custom_call.1} parent=1 // pred_fallthru
      _
    // Predicated region
    $region22: #{tpu_custom_call.1} parent=1 // pred_check
      _
    $region23: #{tpu_custom_call.1} parent=1 // pred_check_branch
      %45 = sbr.rel (0) target = $region25
    $region24: #{tpu_custom_call.1} parent=1 // pred_region
      %46 = dma.done [#allocation5], 512
    $region25: #{tpu_custom_call.1} parent=1 // pred_fallthru
      _
    // Predicated region
    $region26: #{tpu_custom_call.1} parent=1 // pred_check
      _
    $region27: #{tpu_custom_call.1} parent=1 // pred_check_branch
      %48 = sbr.rel (0) target = $region29
    $region28: #{tpu_custom_call.1} parent=1 // pred_region
      %49 = dma.done [#allocation8], 32768
    $region29: #{tpu_custom_call.1} parent=1 // pred_fallthru
      _
    %p50 = scmp.eq.s32.totalorder 0, 0
    // Predicated region
    $region30: #{tpu_custom_call.1} parent=1 // pred_check
      %p51 = pneg %p50
    $region31: #{tpu_custom_call.1} parent=1 // pred_check_branch
      %53 = sbr.rel (%p51) target = $region33
    $region32: #{tpu_custom_call.1} parent=1 // pred_region
      %54 = vst [vmem:[#allocation2] sm:$0xff] -inf
      %55 = vst [vmem:[#allocation2 + $0x8] sm:$0xff] -inf
      %56 = vst [vmem:[#allocation2 + $0x10] sm:$0xff] -inf
      %57 = vst [vmem:[#allocation2 + $0x18] sm:$0xff] -inf
    $region33: #{tpu_custom_call.1} parent=1 // pred_fallthru
      _
    %v58 = vld [vmem:[%s0] sm:$0x3]
    %v59 = vld [vmem:[%s0 + $0x2] sm:$0x3]
    %v60 = vld [vmem:[%s0 + $0x4] sm:$0x3]
    %v61 = vld [vmem:[%s0 + $0x6] sm:$0x3]
    %v62 = vld [vmem:[%s0 + $0x8] sm:$0x3]
    %v63 = vld [vmem:[%s0 + $0xa] sm:$0x3]
    %v64 = vunpack.c.l.bf16 %v58
    %v65 = vunpack.c.l.bf16 %v59
    %v66 = vunpack.c.l.bf16 %v60
    %v67 = vunpack.c.l.bf16 %v61
    %v68 = vunpack.c.l.bf16 %v62
    %v69 = vunpack.c.l.bf16 %v63
    %v77 = vunpack.c.l.s4 1966171168
    %v78 = vunpack.c.0.s8 %v77
    %v79 = vlaneseq
    %v80 = vshrl.u32 %v79, 7
    %v81 = vsub.s32 %v78, %v80
    %v82 = vrot.slane %v64, %v81
    %v84 = vunpack.c.l.s4 1966171168
    %v85 = vunpack.c.0.s8 %v84
    %v86 = vlaneseq
    %v87 = vshrl.u32 %v86, 7
    %v88 = vsub.s32 %v85, %v87
    %v89 = vrot.slane %v65, %v88
    %v91 = vunpack.c.l.s4 1966171168
    %v92 = vunpack.c.0.s8 %v91
    %v93 = vlaneseq
    %v94 = vshrl.u32 %v93, 7
    %v95 = vsub.s32 %v92, %v94
    %v96 = vrot.slane %v66, %v95
    %v98 = vunpack.c.l.s4 1966171168
    %v99 = vunpack.c.0.s8 %v98
    %v100 = vlaneseq
    %v101 = vshrl.u32 %v100, 7
    %v102 = vsub.s32 %v99, %v101
    %v103 = vrot.slane %v67, %v102
    %v105 = vunpack.c.l.s4 1966171168
    %v106 = vunpack.c.0.s8 %v105
    %v107 = vlaneseq
    %v108 = vshrl.u32 %v107, 7
    %v109 = vsub.s32 %v106, %v108
    %v110 = vrot.slane %v68, %v109
    %v112 = vunpack.c.l.s4 1966171168
    %v113 = vunpack.c.0.s8 %v112
    %v114 = vlaneseq
    %v115 = vshrl.u32 %v114, 7
    %v116 = vsub.s32 %v113, %v115
    %v117 = vrot.slane %v69, %v116
    %v124 = vlaneseq
    %vm125 = vcmp.ge.s32.totalorder %v124, 0
    %vm126 = vcmp.lt.s32.totalorder %v124, 256
    %vm127 = vmand %vm125, %vm126
    %128 = vst.msk [vmem:[#allocation3] sm:$0x3] %vm127, %v82
    %129 = vst.msk [vmem:[#allocation3 + $0x2] sm:$0x3] %vm127, %v89
    %130 = vst.msk [vmem:[#allocation3 + $0x4] sm:$0x3] %vm127, %v96
    %131 = vst.msk [vmem:[#allocation3 + $0x6] sm:$0x3] %vm127, %v103
    %132 = vst.msk [vmem:[#allocation3 + $0x8] sm:$0x3] %vm127, %v110
    %133 = vst.msk [vmem:[#allocation3 + $0xa] sm:$0x3] %vm127, %v117
    %v134 = vld [vmem:[#allocation4] sm:$0x55]
    %v135 = vld [vmem:[#allocation4 + $0x8] sm:$0x55]
    %v136 = vld [vmem:[#allocation4 + $0x10] sm:$0x55]
    %v137 = vld [vmem:[#allocation4 + $0x18] sm:$0x55]
    %v138 = vunpack.c.l.bf16 %v134
    %v139 = vunpack.c.h.bf16 %v134
    %v140 = vunpack.c.l.bf16 %v135
    %v141 = vunpack.c.h.bf16 %v135
    %v142 = vunpack.c.l.bf16 %v136
    %v143 = vunpack.c.h.bf16 %v136
    %v144 = vunpack.c.l.bf16 %v137
    %v145 = vunpack.c.h.bf16 %v137
    %v146 = vld [vmem:[#allocation4] sm:$0xaa]
    %v147 = vld [vmem:[#allocation4 + $0x8] sm:$0xaa]
    %v148 = vld [vmem:[#allocation4 + $0x10] sm:$0xaa]
    %v149 = vld [vmem:[#allocation4 + $0x18] sm:$0xaa]
    %v150 = vunpack.c.l.bf16 %v146
    %v151 = vunpack.c.h.bf16 %v146
    %v152 = vunpack.c.l.bf16 %v147
    %v153 = vunpack.c.h.bf16 %v147
    %v154 = vunpack.c.l.bf16 %v148
    %v155 = vunpack.c.h.bf16 %v148
    %v156 = vunpack.c.l.bf16 %v149
    %v157 = vunpack.c.h.bf16 %v149
    %v158 = vld [vmem:[#allocation3] sm:$0x3]
    %v159 = vld [vmem:[#allocation3 + $0x2] sm:$0x3]
    %v160 = vld [vmem:[#allocation3 + $0x4] sm:$0x3]
    %v161 = vld [vmem:[#allocation3 + $0x6] sm:$0x3]
    %v162 = vld [vmem:[#allocation3 + $0x8] sm:$0x3]
    %v163 = vld [vmem:[#allocation3 + $0xa] sm:$0x3]
    %v166 = vlaneseq
    %v167 = vshrl.u32 %v166, 7
    %v168 = vsub.s32 0, %v167
    %v169 = vrot.slane %v158, %v168
    %v170 = vlaneseq
    %v171 = vshrl.u32 %v170, 7
    %v172 = vsub.s32 1, %v171
    %v173 = vrot.slane %v158, %v172
    %v174 = vlaneseq
    %v175 = vshrl.u32 %v174, 7
    %v176 = vsub.s32 0, %v175
    %v177 = vrot.slane %v161, %v176
    %v178 = vlaneseq
    %v179 = vshrl.u32 %v178, 7
    %v180 = vsub.s32 1, %v179
    %v181 = vrot.slane %v161, %v180
    %v186 = vlaneseq
    %v187 = vshrl.u32 %v186, 7
    %v188 = vsub.s32 0, %v187
    %v189 = vrot.slane %v169, %v188
    %191 = vbcast.lane.b32.xlu0 %v189, 256
    %v192 = vpop.permute.xlu0 %191
    %s194 = sor.u32 256, 8
    %195 = vbcast.lane.b32.xlu0 %v189, %s194
    %v196 = vpop.permute.xlu0 %195
    %s198 = sor.u32 256, 16
    %199 = vbcast.lane.b32.xlu0 %v189, %s198
    %v200 = vpop.permute.xlu0 %199
    %s202 = sor.u32 256, 24
    %203 = vbcast.lane.b32.xlu0 %v189, %s202
    %v204 = vpop.permute.xlu0 %203
    %s206 = sor.u32 256, 32
    %207 = vbcast.lane.b32.xlu0 %v189, %s206
    %v208 = vpop.permute.xlu0 %207
    %s210 = sor.u32 256, 40
    %211 = vbcast.lane.b32.xlu0 %v189, %s210
    %v212 = vpop.permute.xlu0 %211
    %s214 = sor.u32 256, 48
    %215 = vbcast.lane.b32.xlu0 %v189, %s214
    %v216 = vpop.permute.xlu0 %215
    %s218 = sor.u32 256, 56
    %219 = vbcast.lane.b32.xlu0 %v189, %s218
    %v220 = vpop.permute.xlu0 %219
    %s222 = sor.u32 256, 64
    %223 = vbcast.lane.b32.xlu0 %v189, %s222
    %v224 = vpop.permute.xlu0 %223
    %s226 = sor.u32 256, 72
    %227 = vbcast.lane.b32.xlu0 %v189, %s226
    %v228 = vpop.permute.xlu0 %227
    %s230 = sor.u32 256, 80
    %231 = vbcast.lane.b32.xlu0 %v189, %s230
    %v232 = vpop.permute.xlu0 %231
    %s234 = sor.u32 256, 88
    %235 = vbcast.lane.b32.xlu0 %v189, %s234
    %v236 = vpop.permute.xlu0 %235
    %s238 = sor.u32 256, 96
    %239 = vbcast.lane.b32.xlu0 %v189, %s238
    %v240 = vpop.permute.xlu0 %239
    %s242 = sor.u32 256, 104
    %243 = vbcast.lane.b32.xlu0 %v189, %s242
    %v244 = vpop.permute.xlu0 %243
    %s246 = sor.u32 256, 112
    %247 = vbcast.lane.b32.xlu0 %v189, %s246
    %v248 = vpop.permute.xlu0 %247
    %s250 = sor.u32 256, 120
    %251 = vbcast.lane.b32.xlu0 %v189, %s250
    %v252 = vpop.permute.xlu0 %251
    %v253 = vlaneseq
    %v254 = vshrl.u32 %v253, 7
    %v255 = vsub.s32 0, %v254
    %v256 = vrot.slane %v173, %v255
    %258 = vbcast.lane.b32.xlu0 %v256, 256
    %v259 = vpop.permute.xlu0 %258
    %s261 = sor.u32 256, 8
    %262 = vbcast.lane.b32.xlu0 %v256, %s261
    %v263 = vpop.permute.xlu0 %262
    %s265 = sor.u32 256, 16
    %266 = vbcast.lane.b32.xlu0 %v256, %s265
    %v267 = vpop.permute.xlu0 %266
    %s269 = sor.u32 256, 24
    %270 = vbcast.lane.b32.xlu0 %v256, %s269
    %v271 = vpop.permute.xlu0 %270
    %s273 = sor.u32 256, 32
    %274 = vbcast.lane.b32.xlu0 %v256, %s273
    %v275 = vpop.permute.xlu0 %274
    %s277 = sor.u32 256, 40
    %278 = vbcast.lane.b32.xlu0 %v256, %s277
    %v279 = vpop.permute.xlu0 %278
    %s281 = sor.u32 256, 48
    %282 = vbcast.lane.b32.xlu0 %v256, %s281
    %v283 = vpop.permute.xlu0 %282
    %s285 = sor.u32 256, 56
    %286 = vbcast.lane.b32.xlu0 %v256, %s285
    %v287 = vpop.permute.xlu0 %286
    %s289 = sor.u32 256, 64
    %290 = vbcast.lane.b32.xlu0 %v256, %s289
    %v291 = vpop.permute.xlu0 %290
    %s293 = sor.u32 256, 72
    %294 = vbcast.lane.b32.xlu0 %v256, %s293
    %v295 = vpop.permute.xlu0 %294
    %s297 = sor.u32 256, 80
    %298 = vbcast.lane.b32.xlu0 %v256, %s297
    %v299 = vpop.permute.xlu0 %298
    %s301 = sor.u32 256, 88
    %302 = vbcast.lane.b32.xlu0 %v256, %s301
    %v303 = vpop.permute.xlu0 %302
    %s305 = sor.u32 256, 96
    %306 = vbcast.lane.b32.xlu0 %v256, %s305
    %v307 = vpop.permute.xlu0 %306
    %s309 = sor.u32 256, 104
    %310 = vbcast.lane.b32.xlu0 %v256, %s309
    %v311 = vpop.permute.xlu0 %310
    %s313 = sor.u32 256, 112
    %314 = vbcast.lane.b32.xlu0 %v256, %s313
    %v315 = vpop.permute.xlu0 %314
    %s317 = sor.u32 256, 120
    %318 = vbcast.lane.b32.xlu0 %v256, %s317
    %v319 = vpop.permute.xlu0 %318
    %v320 = vlaneseq
    %v321 = vshrl.u32 %v320, 7
    %v322 = vsub.s32 0, %v321
    %v323 = vrot.slane %v177, %v322
    %325 = vbcast.lane.b32.xlu0 %v323, 256
    %v326 = vpop.permute.xlu0 %325
    %s328 = sor.u32 256, 8
    %329 = vbcast.lane.b32.xlu0 %v323, %s328
    %v330 = vpop.permute.xlu0 %329
    %s332 = sor.u32 256, 16
    %333 = vbcast.lane.b32.xlu0 %v323, %s332
    %v334 = vpop.permute.xlu0 %333
    %s336 = sor.u32 256, 24
    %337 = vbcast.lane.b32.xlu0 %v323, %s336
    %v338 = vpop.permute.xlu0 %337
    %s340 = sor.u32 256, 32
    %341 = vbcast.lane.b32.xlu0 %v323, %s340
    %v342 = vpop.permute.xlu0 %341
    %s344 = sor.u32 256, 40
    %345 = vbcast.lane.b32.xlu0 %v323, %s344
    %v346 = vpop.permute.xlu0 %345
    %s348 = sor.u32 256, 48
    %349 = vbcast.lane.b32.xlu0 %v323, %s348
    %v350 = vpop.permute.xlu0 %349
    %s352 = sor.u32 256, 56
    %353 = vbcast.lane.b32.xlu0 %v323, %s352
    %v354 = vpop.permute.xlu0 %353
    %s356 = sor.u32 256, 64
    %357 = vbcast.lane.b32.xlu0 %v323, %s356
    %v358 = vpop.permute.xlu0 %357
    %s360 = sor.u32 256, 72
    %361 = vbcast.lane.b32.xlu0 %v323, %s360
    %v362 = vpop.permute.xlu0 %361
    %s364 = sor.u32 256, 80
    %365 = vbcast.lane.b32.xlu0 %v323, %s364
    %v366 = vpop.permute.xlu0 %365
    %s368 = sor.u32 256, 88
    %369 = vbcast.lane.b32.xlu0 %v323, %s368
    %v370 = vpop.permute.xlu0 %369
    %s372 = sor.u32 256, 96
    %373 = vbcast.lane.b32.xlu0 %v323, %s372
    %v374 = vpop.permute.xlu0 %373
    %s376 = sor.u32 256, 104
    %377 = vbcast.lane.b32.xlu0 %v323, %s376
    %v378 = vpop.permute.xlu0 %377
    %s380 = sor.u32 256, 112
    %381 = vbcast.lane.b32.xlu0 %v323, %s380
    %v382 = vpop.permute.xlu0 %381
    %s384 = sor.u32 256, 120
    %385 = vbcast.lane.b32.xlu0 %v323, %s384
    %v386 = vpop.permute.xlu0 %385
    %v387 = vlaneseq
    %v388 = vshrl.u32 %v387, 7
    %v389 = vsub.s32 0, %v388
    %v390 = vrot.slane %v181, %v389
    %392 = vbcast.lane.b32.xlu0 %v390, 256
    %v393 = vpop.permute.xlu0 %392
    %s395 = sor.u32 256, 8
    %396 = vbcast.lane.b32.xlu0 %v390, %s395
    %v397 = vpop.permute.xlu0 %396
    %s399 = sor.u32 256, 16
    %400 = vbcast.lane.b32.xlu0 %v390, %s399
    %v401 = vpop.permute.xlu0 %400
    %s403 = sor.u32 256, 24
    %404 = vbcast.lane.b32.xlu0 %v390, %s403
    %v405 = vpop.permute.xlu0 %404
    %s407 = sor.u32 256, 32
    %408 = vbcast.lane.b32.xlu0 %v390, %s407
    %v409 = vpop.permute.xlu0 %408
    %s411 = sor.u32 256, 40
    %412 = vbcast.lane.b32.xlu0 %v390, %s411
    %v413 = vpop.permute.xlu0 %412
    %s415 = sor.u32 256, 48
    %416 = vbcast.lane.b32.xlu0 %v390, %s415
    %v417 = vpop.permute.xlu0 %416
    %s419 = sor.u32 256, 56
    %420 = vbcast.lane.b32.xlu0 %v390, %s419
    %v421 = vpop.permute.xlu0 %420
    %s423 = sor.u32 256, 64
    %424 = vbcast.lane.b32.xlu0 %v390, %s423
    %v425 = vpop.permute.xlu0 %424
    %s427 = sor.u32 256, 72
    %428 = vbcast.lane.b32.xlu0 %v390, %s427
    %v429 = vpop.permute.xlu0 %428
    %s431 = sor.u32 256, 80
    %432 = vbcast.lane.b32.xlu0 %v390, %s431
    %v433 = vpop.permute.xlu0 %432
    %s435 = sor.u32 256, 88
    %436 = vbcast.lane.b32.xlu0 %v390, %s435
    %v437 = vpop.permute.xlu0 %436
    %s439 = sor.u32 256, 96
    %440 = vbcast.lane.b32.xlu0 %v390, %s439
    %v441 = vpop.permute.xlu0 %440
    %s443 = sor.u32 256, 104
    %444 = vbcast.lane.b32.xlu0 %v390, %s443
    %v445 = vpop.permute.xlu0 %444
    %s447 = sor.u32 256, 112
    %448 = vbcast.lane.b32.xlu0 %v390, %s447
    %v449 = vpop.permute.xlu0 %448
    %s451 = sor.u32 256, 120
    %452 = vbcast.lane.b32.xlu0 %v390, %s451
    %v453 = vpop.permute.xlu0 %452
    %v462 = vlaneseq
    %v463 = vshrl.u32 %v462, 7
    %v464 = vsub.s32 0, %v463
    %v465 = vrot.slane %v138, %v464
    %v466 = vlaneseq
    %v467 = vshrl.u32 %v466, 7
    %v468 = vsub.s32 4, %v467
    %v469 = vrot.slane %v138, %v468
    %v470 = vlaneseq
    %v471 = vshrl.u32 %v470, 7
    %v472 = vsub.s32 0, %v471
    %v473 = vrot.slane %v139, %v472
    %v474 = vlaneseq
    %v475 = vshrl.u32 %v474, 7
    %v476 = vsub.s32 4, %v475
    %v477 = vrot.slane %v139, %v476
    %v478 = vlaneseq
    %v479 = vshrl.u32 %v478, 7
    %v480 = vsub.s32 0, %v479
    %v481 = vrot.slane %v140, %v480
    %v482 = vlaneseq
    %v483 = vshrl.u32 %v482, 7
    %v484 = vsub.s32 4, %v483
    %v485 = vrot.slane %v140, %v484
    %v486 = vlaneseq
    %v487 = vshrl.u32 %v486, 7
    %v488 = vsub.s32 0, %v487
    %v489 = vrot.slane %v141, %v488
    %v490 = vlaneseq
    %v491 = vshrl.u32 %v490, 7
    %v492 = vsub.s32 4, %v491
    %v493 = vrot.slane %v141, %v492
    %v494 = vlaneseq
    %v495 = vshrl.u32 %v494, 7
    %v496 = vsub.s32 0, %v495
    %v497 = vrot.slane %v142, %v496
    %v498 = vlaneseq
    %v499 = vshrl.u32 %v498, 7
    %v500 = vsub.s32 4, %v499
    %v501 = vrot.slane %v142, %v500
    %v502 = vlaneseq
    %v503 = vshrl.u32 %v502, 7
    %v504 = vsub.s32 0, %v503
    %v505 = vrot.slane %v143, %v504
    %v506 = vlaneseq
    %v507 = vshrl.u32 %v506, 7
    %v508 = vsub.s32 4, %v507
    %v509 = vrot.slane %v143, %v508
    %v510 = vlaneseq
    %v511 = vshrl.u32 %v510, 7
    %v512 = vsub.s32 0, %v511
    %v513 = vrot.slane %v144, %v512
    %v514 = vlaneseq
    %v515 = vshrl.u32 %v514, 7
    %v516 = vsub.s32 4, %v515
    %v517 = vrot.slane %v144, %v516
    %v518 = vlaneseq
    %v519 = vshrl.u32 %v518, 7
    %v520 = vsub.s32 0, %v519
    %v521 = vrot.slane %v145, %v520
    %v522 = vlaneseq
    %v523 = vshrl.u32 %v522, 7
    %v524 = vsub.s32 4, %v523
    %v525 = vrot.slane %v145, %v524
    %v542 = vlaneseq
    %v543 = vshrl.u32 %v542, 7
    %v544 = vsub.s32 0, %v543
    %v545 = vrot.slane %v465, %v544
    %v546 = vlaneseq
    %v547 = vshrl.u32 %v546, 7
    %v548 = vsub.s32 0, %v547
    %v549 = vrot.slane %v469, %v548
    %v550 = vlaneseq
    %v551 = vshrl.u32 %v550, 7
    %v552 = vsub.s32 0, %v551
    %v553 = vrot.slane %v473, %v552
    %v554 = vlaneseq
    %v555 = vshrl.u32 %v554, 7
    %v556 = vsub.s32 0, %v555
    %v557 = vrot.slane %v477, %v556
    %v558 = vlaneseq
    %v559 = vshrl.u32 %v558, 7
    %v560 = vsub.s32 0, %v559
    %v561 = vrot.slane %v481, %v560
    %v562 = vlaneseq
    %v563 = vshrl.u32 %v562, 7
    %v564 = vsub.s32 0, %v563
    %v565 = vrot.slane %v485, %v564
    %v566 = vlaneseq
    %v567 = vshrl.u32 %v566, 7
    %v568 = vsub.s32 0, %v567
    %v569 = vrot.slane %v489, %v568
    %v570 = vlaneseq
    %v571 = vshrl.u32 %v570, 7
    %v572 = vsub.s32 0, %v571
    %v573 = vrot.slane %v493, %v572
    %v574 = vlaneseq
    %v575 = vshrl.u32 %v574, 7
    %v576 = vsub.s32 0, %v575
    %v577 = vrot.slane %v497, %v576
    %v578 = vlaneseq
    %v579 = vshrl.u32 %v578, 7
    %v580 = vsub.s32 0, %v579
    %v581 = vrot.slane %v501, %v580
    %v582 = vlaneseq
    %v583 = vshrl.u32 %v582, 7
    %v584 = vsub.s32 0, %v583
    %v585 = vrot.slane %v505, %v584
    %v586 = vlaneseq
    %v587 = vshrl.u32 %v586, 7
    %v588 = vsub.s32 0, %v587
    %v589 = vrot.slane %v509, %v588
    %v590 = vlaneseq
    %v591 = vshrl.u32 %v590, 7
    %v592 = vsub.s32 0, %v591
    %v593 = vrot.slane %v513, %v592
    %v594 = vlaneseq
    %v595 = vshrl.u32 %v594, 7
    %v596 = vsub.s32 0, %v595
    %v597 = vrot.slane %v517, %v596
    %v598 = vlaneseq
    %v599 = vshrl.u32 %v598, 7
    %v600 = vsub.s32 0, %v599
    %v601 = vrot.slane %v521, %v600
    %v602 = vlaneseq
    %v603 = vshrl.u32 %v602, 7
    %v604 = vsub.s32 0, %v603
    %v605 = vrot.slane %v525, %v604
    %v606 = vmul.f32 %v192, %v545
    %v607 = vmul.f32 %v192, %v549
    %v608 = vmul.f32 %v192, %v553
    %v609 = vmul.f32 %v192, %v557
    %v610 = vmul.f32 %v192, %v561
    %v611 = vmul.f32 %v192, %v565
    %v612 = vmul.f32 %v192, %v569
    %v613 = vmul.f32 %v192, %v573
    %v614 = vmul.f32 %v192, %v577
    %v615 = vmul.f32 %v192, %v581
    %v616 = vmul.f32 %v192, %v585
    %v617 = vmul.f32 %v192, %v589
    %v618 = vmul.f32 %v192, %v593
    %v619 = vmul.f32 %v192, %v597
    %v620 = vmul.f32 %v192, %v601
    %v621 = vmul.f32 %v192, %v605
    %v622 = vmul.f32 %v196, %v545
    %v623 = vmul.f32 %v196, %v549
    %v624 = vmul.f32 %v196, %v553
    %v625 = vmul.f32 %v196, %v557
    %v626 = vmul.f32 %v196, %v561
    %v627 = vmul.f32 %v196, %v565
    %v628 = vmul.f32 %v196, %v569
    %v629 = vmul.f32 %v196, %v573
    %v630 = vmul.f32 %v196, %v577
    %v631 = vmul.f32 %v196, %v581
    %v632 = vmul.f32 %v196, %v585
    %v633 = vmul.f32 %v196, %v589
    %v634 = vmul.f32 %v196, %v593
    %v635 = vmul.f32 %v196, %v597
    %v636 = vmul.f32 %v196, %v601
    %v637 = vmul.f32 %v196, %v605
    %v638 = vmul.f32 %v200, %v545
    %v639 = vmul.f32 %v200, %v549
    %v640 = vmul.f32 %v200, %v553
    %v641 = vmul.f32 %v200, %v557
    %v642 = vmul.f32 %v200, %v561
    %v643 = vmul.f32 %v200, %v565
    %v644 = vmul.f32 %v200, %v569
    %v645 = vmul.f32 %v200, %v573
    %v646 = vmul.f32 %v200, %v577
    %v647 = vmul.f32 %v200, %v581
    %v648 = vmul.f32 %v200, %v585
    %v649 = vmul.f32 %v200, %v589
    %v650 = vmul.f32 %v200, %v593
    %v651 = vmul.f32 %v200, %v597
    %v652 = vmul.f32 %v200, %v601
    %v653 = vmul.f32 %v200, %v605
    %v654 = vmul.f32 %v204, %v545
    %v655 = vmul.f32 %v204, %v549
    %v656 = vmul.f32 %v204, %v553
    %v657 = vmul.f32 %v204, %v557
    %v658 = vmul.f32 %v204, %v561
    %v659 = vmul.f32 %v204, %v565
    %v660 = vmul.f32 %v204, %v569
    %v661 = vmul.f32 %v204, %v573
    %v662 = vmul.f32 %v204, %v577
    %v663 = vmul.f32 %v204, %v581
    %v664 = vmul.f32 %v204, %v585
    %v665 = vmul.f32 %v204, %v589
    %v666 = vmul.f32 %v204, %v593
    %v667 = vmul.f32 %v204, %v597
    %v668 = vmul.f32 %v204, %v601
    %v669 = vmul.f32 %v204, %v605
    %v670 = vmul.f32 %v208, %v545
    %v671 = vmul.f32 %v208, %v549
    %v672 = vmul.f32 %v208, %v553
    %v673 = vmul.f32 %v208, %v557
    %v674 = vmul.f32 %v208, %v561
    %v675 = vmul.f32 %v208, %v565
    %v676 = vmul.f32 %v208, %v569
    %v677 = vmul.f32 %v208, %v573
    %v678 = vmul.f32 %v208, %v577
    %v679 = vmul.f32 %v208, %v581
    %v680 = vmul.f32 %v208, %v585
    %v681 = vmul.f32 %v208, %v589
    %v682 = vmul.f32 %v208, %v593
    %v683 = vmul.f32 %v208, %v597
    %v684 = vmul.f32 %v208, %v601
    %v685 = vmul.f32 %v208, %v605
    %v686 = vmul.f32 %v212, %v545
    %v687 = vmul.f32 %v212, %v549
    %v688 = vmul.f32 %v212, %v553
    %v689 = vmul.f32 %v212, %v557
    %v690 = vmul.f32 %v212, %v561
    %v691 = vmul.f32 %v212, %v565
    %v692 = vmul.f32 %v212, %v569
    %v693 = vmul.f32 %v212, %v573
    %v694 = vmul.f32 %v212, %v577
    %v695 = vmul.f32 %v212, %v581
    %v696 = vmul.f32 %v212, %v585
    %v697 = vmul.f32 %v212, %v589
    %v698 = vmul.f32 %v212, %v593
    %v699 = vmul.f32 %v212, %v597
    %v700 = vmul.f32 %v212, %v601
    %v701 = vmul.f32 %v212, %v605
    %v702 = vmul.f32 %v216, %v545
    %v703 = vmul.f32 %v216, %v549
    %v704 = vmul.f32 %v216, %v553
    %v705 = vmul.f32 %v216, %v557
    %v706 = vmul.f32 %v216, %v561
    %v707 = vmul.f32 %v216, %v565
    %v708 = vmul.f32 %v216, %v569
    %v709 = vmul.f32 %v216, %v573
    %v710 = vmul.f32 %v216, %v577
    %v711 = vmul.f32 %v216, %v581
    %v712 = vmul.f32 %v216, %v585
    %v713 = vmul.f32 %v216, %v589
    %v714 = vmul.f32 %v216, %v593
    %v715 = vmul.f32 %v216, %v597
    %v716 = vmul.f32 %v216, %v601
    %v717 = vmul.f32 %v216, %v605
    %v718 = vmul.f32 %v220, %v545
    %v719 = vmul.f32 %v220, %v549
    %v720 = vmul.f32 %v220, %v553
    %v721 = vmul.f32 %v220, %v557
    %v722 = vmul.f32 %v220, %v561
    %v723 = vmul.f32 %v220, %v565
    %v724 = vmul.f32 %v220, %v569
    %v725 = vmul.f32 %v220, %v573
    %v726 = vmul.f32 %v220, %v577
    %v727 = vmul.f32 %v220, %v581
    %v728 = vmul.f32 %v220, %v585
    %v729 = vmul.f32 %v220, %v589
    %v730 = vmul.f32 %v220, %v593
    %v731 = vmul.f32 %v220, %v597
    %v732 = vmul.f32 %v220, %v601
    %v733 = vmul.f32 %v220, %v605
    %v734 = vmul.f32 %v224, %v545
    %v735 = vmul.f32 %v224, %v549
    %v736 = vmul.f32 %v224, %v553
    %v737 = vmul.f32 %v224, %v557
    %v738 = vmul.f32 %v224, %v561
    %v739 = vmul.f32 %v224, %v565
    %v740 = vmul.f32 %v224, %v569
    %v741 = vmul.f32 %v224, %v573
    %v742 = vmul.f32 %v224, %v577
    %v743 = vmul.f32 %v224, %v581
    %v744 = vmul.f32 %v224, %v585
    %v745 = vmul.f32 %v224, %v589
    %v746 = vmul.f32 %v224, %v593
    %v747 = vmul.f32 %v224, %v597
    %v748 = vmul.f32 %v224, %v601
    %v749 = vmul.f32 %v224, %v605
    %v750 = vmul.f32 %v228, %v545
    %v751 = vmul.f32 %v228, %v549
    %v752 = vmul.f32 %v228, %v553
    %v753 = vmul.f32 %v228, %v557
    %v754 = vmul.f32 %v228, %v561
    %v755 = vmul.f32 %v228, %v565
    %v756 = vmul.f32 %v228, %v569
    %v757 = vmul.f32 %v228, %v573
    %v758 = vmul.f32 %v228, %v577
    %v759 = vmul.f32 %v228, %v581
    %v760 = vmul.f32 %v228, %v585
    %v761 = vmul.f32 %v228, %v589
    %v762 = vmul.f32 %v228, %v593
    %v763 = vmul.f32 %v228, %v597
    %v764 = vmul.f32 %v228, %v601
    %v765 = vmul.f32 %v228, %v605
    %v766 = vmul.f32 %v232, %v545
    %v767 = vmul.f32 %v232, %v549
    %v768 = vmul.f32 %v232, %v553
    %v769 = vmul.f32 %v232, %v557
    %v770 = vmul.f32 %v232, %v561
    %v771 = vmul.f32 %v232, %v565
    %v772 = vmul.f32 %v232, %v569
    %v773 = vmul.f32 %v232, %v573
    %v774 = vmul.f32 %v232, %v577
    %v775 = vmul.f32 %v232, %v581
    %v776 = vmul.f32 %v232, %v585
    %v777 = vmul.f32 %v232, %v589
    %v778 = vmul.f32 %v232, %v593
    %v779 = vmul.f32 %v232, %v597
    %v780 = vmul.f32 %v232, %v601
    %v781 = vmul.f32 %v232, %v605
    %v782 = vmul.f32 %v236, %v545
    %v783 = vmul.f32 %v236, %v549
    %v784 = vmul.f32 %v236, %v553
    %v785 = vmul.f32 %v236, %v557
    %v786 = vmul.f32 %v236, %v561
    %v787 = vmul.f32 %v236, %v565
    %v788 = vmul.f32 %v236, %v569
    %v789 = vmul.f32 %v236, %v573
    %v790 = vmul.f32 %v236, %v577
    %v791 = vmul.f32 %v236, %v581
    %v792 = vmul.f32 %v236, %v585
    %v793 = vmul.f32 %v236, %v589
    %v794 = vmul.f32 %v236, %v593
    %v795 = vmul.f32 %v236, %v597
    %v796 = vmul.f32 %v236, %v601
    %v797 = vmul.f32 %v236, %v605
    %v798 = vmul.f32 %v240, %v545
    %v799 = vmul.f32 %v240, %v549
    %v800 = vmul.f32 %v240, %v553
    %v801 = vmul.f32 %v240, %v557
    %v802 = vmul.f32 %v240, %v561
    %v803 = vmul.f32 %v240, %v565
    %v804 = vmul.f32 %v240, %v569
    %v805 = vmul.f32 %v240, %v573
    %v806 = vmul.f32 %v240, %v577
    %v807 = vmul.f32 %v240, %v581
    %v808 = vmul.f32 %v240, %v585
    %v809 = vmul.f32 %v240, %v589
    %v810 = vmul.f32 %v240, %v593
    %v811 = vmul.f32 %v240, %v597
    %v812 = vmul.f32 %v240, %v601
    %v813 = vmul.f32 %v240, %v605
    %v814 = vmul.f32 %v244, %v545
    %v815 = vmul.f32 %v244, %v549
    %v816 = vmul.f32 %v244, %v553
    %v817 = vmul.f32 %v244, %v557
    %v818 = vmul.f32 %v244, %v561
    %v819 = vmul.f32 %v244, %v565
    %v820 = vmul.f32 %v244, %v569
    %v821 = vmul.f32 %v244, %v573
    %v822 = vmul.f32 %v244, %v577
    %v823 = vmul.f32 %v244, %v581
    %v824 = vmul.f32 %v244, %v585
    %v825 = vmul.f32 %v244, %v589
    %v826 = vmul.f32 %v244, %v593
    %v827 = vmul.f32 %v244, %v597
    %v828 = vmul.f32 %v244, %v601
    %v829 = vmul.f32 %v244, %v605
    %v830 = vmul.f32 %v248, %v545
    %v831 = vmul.f32 %v248, %v549
    %v832 = vmul.f32 %v248, %v553
    %v833 = vmul.f32 %v248, %v557
    %v834 = vmul.f32 %v248, %v561
    %v835 = vmul.f32 %v248, %v565
    %v836 = vmul.f32 %v248, %v569
    %v837 = vmul.f32 %v248, %v573
    %v838 = vmul.f32 %v248, %v577
    %v839 = vmul.f32 %v248, %v581
    %v840 = vmul.f32 %v248, %v585
    %v841 = vmul.f32 %v248, %v589
    %v842 = vmul.f32 %v248, %v593
    %v843 = vmul.f32 %v248, %v597
    %v844 = vmul.f32 %v248, %v601
    %v845 = vmul.f32 %v248, %v605
    %v846 = vmul.f32 %v252, %v545
    %v847 = vmul.f32 %v252, %v549
    %v848 = vmul.f32 %v252, %v553
    %v849 = vmul.f32 %v252, %v557
    %v850 = vmul.f32 %v252, %v561
    %v851 = vmul.f32 %v252, %v565
    %v852 = vmul.f32 %v252, %v569
    %v853 = vmul.f32 %v252, %v573
    %v854 = vmul.f32 %v252, %v577
    %v855 = vmul.f32 %v252, %v581
    %v856 = vmul.f32 %v252, %v585
    %v857 = vmul.f32 %v252, %v589
    %v858 = vmul.f32 %v252, %v593
    %v859 = vmul.f32 %v252, %v597
    %v860 = vmul.f32 %v252, %v601
    %v861 = vmul.f32 %v252, %v605
    %v862 = vmul.f32 %v259, %v545
    %v863 = vmul.f32 %v259, %v549
    %v864 = vmul.f32 %v259, %v553
    %v865 = vmul.f32 %v259, %v557
    %v866 = vmul.f32 %v259, %v561
    %v867 = vmul.f32 %v259, %v565
    %v868 = vmul.f32 %v259, %v569
    %v869 = vmul.f32 %v259, %v573
    %v870 = vmul.f32 %v259, %v577
    %v871 = vmul.f32 %v259, %v581
    %v872 = vmul.f32 %v259, %v585
    %v873 = vmul.f32 %v259, %v589
    %v874 = vmul.f32 %v259, %v593
    %v875 = vmul.f32 %v259, %v597
    %v876 = vmul.f32 %v259, %v601
    %v877 = vmul.f32 %v259, %v605
    %v878 = vmul.f32 %v263, %v545
    %v879 = vmul.f32 %v263, %v549
    %v880 = vmul.f32 %v263, %v553
    %v881 = vmul.f32 %v263, %v557
    %v882 = vmul.f32 %v263, %v561
    %v883 = vmul.f32 %v263, %v565
    %v884 = vmul.f32 %v263, %v569
    %v885 = vmul.f32 %v263, %v573
    %v886 = vmul.f32 %v263, %v577
    %v887 = vmul.f32 %v263, %v581
    %v888 = vmul.f32 %v263, %v585
    %v889 = vmul.f32 %v263, %v589
    %v890 = vmul.f32 %v263, %v593
    %v891 = vmul.f32 %v263, %v597
    %v892 = vmul.f32 %v263, %v601
    %v893 = vmul.f32 %v263, %v605
    %v894 = vmul.f32 %v267, %v545
    %v895 = vmul.f32 %v267, %v549
    %v896 = vmul.f32 %v267, %v553
    %v897 = vmul.f32 %v267, %v557
    %v898 = vmul.f32 %v267, %v561
    %v899 = vmul.f32 %v267, %v565
    %v900 = vmul.f32 %v267, %v569
    %v901 = vmul.f32 %v267, %v573
    %v902 = vmul.f32 %v267, %v577
    %v903 = vmul.f32 %v267, %v581
    %v904 = vmul.f32 %v267, %v585
    %v905 = vmul.f32 %v267, %v589
    %v906 = vmul.f32 %v267, %v593
    %v907 = vmul.f32 %v267, %v597
    %v908 = vmul.f32 %v267, %v601
    %v909 = vmul.f32 %v267, %v605
    %v910 = vmul.f32 %v271, %v545
    %v911 = vmul.f32 %v271, %v549
    %v912 = vmul.f32 %v271, %v553
    %v913 = vmul.f32 %v271, %v557
    %v914 = vmul.f32 %v271, %v561
    %v915 = vmul.f32 %v271, %v565
    %v916 = vmul.f32 %v271, %v569
    %v917 = vmul.f32 %v271, %v573
    %v918 = vmul.f32 %v271, %v577
    %v919 = vmul.f32 %v271, %v581
    %v920 = vmul.f32 %v271, %v585
    %v921 = vmul.f32 %v271, %v589
    %v922 = vmul.f32 %v271, %v593
    %v923 = vmul.f32 %v271, %v597
    %v924 = vmul.f32 %v271, %v601
    %v925 = vmul.f32 %v271, %v605
    %v926 = vmul.f32 %v275, %v545
    %v927 = vmul.f32 %v275, %v549
    %v928 = vmul.f32 %v275, %v553
    %v929 = vmul.f32 %v275, %v557
    %v930 = vmul.f32 %v275, %v561
    %v931 = vmul.f32 %v275, %v565
    %v932 = vmul.f32 %v275, %v569
    %v933 = vmul.f32 %v275, %v573
    %v934 = vmul.f32 %v275, %v577
    %v935 = vmul.f32 %v275, %v581
    %v936 = vmul.f32 %v275, %v585
    %v937 = vmul.f32 %v275, %v589
    %v938 = vmul.f32 %v275, %v593
    %v939 = vmul.f32 %v275, %v597
    %v940 = vmul.f32 %v275, %v601
    %v941 = vmul.f32 %v275, %v605
    %v942 = vmul.f32 %v279, %v545
    %v943 = vmul.f32 %v279, %v549
    %v944 = vmul.f32 %v279, %v553
    %v945 = vmul.f32 %v279, %v557
    %v946 = vmul.f32 %v279, %v561
    %v947 = vmul.f32 %v279, %v565
    %v948 = vmul.f32 %v279, %v569
    %v949 = vmul.f32 %v279, %v573
    %v950 = vmul.f32 %v279, %v577
    %v951 = vmul.f32 %v279, %v581
    %v952 = vmul.f32 %v279, %v585
    %v953 = vmul.f32 %v279, %v589
    %v954 = vmul.f32 %v279, %v593
    %v955 = vmul.f32 %v279, %v597
    %v956 = vmul.f32 %v279, %v601
    %v957 = vmul.f32 %v279, %v605
    %v958 = vmul.f32 %v283, %v545
    %v959 = vmul.f32 %v283, %v549
    %v960 = vmul.f32 %v283, %v553
    %v961 = vmul.f32 %v283, %v557
    %v962 = vmul.f32 %v283, %v561
    %v963 = vmul.f32 %v283, %v565
    %v964 = vmul.f32 %v283, %v569
    %v965 = vmul.f32 %v283, %v573
    %v966 = vmul.f32 %v283, %v577
    %v967 = vmul.f32 %v283, %v581
    %v968 = vmul.f32 %v283, %v585
    %v969 = vmul.f32 %v283, %v589
    %v970 = vmul.f32 %v283, %v593
    %v971 = vmul.f32 %v283, %v597
    %v972 = vmul.f32 %v283, %v601
    %v973 = vmul.f32 %v283, %v605
    %v974 = vmul.f32 %v287, %v545
    %v975 = vmul.f32 %v287, %v549
    %v976 = vmul.f32 %v287, %v553
    %v977 = vmul.f32 %v287, %v557
    %v978 = vmul.f32 %v287, %v561
    %v979 = vmul.f32 %v287, %v565
    %v980 = vmul.f32 %v287, %v569
    %v981 = vmul.f32 %v287, %v573
    %v982 = vmul.f32 %v287, %v577
    %v983 = vmul.f32 %v287, %v581
    %v984 = vmul.f32 %v287, %v585
    %v985 = vmul.f32 %v287, %v589
    %v986 = vmul.f32 %v287, %v593
    %v987 = vmul.f32 %v287, %v597
    %v988 = vmul.f32 %v287, %v601
    %v989 = vmul.f32 %v287, %v605
    %v990 = vmul.f32 %v291, %v545
    %v991 = vmul.f32 %v291, %v549
    %v992 = vmul.f32 %v291, %v553
    %v993 = vmul.f32 %v291, %v557
    %v994 = vmul.f32 %v291, %v561
    %v995 = vmul.f32 %v291, %v565
    %v996 = vmul.f32 %v291, %v569
    %v997 = vmul.f32 %v291, %v573
    %v998 = vmul.f32 %v291, %v577
    %v999 = vmul.f32 %v291, %v581
    %v1000 = vmul.f32 %v291, %v585
    %v1001 = vmul.f32 %v291, %v589
    %v1002 = vmul.f32 %v291, %v593
    %v1003 = vmul.f32 %v291, %v597
    %v1004 = vmul.f32 %v291, %v601
    %v1005 = vmul.f32 %v291, %v605
    %v1006 = vmul.f32 %v295, %v545
    %v1007 = vmul.f32 %v295, %v549
    %v1008 = vmul.f32 %v295, %v553
    %v1009 = vmul.f32 %v295, %v557
    %v1010 = vmul.f32 %v295, %v561
    %v1011 = vmul.f32 %v295, %v565
    %v1012 = vmul.f32 %v295, %v569
    %v1013 = vmul.f32 %v295, %v573
    %v1014 = vmul.f32 %v295, %v577
    %v1015 = vmul.f32 %v295, %v581
    %v1016 = vmul.f32 %v295, %v585
    %v1017 = vmul.f32 %v295, %v589
    %v1018 = vmul.f32 %v295, %v593
    %v1019 = vmul.f32 %v295, %v597
    %v1020 = vmul.f32 %v295, %v601
    %v1021 = vmul.f32 %v295, %v605
    %v1022 = vmul.f32 %v299, %v545
    %v1023 = vmul.f32 %v299, %v549
    %v1024 = vmul.f32 %v299, %v553
    %v1025 = vmul.f32 %v299, %v557
    %v1026 = vmul.f32 %v299, %v561
    %v1027 = vmul.f32 %v299, %v565
    %v1028 = vmul.f32 %v299, %v569
    %v1029 = vmul.f32 %v299, %v573
    %v1030 = vmul.f32 %v299, %v577
    %v1031 = vmul.f32 %v299, %v581
    %v1032 = vmul.f32 %v299, %v585
    %v1033 = vmul.f32 %v299, %v589
    %v1034 = vmul.f32 %v299, %v593
    %v1035 = vmul.f32 %v299, %v597
    %v1036 = vmul.f32 %v299, %v601
    %v1037 = vmul.f32 %v299, %v605
    %v1038 = vmul.f32 %v303, %v545
    %v1039 = vmul.f32 %v303, %v549
    %v1040 = vmul.f32 %v303, %v553
    %v1041 = vmul.f32 %v303, %v557
    %v1042 = vmul.f32 %v303, %v561
    %v1043 = vmul.f32 %v303, %v565
    %v1044 = vmul.f32 %v303, %v569
    %v1045 = vmul.f32 %v303, %v573
    %v1046 = vmul.f32 %v303, %v577
    %v1047 = vmul.f32 %v303, %v581
    %v1048 = vmul.f32 %v303, %v585
    %v1049 = vmul.f32 %v303, %v589
    %v1050 = vmul.f32 %v303, %v593
    %v1051 = vmul.f32 %v303, %v597
    %v1052 = vmul.f32 %v303, %v601
    %v1053 = vmul.f32 %v303, %v605
    %v1054 = vmul.f32 %v307, %v545
    %v1055 = vmul.f32 %v307, %v549
    %v1056 = vmul.f32 %v307, %v553
    %v1057 = vmul.f32 %v307, %v557
    %v1058 = vmul.f32 %v307, %v561
    %v1059 = vmul.f32 %v307, %v565
    %v1060 = vmul.f32 %v307, %v569
    %v1061 = vmul.f32 %v307, %v573
    %v1062 = vmul.f32 %v307, %v577
    %v1063 = vmul.f32 %v307, %v581
    %v1064 = vmul.f32 %v307, %v585
    %v1065 = vmul.f32 %v307, %v589
    %v1066 = vmul.f32 %v307, %v593
    %v1067 = vmul.f32 %v307, %v597
    %v1068 = vmul.f32 %v307, %v601
    %v1069 = vmul.f32 %v307, %v605
    %v1070 = vmul.f32 %v311, %v545
    %v1071 = vmul.f32 %v311, %v549
    %v1072 = vmul.f32 %v311, %v553
    %v1073 = vmul.f32 %v311, %v557
    %v1074 = vmul.f32 %v311, %v561
    %v1075 = vmul.f32 %v311, %v565
    %v1076 = vmul.f32 %v311, %v569
    %v1077 = vmul.f32 %v311, %v573
    %v1078 = vmul.f32 %v311, %v577
    %v1079 = vmul.f32 %v311, %v581
    %v1080 = vmul.f32 %v311, %v585
    %v1081 = vmul.f32 %v311, %v589
    %v1082 = vmul.f32 %v311, %v593
    %v1083 = vmul.f32 %v311, %v597
    %v1084 = vmul.f32 %v311, %v601
    %v1085 = vmul.f32 %v311, %v605
    %v1086 = vmul.f32 %v315, %v545
    %v1087 = vmul.f32 %v315, %v549
    %v1088 = vmul.f32 %v315, %v553
    %v1089 = vmul.f32 %v315, %v557
    %v1090 = vmul.f32 %v315, %v561
    %v1091 = vmul.f32 %v315, %v565
    %v1092 = vmul.f32 %v315, %v569
    %v1093 = vmul.f32 %v315, %v573
    %v1094 = vmul.f32 %v315, %v577
    %v1095 = vmul.f32 %v315, %v581
    %v1096 = vmul.f32 %v315, %v585
    %v1097 = vmul.f32 %v315, %v589
    %v1098 = vmul.f32 %v315, %v593
    %v1099 = vmul.f32 %v315, %v597
    %v1100 = vmul.f32 %v315, %v601
    %v1101 = vmul.f32 %v315, %v605
    %v1102 = vmul.f32 %v319, %v545
    %v1103 = vmul.f32 %v319, %v549
    %v1104 = vmul.f32 %v319, %v553
    %v1105 = vmul.f32 %v319, %v557
    %v1106 = vmul.f32 %v319, %v561
    %v1107 = vmul.f32 %v319, %v565
    %v1108 = vmul.f32 %v319, %v569
    %v1109 = vmul.f32 %v319, %v573
    %v1110 = vmul.f32 %v319, %v577
    %v1111 = vmul.f32 %v319, %v581
    %v1112 = vmul.f32 %v319, %v585
    %v1113 = vmul.f32 %v319, %v589
    %v1114 = vmul.f32 %v319, %v593
    %v1115 = vmul.f32 %v319, %v597
    %v1116 = vmul.f32 %v319, %v601
    %v1117 = vmul.f32 %v319, %v605
    %v1118 = vmul.f32 %v326, %v545
    %v1119 = vmul.f32 %v326, %v549
    %v1120 = vmul.f32 %v326, %v553
    %v1121 = vmul.f32 %v326, %v557
    %v1122 = vmul.f32 %v326, %v561
    %v1123 = vmul.f32 %v326, %v565
    %v1124 = vmul.f32 %v326, %v569
    %v1125 = vmul.f32 %v326, %v573
    %v1126 = vmul.f32 %v326, %v577
    %v1127 = vmul.f32 %v326, %v581
    %v1128 = vmul.f32 %v326, %v585
    %v1129 = vmul.f32 %v326, %v589
    %v1130 = vmul.f32 %v326, %v593
    %v1131 = vmul.f32 %v326, %v597
    %v1132 = vmul.f32 %v326, %v601
    %v1133 = vmul.f32 %v326, %v605
    %v1134 = vmul.f32 %v330, %v545
    %v1135 = vmul.f32 %v330, %v549
    %v1136 = vmul.f32 %v330, %v553
    %v1137 = vmul.f32 %v330, %v557
    %v1138 = vmul.f32 %v330, %v561
    %v1139 = vmul.f32 %v330, %v565
    %v1140 = vmul.f32 %v330, %v569
    %v1141 = vmul.f32 %v330, %v573
    %v1142 = vmul.f32 %v330, %v577
    %v1143 = vmul.f32 %v330, %v581
    %v1144 = vmul.f32 %v330, %v585
    %v1145 = vmul.f32 %v330, %v589
    %v1146 = vmul.f32 %v330, %v593
    %v1147 = vmul.f32 %v330, %v597
    %v1148 = vmul.f32 %v330, %v601
    %v1149 = vmul.f32 %v330, %v605
    %v1150 = vmul.f32 %v334, %v545
    %v1151 = vmul.f32 %v334, %v549
    %v1152 = vmul.f32 %v334, %v553
    %v1153 = vmul.f32 %v334, %v557
    %v1154 = vmul.f32 %v334, %v561
    %v1155 = vmul.f32 %v334, %v565
    %v1156 = vmul.f32 %v334, %v569
    %v1157 = vmul.f32 %v334, %v573
    %v1158 = vmul.f32 %v334, %v577
    %v1159 = vmul.f32 %v334, %v581
    %v1160 = vmul.f32 %v334, %v585
    %v1161 = vmul.f32 %v334, %v589
    %v1162 = vmul.f32 %v334, %v593
    %v1163 = vmul.f32 %v334, %v597
    %v1164 = vmul.f32 %v334, %v601
    %v1165 = vmul.f32 %v334, %v605
    %v1166 = vmul.f32 %v338, %v545
    %v1167 = vmul.f32 %v338, %v549
    %v1168 = vmul.f32 %v338, %v553
    %v1169 = vmul.f32 %v338, %v557
    %v1170 = vmul.f32 %v338, %v561
    %v1171 = vmul.f32 %v338, %v565
    %v1172 = vmul.f32 %v338, %v569
    %v1173 = vmul.f32 %v338, %v573
    %v1174 = vmul.f32 %v338, %v577
    %v1175 = vmul.f32 %v338, %v581
    %v1176 = vmul.f32 %v338, %v585
    %v1177 = vmul.f32 %v338, %v589
    %v1178 = vmul.f32 %v338, %v593
    %v1179 = vmul.f32 %v338, %v597
    %v1180 = vmul.f32 %v338, %v601
    %v1181 = vmul.f32 %v338, %v605
    %v1182 = vmul.f32 %v342, %v545
    %v1183 = vmul.f32 %v342, %v549
    %v1184 = vmul.f32 %v342, %v553
    %v1185 = vmul.f32 %v342, %v557
    %v1186 = vmul.f32 %v342, %v561
    %v1187 = vmul.f32 %v342, %v565
    %v1188 = vmul.f32 %v342, %v569
    %v1189 = vmul.f32 %v342, %v573
    %v1190 = vmul.f32 %v342, %v577
    %v1191 = vmul.f32 %v342, %v581
    %v1192 = vmul.f32 %v342, %v585
    %v1193 = vmul.f32 %v342, %v589
    %v1194 = vmul.f32 %v342, %v593
    %v1195 = vmul.f32 %v342, %v597
    %v1196 = vmul.f32 %v342, %v601
    %v1197 = vmul.f32 %v342, %v605
    %v1198 = vmul.f32 %v346, %v545
    %v1199 = vmul.f32 %v346, %v549
    %v1200 = vmul.f32 %v346, %v553
    %v1201 = vmul.f32 %v346, %v557
    %v1202 = vmul.f32 %v346, %v561
    %v1203 = vmul.f32 %v346, %v565
    %v1204 = vmul.f32 %v346, %v569
    %v1205 = vmul.f32 %v346, %v573
    %v1206 = vmul.f32 %v346, %v577
    %v1207 = vmul.f32 %v346, %v581
    %v1208 = vmul.f32 %v346, %v585
    %v1209 = vmul.f32 %v346, %v589
    %v1210 = vmul.f32 %v346, %v593
    %v1211 = vmul.f32 %v346, %v597
    %v1212 = vmul.f32 %v346, %v601
    %v1213 = vmul.f32 %v346, %v605
    %v1214 = vmul.f32 %v350, %v545
    %v1215 = vmul.f32 %v350, %v549
    %v1216 = vmul.f32 %v350, %v553
    %v1217 = vmul.f32 %v350, %v557
    %v1218 = vmul.f32 %v350, %v561
    %v1219 = vmul.f32 %v350, %v565
    %v1220 = vmul.f32 %v350, %v569
    %v1221 = vmul.f32 %v350, %v573
    %v1222 = vmul.f32 %v350, %v577
    %v1223 = vmul.f32 %v350, %v581
    %v1224 = vmul.f32 %v350, %v585
    %v1225 = vmul.f32 %v350, %v589
    %v1226 = vmul.f32 %v350, %v593
    %v1227 = vmul.f32 %v350, %v597
    %v1228 = vmul.f32 %v350, %v601
    %v1229 = vmul.f32 %v350, %v605
    %v1230 = vmul.f32 %v354, %v545
    %v1231 = vmul.f32 %v354, %v549
    %v1232 = vmul.f32 %v354, %v553
    %v1233 = vmul.f32 %v354, %v557
    %v1234 = vmul.f32 %v354, %v561
    %v1235 = vmul.f32 %v354, %v565
    %v1236 = vmul.f32 %v354, %v569
    %v1237 = vmul.f32 %v354, %v573
    %v1238 = vmul.f32 %v354, %v577
    %v1239 = vmul.f32 %v354, %v581
    %v1240 = vmul.f32 %v354, %v585
    %v1241 = vmul.f32 %v354, %v589
    %v1242 = vmul.f32 %v354, %v593
    %v1243 = vmul.f32 %v354, %v597
    %v1244 = vmul.f32 %v354, %v601
    %v1245 = vmul.f32 %v354, %v605
    %v1246 = vmul.f32 %v358, %v545
    %v1247 = vmul.f32 %v358, %v549
    %v1248 = vmul.f32 %v358, %v553
    %v1249 = vmul.f32 %v358, %v557
    %v1250 = vmul.f32 %v358, %v561
    %v1251 = vmul.f32 %v358, %v565
    %v1252 = vmul.f32 %v358, %v569
    %v1253 = vmul.f32 %v358, %v573
    %v1254 = vmul.f32 %v358, %v577
    %v1255 = vmul.f32 %v358, %v581
    %v1256 = vmul.f32 %v358, %v585
    %v1257 = vmul.f32 %v358, %v589
    %v1258 = vmul.f32 %v358, %v593
    %v1259 = vmul.f32 %v358, %v597
    %v1260 = vmul.f32 %v358, %v601
    %v1261 = vmul.f32 %v358, %v605
    %v1262 = vmul.f32 %v362, %v545
    %v1263 = vmul.f32 %v362, %v549
    %v1264 = vmul.f32 %v362, %v553
    %v1265 = vmul.f32 %v362, %v557
    %v1266 = vmul.f32 %v362, %v561
    %v1267 = vmul.f32 %v362, %v565
    %v1268 = vmul.f32 %v362, %v569
    %v1269 = vmul.f32 %v362, %v573
    %v1270 = vmul.f32 %v362, %v577
    %v1271 = vmul.f32 %v362, %v581
    %v1272 = vmul.f32 %v362, %v585
    %v1273 = vmul.f32 %v362, %v589
    %v1274 = vmul.f32 %v362, %v593
    %v1275 = vmul.f32 %v362, %v597
    %v1276 = vmul.f32 %v362, %v601
    %v1277 = vmul.f32 %v362, %v605
    %v1278 = vmul.f32 %v366, %v545
    %v1279 = vmul.f32 %v366, %v549
    %v1280 = vmul.f32 %v366, %v553
    %v1281 = vmul.f32 %v366, %v557
    %v1282 = vmul.f32 %v366, %v561
    %v1283 = vmul.f32 %v366, %v565
    %v1284 = vmul.f32 %v366, %v569
    %v1285 = vmul.f32 %v366, %v573
    %v1286 = vmul.f32 %v366, %v577
    %v1287 = vmul.f32 %v366, %v581
    %v1288 = vmul.f32 %v366, %v585
    %v1289 = vmul.f32 %v366, %v589
    %v1290 = vmul.f32 %v366, %v593
    %v1291 = vmul.f32 %v366, %v597
    %v1292 = vmul.f32 %v366, %v601
    %v1293 = vmul.f32 %v366, %v605
    %v1294 = vmul.f32 %v370, %v545
    %v1295 = vmul.f32 %v370, %v549
    %v1296 = vmul.f32 %v370, %v553
    %v1297 = vmul.f32 %v370, %v557
    %v1298 = vmul.f32 %v370, %v561
    %v1299 = vmul.f32 %v370, %v565
    %v1300 = vmul.f32 %v370, %v569
    %v1301 = vmul.f32 %v370, %v573
    %v1302 = vmul.f32 %v370, %v577
    %v1303 = vmul.f32 %v370, %v581
    %v1304 = vmul.f32 %v370, %v585
    %v1305 = vmul.f32 %v370, %v589
    %v1306 = vmul.f32 %v370, %v593
    %v1307 = vmul.f32 %v370, %v597
    %v1308 = vmul.f32 %v370, %v601
    %v1309 = vmul.f32 %v370, %v605
    %v1310 = vmul.f32 %v374, %v545
    %v1311 = vmul.f32 %v374, %v549
    %v1312 = vmul.f32 %v374, %v553
    %v1313 = vmul.f32 %v374, %v557
    %v1314 = vmul.f32 %v374, %v561
    %v1315 = vmul.f32 %v374, %v565
    %v1316 = vmul.f32 %v374, %v569
    %v1317 = vmul.f32 %v374, %v573
    %v1318 = vmul.f32 %v374, %v577
    %v1319 = vmul.f32 %v374, %v581
    %v1320 = vmul.f32 %v374, %v585
    %v1321 = vmul.f32 %v374, %v589
    %v1322 = vmul.f32 %v374, %v593
    %v1323 = vmul.f32 %v374, %v597
    %v1324 = vmul.f32 %v374, %v601
    %v1325 = vmul.f32 %v374, %v605
    %v1326 = vmul.f32 %v378, %v545
    %v1327 = vmul.f32 %v378, %v549
    %v1328 = vmul.f32 %v378, %v553
    %v1329 = vmul.f32 %v378, %v557
    %v1330 = vmul.f32 %v378, %v561
    %v1331 = vmul.f32 %v378, %v565
    %v1332 = vmul.f32 %v378, %v569
    %v1333 = vmul.f32 %v378, %v573
    %v1334 = vmul.f32 %v378, %v577
    %v1335 = vmul.f32 %v378, %v581
    %v1336 = vmul.f32 %v378, %v585
    %v1337 = vmul.f32 %v378, %v589
    %v1338 = vmul.f32 %v378, %v593
    %v1339 = vmul.f32 %v378, %v597
    %v1340 = vmul.f32 %v378, %v601
    %v1341 = vmul.f32 %v378, %v605
    %v1342 = vmul.f32 %v382, %v545
    %v1343 = vmul.f32 %v382, %v549
    %v1344 = vmul.f32 %v382, %v553
    %v1345 = vmul.f32 %v382, %v557
    %v1346 = vmul.f32 %v382, %v561
    %v1347 = vmul.f32 %v382, %v565
    %v1348 = vmul.f32 %v382, %v569
    %v1349 = vmul.f32 %v382, %v573
    %v1350 = vmul.f32 %v382, %v577
    %v1351 = vmul.f32 %v382, %v581
    %v1352 = vmul.f32 %v382, %v585
    %v1353 = vmul.f32 %v382, %v589
    %v1354 = vmul.f32 %v382, %v593
    %v1355 = vmul.f32 %v382, %v597
    %v1356 = vmul.f32 %v382, %v601
    %v1357 = vmul.f32 %v382, %v605
    %v1358 = vmul.f32 %v386, %v545
    %v1359 = vmul.f32 %v386, %v549
    %v1360 = vmul.f32 %v386, %v553
    %v1361 = vmul.f32 %v386, %v557
    %v1362 = vmul.f32 %v386, %v561
    %v1363 = vmul.f32 %v386, %v565
    %v1364 = vmul.f32 %v386, %v569
    %v1365 = vmul.f32 %v386, %v573
    %v1366 = vmul.f32 %v386, %v577
    %v1367 = vmul.f32 %v386, %v581
    %v1368 = vmul.f32 %v386, %v585
    %v1369 = vmul.f32 %v386, %v589
    %v1370 = vmul.f32 %v386, %v593
    %v1371 = vmul.f32 %v386, %v597
    %v1372 = vmul.f32 %v386, %v601
    %v1373 = vmul.f32 %v386, %v605
    %v1374 = vmul.f32 %v393, %v545
    %v1375 = vmul.f32 %v393, %v549
    %v1376 = vmul.f32 %v393, %v553
    %v1377 = vmul.f32 %v393, %v557
    %v1378 = vmul.f32 %v393, %v561
    %v1379 = vmul.f32 %v393, %v565
    %v1380 = vmul.f32 %v393, %v569
    %v1381 = vmul.f32 %v393, %v573
    %v1382 = vmul.f32 %v393, %v577
    %v1383 = vmul.f32 %v393, %v581
    %v1384 = vmul.f32 %v393, %v585
    %v1385 = vmul.f32 %v393, %v589
    %v1386 = vmul.f32 %v393, %v593
    %v1387 = vmul.f32 %v393, %v597
    %v1388 = vmul.f32 %v393, %v601
    %v1389 = vmul.f32 %v393, %v605
    %v1390 = vmul.f32 %v397, %v545
    %v1391 = vmul.f32 %v397, %v549
    %v1392 = vmul.f32 %v397, %v553
    %v1393 = vmul.f32 %v397, %v557
    %v1394 = vmul.f32 %v397, %v561
    %v1395 = vmul.f32 %v397, %v565
    %v1396 = vmul.f32 %v397, %v569
    %v1397 = vmul.f32 %v397, %v573
    %v1398 = vmul.f32 %v397, %v577
    %v1399 = vmul.f32 %v397, %v581
    %v1400 = vmul.f32 %v397, %v585
    %v1401 = vmul.f32 %v397, %v589
    %v1402 = vmul.f32 %v397, %v593
    %v1403 = vmul.f32 %v397, %v597
    %v1404 = vmul.f32 %v397, %v601
    %v1405 = vmul.f32 %v397, %v605
    %v1406 = vmul.f32 %v401, %v545
    %v1407 = vmul.f32 %v401, %v549
    %v1408 = vmul.f32 %v401, %v553
    %v1409 = vmul.f32 %v401, %v557
    %v1410 = vmul.f32 %v401, %v561
    %v1411 = vmul.f32 %v401, %v565
    %v1412 = vmul.f32 %v401, %v569
    %v1413 = vmul.f32 %v401, %v573
    %v1414 = vmul.f32 %v401, %v577
    %v1415 = vmul.f32 %v401, %v581
    %v1416 = vmul.f32 %v401, %v585
    %v1417 = vmul.f32 %v401, %v589
    %v1418 = vmul.f32 %v401, %v593
    %v1419 = vmul.f32 %v401, %v597
    %v1420 = vmul.f32 %v401, %v601
    %v1421 = vmul.f32 %v401, %v605
    %v1422 = vmul.f32 %v405, %v545
    %v1423 = vmul.f32 %v405, %v549
    %v1424 = vmul.f32 %v405, %v553
    %v1425 = vmul.f32 %v405, %v557
    %v1426 = vmul.f32 %v405, %v561
    %v1427 = vmul.f32 %v405, %v565
    %v1428 = vmul.f32 %v405, %v569
    %v1429 = vmul.f32 %v405, %v573
    %v1430 = vmul.f32 %v405, %v577
    %v1431 = vmul.f32 %v405, %v581
    %v1432 = vmul.f32 %v405, %v585
    %v1433 = vmul.f32 %v405, %v589
    %v1434 = vmul.f32 %v405, %v593
    %v1435 = vmul.f32 %v405, %v597
    %v1436 = vmul.f32 %v405, %v601
    %v1437 = vmul.f32 %v405, %v605
    %v1438 = vmul.f32 %v409, %v545
    %v1439 = vmul.f32 %v409, %v549
    %v1440 = vmul.f32 %v409, %v553
    %v1441 = vmul.f32 %v409, %v557
    %v1442 = vmul.f32 %v409, %v561
    %v1443 = vmul.f32 %v409, %v565
    %v1444 = vmul.f32 %v409, %v569
    %v1445 = vmul.f32 %v409, %v573
    %v1446 = vmul.f32 %v409, %v577
    %v1447 = vmul.f32 %v409, %v581
    %v1448 = vmul.f32 %v409, %v585
    %v1449 = vmul.f32 %v409, %v589
    %v1450 = vmul.f32 %v409, %v593
    %v1451 = vmul.f32 %v409, %v597
    %v1452 = vmul.f32 %v409, %v601
    %v1453 = vmul.f32 %v409, %v605
    %v1454 = vmul.f32 %v413, %v545
    %v1455 = vmul.f32 %v413, %v549
    %v1456 = vmul.f32 %v413, %v553
    %v1457 = vmul.f32 %v413, %v557
    %v1458 = vmul.f32 %v413, %v561
    %v1459 = vmul.f32 %v413, %v565
    %v1460 = vmul.f32 %v413, %v569
    %v1461 = vmul.f32 %v413, %v573
    %v1462 = vmul.f32 %v413, %v577
    %v1463 = vmul.f32 %v413, %v581
    %v1464 = vmul.f32 %v413, %v585
    %v1465 = vmul.f32 %v413, %v589
    %v1466 = vmul.f32 %v413, %v593
    %v1467 = vmul.f32 %v413, %v597
    %v1468 = vmul.f32 %v413, %v601
    %v1469 = vmul.f32 %v413, %v605
    %v1470 = vmul.f32 %v417, %v545
    %v1471 = vmul.f32 %v417, %v549
    %v1472 = vmul.f32 %v417, %v553
    %v1473 = vmul.f32 %v417, %v557
    %v1474 = vmul.f32 %v417, %v561
    %v1475 = vmul.f32 %v417, %v565
    %v1476 = vmul.f32 %v417, %v569
    %v1477 = vmul.f32 %v417, %v573
    %v1478 = vmul.f32 %v417, %v577
    %v1479 = vmul.f32 %v417, %v581
    %v1480 = vmul.f32 %v417, %v585
    %v1481 = vmul.f32 %v417, %v589
    %v1482 = vmul.f32 %v417, %v593
    %v1483 = vmul.f32 %v417, %v597
    %v1484 = vmul.f32 %v417, %v601
    %v1485 = vmul.f32 %v417, %v605
    %v1486 = vmul.f32 %v421, %v545
    %v1487 = vmul.f32 %v421, %v549
    %v1488 = vmul.f32 %v421, %v553
    %v1489 = vmul.f32 %v421, %v557
    %v1490 = vmul.f32 %v421, %v561
    %v1491 = vmul.f32 %v421, %v565
    %v1492 = vmul.f32 %v421, %v569
    %v1493 = vmul.f32 %v421, %v573
    %v1494 = vmul.f32 %v421, %v577
    %v1495 = vmul.f32 %v421, %v581
    %v1496 = vmul.f32 %v421, %v585
    %v1497 = vmul.f32 %v421, %v589
    %v1498 = vmul.f32 %v421, %v593
    %v1499 = vmul.f32 %v421, %v597
    %v1500 = vmul.f32 %v421, %v601
    %v1501 = vmul.f32 %v421, %v605
    %v1502 = vmul.f32 %v425, %v545
    %v1503 = vmul.f32 %v425, %v549
    %v1504 = vmul.f32 %v425, %v553
    %v1505 = vmul.f32 %v425, %v557
    %v1506 = vmul.f32 %v425, %v561
    %v1507 = vmul.f32 %v425, %v565
    %v1508 = vmul.f32 %v425, %v569
    %v1509 = vmul.f32 %v425, %v573
    %v1510 = vmul.f32 %v425, %v577
    %v1511 = vmul.f32 %v425, %v581
    %v1512 = vmul.f32 %v425, %v585
    %v1513 = vmul.f32 %v425, %v589
    %v1514 = vmul.f32 %v425, %v593
    %v1515 = vmul.f32 %v425, %v597
    %v1516 = vmul.f32 %v425, %v601
    %v1517 = vmul.f32 %v425, %v605
    %v1518 = vmul.f32 %v429, %v545
    %v1519 = vmul.f32 %v429, %v549
    %v1520 = vmul.f32 %v429, %v553
    %v1521 = vmul.f32 %v429, %v557
    %v1522 = vmul.f32 %v429, %v561
    %v1523 = vmul.f32 %v429, %v565
    %v1524 = vmul.f32 %v429, %v569
    %v1525 = vmul.f32 %v429, %v573
    %v1526 = vmul.f32 %v429, %v577
    %v1527 = vmul.f32 %v429, %v581
    %v1528 = vmul.f32 %v429, %v585
    %v1529 = vmul.f32 %v429, %v589
    %v1530 = vmul.f32 %v429, %v593
    %v1531 = vmul.f32 %v429, %v597
    %v1532 = vmul.f32 %v429, %v601
    %v1533 = vmul.f32 %v429, %v605
    %v1534 = vmul.f32 %v433, %v545
    %v1535 = vmul.f32 %v433, %v549
    %v1536 = vmul.f32 %v433, %v553
    %v1537 = vmul.f32 %v433, %v557
    %v1538 = vmul.f32 %v433, %v561
    %v1539 = vmul.f32 %v433, %v565
    %v1540 = vmul.f32 %v433, %v569
    %v1541 = vmul.f32 %v433, %v573
    %v1542 = vmul.f32 %v433, %v577
    %v1543 = vmul.f32 %v433, %v581
    %v1544 = vmul.f32 %v433, %v585
    %v1545 = vmul.f32 %v433, %v589
    %v1546 = vmul.f32 %v433, %v593
    %v1547 = vmul.f32 %v433, %v597
    %v1548 = vmul.f32 %v433, %v601
    %v1549 = vmul.f32 %v433, %v605
    %v1550 = vmul.f32 %v437, %v545
    %v1551 = vmul.f32 %v437, %v549
    %v1552 = vmul.f32 %v437, %v553
    %v1553 = vmul.f32 %v437, %v557
    %v1554 = vmul.f32 %v437, %v561
    %v1555 = vmul.f32 %v437, %v565
    %v1556 = vmul.f32 %v437, %v569
    %v1557 = vmul.f32 %v437, %v573
    %v1558 = vmul.f32 %v437, %v577
    %v1559 = vmul.f32 %v437, %v581
    %v1560 = vmul.f32 %v437, %v585
    %v1561 = vmul.f32 %v437, %v589
    %v1562 = vmul.f32 %v437, %v593
    %v1563 = vmul.f32 %v437, %v597
    %v1564 = vmul.f32 %v437, %v601
    %v1565 = vmul.f32 %v437, %v605
    %v1566 = vmul.f32 %v441, %v545
    %v1567 = vmul.f32 %v441, %v549
    %v1568 = vmul.f32 %v441, %v553
    %v1569 = vmul.f32 %v441, %v557
    %v1570 = vmul.f32 %v441, %v561
    %v1571 = vmul.f32 %v441, %v565
    %v1572 = vmul.f32 %v441, %v569
    %v1573 = vmul.f32 %v441, %v573
    %v1574 = vmul.f32 %v441, %v577
    %v1575 = vmul.f32 %v441, %v581
    %v1576 = vmul.f32 %v441, %v585
    %v1577 = vmul.f32 %v441, %v589
    %v1578 = vmul.f32 %v441, %v593
    %v1579 = vmul.f32 %v441, %v597
    %v1580 = vmul.f32 %v441, %v601
    %v1581 = vmul.f32 %v441, %v605
    %v1582 = vmul.f32 %v445, %v545
    %v1583 = vmul.f32 %v445, %v549
    %v1584 = vmul.f32 %v445, %v553
    %v1585 = vmul.f32 %v445, %v557
    %v1586 = vmul.f32 %v445, %v561
    %v1587 = vmul.f32 %v445, %v565
    %v1588 = vmul.f32 %v445, %v569
    %v1589 = vmul.f32 %v445, %v573
    %v1590 = vmul.f32 %v445, %v577
    %v1591 = vmul.f32 %v445, %v581
    %v1592 = vmul.f32 %v445, %v585
    %v1593 = vmul.f32 %v445, %v589
    %v1594 = vmul.f32 %v445, %v593
    %v1595 = vmul.f32 %v445, %v597
    %v1596 = vmul.f32 %v445, %v601
    %v1597 = vmul.f32 %v445, %v605
    %v1598 = vmul.f32 %v449, %v545
    %v1599 = vmul.f32 %v449, %v549
    %v1600 = vmul.f32 %v449, %v553
    %v1601 = vmul.f32 %v449, %v557
    %v1602 = vmul.f32 %v449, %v561
    %v1603 = vmul.f32 %v449, %v565
    %v1604 = vmul.f32 %v449, %v569
    %v1605 = vmul.f32 %v449, %v573
    %v1606 = vmul.f32 %v449, %v577
    %v1607 = vmul.f32 %v449, %v581
    %v1608 = vmul.f32 %v449, %v585
    %v1609 = vmul.f32 %v449, %v589
    %v1610 = vmul.f32 %v449, %v593
    %v1611 = vmul.f32 %v449, %v597
    %v1612 = vmul.f32 %v449, %v601
    %v1613 = vmul.f32 %v449, %v605
    %v1614 = vmul.f32 %v453, %v545
    %v1615 = vmul.f32 %v453, %v549
    %v1616 = vmul.f32 %v453, %v553
    %v1617 = vmul.f32 %v453, %v557
    %v1618 = vmul.f32 %v453, %v561
    %v1619 = vmul.f32 %v453, %v565
    %v1620 = vmul.f32 %v453, %v569
    %v1621 = vmul.f32 %v453, %v573
    %v1622 = vmul.f32 %v453, %v577
    %v1623 = vmul.f32 %v453, %v581
    %v1624 = vmul.f32 %v453, %v585
    %v1625 = vmul.f32 %v453, %v589
    %v1626 = vmul.f32 %v453, %v593
    %v1627 = vmul.f32 %v453, %v597
    %v1628 = vmul.f32 %v453, %v601
    %v1629 = vmul.f32 %v453, %v605
    %v1632 = vlaneseq
    %v1633 = vshrl.u32 %v1632, 7
    %v1634 = vsub.s32 0, %v1633
    %v1635 = vrot.slane %v159, %v1634
    %v1636 = vlaneseq
    %v1637 = vshrl.u32 %v1636, 7
    %v1638 = vsub.s32 1, %v1637
    %v1639 = vrot.slane %v159, %v1638
    %v1640 = vlaneseq
    %v1641 = vshrl.u32 %v1640, 7
    %v1642 = vsub.s32 0, %v1641
    %v1643 = vrot.slane %v162, %v1642
    %v1644 = vlaneseq
    %v1645 = vshrl.u32 %v1644, 7
    %v1646 = vsub.s32 1, %v1645
    %v1647 = vrot.slane %v162, %v1646
    %v1652 = vlaneseq
    %v1653 = vshrl.u32 %v1652, 7
    %v1654 = vsub.s32 0, %v1653
    %v1655 = vrot.slane %v1635, %v1654
    %1657 = vbcast.lane.b32.xlu0 %v1655, 256
    %v1658 = vpop.permute.xlu0 %1657
    %s1660 = sor.u32 256, 8
    %1661 = vbcast.lane.b32.xlu0 %v1655, %s1660
    %v1662 = vpop.permute.xlu0 %1661
    %s1664 = sor.u32 256, 16
    %1665 = vbcast.lane.b32.xlu0 %v1655, %s1664
    %v1666 = vpop.permute.xlu0 %1665
    %s1668 = sor.u32 256, 24
    %1669 = vbcast.lane.b32.xlu0 %v1655, %s1668
    %v1670 = vpop.permute.xlu0 %1669
    %s1672 = sor.u32 256, 32
    %1673 = vbcast.lane.b32.xlu0 %v1655, %s1672
    %v1674 = vpop.permute.xlu0 %1673
    %s1676 = sor.u32 256, 40
    %1677 = vbcast.lane.b32.xlu0 %v1655, %s1676
    %v1678 = vpop.permute.xlu0 %1677
    %s1680 = sor.u32 256, 48
    %1681 = vbcast.lane.b32.xlu0 %v1655, %s1680
    %v1682 = vpop.permute.xlu0 %1681
    %s1684 = sor.u32 256, 56
    %1685 = vbcast.lane.b32.xlu0 %v1655, %s1684
    %v1686 = vpop.permute.xlu0 %1685
    %s1688 = sor.u32 256, 64
    %1689 = vbcast.lane.b32.xlu0 %v1655, %s1688
    %v1690 = vpop.permute.xlu0 %1689
    %s1692 = sor.u32 256, 72
    %1693 = vbcast.lane.b32.xlu0 %v1655, %s1692
    %v1694 = vpop.permute.xlu0 %1693
    %s1696 = sor.u32 256, 80
    %1697 = vbcast.lane.b32.xlu0 %v1655, %s1696
    %v1698 = vpop.permute.xlu0 %1697
    %s1700 = sor.u32 256, 88
    %1701 = vbcast.lane.b32.xlu0 %v1655, %s1700
    %v1702 = vpop.permute.xlu0 %1701
    %s1704 = sor.u32 256, 96
    %1705 = vbcast.lane.b32.xlu0 %v1655, %s1704
    %v1706 = vpop.permute.xlu0 %1705
    %s1708 = sor.u32 256, 104
    %1709 = vbcast.lane.b32.xlu0 %v1655, %s1708
    %v1710 = vpop.permute.xlu0 %1709
    %s1712 = sor.u32 256, 112
    %1713 = vbcast.lane.b32.xlu0 %v1655, %s1712
    %v1714 = vpop.permute.xlu0 %1713
    %s1716 = sor.u32 256, 120
    %1717 = vbcast.lane.b32.xlu0 %v1655, %s1716
    %v1718 = vpop.permute.xlu0 %1717
    %v1719 = vlaneseq
    %v1720 = vshrl.u32 %v1719, 7
    %v1721 = vsub.s32 0, %v1720
    %v1722 = vrot.slane %v1639, %v1721
    %1724 = vbcast.lane.b32.xlu0 %v1722, 256
    %v1725 = vpop.permute.xlu0 %1724
    %s1727 = sor.u32 256, 8
    %1728 = vbcast.lane.b32.xlu0 %v1722, %s1727
    %v1729 = vpop.permute.xlu0 %1728
    %s1731 = sor.u32 256, 16
    %1732 = vbcast.lane.b32.xlu0 %v1722, %s1731
    %v1733 = vpop.permute.xlu0 %1732
    %s1735 = sor.u32 256, 24
    %1736 = vbcast.lane.b32.xlu0 %v1722, %s1735
    %v1737 = vpop.permute.xlu0 %1736
    %s1739 = sor.u32 256, 32
    %1740 = vbcast.lane.b32.xlu0 %v1722, %s1739
    %v1741 = vpop.permute.xlu0 %1740
    %s1743 = sor.u32 256, 40
    %1744 = vbcast.lane.b32.xlu0 %v1722, %s1743
    %v1745 = vpop.permute.xlu0 %1744
    %s1747 = sor.u32 256, 48
    %1748 = vbcast.lane.b32.xlu0 %v1722, %s1747
    %v1749 = vpop.permute.xlu0 %1748
    %s1751 = sor.u32 256, 56
    %1752 = vbcast.lane.b32.xlu0 %v1722, %s1751
    %v1753 = vpop.permute.xlu0 %1752
    %s1755 = sor.u32 256, 64
    %1756 = vbcast.lane.b32.xlu0 %v1722, %s1755
    %v1757 = vpop.permute.xlu0 %1756
    %s1759 = sor.u32 256, 72
    %1760 = vbcast.lane.b32.xlu0 %v1722, %s1759
    %v1761 = vpop.permute.xlu0 %1760
    %s1763 = sor.u32 256, 80
    %1764 = vbcast.lane.b32.xlu0 %v1722, %s1763
    %v1765 = vpop.permute.xlu0 %1764
    %s1767 = sor.u32 256, 88
    %1768 = vbcast.lane.b32.xlu0 %v1722, %s1767
    %v1769 = vpop.permute.xlu0 %1768
    %s1771 = sor.u32 256, 96
    %1772 = vbcast.lane.b32.xlu0 %v1722, %s1771
    %v1773 = vpop.permute.xlu0 %1772
    %s1775 = sor.u32 256, 104
    %1776 = vbcast.lane.b32.xlu0 %v1722, %s1775
    %v1777 = vpop.permute.xlu0 %1776
    %s1779 = sor.u32 256, 112
    %1780 = vbcast.lane.b32.xlu0 %v1722, %s1779
    %v1781 = vpop.permute.xlu0 %1780
    %s1783 = sor.u32 256, 120
    %1784 = vbcast.lane.b32.xlu0 %v1722, %s1783
    %v1785 = vpop.permute.xlu0 %1784
    %v1786 = vlaneseq
    %v1787 = vshrl.u32 %v1786, 7
    %v1788 = vsub.s32 0, %v1787
    %v1789 = vrot.slane %v1643, %v1788
    %1791 = vbcast.lane.b32.xlu0 %v1789, 256
    %v1792 = vpop.permute.xlu0 %1791
    %s1794 = sor.u32 256, 8
    %1795 = vbcast.lane.b32.xlu0 %v1789, %s1794
    %v1796 = vpop.permute.xlu0 %1795
    %s1798 = sor.u32 256, 16
    %1799 = vbcast.lane.b32.xlu0 %v1789, %s1798
    %v1800 = vpop.permute.xlu0 %1799
    %s1802 = sor.u32 256, 24
    %1803 = vbcast.lane.b32.xlu0 %v1789, %s1802
    %v1804 = vpop.permute.xlu0 %1803
    %s1806 = sor.u32 256, 32
    %1807 = vbcast.lane.b32.xlu0 %v1789, %s1806
    %v1808 = vpop.permute.xlu0 %1807
    %s1810 = sor.u32 256, 40
    %1811 = vbcast.lane.b32.xlu0 %v1789, %s1810
    %v1812 = vpop.permute.xlu0 %1811
    %s1814 = sor.u32 256, 48
    %1815 = vbcast.lane.b32.xlu0 %v1789, %s1814
    %v1816 = vpop.permute.xlu0 %1815
    %s1818 = sor.u32 256, 56
    %1819 = vbcast.lane.b32.xlu0 %v1789, %s1818
    %v1820 = vpop.permute.xlu0 %1819
    %s1822 = sor.u32 256, 64
    %1823 = vbcast.lane.b32.xlu0 %v1789, %s1822
    %v1824 = vpop.permute.xlu0 %1823
    %s1826 = sor.u32 256, 72
    %1827 = vbcast.lane.b32.xlu0 %v1789, %s1826
    %v1828 = vpop.permute.xlu0 %1827
    %s1830 = sor.u32 256, 80
    %1831 = vbcast.lane.b32.xlu0 %v1789, %s1830
    %v1832 = vpop.permute.xlu0 %1831
    %s1834 = sor.u32 256, 88
    %1835 = vbcast.lane.b32.xlu0 %v1789, %s1834
    %v1836 = vpop.permute.xlu0 %1835
    %s1838 = sor.u32 256, 96
    %1839 = vbcast.lane.b32.xlu0 %v1789, %s1838
    %v1840 = vpop.permute.xlu0 %1839
    %s1842 = sor.u32 256, 104
    %1843 = vbcast.lane.b32.xlu0 %v1789, %s1842
    %v1844 = vpop.permute.xlu0 %1843
    %s1846 = sor.u32 256, 112
    %1847 = vbcast.lane.b32.xlu0 %v1789, %s1846
    %v1848 = vpop.permute.xlu0 %1847
    %s1850 = sor.u32 256, 120
    %1851 = vbcast.lane.b32.xlu0 %v1789, %s1850
    %v1852 = vpop.permute.xlu0 %1851
    %v1853 = vlaneseq
    %v1854 = vshrl.u32 %v1853, 7
    %v1855 = vsub.s32 0, %v1854
    %v1856 = vrot.slane %v1647, %v1855
    %1858 = vbcast.lane.b32.xlu0 %v1856, 256
    %v1859 = vpop.permute.xlu0 %1858
    %s1861 = sor.u32 256, 8
    %1862 = vbcast.lane.b32.xlu0 %v1856, %s1861
    %v1863 = vpop.permute.xlu0 %1862
    %s1865 = sor.u32 256, 16
    %1866 = vbcast.lane.b32.xlu0 %v1856, %s1865
    %v1867 = vpop.permute.xlu0 %1866
    %s1869 = sor.u32 256, 24
    %1870 = vbcast.lane.b32.xlu0 %v1856, %s1869
    %v1871 = vpop.permute.xlu0 %1870
    %s1873 = sor.u32 256, 32
    %1874 = vbcast.lane.b32.xlu0 %v1856, %s1873
    %v1875 = vpop.permute.xlu0 %1874
    %s1877 = sor.u32 256, 40
    %1878 = vbcast.lane.b32.xlu0 %v1856, %s1877
    %v1879 = vpop.permute.xlu0 %1878
    %s1881 = sor.u32 256, 48
    %1882 = vbcast.lane.b32.xlu0 %v1856, %s1881
    %v1883 = vpop.permute.xlu0 %1882
    %s1885 = sor.u32 256, 56
    %1886 = vbcast.lane.b32.xlu0 %v1856, %s1885
    %v1887 = vpop.permute.xlu0 %1886
    %s1889 = sor.u32 256, 64
    %1890 = vbcast.lane.b32.xlu0 %v1856, %s1889
    %v1891 = vpop.permute.xlu0 %1890
    %s1893 = sor.u32 256, 72
    %1894 = vbcast.lane.b32.xlu0 %v1856, %s1893
    %v1895 = vpop.permute.xlu0 %1894
    %s1897 = sor.u32 256, 80
    %1898 = vbcast.lane.b32.xlu0 %v1856, %s1897
    %v1899 = vpop.permute.xlu0 %1898
    %s1901 = sor.u32 256, 88
    %1902 = vbcast.lane.b32.xlu0 %v1856, %s1901
    %v1903 = vpop.permute.xlu0 %1902
    %s1905 = sor.u32 256, 96
    %1906 = vbcast.lane.b32.xlu0 %v1856, %s1905
    %v1907 = vpop.permute.xlu0 %1906
    %s1909 = sor.u32 256, 104
    %1910 = vbcast.lane.b32.xlu0 %v1856, %s1909
    %v1911 = vpop.permute.xlu0 %1910
    %s1913 = sor.u32 256, 112
    %1914 = vbcast.lane.b32.xlu0 %v1856, %s1913
    %v1915 = vpop.permute.xlu0 %1914
    %s1917 = sor.u32 256, 120
    %1918 = vbcast.lane.b32.xlu0 %v1856, %s1917
    %v1919 = vpop.permute.xlu0 %1918
    %v1920 = vlaneseq
    %v1921 = vshrl.u32 %v1920, 7
    %v1922 = vsub.s32 1, %v1921
    %v1923 = vrot.slane %v138, %v1922
    %v1924 = vlaneseq
    %v1925 = vshrl.u32 %v1924, 7
    %v1926 = vsub.s32 5, %v1925
    %v1927 = vrot.slane %v138, %v1926
    %v1928 = vlaneseq
    %v1929 = vshrl.u32 %v1928, 7
    %v1930 = vsub.s32 1, %v1929
    %v1931 = vrot.slane %v139, %v1930
    %v1932 = vlaneseq
    %v1933 = vshrl.u32 %v1932, 7
    %v1934 = vsub.s32 5, %v1933
    %v1935 = vrot.slane %v139, %v1934
    %v1936 = vlaneseq
    %v1937 = vshrl.u32 %v1936, 7
    %v1938 = vsub.s32 1, %v1937
    %v1939 = vrot.slane %v140, %v1938
    %v1940 = vlaneseq
    %v1941 = vshrl.u32 %v1940, 7
    %v1942 = vsub.s32 5, %v1941
    %v1943 = vrot.slane %v140, %v1942
    %v1944 = vlaneseq
    %v1945 = vshrl.u32 %v1944, 7
    %v1946 = vsub.s32 1, %v1945
    %v1947 = vrot.slane %v141, %v1946
    %v1948 = vlaneseq
    %v1949 = vshrl.u32 %v1948, 7
    %v1950 = vsub.s32 5, %v1949
    %v1951 = vrot.slane %v141, %v1950
    %v1952 = vlaneseq
    %v1953 = vshrl.u32 %v1952, 7
    %v1954 = vsub.s32 1, %v1953
    %v1955 = vrot.slane %v142, %v1954
    %v1956 = vlaneseq
    %v1957 = vshrl.u32 %v1956, 7
    %v1958 = vsub.s32 5, %v1957
    %v1959 = vrot.slane %v142, %v1958
    %v1960 = vlaneseq
    %v1961 = vshrl.u32 %v1960, 7
    %v1962 = vsub.s32 1, %v1961
    %v1963 = vrot.slane %v143, %v1962
    %v1964 = vlaneseq
    %v1965 = vshrl.u32 %v1964, 7
    %v1966 = vsub.s32 5, %v1965
    %v1967 = vrot.slane %v143, %v1966
    %v1968 = vlaneseq
    %v1969 = vshrl.u32 %v1968, 7
    %v1970 = vsub.s32 1, %v1969
    %v1971 = vrot.slane %v144, %v1970
    %v1972 = vlaneseq
    %v1973 = vshrl.u32 %v1972, 7
    %v1974 = vsub.s32 5, %v1973
    %v1975 = vrot.slane %v144, %v1974
    %v1976 = vlaneseq
    %v1977 = vshrl.u32 %v1976, 7
    %v1978 = vsub.s32 1, %v1977
    %v1979 = vrot.slane %v145, %v1978
    %v1980 = vlaneseq
    %v1981 = vshrl.u32 %v1980, 7
    %v1982 = vsub.s32 5, %v1981
    %v1983 = vrot.slane %v145, %v1982
    %v2000 = vlaneseq
    %v2001 = vshrl.u32 %v2000, 7
    %v2002 = vsub.s32 1, %v2001
    %v2003 = vrot.slane %v1923, %v2002
    %v2004 = vlaneseq
    %v2005 = vshrl.u32 %v2004, 7
    %v2006 = vsub.s32 1, %v2005
    %v2007 = vrot.slane %v1927, %v2006
    %v2008 = vlaneseq
    %v2009 = vshrl.u32 %v2008, 7
    %v2010 = vsub.s32 1, %v2009
    %v2011 = vrot.slane %v1931, %v2010
    %v2012 = vlaneseq
    %v2013 = vshrl.u32 %v2012, 7
    %v2014 = vsub.s32 1, %v2013
    %v2015 = vrot.slane %v1935, %v2014
    %v2016 = vlaneseq
    %v2017 = vshrl.u32 %v2016, 7
    %v2018 = vsub.s32 1, %v2017
    %v2019 = vrot.slane %v1939, %v2018
    %v2020 = vlaneseq
    %v2021 = vshrl.u32 %v2020, 7
    %v2022 = vsub.s32 1, %v2021
    %v2023 = vrot.slane %v1943, %v2022
    %v2024 = vlaneseq
    %v2025 = vshrl.u32 %v2024, 7
    %v2026 = vsub.s32 1, %v2025
    %v2027 = vrot.slane %v1947, %v2026
    %v2028 = vlaneseq
    %v2029 = vshrl.u32 %v2028, 7
    %v2030 = vsub.s32 1, %v2029
    %v2031 = vrot.slane %v1951, %v2030
    %v2032 = vlaneseq
    %v2033 = vshrl.u32 %v2032, 7
    %v2034 = vsub.s32 1, %v2033
    %v2035 = vrot.slane %v1955, %v2034
    %v2036 = vlaneseq
    %v2037 = vshrl.u32 %v2036, 7
    %v2038 = vsub.s32 1, %v2037
    %v2039 = vrot.slane %v1959, %v2038
    %v2040 = vlaneseq
    %v2041 = vshrl.u32 %v2040, 7
    %v2042 = vsub.s32 1, %v2041
    %v2043 = vrot.slane %v1963, %v2042
    %v2044 = vlaneseq
    %v2045 = vshrl.u32 %v2044, 7
    %v2046 = vsub.s32 1, %v2045
    %v2047 = vrot.slane %v1967, %v2046
    %v2048 = vlaneseq
    %v2049 = vshrl.u32 %v2048, 7
    %v2050 = vsub.s32 1, %v2049
    %v2051 = vrot.slane %v1971, %v2050
    %v2052 = vlaneseq
    %v2053 = vshrl.u32 %v2052, 7
    %v2054 = vsub.s32 1, %v2053
    %v2055 = vrot.slane %v1975, %v2054
    %v2056 = vlaneseq
    %v2057 = vshrl.u32 %v2056, 7
    %v2058 = vsub.s32 1, %v2057
    %v2059 = vrot.slane %v1979, %v2058
    %v2060 = vlaneseq
    %v2061 = vshrl.u32 %v2060, 7
    %v2062 = vsub.s32 1, %v2061
    %v2063 = vrot.slane %v1983, %v2062
    %v2064 = vmul.f32 %v1658, %v2003
    %v2065 = vmul.f32 %v1658, %v2007
    %v2066 = vmul.f32 %v1658, %v2011
    %v2067 = vmul.f32 %v1658, %v2015
    %v2068 = vmul.f32 %v1658, %v2019
    %v2069 = vmul.f32 %v1658, %v2023
    %v2070 = vmul.f32 %v1658, %v2027
    %v2071 = vmul.f32 %v1658, %v2031
    %v2072 = vmul.f32 %v1658, %v2035
    %v2073 = vmul.f32 %v1658, %v2039
    %v2074 = vmul.f32 %v1658, %v2043
    %v2075 = vmul.f32 %v1658, %v2047
    %v2076 = vmul.f32 %v1658, %v2051
    %v2077 = vmul.f32 %v1658, %v2055
    %v2078 = vmul.f32 %v1658, %v2059
    %v2079 = vmul.f32 %v1658, %v2063
    %v2080 = vmul.f32 %v1662, %v2003
    %v2081 = vmul.f32 %v1662, %v2007
    %v2082 = vmul.f32 %v1662, %v2011
    %v2083 = vmul.f32 %v1662, %v2015
    %v2084 = vmul.f32 %v1662, %v2019
    %v2085 = vmul.f32 %v1662, %v2023
    %v2086 = vmul.f32 %v1662, %v2027
    %v2087 = vmul.f32 %v1662, %v2031
    %v2088 = vmul.f32 %v1662, %v2035
    %v2089 = vmul.f32 %v1662, %v2039
    %v2090 = vmul.f32 %v1662, %v2043
    %v2091 = vmul.f32 %v1662, %v2047
    %v2092 = vmul.f32 %v1662, %v2051
    %v2093 = vmul.f32 %v1662, %v2055
    %v2094 = vmul.f32 %v1662, %v2059
    %v2095 = vmul.f32 %v1662, %v2063
    %v2096 = vmul.f32 %v1666, %v2003
    %v2097 = vmul.f32 %v1666, %v2007
    %v2098 = vmul.f32 %v1666, %v2011
    %v2099 = vmul.f32 %v1666, %v2015
    %v2100 = vmul.f32 %v1666, %v2019
    %v2101 = vmul.f32 %v1666, %v2023
    %v2102 = vmul.f32 %v1666, %v2027
    %v2103 = vmul.f32 %v1666, %v2031
    %v2104 = vmul.f32 %v1666, %v2035
    %v2105 = vmul.f32 %v1666, %v2039
    %v2106 = vmul.f32 %v1666, %v2043
    %v2107 = vmul.f32 %v1666, %v2047
    %v2108 = vmul.f32 %v1666, %v2051
    %v2109 = vmul.f32 %v1666, %v2055
    %v2110 = vmul.f32 %v1666, %v2059
    %v2111 = vmul.f32 %v1666, %v2063
    %v2112 = vmul.f32 %v1670, %v2003
    %v2113 = vmul.f32 %v1670, %v2007
    %v2114 = vmul.f32 %v1670, %v2011
    %v2115 = vmul.f32 %v1670, %v2015
    %v2116 = vmul.f32 %v1670, %v2019
    %v2117 = vmul.f32 %v1670, %v2023
    %v2118 = vmul.f32 %v1670, %v2027
    %v2119 = vmul.f32 %v1670, %v2031
    %v2120 = vmul.f32 %v1670, %v2035
    %v2121 = vmul.f32 %v1670, %v2039
    %v2122 = vmul.f32 %v1670, %v2043
    %v2123 = vmul.f32 %v1670, %v2047
    %v2124 = vmul.f32 %v1670, %v2051
    %v2125 = vmul.f32 %v1670, %v2055
    %v2126 = vmul.f32 %v1670, %v2059
    %v2127 = vmul.f32 %v1670, %v2063
    %v2128 = vmul.f32 %v1674, %v2003
    %v2129 = vmul.f32 %v1674, %v2007
    %v2130 = vmul.f32 %v1674, %v2011
    %v2131 = vmul.f32 %v1674, %v2015
    %v2132 = vmul.f32 %v1674, %v2019
    %v2133 = vmul.f32 %v1674, %v2023
    %v2134 = vmul.f32 %v1674, %v2027
    %v2135 = vmul.f32 %v1674, %v2031
    %v2136 = vmul.f32 %v1674, %v2035
    %v2137 = vmul.f32 %v1674, %v2039
    %v2138 = vmul.f32 %v1674, %v2043
    %v2139 = vmul.f32 %v1674, %v2047
    %v2140 = vmul.f32 %v1674, %v2051
    %v2141 = vmul.f32 %v1674, %v2055
    %v2142 = vmul.f32 %v1674, %v2059
    %v2143 = vmul.f32 %v1674, %v2063
    %v2144 = vmul.f32 %v1678, %v2003
    %v2145 = vmul.f32 %v1678, %v2007
    %v2146 = vmul.f32 %v1678, %v2011
    %v2147 = vmul.f32 %v1678, %v2015
    %v2148 = vmul.f32 %v1678, %v2019
    %v2149 = vmul.f32 %v1678, %v2023
    %v2150 = vmul.f32 %v1678, %v2027
    %v2151 = vmul.f32 %v1678, %v2031
    %v2152 = vmul.f32 %v1678, %v2035
    %v2153 = vmul.f32 %v1678, %v2039
    %v2154 = vmul.f32 %v1678, %v2043
    %v2155 = vmul.f32 %v1678, %v2047
    %v2156 = vmul.f32 %v1678, %v2051
    %v2157 = vmul.f32 %v1678, %v2055
    %v2158 = vmul.f32 %v1678, %v2059
    %v2159 = vmul.f32 %v1678, %v2063
    %v2160 = vmul.f32 %v1682, %v2003
    %v2161 = vmul.f32 %v1682, %v2007
    %v2162 = vmul.f32 %v1682, %v2011
    %v2163 = vmul.f32 %v1682, %v2015
    %v2164 = vmul.f32 %v1682, %v2019
    %v2165 = vmul.f32 %v1682, %v2023
    %v2166 = vmul.f32 %v1682, %v2027
    %v2167 = vmul.f32 %v1682, %v2031
    %v2168 = vmul.f32 %v1682, %v2035
    %v2169 = vmul.f32 %v1682, %v2039
    %v2170 = vmul.f32 %v1682, %v2043
    %v2171 = vmul.f32 %v1682, %v2047
    %v2172 = vmul.f32 %v1682, %v2051
    %v2173 = vmul.f32 %v1682, %v2055
    %v2174 = vmul.f32 %v1682, %v2059
    %v2175 = vmul.f32 %v1682, %v2063
    %v2176 = vmul.f32 %v1686, %v2003
    %v2177 = vmul.f32 %v1686, %v2007
    %v2178 = vmul.f32 %v1686, %v2011
    %v2179 = vmul.f32 %v1686, %v2015
    %v2180 = vmul.f32 %v1686, %v2019
    %v2181 = vmul.f32 %v1686, %v2023
    %v2182 = vmul.f32 %v1686, %v2027
    %v2183 = vmul.f32 %v1686, %v2031
    %v2184 = vmul.f32 %v1686, %v2035
    %v2185 = vmul.f32 %v1686, %v2039
    %v2186 = vmul.f32 %v1686, %v2043
    %v2187 = vmul.f32 %v1686, %v2047
    %v2188 = vmul.f32 %v1686, %v2051
    %v2189 = vmul.f32 %v1686, %v2055
    %v2190 = vmul.f32 %v1686, %v2059
    %v2191 = vmul.f32 %v1686, %v2063
    %v2192 = vmul.f32 %v1690, %v2003
    %v2193 = vmul.f32 %v1690, %v2007
    %v2194 = vmul.f32 %v1690, %v2011
    %v2195 = vmul.f32 %v1690, %v2015
    %v2196 = vmul.f32 %v1690, %v2019
    %v2197 = vmul.f32 %v1690, %v2023
    %v2198 = vmul.f32 %v1690, %v2027
    %v2199 = vmul.f32 %v1690, %v2031
    %v2200 = vmul.f32 %v1690, %v2035
    %v2201 = vmul.f32 %v1690, %v2039
    %v2202 = vmul.f32 %v1690, %v2043
    %v2203 = vmul.f32 %v1690, %v2047
    %v2204 = vmul.f32 %v1690, %v2051
    %v2205 = vmul.f32 %v1690, %v2055
    %v2206 = vmul.f32 %v1690, %v2059
    %v2207 = vmul.f32 %v1690, %v2063
    %v2208 = vmul.f32 %v1694, %v2003
    %v2209 = vmul.f32 %v1694, %v2007
    %v2210 = vmul.f32 %v1694, %v2011
    %v2211 = vmul.f32 %v1694, %v2015
    %v2212 = vmul.f32 %v1694, %v2019
    %v2213 = vmul.f32 %v1694, %v2023
    %v2214 = vmul.f32 %v1694, %v2027
    %v2215 = vmul.f32 %v1694, %v2031
    %v2216 = vmul.f32 %v1694, %v2035
    %v2217 = vmul.f32 %v1694, %v2039
    %v2218 = vmul.f32 %v1694, %v2043
    %v2219 = vmul.f32 %v1694, %v2047
    %v2220 = vmul.f32 %v1694, %v2051
    %v2221 = vmul.f32 %v1694, %v2055
    %v2222 = vmul.f32 %v1694, %v2059
    %v2223 = vmul.f32 %v1694, %v2063
    %v2224 = vmul.f32 %v1698, %v2003
    %v2225 = vmul.f32 %v1698, %v2007
    %v2226 = vmul.f32 %v1698, %v2011
    %v2227 = vmul.f32 %v1698, %v2015
    %v2228 = vmul.f32 %v1698, %v2019
    %v2229 = vmul.f32 %v1698, %v2023
    %v2230 = vmul.f32 %v1698, %v2027
    %v2231 = vmul.f32 %v1698, %v2031
    %v2232 = vmul.f32 %v1698, %v2035
    %v2233 = vmul.f32 %v1698, %v2039
    %v2234 = vmul.f32 %v1698, %v2043
    %v2235 = vmul.f32 %v1698, %v2047
    %v2236 = vmul.f32 %v1698, %v2051
    %v2237 = vmul.f32 %v1698, %v2055
    %v2238 = vmul.f32 %v1698, %v2059
    %v2239 = vmul.f32 %v1698, %v2063
    %v2240 = vmul.f32 %v1702, %v2003
    %v2241 = vmul.f32 %v1702, %v2007
    %v2242 = vmul.f32 %v1702, %v2011
    %v2243 = vmul.f32 %v1702, %v2015
    %v2244 = vmul.f32 %v1702, %v2019
    %v2245 = vmul.f32 %v1702, %v2023
    %v2246 = vmul.f32 %v1702, %v2027
    %v2247 = vmul.f32 %v1702, %v2031
    %v2248 = vmul.f32 %v1702, %v2035
    %v2249 = vmul.f32 %v1702, %v2039
    %v2250 = vmul.f32 %v1702, %v2043
    %v2251 = vmul.f32 %v1702, %v2047
    %v2252 = vmul.f32 %v1702, %v2051
    %v2253 = vmul.f32 %v1702, %v2055
    %v2254 = vmul.f32 %v1702, %v2059
    %v2255 = vmul.f32 %v1702, %v2063
    %v2256 = vmul.f32 %v1706, %v2003
    %v2257 = vmul.f32 %v1706, %v2007
    %v2258 = vmul.f32 %v1706, %v2011
    %v2259 = vmul.f32 %v1706, %v2015
    %v2260 = vmul.f32 %v1706, %v2019
    %v2261 = vmul.f32 %v1706, %v2023
    %v2262 = vmul.f32 %v1706, %v2027
    %v2263 = vmul.f32 %v1706, %v2031
    %v2264 = vmul.f32 %v1706, %v2035
    %v2265 = vmul.f32 %v1706, %v2039
    %v2266 = vmul.f32 %v1706, %v2043
    %v2267 = vmul.f32 %v1706, %v2047
    %v2268 = vmul.f32 %v1706, %v2051
    %v2269 = vmul.f32 %v1706, %v2055
    %v2270 = vmul.f32 %v1706, %v2059
    %v2271 = vmul.f32 %v1706, %v2063
    %v2272 = vmul.f32 %v1710, %v2003
    %v2273 = vmul.f32 %v1710, %v2007
    %v2274 = vmul.f32 %v1710, %v2011
    %v2275 = vmul.f32 %v1710, %v2015
    %v2276 = vmul.f32 %v1710, %v2019
    %v2277 = vmul.f32 %v1710, %v2023
    %v2278 = vmul.f32 %v1710, %v2027
    %v2279 = vmul.f32 %v1710, %v2031
    %v2280 = vmul.f32 %v1710, %v2035
    %v2281 = vmul.f32 %v1710, %v2039
    %v2282 = vmul.f32 %v1710, %v2043
    %v2283 = vmul.f32 %v1710, %v2047
    %v2284 = vmul.f32 %v1710, %v2051
    %v2285 = vmul.f32 %v1710, %v2055
    %v2286 = vmul.f32 %v1710, %v2059
    %v2287 = vmul.f32 %v1710, %v2063
    %v2288 = vmul.f32 %v1714, %v2003
    %v2289 = vmul.f32 %v1714, %v2007
    %v2290 = vmul.f32 %v1714, %v2011
    %v2291 = vmul.f32 %v1714, %v2015
    %v2292 = vmul.f32 %v1714, %v2019
    %v2293 = vmul.f32 %v1714, %v2023
    %v2294 = vmul.f32 %v1714, %v2027
    %v2295 = vmul.f32 %v1714, %v2031
    %v2296 = vmul.f32 %v1714, %v2035
    %v2297 = vmul.f32 %v1714, %v2039
    %v2298 = vmul.f32 %v1714, %v2043
    %v2299 = vmul.f32 %v1714, %v2047
    %v2300 = vmul.f32 %v1714, %v2051
    %v2301 = vmul.f32 %v1714, %v2055
    %v2302 = vmul.f32 %v1714, %v2059
    %v2303 = vmul.f32 %v1714, %v2063
    %v2304 = vmul.f32 %v1718, %v2003
    %v2305 = vmul.f32 %v1718, %v2007
    %v2306 = vmul.f32 %v1718, %v2011
    %v2307 = vmul.f32 %v1718, %v2015
    %v2308 = vmul.f32 %v1718, %v2019
    %v2309 = vmul.f32 %v1718, %v2023
    %v2310 = vmul.f32 %v1718, %v2027
    %v2311 = vmul.f32 %v1718, %v2031
    %v2312 = vmul.f32 %v1718, %v2035
    %v2313 = vmul.f32 %v1718, %v2039
    %v2314 = vmul.f32 %v1718, %v2043
    %v2315 = vmul.f32 %v1718, %v2047
    %v2316 = vmul.f32 %v1718, %v2051
    %v2317 = vmul.f32 %v1718, %v2055
    %v2318 = vmul.f32 %v1718, %v2059
    %v2319 = vmul.f32 %v1718, %v2063
    %v2320 = vmul.f32 %v1725, %v2003
    %v2321 = vmul.f32 %v1725, %v2007
    %v2322 = vmul.f32 %v1725, %v2011
    %v2323 = vmul.f32 %v1725, %v2015
    %v2324 = vmul.f32 %v1725, %v2019
    %v2325 = vmul.f32 %v1725, %v2023
    %v2326 = vmul.f32 %v1725, %v2027
    %v2327 = vmul.f32 %v1725, %v2031
    %v2328 = vmul.f32 %v1725, %v2035
    %v2329 = vmul.f32 %v1725, %v2039
    %v2330 = vmul.f32 %v1725, %v2043
    %v2331 = vmul.f32 %v1725, %v2047
    %v2332 = vmul.f32 %v1725, %v2051
    %v2333 = vmul.f32 %v1725, %v2055
    %v2334 = vmul.f32 %v1725, %v2059
    %v2335 = vmul.f32 %v1725, %v2063
    %v2336 = vmul.f32 %v1729, %v2003
    %v2337 = vmul.f32 %v1729, %v2007
    %v2338 = vmul.f32 %v1729, %v2011
    %v2339 = vmul.f32 %v1729, %v2015
    %v2340 = vmul.f32 %v1729, %v2019
    %v2341 = vmul.f32 %v1729, %v2023
    %v2342 = vmul.f32 %v1729, %v2027
    %v2343 = vmul.f32 %v1729, %v2031
    %v2344 = vmul.f32 %v1729, %v2035
    %v2345 = vmul.f32 %v1729, %v2039
    %v2346 = vmul.f32 %v1729, %v2043
    %v2347 = vmul.f32 %v1729, %v2047
    %v2348 = vmul.f32 %v1729, %v2051
    %v2349 = vmul.f32 %v1729, %v2055
    %v2350 = vmul.f32 %v1729, %v2059
    %v2351 = vmul.f32 %v1729, %v2063
    %v2352 = vmul.f32 %v1733, %v2003
    %v2353 = vmul.f32 %v1733, %v2007
    %v2354 = vmul.f32 %v1733, %v2011
    %v2355 = vmul.f32 %v1733, %v2015
    %v2356 = vmul.f32 %v1733, %v2019
    %v2357 = vmul.f32 %v1733, %v2023
    %v2358 = vmul.f32 %v1733, %v2027
    %v2359 = vmul.f32 %v1733, %v2031
    %v2360 = vmul.f32 %v1733, %v2035
    %v2361 = vmul.f32 %v1733, %v2039
    %v2362 = vmul.f32 %v1733, %v2043
    %v2363 = vmul.f32 %v1733, %v2047
    %v2364 = vmul.f32 %v1733, %v2051
    %v2365 = vmul.f32 %v1733, %v2055
    %v2366 = vmul.f32 %v1733, %v2059
    %v2367 = vmul.f32 %v1733, %v2063
    %v2368 = vmul.f32 %v1737, %v2003
    %v2369 = vmul.f32 %v1737, %v2007
    %v2370 = vmul.f32 %v1737, %v2011
    %v2371 = vmul.f32 %v1737, %v2015
    %v2372 = vmul.f32 %v1737, %v2019
    %v2373 = vmul.f32 %v1737, %v2023
    %v2374 = vmul.f32 %v1737, %v2027
    %v2375 = vmul.f32 %v1737, %v2031
    %v2376 = vmul.f32 %v1737, %v2035
    %v2377 = vmul.f32 %v1737, %v2039
    %v2378 = vmul.f32 %v1737, %v2043
    %v2379 = vmul.f32 %v1737, %v2047
    %v2380 = vmul.f32 %v1737, %v2051
    %v2381 = vmul.f32 %v1737, %v2055
    %v2382 = vmul.f32 %v1737, %v2059
    %v2383 = vmul.f32 %v1737, %v2063
    %v2384 = vmul.f32 %v1741, %v2003
    %v2385 = vmul.f32 %v1741, %v2007
    %v2386 = vmul.f32 %v1741, %v2011
    %v2387 = vmul.f32 %v1741, %v2015
    %v2388 = vmul.f32 %v1741, %v2019
    %v2389 = vmul.f32 %v1741, %v2023
    %v2390 = vmul.f32 %v1741, %v2027
    %v2391 = vmul.f32 %v1741, %v2031
    %v2392 = vmul.f32 %v1741, %v2035
    %v2393 = vmul.f32 %v1741, %v2039
    %v2394 = vmul.f32 %v1741, %v2043
    %v2395 = vmul.f32 %v1741, %v2047
    %v2396 = vmul.f32 %v1741, %v2051
    %v2397 = vmul.f32 %v1741, %v2055
    %v2398 = vmul.f32 %v1741, %v2059
    %v2399 = vmul.f32 %v1741, %v2063
    %v2400 = vmul.f32 %v1745, %v2003
    %v2401 = vmul.f32 %v1745, %v2007
    %v2402 = vmul.f32 %v1745, %v2011
    %v2403 = vmul.f32 %v1745, %v2015
    %v2404 = vmul.f32 %v1745, %v2019
    %v2405 = vmul.f32 %v1745, %v2023
    %v2406 = vmul.f32 %v1745, %v2027
    %v2407 = vmul.f32 %v1745, %v2031
    %v2408 = vmul.f32 %v1745, %v2035
    %v2409 = vmul.f32 %v1745, %v2039
    %v2410 = vmul.f32 %v1745, %v2043
    %v2411 = vmul.f32 %v1745, %v2047
    %v2412 = vmul.f32 %v1745, %v2051
    %v2413 = vmul.f32 %v1745, %v2055
    %v2414 = vmul.f32 %v1745, %v2059
    %v2415 = vmul.f32 %v1745, %v2063
    %v2416 = vmul.f32 %v1749, %v2003
    %v2417 = vmul.f32 %v1749, %v2007
    %v2418 = vmul.f32 %v1749, %v2011
    %v2419 = vmul.f32 %v1749, %v2015
    %v2420 = vmul.f32 %v1749, %v2019
    %v2421 = vmul.f32 %v1749, %v2023
    %v2422 = vmul.f32 %v1749, %v2027
    %v2423 = vmul.f32 %v1749, %v2031
    %v2424 = vmul.f32 %v1749, %v2035
    %v2425 = vmul.f32 %v1749, %v2039
    %v2426 = vmul.f32 %v1749, %v2043
    %v2427 = vmul.f32 %v1749, %v2047
    %v2428 = vmul.f32 %v1749, %v2051
    %v2429 = vmul.f32 %v1749, %v2055
    %v2430 = vmul.f32 %v1749, %v2059
    %v2431 = vmul.f32 %v1749, %v2063
    %v2432 = vmul.f32 %v1753, %v2003
    %v2433 = vmul.f32 %v1753, %v2007
    %v2434 = vmul.f32 %v1753, %v2011
    %v2435 = vmul.f32 %v1753, %v2015
    %v2436 = vmul.f32 %v1753, %v2019
    %v2437 = vmul.f32 %v1753, %v2023
    %v2438 = vmul.f32 %v1753, %v2027
    %v2439 = vmul.f32 %v1753, %v2031
    %v2440 = vmul.f32 %v1753, %v2035
    %v2441 = vmul.f32 %v1753, %v2039
    %v2442 = vmul.f32 %v1753, %v2043
    %v2443 = vmul.f32 %v1753, %v2047
    %v2444 = vmul.f32 %v1753, %v2051
    %v2445 = vmul.f32 %v1753, %v2055
    %v2446 = vmul.f32 %v1753, %v2059
    %v2447 = vmul.f32 %v1753, %v2063
    %v2448 = vmul.f32 %v1757, %v2003
    %v2449 = vmul.f32 %v1757, %v2007
    %v2450 = vmul.f32 %v1757, %v2011
    %v2451 = vmul.f32 %v1757, %v2015
    %v2452 = vmul.f32 %v1757, %v2019
    %v2453 = vmul.f32 %v1757, %v2023
    %v2454 = vmul.f32 %v1757, %v2027
    %v2455 = vmul.f32 %v1757, %v2031
    %v2456 = vmul.f32 %v1757, %v2035
    %v2457 = vmul.f32 %v1757, %v2039
    %v2458 = vmul.f32 %v1757, %v2043
    %v2459 = vmul.f32 %v1757, %v2047
    %v2460 = vmul.f32 %v1757, %v2051
    %v2461 = vmul.f32 %v1757, %v2055
    %v2462 = vmul.f32 %v1757, %v2059
    %v2463 = vmul.f32 %v1757, %v2063
    %v2464 = vmul.f32 %v1761, %v2003
    %v2465 = vmul.f32 %v1761, %v2007
    %v2466 = vmul.f32 %v1761, %v2011
    %v2467 = vmul.f32 %v1761, %v2015
    %v2468 = vmul.f32 %v1761, %v2019
    %v2469 = vmul.f32 %v1761, %v2023
    %v2470 = vmul.f32 %v1761, %v2027
    %v2471 = vmul.f32 %v1761, %v2031
    %v2472 = vmul.f32 %v1761, %v2035
    %v2473 = vmul.f32 %v1761, %v2039
    %v2474 = vmul.f32 %v1761, %v2043
    %v2475 = vmul.f32 %v1761, %v2047
    %v2476 = vmul.f32 %v1761, %v2051
    %v2477 = vmul.f32 %v1761, %v2055
    %v2478 = vmul.f32 %v1761, %v2059
    %v2479 = vmul.f32 %v1761, %v2063
    %v2480 = vmul.f32 %v1765, %v2003
    %v2481 = vmul.f32 %v1765, %v2007
    %v2482 = vmul.f32 %v1765, %v2011
    %v2483 = vmul.f32 %v1765, %v2015
    %v2484 = vmul.f32 %v1765, %v2019
    %v2485 = vmul.f32 %v1765, %v2023
    %v2486 = vmul.f32 %v1765, %v2027
    %v2487 = vmul.f32 %v1765, %v2031
    %v2488 = vmul.f32 %v1765, %v2035
    %v2489 = vmul.f32 %v1765, %v2039
    %v2490 = vmul.f32 %v1765, %v2043
    %v2491 = vmul.f32 %v1765, %v2047
    %v2492 = vmul.f32 %v1765, %v2051
    %v2493 = vmul.f32 %v1765, %v2055
    %v2494 = vmul.f32 %v1765, %v2059
    %v2495 = vmul.f32 %v1765, %v2063
    %v2496 = vmul.f32 %v1769, %v2003
    %v2497 = vmul.f32 %v1769, %v2007
    %v2498 = vmul.f32 %v1769, %v2011
    %v2499 = vmul.f32 %v1769, %v2015
    %v2500 = vmul.f32 %v1769, %v2019
    %v2501 = vmul.f32 %v1769, %v2023
    %v2502 = vmul.f32 %v1769, %v2027
    %v2503 = vmul.f32 %v1769, %v2031
    %v2504 = vmul.f32 %v1769, %v2035
    %v2505 = vmul.f32 %v1769, %v2039
    %v2506 = vmul.f32 %v1769, %v2043
    %v2507 = vmul.f32 %v1769, %v2047
    %v2508 = vmul.f32 %v1769, %v2051
    %v2509 = vmul.f32 %v1769, %v2055
    %v2510 = vmul.f32 %v1769, %v2059
    %v2511 = vmul.f32 %v1769, %v2063
    %v2512 = vmul.f32 %v1773, %v2003
    %v2513 = vmul.f32 %v1773, %v2007
    %v2514 = vmul.f32 %v1773, %v2011
    %v2515 = vmul.f32 %v1773, %v2015
    %v2516 = vmul.f32 %v1773, %v2019
    %v2517 = vmul.f32 %v1773, %v2023
    %v2518 = vmul.f32 %v1773, %v2027
    %v2519 = vmul.f32 %v1773, %v2031
    %v2520 = vmul.f32 %v1773, %v2035
    %v2521 = vmul.f32 %v1773, %v2039
    %v2522 = vmul.f32 %v1773, %v2043
    %v2523 = vmul.f32 %v1773, %v2047
    %v2524 = vmul.f32 %v1773, %v2051
    %v2525 = vmul.f32 %v1773, %v2055
    %v2526 = vmul.f32 %v1773, %v2059
    %v2527 = vmul.f32 %v1773, %v2063
    %v2528 = vmul.f32 %v1777, %v2003
    %v2529 = vmul.f32 %v1777, %v2007
    %v2530 = vmul.f32 %v1777, %v2011
    %v2531 = vmul.f32 %v1777, %v2015
    %v2532 = vmul.f32 %v1777, %v2019
    %v2533 = vmul.f32 %v1777, %v2023
    %v2534 = vmul.f32 %v1777, %v2027
    %v2535 = vmul.f32 %v1777, %v2031
    %v2536 = vmul.f32 %v1777, %v2035
    %v2537 = vmul.f32 %v1777, %v2039
    %v2538 = vmul.f32 %v1777, %v2043
    %v2539 = vmul.f32 %v1777, %v2047
    %v2540 = vmul.f32 %v1777, %v2051
    %v2541 = vmul.f32 %v1777, %v2055
    %v2542 = vmul.f32 %v1777, %v2059
    %v2543 = vmul.f32 %v1777, %v2063
    %v2544 = vmul.f32 %v1781, %v2003
    %v2545 = vmul.f32 %v1781, %v2007
    %v2546 = vmul.f32 %v1781, %v2011
    %v2547 = vmul.f32 %v1781, %v2015
    %v2548 = vmul.f32 %v1781, %v2019
    %v2549 = vmul.f32 %v1781, %v2023
    %v2550 = vmul.f32 %v1781, %v2027
    %v2551 = vmul.f32 %v1781, %v2031
    %v2552 = vmul.f32 %v1781, %v2035
    %v2553 = vmul.f32 %v1781, %v2039
    %v2554 = vmul.f32 %v1781, %v2043
    %v2555 = vmul.f32 %v1781, %v2047
    %v2556 = vmul.f32 %v1781, %v2051
    %v2557 = vmul.f32 %v1781, %v2055
    %v2558 = vmul.f32 %v1781, %v2059
    %v2559 = vmul.f32 %v1781, %v2063
    %v2560 = vmul.f32 %v1785, %v2003
    %v2561 = vmul.f32 %v1785, %v2007
    %v2562 = vmul.f32 %v1785, %v2011
    %v2563 = vmul.f32 %v1785, %v2015
    %v2564 = vmul.f32 %v1785, %v2019
    %v2565 = vmul.f32 %v1785, %v2023
    %v2566 = vmul.f32 %v1785, %v2027
    %v2567 = vmul.f32 %v1785, %v2031
    %v2568 = vmul.f32 %v1785, %v2035
    %v2569 = vmul.f32 %v1785, %v2039
    %v2570 = vmul.f32 %v1785, %v2043
    %v2571 = vmul.f32 %v1785, %v2047
    %v2572 = vmul.f32 %v1785, %v2051
    %v2573 = vmul.f32 %v1785, %v2055
    %v2574 = vmul.f32 %v1785, %v2059
    %v2575 = vmul.f32 %v1785, %v2063
    %v2576 = vmul.f32 %v1792, %v2003
    %v2577 = vmul.f32 %v1792, %v2007
    %v2578 = vmul.f32 %v1792, %v2011
    %v2579 = vmul.f32 %v1792, %v2015
    %v2580 = vmul.f32 %v1792, %v2019
    %v2581 = vmul.f32 %v1792, %v2023
    %v2582 = vmul.f32 %v1792, %v2027
    %v2583 = vmul.f32 %v1792, %v2031
    %v2584 = vmul.f32 %v1792, %v2035
    %v2585 = vmul.f32 %v1792, %v2039
    %v2586 = vmul.f32 %v1792, %v2043
    %v2587 = vmul.f32 %v1792, %v2047
    %v2588 = vmul.f32 %v1792, %v2051
    %v2589 = vmul.f32 %v1792, %v2055
    %v2590 = vmul.f32 %v1792, %v2059
    %v2591 = vmul.f32 %v1792, %v2063
    %v2592 = vmul.f32 %v1796, %v2003
    %v2593 = vmul.f32 %v1796, %v2007
    %v2594 = vmul.f32 %v1796, %v2011
    %v2595 = vmul.f32 %v1796, %v2015
    %v2596 = vmul.f32 %v1796, %v2019
    %v2597 = vmul.f32 %v1796, %v2023
    %v2598 = vmul.f32 %v1796, %v2027
    %v2599 = vmul.f32 %v1796, %v2031
    %v2600 = vmul.f32 %v1796, %v2035
    %v2601 = vmul.f32 %v1796, %v2039
    %v2602 = vmul.f32 %v1796, %v2043
    %v2603 = vmul.f32 %v1796, %v2047
    %v2604 = vmul.f32 %v1796, %v2051
    %v2605 = vmul.f32 %v1796, %v2055
    %v2606 = vmul.f32 %v1796, %v2059
    %v2607 = vmul.f32 %v1796, %v2063
    %v2608 = vmul.f32 %v1800, %v2003
    %v2609 = vmul.f32 %v1800, %v2007
    %v2610 = vmul.f32 %v1800, %v2011
    %v2611 = vmul.f32 %v1800, %v2015
    %v2612 = vmul.f32 %v1800, %v2019
    %v2613 = vmul.f32 %v1800, %v2023
    %v2614 = vmul.f32 %v1800, %v2027
    %v2615 = vmul.f32 %v1800, %v2031
    %v2616 = vmul.f32 %v1800, %v2035
    %v2617 = vmul.f32 %v1800, %v2039
    %v2618 = vmul.f32 %v1800, %v2043
    %v2619 = vmul.f32 %v1800, %v2047
    %v2620 = vmul.f32 %v1800, %v2051
    %v2621 = vmul.f32 %v1800, %v2055
    %v2622 = vmul.f32 %v1800, %v2059
    %v2623 = vmul.f32 %v1800, %v2063
    %v2624 = vmul.f32 %v1804, %v2003
    %v2625 = vmul.f32 %v1804, %v2007
    %v2626 = vmul.f32 %v1804, %v2011
    %v2627 = vmul.f32 %v1804, %v2015
    %v2628 = vmul.f32 %v1804, %v2019
    %v2629 = vmul.f32 %v1804, %v2023
    %v2630 = vmul.f32 %v1804, %v2027
    %v2631 = vmul.f32 %v1804, %v2031
    %v2632 = vmul.f32 %v1804, %v2035
    %v2633 = vmul.f32 %v1804, %v2039
    %v2634 = vmul.f32 %v1804, %v2043
    %v2635 = vmul.f32 %v1804, %v2047
    %v2636 = vmul.f32 %v1804, %v2051
    %v2637 = vmul.f32 %v1804, %v2055
    %v2638 = vmul.f32 %v1804, %v2059
    %v2639 = vmul.f32 %v1804, %v2063
    %v2640 = vmul.f32 %v1808, %v2003
    %v2641 = vmul.f32 %v1808, %v2007
    %v2642 = vmul.f32 %v1808, %v2011
    %v2643 = vmul.f32 %v1808, %v2015
    %v2644 = vmul.f32 %v1808, %v2019
    %v2645 = vmul.f32 %v1808, %v2023
    %v2646 = vmul.f32 %v1808, %v2027
    %v2647 = vmul.f32 %v1808, %v2031
    %v2648 = vmul.f32 %v1808, %v2035
    %v2649 = vmul.f32 %v1808, %v2039
    %v2650 = vmul.f32 %v1808, %v2043
    %v2651 = vmul.f32 %v1808, %v2047
    %v2652 = vmul.f32 %v1808, %v2051
    %v2653 = vmul.f32 %v1808, %v2055
    %v2654 = vmul.f32 %v1808, %v2059
    %v2655 = vmul.f32 %v1808, %v2063
    %v2656 = vmul.f32 %v1812, %v2003
    %v2657 = vmul.f32 %v1812, %v2007
    %v2658 = vmul.f32 %v1812, %v2011
    %v2659 = vmul.f32 %v1812, %v2015
    %v2660 = vmul.f32 %v1812, %v2019
    %v2661 = vmul.f32 %v1812, %v2023
    %v2662 = vmul.f32 %v1812, %v2027
    %v2663 = vmul.f32 %v1812, %v2031
    %v2664 = vmul.f32 %v1812, %v2035
    %v2665 = vmul.f32 %v1812, %v2039
    %v2666 = vmul.f32 %v1812, %v2043
    %v2667 = vmul.f32 %v1812, %v2047
    %v2668 = vmul.f32 %v1812, %v2051
    %v2669 = vmul.f32 %v1812, %v2055
    %v2670 = vmul.f32 %v1812, %v2059
    %v2671 = vmul.f32 %v1812, %v2063
    %v2672 = vmul.f32 %v1816, %v2003
    %v2673 = vmul.f32 %v1816, %v2007
    %v2674 = vmul.f32 %v1816, %v2011
    %v2675 = vmul.f32 %v1816, %v2015
    %v2676 = vmul.f32 %v1816, %v2019
    %v2677 = vmul.f32 %v1816, %v2023
    %v2678 = vmul.f32 %v1816, %v2027
    %v2679 = vmul.f32 %v1816, %v2031
    %v2680 = vmul.f32 %v1816, %v2035
    %v2681 = vmul.f32 %v1816, %v2039
    %v2682 = vmul.f32 %v1816, %v2043
    %v2683 = vmul.f32 %v1816, %v2047
    %v2684 = vmul.f32 %v1816, %v2051
    %v2685 = vmul.f32 %v1816, %v2055
    %v2686 = vmul.f32 %v1816, %v2059
    %v2687 = vmul.f32 %v1816, %v2063
    %v2688 = vmul.f32 %v1820, %v2003
    %v2689 = vmul.f32 %v1820, %v2007
    %v2690 = vmul.f32 %v1820, %v2011
    %v2691 = vmul.f32 %v1820, %v2015
    %v2692 = vmul.f32 %v1820, %v2019
    %v2693 = vmul.f32 %v1820, %v2023
    %v2694 = vmul.f32 %v1820, %v2027
    %v2695 = vmul.f32 %v1820, %v2031
    %v2696 = vmul.f32 %v1820, %v2035
    %v2697 = vmul.f32 %v1820, %v2039
    %v2698 = vmul.f32 %v1820, %v2043
    %v2699 = vmul.f32 %v1820, %v2047
    %v2700 = vmul.f32 %v1820, %v2051
    %v2701 = vmul.f32 %v1820, %v2055
    %v2702 = vmul.f32 %v1820, %v2059
    %v2703 = vmul.f32 %v1820, %v2063
    %v2704 = vmul.f32 %v1824, %v2003
    %v2705 = vmul.f32 %v1824, %v2007
    %v2706 = vmul.f32 %v1824, %v2011
    %v2707 = vmul.f32 %v1824, %v2015
    %v2708 = vmul.f32 %v1824, %v2019
    %v2709 = vmul.f32 %v1824, %v2023
    %v2710 = vmul.f32 %v1824, %v2027
    %v2711 = vmul.f32 %v1824, %v2031
    %v2712 = vmul.f32 %v1824, %v2035
    %v2713 = vmul.f32 %v1824, %v2039
    %v2714 = vmul.f32 %v1824, %v2043
    %v2715 = vmul.f32 %v1824, %v2047
    %v2716 = vmul.f32 %v1824, %v2051
    %v2717 = vmul.f32 %v1824, %v2055
    %v2718 = vmul.f32 %v1824, %v2059
    %v2719 = vmul.f32 %v1824, %v2063
    %v2720 = vmul.f32 %v1828, %v2003
    %v2721 = vmul.f32 %v1828, %v2007
    %v2722 = vmul.f32 %v1828, %v2011
    %v2723 = vmul.f32 %v1828, %v2015
    %v2724 = vmul.f32 %v1828, %v2019
    %v2725 = vmul.f32 %v1828, %v2023
    %v2726 = vmul.f32 %v1828, %v2027
    %v2727 = vmul.f32 %v1828, %v2031
    %v2728 = vmul.f32 %v1828, %v2035
    %v2729 = vmul.f32 %v1828, %v2039
    %v2730 = vmul.f32 %v1828, %v2043
    %v2731 = vmul.f32 %v1828, %v2047
    %v2732 = vmul.f32 %v1828, %v2051
    %v2733 = vmul.f32 %v1828, %v2055
    %v2734 = vmul.f32 %v1828, %v2059
    %v2735 = vmul.f32 %v1828, %v2063
    %v2736 = vmul.f32 %v1832, %v2003
    %v2737 = vmul.f32 %v1832, %v2007
    %v2738 = vmul.f32 %v1832, %v2011
    %v2739 = vmul.f32 %v1832, %v2015
    %v2740 = vmul.f32 %v1832, %v2019
    %v2741 = vmul.f32 %v1832, %v2023
    %v2742 = vmul.f32 %v1832, %v2027
    %v2743 = vmul.f32 %v1832, %v2031
    %v2744 = vmul.f32 %v1832, %v2035
    %v2745 = vmul.f32 %v1832, %v2039
    %v2746 = vmul.f32 %v1832, %v2043
    %v2747 = vmul.f32 %v1832, %v2047
    %v2748 = vmul.f32 %v1832, %v2051
    %v2749 = vmul.f32 %v1832, %v2055
    %v2750 = vmul.f32 %v1832, %v2059
    %v2751 = vmul.f32 %v1832, %v2063
    %v2752 = vmul.f32 %v1836, %v2003
    %v2753 = vmul.f32 %v1836, %v2007
    %v2754 = vmul.f32 %v1836, %v2011
    %v2755 = vmul.f32 %v1836, %v2015
    %v2756 = vmul.f32 %v1836, %v2019
    %v2757 = vmul.f32 %v1836, %v2023
    %v2758 = vmul.f32 %v1836, %v2027
    %v2759 = vmul.f32 %v1836, %v2031
    %v2760 = vmul.f32 %v1836, %v2035
    %v2761 = vmul.f32 %v1836, %v2039
    %v2762 = vmul.f32 %v1836, %v2043
    %v2763 = vmul.f32 %v1836, %v2047
    %v2764 = vmul.f32 %v1836, %v2051
    %v2765 = vmul.f32 %v1836, %v2055
    %v2766 = vmul.f32 %v1836, %v2059
    %v2767 = vmul.f32 %v1836, %v2063
    %v2768 = vmul.f32 %v1840, %v2003
    %v2769 = vmul.f32 %v1840, %v2007
    %v2770 = vmul.f32 %v1840, %v2011
    %v2771 = vmul.f32 %v1840, %v2015
    %v2772 = vmul.f32 %v1840, %v2019
    %v2773 = vmul.f32 %v1840, %v2023
    %v2774 = vmul.f32 %v1840, %v2027
    %v2775 = vmul.f32 %v1840, %v2031
    %v2776 = vmul.f32 %v1840, %v2035
    %v2777 = vmul.f32 %v1840, %v2039
    %v2778 = vmul.f32 %v1840, %v2043
    %v2779 = vmul.f32 %v1840, %v2047
    %v2780 = vmul.f32 %v1840, %v2051
    %v2781 = vmul.f32 %v1840, %v2055
    %v2782 = vmul.f32 %v1840, %v2059
    %v2783 = vmul.f32 %v1840, %v2063
    %v2784 = vmul.f32 %v1844, %v2003
    %v2785 = vmul.f32 %v1844, %v2007
    %v2786 = vmul.f32 %v1844, %v2011
    %v2787 = vmul.f32 %v1844, %v2015
    %v2788 = vmul.f32 %v1844, %v2019
    %v2789 = vmul.f32 %v1844, %v2023
    %v2790 = vmul.f32 %v1844, %v2027
    %v2791 = vmul.f32 %v1844, %v2031
    %v2792 = vmul.f32 %v1844, %v2035
    %v2793 = vmul.f32 %v1844, %v2039
    %v2794 = vmul.f32 %v1844, %v2043
    %v2795 = vmul.f32 %v1844, %v2047
    %v2796 = vmul.f32 %v1844, %v2051
    %v2797 = vmul.f32 %v1844, %v2055
    %v2798 = vmul.f32 %v1844, %v2059
    %v2799 = vmul.f32 %v1844, %v2063
    %v2800 = vmul.f32 %v1848, %v2003
    %v2801 = vmul.f32 %v1848, %v2007
    %v2802 = vmul.f32 %v1848, %v2011
    %v2803 = vmul.f32 %v1848, %v2015
    %v2804 = vmul.f32 %v1848, %v2019
    %v2805 = vmul.f32 %v1848, %v2023
    %v2806 = vmul.f32 %v1848, %v2027
    %v2807 = vmul.f32 %v1848, %v2031
    %v2808 = vmul.f32 %v1848, %v2035
    %v2809 = vmul.f32 %v1848, %v2039
    %v2810 = vmul.f32 %v1848, %v2043
    %v2811 = vmul.f32 %v1848, %v2047
    %v2812 = vmul.f32 %v1848, %v2051
    %v2813 = vmul.f32 %v1848, %v2055
    %v2814 = vmul.f32 %v1848, %v2059
    %v2815 = vmul.f32 %v1848, %v2063
    %v2816 = vmul.f32 %v1852, %v2003
    %v2817 = vmul.f32 %v1852, %v2007
    %v2818 = vmul.f32 %v1852, %v2011
    %v2819 = vmul.f32 %v1852, %v2015
    %v2820 = vmul.f32 %v1852, %v2019
    %v2821 = vmul.f32 %v1852, %v2023
    %v2822 = vmul.f32 %v1852, %v2027
    %v2823 = vmul.f32 %v1852, %v2031
    %v2824 = vmul.f32 %v1852, %v2035
    %v2825 = vmul.f32 %v1852, %v2039
    %v2826 = vmul.f32 %v1852, %v2043
    %v2827 = vmul.f32 %v1852, %v2047
    %v2828 = vmul.f32 %v1852, %v2051
    %v2829 = vmul.f32 %v1852, %v2055
    %v2830 = vmul.f32 %v1852, %v2059
    %v2831 = vmul.f32 %v1852, %v2063
    %v2832 = vmul.f32 %v1859, %v2003
    %v2833 = vmul.f32 %v1859, %v2007
    %v2834 = vmul.f32 %v1859, %v2011
    %v2835 = vmul.f32 %v1859, %v2015
    %v2836 = vmul.f32 %v1859, %v2019
    %v2837 = vmul.f32 %v1859, %v2023
    %v2838 = vmul.f32 %v1859, %v2027
    %v2839 = vmul.f32 %v1859, %v2031
    %v2840 = vmul.f32 %v1859, %v2035
    %v2841 = vmul.f32 %v1859, %v2039
    %v2842 = vmul.f32 %v1859, %v2043
    %v2843 = vmul.f32 %v1859, %v2047
    %v2844 = vmul.f32 %v1859, %v2051
    %v2845 = vmul.f32 %v1859, %v2055
    %v2846 = vmul.f32 %v1859, %v2059
    %v2847 = vmul.f32 %v1859, %v2063
    %v2848 = vmul.f32 %v1863, %v2003
    %v2849 = vmul.f32 %v1863, %v2007
    %v2850 = vmul.f32 %v1863, %v2011
    %v2851 = vmul.f32 %v1863, %v2015
    %v2852 = vmul.f32 %v1863, %v2019
    %v2853 = vmul.f32 %v1863, %v2023
    %v2854 = vmul.f32 %v1863, %v2027
    %v2855 = vmul.f32 %v1863, %v2031
    %v2856 = vmul.f32 %v1863, %v2035
    %v2857 = vmul.f32 %v1863, %v2039
    %v2858 = vmul.f32 %v1863, %v2043
    %v2859 = vmul.f32 %v1863, %v2047
    %v2860 = vmul.f32 %v1863, %v2051
    %v2861 = vmul.f32 %v1863, %v2055
    %v2862 = vmul.f32 %v1863, %v2059
    %v2863 = vmul.f32 %v1863, %v2063
    %v2864 = vmul.f32 %v1867, %v2003
    %v2865 = vmul.f32 %v1867, %v2007
    %v2866 = vmul.f32 %v1867, %v2011
    %v2867 = vmul.f32 %v1867, %v2015
    %v2868 = vmul.f32 %v1867, %v2019
    %v2869 = vmul.f32 %v1867, %v2023
    %v2870 = vmul.f32 %v1867, %v2027
    %v2871 = vmul.f32 %v1867, %v2031
    %v2872 = vmul.f32 %v1867, %v2035
    %v2873 = vmul.f32 %v1867, %v2039
    %v2874 = vmul.f32 %v1867, %v2043
    %v2875 = vmul.f32 %v1867, %v2047
    %v2876 = vmul.f32 %v1867, %v2051
    %v2877 = vmul.f32 %v1867, %v2055
    %v2878 = vmul.f32 %v1867, %v2059
    %v2879 = vmul.f32 %v1867, %v2063
    %v2880 = vmul.f32 %v1871, %v2003
    %v2881 = vmul.f32 %v1871, %v2007
    %v2882 = vmul.f32 %v1871, %v2011
    %v2883 = vmul.f32 %v1871, %v2015
    %v2884 = vmul.f32 %v1871, %v2019
    %v2885 = vmul.f32 %v1871, %v2023
    %v2886 = vmul.f32 %v1871, %v2027
    %v2887 = vmul.f32 %v1871, %v2031
    %v2888 = vmul.f32 %v1871, %v2035
    %v2889 = vmul.f32 %v1871, %v2039
    %v2890 = vmul.f32 %v1871, %v2043
    %v2891 = vmul.f32 %v1871, %v2047
    %v2892 = vmul.f32 %v1871, %v2051
    %v2893 = vmul.f32 %v1871, %v2055
    %v2894 = vmul.f32 %v1871, %v2059
    %v2895 = vmul.f32 %v1871, %v2063
    %v2896 = vmul.f32 %v1875, %v2003
    %v2897 = vmul.f32 %v1875, %v2007
    %v2898 = vmul.f32 %v1875, %v2011
    %v2899 = vmul.f32 %v1875, %v2015
    %v2900 = vmul.f32 %v1875, %v2019
    %v2901 = vmul.f32 %v1875, %v2023
    %v2902 = vmul.f32 %v1875, %v2027
    %v2903 = vmul.f32 %v1875, %v2031
    %v2904 = vmul.f32 %v1875, %v2035
    %v2905 = vmul.f32 %v1875, %v2039
    %v2906 = vmul.f32 %v1875, %v2043
    %v2907 = vmul.f32 %v1875, %v2047
    %v2908 = vmul.f32 %v1875, %v2051
    %v2909 = vmul.f32 %v1875, %v2055
    %v2910 = vmul.f32 %v1875, %v2059
    %v2911 = vmul.f32 %v1875, %v2063
    %v2912 = vmul.f32 %v1879, %v2003
    %v2913 = vmul.f32 %v1879, %v2007
    %v2914 = vmul.f32 %v1879, %v2011
    %v2915 = vmul.f32 %v1879, %v2015
    %v2916 = vmul.f32 %v1879, %v2019
    %v2917 = vmul.f32 %v1879, %v2023
    %v2918 = vmul.f32 %v1879, %v2027
    %v2919 = vmul.f32 %v1879, %v2031
    %v2920 = vmul.f32 %v1879, %v2035
    %v2921 = vmul.f32 %v1879, %v2039
    %v2922 = vmul.f32 %v1879, %v2043
    %v2923 = vmul.f32 %v1879, %v2047
    %v2924 = vmul.f32 %v1879, %v2051
    %v2925 = vmul.f32 %v1879, %v2055
    %v2926 = vmul.f32 %v1879, %v2059
    %v2927 = vmul.f32 %v1879, %v2063
    %v2928 = vmul.f32 %v1883, %v2003
    %v2929 = vmul.f32 %v1883, %v2007
    %v2930 = vmul.f32 %v1883, %v2011
    %v2931 = vmul.f32 %v1883, %v2015
    %v2932 = vmul.f32 %v1883, %v2019
    %v2933 = vmul.f32 %v1883, %v2023
    %v2934 = vmul.f32 %v1883, %v2027
    %v2935 = vmul.f32 %v1883, %v2031
    %v2936 = vmul.f32 %v1883, %v2035
    %v2937 = vmul.f32 %v1883, %v2039
    %v2938 = vmul.f32 %v1883, %v2043
    %v2939 = vmul.f32 %v1883, %v2047
    %v2940 = vmul.f32 %v1883, %v2051
    %v2941 = vmul.f32 %v1883, %v2055
    %v2942 = vmul.f32 %v1883, %v2059
    %v2943 = vmul.f32 %v1883, %v2063
    %v2944 = vmul.f32 %v1887, %v2003
    %v2945 = vmul.f32 %v1887, %v2007
    %v2946 = vmul.f32 %v1887, %v2011
    %v2947 = vmul.f32 %v1887, %v2015
    %v2948 = vmul.f32 %v1887, %v2019
    %v2949 = vmul.f32 %v1887, %v2023
    %v2950 = vmul.f32 %v1887, %v2027
    %v2951 = vmul.f32 %v1887, %v2031
    %v2952 = vmul.f32 %v1887, %v2035
    %v2953 = vmul.f32 %v1887, %v2039
    %v2954 = vmul.f32 %v1887, %v2043
    %v2955 = vmul.f32 %v1887, %v2047
    %v2956 = vmul.f32 %v1887, %v2051
    %v2957 = vmul.f32 %v1887, %v2055
    %v2958 = vmul.f32 %v1887, %v2059
    %v2959 = vmul.f32 %v1887, %v2063
    %v2960 = vmul.f32 %v1891, %v2003
    %v2961 = vmul.f32 %v1891, %v2007
    %v2962 = vmul.f32 %v1891, %v2011
    %v2963 = vmul.f32 %v1891, %v2015
    %v2964 = vmul.f32 %v1891, %v2019
    %v2965 = vmul.f32 %v1891, %v2023
    %v2966 = vmul.f32 %v1891, %v2027
    %v2967 = vmul.f32 %v1891, %v2031
    %v2968 = vmul.f32 %v1891, %v2035
    %v2969 = vmul.f32 %v1891, %v2039
    %v2970 = vmul.f32 %v1891, %v2043
    %v2971 = vmul.f32 %v1891, %v2047
    %v2972 = vmul.f32 %v1891, %v2051
    %v2973 = vmul.f32 %v1891, %v2055
    %v2974 = vmul.f32 %v1891, %v2059
    %v2975 = vmul.f32 %v1891, %v2063
    %v2976 = vmul.f32 %v1895, %v2003
    %v2977 = vmul.f32 %v1895, %v2007
    %v2978 = vmul.f32 %v1895, %v2011
    %v2979 = vmul.f32 %v1895, %v2015
    %v2980 = vmul.f32 %v1895, %v2019
    %v2981 = vmul.f32 %v1895, %v2023
    %v2982 = vmul.f32 %v1895, %v2027
    %v2983 = vmul.f32 %v1895, %v2031
    %v2984 = vmul.f32 %v1895, %v2035
    %v2985 = vmul.f32 %v1895, %v2039
    %v2986 = vmul.f32 %v1895, %v2043
    %v2987 = vmul.f32 %v1895, %v2047
    %v2988 = vmul.f32 %v1895, %v2051
    %v2989 = vmul.f32 %v1895, %v2055
    %v2990 = vmul.f32 %v1895, %v2059
    %v2991 = vmul.f32 %v1895, %v2063
    %v2992 = vmul.f32 %v1899, %v2003
    %v2993 = vmul.f32 %v1899, %v2007
    %v2994 = vmul.f32 %v1899, %v2011
    %v2995 = vmul.f32 %v1899, %v2015
    %v2996 = vmul.f32 %v1899, %v2019
    %v2997 = vmul.f32 %v1899, %v2023
    %v2998 = vmul.f32 %v1899, %v2027
    %v2999 = vmul.f32 %v1899, %v2031
    %v3000 = vmul.f32 %v1899, %v2035
    %v3001 = vmul.f32 %v1899, %v2039
    %v3002 = vmul.f32 %v1899, %v2043
    %v3003 = vmul.f32 %v1899, %v2047
    %v3004 = vmul.f32 %v1899, %v2051
    %v3005 = vmul.f32 %v1899, %v2055
    %v3006 = vmul.f32 %v1899, %v2059
    %v3007 = vmul.f32 %v1899, %v2063
    %v3008 = vmul.f32 %v1903, %v2003
    %v3009 = vmul.f32 %v1903, %v2007
    %v3010 = vmul.f32 %v1903, %v2011
    %v3011 = vmul.f32 %v1903, %v2015
    %v3012 = vmul.f32 %v1903, %v2019
    %v3013 = vmul.f32 %v1903, %v2023
    %v3014 = vmul.f32 %v1903, %v2027
    %v3015 = vmul.f32 %v1903, %v2031
    %v3016 = vmul.f32 %v1903, %v2035
    %v3017 = vmul.f32 %v1903, %v2039
    %v3018 = vmul.f32 %v1903, %v2043
    %v3019 = vmul.f32 %v1903, %v2047
    %v3020 = vmul.f32 %v1903, %v2051
    %v3021 = vmul.f32 %v1903, %v2055
    %v3022 = vmul.f32 %v1903, %v2059
    %v3023 = vmul.f32 %v1903, %v2063
    %v3024 = vmul.f32 %v1907, %v2003
    %v3025 = vmul.f32 %v1907, %v2007
    %v3026 = vmul.f32 %v1907, %v2011
    %v3027 = vmul.f32 %v1907, %v2015
    %v3028 = vmul.f32 %v1907, %v2019
    %v3029 = vmul.f32 %v1907, %v2023
    %v3030 = vmul.f32 %v1907, %v2027
    %v3031 = vmul.f32 %v1907, %v2031
    %v3032 = vmul.f32 %v1907, %v2035
    %v3033 = vmul.f32 %v1907, %v2039
    %v3034 = vmul.f32 %v1907, %v2043
    %v3035 = vmul.f32 %v1907, %v2047
    %v3036 = vmul.f32 %v1907, %v2051
    %v3037 = vmul.f32 %v1907, %v2055
    %v3038 = vmul.f32 %v1907, %v2059
    %v3039 = vmul.f32 %v1907, %v2063
    %v3040 = vmul.f32 %v1911, %v2003
    %v3041 = vmul.f32 %v1911, %v2007
    %v3042 = vmul.f32 %v1911, %v2011
    %v3043 = vmul.f32 %v1911, %v2015
    %v3044 = vmul.f32 %v1911, %v2019
    %v3045 = vmul.f32 %v1911, %v2023
    %v3046 = vmul.f32 %v1911, %v2027
    %v3047 = vmul.f32 %v1911, %v2031
    %v3048 = vmul.f32 %v1911, %v2035
    %v3049 = vmul.f32 %v1911, %v2039
    %v3050 = vmul.f32 %v1911, %v2043
    %v3051 = vmul.f32 %v1911, %v2047
    %v3052 = vmul.f32 %v1911, %v2051
    %v3053 = vmul.f32 %v1911, %v2055
    %v3054 = vmul.f32 %v1911, %v2059
    %v3055 = vmul.f32 %v1911, %v2063
    %v3056 = vmul.f32 %v1915, %v2003
    %v3057 = vmul.f32 %v1915, %v2007
    %v3058 = vmul.f32 %v1915, %v2011
    %v3059 = vmul.f32 %v1915, %v2015
    %v3060 = vmul.f32 %v1915, %v2019
    %v3061 = vmul.f32 %v1915, %v2023
    %v3062 = vmul.f32 %v1915, %v2027
    %v3063 = vmul.f32 %v1915, %v2031
    %v3064 = vmul.f32 %v1915, %v2035
    %v3065 = vmul.f32 %v1915, %v2039
    %v3066 = vmul.f32 %v1915, %v2043
    %v3067 = vmul.f32 %v1915, %v2047
    %v3068 = vmul.f32 %v1915, %v2051
    %v3069 = vmul.f32 %v1915, %v2055
    %v3070 = vmul.f32 %v1915, %v2059
    %v3071 = vmul.f32 %v1915, %v2063
    %v3072 = vmul.f32 %v1919, %v2003
    %v3073 = vmul.f32 %v1919, %v2007
    %v3074 = vmul.f32 %v1919, %v2011
    %v3075 = vmul.f32 %v1919, %v2015
    %v3076 = vmul.f32 %v1919, %v2019
    %v3077 = vmul.f32 %v1919, %v2023
    %v3078 = vmul.f32 %v1919, %v2027
    %v3079 = vmul.f32 %v1919, %v2031
    %v3080 = vmul.f32 %v1919, %v2035
    %v3081 = vmul.f32 %v1919, %v2039
    %v3082 = vmul.f32 %v1919, %v2043
    %v3083 = vmul.f32 %v1919, %v2047
    %v3084 = vmul.f32 %v1919, %v2051
    %v3085 = vmul.f32 %v1919, %v2055
    %v3086 = vmul.f32 %v1919, %v2059
    %v3087 = vmul.f32 %v1919, %v2063
    %v3088 = vadd.f32 %v606, %v2064
    %v3089 = vadd.f32 %v607, %v2065
    %v3090 = vadd.f32 %v608, %v2066
    %v3091 = vadd.f32 %v609, %v2067
    %v3092 = vadd.f32 %v610, %v2068
    %v3093 = vadd.f32 %v611, %v2069
    %v3094 = vadd.f32 %v612, %v2070
    %v3095 = vadd.f32 %v613, %v2071
    %v3096 = vadd.f32 %v614, %v2072
    %v3097 = vadd.f32 %v615, %v2073
    %v3098 = vadd.f32 %v616, %v2074
    %v3099 = vadd.f32 %v617, %v2075
    %v3100 = vadd.f32 %v618, %v2076
    %v3101 = vadd.f32 %v619, %v2077
    %v3102 = vadd.f32 %v620, %v2078
    %v3103 = vadd.f32 %v621, %v2079
    %v3104 = vadd.f32 %v622, %v2080
    %v3105 = vadd.f32 %v623, %v2081
    %v3106 = vadd.f32 %v624, %v2082
    %v3107 = vadd.f32 %v625, %v2083
    %v3108 = vadd.f32 %v626, %v2084
    %v3109 = vadd.f32 %v627, %v2085
    %v3110 = vadd.f32 %v628, %v2086
    %v3111 = vadd.f32 %v629, %v2087
    %v3112 = vadd.f32 %v630, %v2088
    %v3113 = vadd.f32 %v631, %v2089
    %v3114 = vadd.f32 %v632, %v2090
    %v3115 = vadd.f32 %v633, %v2091
    %v3116 = vadd.f32 %v634, %v2092
    %v3117 = vadd.f32 %v635, %v2093
    %v3118 = vadd.f32 %v636, %v2094
    %v3119 = vadd.f32 %v637, %v2095
    %v3120 = vadd.f32 %v638, %v2096
    %v3121 = vadd.f32 %v639, %v2097
    %v3122 = vadd.f32 %v640, %v2098
    %v3123 = vadd.f32 %v641, %v2099
    %v3124 = vadd.f32 %v642, %v2100
    %v3125 = vadd.f32 %v643, %v2101
    %v3126 = vadd.f32 %v644, %v2102
    %v3127 = vadd.f32 %v645, %v2103
    %v3128 = vadd.f32 %v646, %v2104
    %v3129 = vadd.f32 %v647, %v2105
    %v3130 = vadd.f32 %v648, %v2106
    %v3131 = vadd.f32 %v649, %v2107
    %v3132 = vadd.f32 %v650, %v2108
    %v3133 = vadd.f32 %v651, %v2109
    %v3134 = vadd.f32 %v652, %v2110
    %v3135 = vadd.f32 %v653, %v2111
    %v3136 = vadd.f32 %v654, %v2112
    %v3137 = vadd.f32 %v655, %v2113
    %v3138 = vadd.f32 %v656, %v2114
    %v3139 = vadd.f32 %v657, %v2115
    %v3140 = vadd.f32 %v658, %v2116
    %v3141 = vadd.f32 %v659, %v2117
    %v3142 = vadd.f32 %v660, %v2118
    %v3143 = vadd.f32 %v661, %v2119
    %v3144 = vadd.f32 %v662, %v2120
    %v3145 = vadd.f32 %v663, %v2121
    %v3146 = vadd.f32 %v664, %v2122
    %v3147 = vadd.f32 %v665, %v2123
    %v3148 = vadd.f32 %v666, %v2124
    %v3149 = vadd.f32 %v667, %v2125
    %v3150 = vadd.f32 %v668, %v2126
    %v3151 = vadd.f32 %v669, %v2127
    %v3152 = vadd.f32 %v670, %v2128
    %v3153 = vadd.f32 %v671, %v2129
    %v3154 = vadd.f32 %v672, %v2130
    %v3155 = vadd.f32 %v673, %v2131
    %v3156 = vadd.f32 %v674, %v2132
    %v3157 = vadd.f32 %v675, %v2133
    %v3158 = vadd.f32 %v676, %v2134
    %v3159 = vadd.f32 %v677, %v2135
    %v3160 = vadd.f32 %v678, %v2136
    %v3161 = vadd.f32 %v679, %v2137
    %v3162 = vadd.f32 %v680, %v2138
    %v3163 = vadd.f32 %v681, %v2139
    %v3164 = vadd.f32 %v682, %v2140
    %v3165 = vadd.f32 %v683, %v2141
    %v3166 = vadd.f32 %v684, %v2142
    %v3167 = vadd.f32 %v685, %v2143
    %v3168 = vadd.f32 %v686, %v2144
    %v3169 = vadd.f32 %v687, %v2145
    %v3170 = vadd.f32 %v688, %v2146
    %v3171 = vadd.f32 %v689, %v2147
    %v3172 = vadd.f32 %v690, %v2148
    %v3173 = vadd.f32 %v691, %v2149
    %v3174 = vadd.f32 %v692, %v2150
    %v3175 = vadd.f32 %v693, %v2151
    %v3176 = vadd.f32 %v694, %v2152
    %v3177 = vadd.f32 %v695, %v2153
    %v3178 = vadd.f32 %v696, %v2154
    %v3179 = vadd.f32 %v697, %v2155
    %v3180 = vadd.f32 %v698, %v2156
    %v3181 = vadd.f32 %v699, %v2157
    %v3182 = vadd.f32 %v700, %v2158
    %v3183 = vadd.f32 %v701, %v2159
    %v3184 = vadd.f32 %v702, %v2160
    %v3185 = vadd.f32 %v703, %v2161
    %v3186 = vadd.f32 %v704, %v2162
    %v3187 = vadd.f32 %v705, %v2163
    %v3188 = vadd.f32 %v706, %v2164
    %v3189 = vadd.f32 %v707, %v2165
    %v3190 = vadd.f32 %v708, %v2166
    %v3191 = vadd.f32 %v709, %v2167
    %v3192 = vadd.f32 %v710, %v2168
    %v3193 = vadd.f32 %v711, %v2169
    %v3194 = vadd.f32 %v712, %v2170
    %v3195 = vadd.f32 %v713, %v2171
    %v3196 = vadd.f32 %v714, %v2172
    %v3197 = vadd.f32 %v715, %v2173
    %v3198 = vadd.f32 %v716, %v2174
    %v3199 = vadd.f32 %v717, %v2175
    %v3200 = vadd.f32 %v718, %v2176
    %v3201 = vadd.f32 %v719, %v2177
    %v3202 = vadd.f32 %v720, %v2178
    %v3203 = vadd.f32 %v721, %v2179
    %v3204 = vadd.f32 %v722, %v2180
    %v3205 = vadd.f32 %v723, %v2181
    %v3206 = vadd.f32 %v724, %v2182
    %v3207 = vadd.f32 %v725, %v2183
    %v3208 = vadd.f32 %v726, %v2184
    %v3209 = vadd.f32 %v727, %v2185
    %v3210 = vadd.f32 %v728, %v2186
    %v3211 = vadd.f32 %v729, %v2187
    %v3212 = vadd.f32 %v730, %v2188
    %v3213 = vadd.f32 %v731, %v2189
    %v3214 = vadd.f32 %v732, %v2190
    %v3215 = vadd.f32 %v733, %v2191
    %v3216 = vadd.f32 %v734, %v2192
    %v3217 = vadd.f32 %v735, %v2193
    %v3218 = vadd.f32 %v736, %v2194
    %v3219 = vadd.f32 %v737, %v2195
    %v3220 = vadd.f32 %v738, %v2196
    %v3221 = vadd.f32 %v739, %v2197
    %v3222 = vadd.f32 %v740, %v2198
    %v3223 = vadd.f32 %v741, %v2199
    %v3224 = vadd.f32 %v742, %v2200
    %v3225 = vadd.f32 %v743, %v2201
    %v3226 = vadd.f32 %v744, %v2202
    %v3227 = vadd.f32 %v745, %v2203
    %v3228 = vadd.f32 %v746, %v2204
    %v3229 = vadd.f32 %v747, %v2205
    %v3230 = vadd.f32 %v748, %v2206
    %v3231 = vadd.f32 %v749, %v2207
    %v3232 = vadd.f32 %v750, %v2208
    %v3233 = vadd.f32 %v751, %v2209
    %v3234 = vadd.f32 %v752, %v2210
    %v3235 = vadd.f32 %v753, %v2211
    %v3236 = vadd.f32 %v754, %v2212
    %v3237 = vadd.f32 %v755, %v2213
    %v3238 = vadd.f32 %v756, %v2214
    %v3239 = vadd.f32 %v757, %v2215
    %v3240 = vadd.f32 %v758, %v2216
    %v3241 = vadd.f32 %v759, %v2217
    %v3242 = vadd.f32 %v760, %v2218
    %v3243 = vadd.f32 %v761, %v2219
    %v3244 = vadd.f32 %v762, %v2220
    %v3245 = vadd.f32 %v763, %v2221
    %v3246 = vadd.f32 %v764, %v2222
    %v3247 = vadd.f32 %v765, %v2223
    %v3248 = vadd.f32 %v766, %v2224
    %v3249 = vadd.f32 %v767, %v2225
    %v3250 = vadd.f32 %v768, %v2226
    %v3251 = vadd.f32 %v769, %v2227
    %v3252 = vadd.f32 %v770, %v2228
    %v3253 = vadd.f32 %v771, %v2229
    %v3254 = vadd.f32 %v772, %v2230
    %v3255 = vadd.f32 %v773, %v2231
    %v3256 = vadd.f32 %v774, %v2232
    %v3257 = vadd.f32 %v775, %v2233
    %v3258 = vadd.f32 %v776, %v2234
    %v3259 = vadd.f32 %v777, %v2235
    %v3260 = vadd.f32 %v778, %v2236
    %v3261 = vadd.f32 %v779, %v2237
    %v3262 = vadd.f32 %v780, %v2238
    %v3263 = vadd.f32 %v781, %v2239
    %v3264 = vadd.f32 %v782, %v2240
    %v3265 = vadd.f32 %v783, %v2241
    %v3266 = vadd.f32 %v784, %v2242
    %v3267 = vadd.f32 %v785, %v2243
    %v3268 = vadd.f32 %v786, %v2244
    %v3269 = vadd.f32 %v787, %v2245
    %v3270 = vadd.f32 %v788, %v2246
    %v3271 = vadd.f32 %v789, %v2247
    %v3272 = vadd.f32 %v790, %v2248
    %v3273 = vadd.f32 %v791, %v2249
    %v3274 = vadd.f32 %v792, %v2250
    %v3275 = vadd.f32 %v793, %v2251
    %v3276 = vadd.f32 %v794, %v2252
    %v3277 = vadd.f32 %v795, %v2253
    %v3278 = vadd.f32 %v796, %v2254
    %v3279 = vadd.f32 %v797, %v2255
    %v3280 = vadd.f32 %v798, %v2256
    %v3281 = vadd.f32 %v799, %v2257
    %v3282 = vadd.f32 %v800, %v2258
    %v3283 = vadd.f32 %v801, %v2259
    %v3284 = vadd.f32 %v802, %v2260
    %v3285 = vadd.f32 %v803, %v2261
    %v3286 = vadd.f32 %v804, %v2262
    %v3287 = vadd.f32 %v805, %v2263
    %v3288 = vadd.f32 %v806, %v2264
    %v3289 = vadd.f32 %v807, %v2265
    %v3290 = vadd.f32 %v808, %v2266
    %v3291 = vadd.f32 %v809, %v2267
    %v3292 = vadd.f32 %v810, %v2268
    %v3293 = vadd.f32 %v811, %v2269
    %v3294 = vadd.f32 %v812, %v2270
    %v3295 = vadd.f32 %v813, %v2271
    %v3296 = vadd.f32 %v814, %v2272
    %v3297 = vadd.f32 %v815, %v2273
    %v3298 = vadd.f32 %v816, %v2274
    %v3299 = vadd.f32 %v817, %v2275
    %v3300 = vadd.f32 %v818, %v2276
    %v3301 = vadd.f32 %v819, %v2277
    %v3302 = vadd.f32 %v820, %v2278
    %v3303 = vadd.f32 %v821, %v2279
    %v3304 = vadd.f32 %v822, %v2280
    %v3305 = vadd.f32 %v823, %v2281
    %v3306 = vadd.f32 %v824, %v2282
    %v3307 = vadd.f32 %v825, %v2283
    %v3308 = vadd.f32 %v826, %v2284
    %v3309 = vadd.f32 %v827, %v2285
    %v3310 = vadd.f32 %v828, %v2286
    %v3311 = vadd.f32 %v829, %v2287
    %v3312 = vadd.f32 %v830, %v2288
    %v3313 = vadd.f32 %v831, %v2289
    %v3314 = vadd.f32 %v832, %v2290
    %v3315 = vadd.f32 %v833, %v2291
    %v3316 = vadd.f32 %v834, %v2292
    %v3317 = vadd.f32 %v835, %v2293
    %v3318 = vadd.f32 %v836, %v2294
    %v3319 = vadd.f32 %v837, %v2295
    %v3320 = vadd.f32 %v838, %v2296
    %v3321 = vadd.f32 %v839, %v2297
    %v3322 = vadd.f32 %v840, %v2298
    %v3323 = vadd.f32 %v841, %v2299
    %v3324 = vadd.f32 %v842, %v2300
    %v3325 = vadd.f32 %v843, %v2301
    %v3326 = vadd.f32 %v844, %v2302
    %v3327 = vadd.f32 %v845, %v2303
    %v3328 = vadd.f32 %v846, %v2304
    %v3329 = vadd.f32 %v847, %v2305
    %v3330 = vadd.f32 %v848, %v2306
    %v3331 = vadd.f32 %v849, %v2307
    %v3332 = vadd.f32 %v850, %v2308
    %v3333 = vadd.f32 %v851, %v2309
    %v3334 = vadd.f32 %v852, %v2310
    %v3335 = vadd.f32 %v853, %v2311
    %v3336 = vadd.f32 %v854, %v2312
    %v3337 = vadd.f32 %v855, %v2313
    %v3338 = vadd.f32 %v856, %v2314
    %v3339 = vadd.f32 %v857, %v2315
    %v3340 = vadd.f32 %v858, %v2316
    %v3341 = vadd.f32 %v859, %v2317
    %v3342 = vadd.f32 %v860, %v2318
    %v3343 = vadd.f32 %v861, %v2319
    %v3344 = vadd.f32 %v862, %v2320
    %v3345 = vadd.f32 %v863, %v2321
    %v3346 = vadd.f32 %v864, %v2322
    %v3347 = vadd.f32 %v865, %v2323
    %v3348 = vadd.f32 %v866, %v2324
    %v3349 = vadd.f32 %v867, %v2325
    %v3350 = vadd.f32 %v868, %v2326
    %v3351 = vadd.f32 %v869, %v2327
    %v3352 = vadd.f32 %v870, %v2328
    %v3353 = vadd.f32 %v871, %v2329
    %v3354 = vadd.f32 %v872, %v2330
    %v3355 = vadd.f32 %v873, %v2331
    %v3356 = vadd.f32 %v874, %v2332
    %v3357 = vadd.f32 %v875, %v2333
    %v3358 = vadd.f32 %v876, %v2334
    %v3359 = vadd.f32 %v877, %v2335
    %v3360 = vadd.f32 %v878, %v2336
    %v3361 = vadd.f32 %v879, %v2337
    %v3362 = vadd.f32 %v880, %v2338
    %v3363 = vadd.f32 %v881, %v2339
    %v3364 = vadd.f32 %v882, %v2340
    %v3365 = vadd.f32 %v883, %v2341
    %v3366 = vadd.f32 %v884, %v2342
    %v3367 = vadd.f32 %v885, %v2343
    %v3368 = vadd.f32 %v886, %v2344
    %v3369 = vadd.f32 %v887, %v2345
    %v3370 = vadd.f32 %v888, %v2346
    %v3371 = vadd.f32 %v889, %v2347
    %v3372 = vadd.f32 %v890, %v2348
    %v3373 = vadd.f32 %v891, %v2349
    %v3374 = vadd.f32 %v892, %v2350
    %v3375 = vadd.f32 %v893, %v2351
    %v3376 = vadd.f32 %v894, %v2352
    %v3377 = vadd.f32 %v895, %v2353
    %v3378 = vadd.f32 %v896, %v2354
    %v3379 = vadd.f32 %v897, %v2355
    %v3380 = vadd.f32 %v898, %v2356
    %v3381 = vadd.f32 %v899, %v2357
    %v3382 = vadd.f32 %v900, %v2358
    %v3383 = vadd.f32 %v901, %v2359
    %v3384 = vadd.f32 %v902, %v2360
    %v3385 = vadd.f32 %v903, %v2361
    %v3386 = vadd.f32 %v904, %v2362
    %v3387 = vadd.f32 %v905, %v2363
    %v3388 = vadd.f32 %v906, %v2364
    %v3389 = vadd.f32 %v907, %v2365
    %v3390 = vadd.f32 %v908, %v2366
    %v3391 = vadd.f32 %v909, %v2367
    %v3392 = vadd.f32 %v910, %v2368
    %v3393 = vadd.f32 %v911, %v2369
    %v3394 = vadd.f32 %v912, %v2370
    %v3395 = vadd.f32 %v913, %v2371
    %v3396 = vadd.f32 %v914, %v2372
    %v3397 = vadd.f32 %v915, %v2373
    %v3398 = vadd.f32 %v916, %v2374
    %v3399 = vadd.f32 %v917, %v2375
    %v3400 = vadd.f32 %v918, %v2376
    %v3401 = vadd.f32 %v919, %v2377
    %v3402 = vadd.f32 %v920, %v2378
    %v3403 = vadd.f32 %v921, %v2379
    %v3404 = vadd.f32 %v922, %v2380
    %v3405 = vadd.f32 %v923, %v2381
    %v3406 = vadd.f32 %v924, %v2382
    %v3407 = vadd.f32 %v925, %v2383
    %v3408 = vadd.f32 %v926, %v2384
    %v3409 = vadd.f32 %v927, %v2385
    %v3410 = vadd.f32 %v928, %v2386
    %v3411 = vadd.f32 %v929, %v2387
    %v3412 = vadd.f32 %v930, %v2388
    %v3413 = vadd.f32 %v931, %v2389
    %v3414 = vadd.f32 %v932, %v2390
    %v3415 = vadd.f32 %v933, %v2391
    %v3416 = vadd.f32 %v934, %v2392
    %v3417 = vadd.f32 %v935, %v2393
    %v3418 = vadd.f32 %v936, %v2394
    %v3419 = vadd.f32 %v937, %v2395
    %v3420 = vadd.f32 %v938, %v2396
    %v3421 = vadd.f32 %v939, %v2397
    %v3422 = vadd.f32 %v940, %v2398
    %v3423 = vadd.f32 %v941, %v2399
    %v3424 = vadd.f32 %v942, %v2400
    %v3425 = vadd.f32 %v943, %v2401
    %v3426 = vadd.f32 %v944, %v2402
    %v3427 = vadd.f32 %v945, %v2403
    %v3428 = vadd.f32 %v946, %v2404
    %v3429 = vadd.f32 %v947, %v2405
    %v3430 = vadd.f32 %v948, %v2406
    %v3431 = vadd.f32 %v949, %v2407
    %v3432 = vadd.f32 %v950, %v2408
    %v3433 = vadd.f32 %v951, %v2409
    %v3434 = vadd.f32 %v952, %v2410
    %v3435 = vadd.f32 %v953, %v2411
    %v3436 = vadd.f32 %v954, %v2412
    %v3437 = vadd.f32 %v955, %v2413
    %v3438 = vadd.f32 %v956, %v2414
    %v3439 = vadd.f32 %v957, %v2415
    %v3440 = vadd.f32 %v958, %v2416
    %v3441 = vadd.f32 %v959, %v2417
    %v3442 = vadd.f32 %v960, %v2418
    %v3443 = vadd.f32 %v961, %v2419
    %v3444 = vadd.f32 %v962, %v2420
    %v3445 = vadd.f32 %v963, %v2421
    %v3446 = vadd.f32 %v964, %v2422
    %v3447 = vadd.f32 %v965, %v2423
    %v3448 = vadd.f32 %v966, %v2424
    %v3449 = vadd.f32 %v967, %v2425
    %v3450 = vadd.f32 %v968, %v2426
    %v3451 = vadd.f32 %v969, %v2427
    %v3452 = vadd.f32 %v970, %v2428
    %v3453 = vadd.f32 %v971, %v2429
    %v3454 = vadd.f32 %v972, %v2430
    %v3455 = vadd.f32 %v973, %v2431
    %v3456 = vadd.f32 %v974, %v2432
    %v3457 = vadd.f32 %v975, %v2433
    %v3458 = vadd.f32 %v976, %v2434
    %v3459 = vadd.f32 %v977, %v2435
    %v3460 = vadd.f32 %v978, %v2436
    %v3461 = vadd.f32 %v979, %v2437
    %v3462 = vadd.f32 %v980, %v2438
    %v3463 = vadd.f32 %v981, %v2439
    %v3464 = vadd.f32 %v982, %v2440
    %v3465 = vadd.f32 %v983, %v2441
    %v3466 = vadd.f32 %v984, %v2442
    %v3467 = vadd.f32 %v985, %v2443
    %v3468 = vadd.f32 %v986, %v2444
    %v3469 = vadd.f32 %v987, %v2445
    %v3470 = vadd.f32 %v988, %v2446
    %v3471 = vadd.f32 %v989, %v2447
    %v3472 = vadd.f32 %v990, %v2448
    %v3473 = vadd.f32 %v991, %v2449
    %v3474 = vadd.f32 %v992, %v2450
    %v3475 = vadd.f32 %v993, %v2451
    %v3476 = vadd.f32 %v994, %v2452
    %v3477 = vadd.f32 %v995, %v2453
    %v3478 = vadd.f32 %v996, %v2454
    %v3479 = vadd.f32 %v997, %v2455
    %v3480 = vadd.f32 %v998, %v2456
    %v3481 = vadd.f32 %v999, %v2457
    %v3482 = vadd.f32 %v1000, %v2458
    %v3483 = vadd.f32 %v1001, %v2459
    %v3484 = vadd.f32 %v1002, %v2460
    %v3485 = vadd.f32 %v1003, %v2461
    %v3486 = vadd.f32 %v1004, %v2462
    %v3487 = vadd.f32 %v1005, %v2463
    %v3488 = vadd.f32 %v1006, %v2464
    %v3489 = vadd.f32 %v1007, %v2465
    %v3490 = vadd.f32 %v1008, %v2466
    %v3491 = vadd.f32 %v1009, %v2467
    %v3492 = vadd.f32 %v1010, %v2468
    %v3493 = vadd.f32 %v1011, %v2469
    %v3494 = vadd.f32 %v1012, %v2470
    %v3495 = vadd.f32 %v1013, %v2471
    %v3496 = vadd.f32 %v1014, %v2472
    %v3497 = vadd.f32 %v1015, %v2473
    %v3498 = vadd.f32 %v1016, %v2474
    %v3499 = vadd.f32 %v1017, %v2475
    %v3500 = vadd.f32 %v1018, %v2476
    %v3501 = vadd.f32 %v1019, %v2477
    %v3502 = vadd.f32 %v1020, %v2478
    %v3503 = vadd.f32 %v1021, %v2479
    %v3504 = vadd.f32 %v1022, %v2480
    %v3505 = vadd.f32 %v1023, %v2481
    %v3506 = vadd.f32 %v1024, %v2482
    %v3507 = vadd.f32 %v1025, %v2483
    %v3508 = vadd.f32 %v1026, %v2484
    %v3509 = vadd.f32 %v1027, %v2485
    %v3510 = vadd.f32 %v1028, %v2486
    %v3511 = vadd.f32 %v1029, %v2487
    %v3512 = vadd.f32 %v1030, %v2488
    %v3513 = vadd.f32 %v1031, %v2489
    %v3514 = vadd.f32 %v1032, %v2490
    %v3515 = vadd.f32 %v1033, %v2491
    %v3516 = vadd.f32 %v1034, %v2492
    %v3517 = vadd.f32 %v1035, %v2493
    %v3518 = vadd.f32 %v1036, %v2494
    %v3519 = vadd.f32 %v1037, %v2495
    %v3520 = vadd.f32 %v1038, %v2496
    %v3521 = vadd.f32 %v1039, %v2497
    %v3522 = vadd.f32 %v1040, %v2498
    %v3523 = vadd.f32 %v1041, %v2499
    %v3524 = vadd.f32 %v1042, %v2500
    %v3525 = vadd.f32 %v1043, %v2501
    %v3526 = vadd.f32 %v1044, %v2502
    %v3527 = vadd.f32 %v1045, %v2503
    %v3528 = vadd.f32 %v1046, %v2504
    %v3529 = vadd.f32 %v1047, %v2505
    %v3530 = vadd.f32 %v1048, %v2506
    %v3531 = vadd.f32 %v1049, %v2507
    %v3532 = vadd.f32 %v1050, %v2508
    %v3533 = vadd.f32 %v1051, %v2509
    %v3534 = vadd.f32 %v1052, %v2510
    %v3535 = vadd.f32 %v1053, %v2511
    %v3536 = vadd.f32 %v1054, %v2512
    %v3537 = vadd.f32 %v1055, %v2513
    %v3538 = vadd.f32 %v1056, %v2514
    %v3539 = vadd.f32 %v1057, %v2515
    %v3540 = vadd.f32 %v1058, %v2516
    %v3541 = vadd.f32 %v1059, %v2517
    %v3542 = vadd.f32 %v1060, %v2518
    %v3543 = vadd.f32 %v1061, %v2519
    %v3544 = vadd.f32 %v1062, %v2520
    %v3545 = vadd.f32 %v1063, %v2521
    %v3546 = vadd.f32 %v1064, %v2522
    %v3547 = vadd.f32 %v1065, %v2523
    %v3548 = vadd.f32 %v1066, %v2524
    %v3549 = vadd.f32 %v1067, %v2525
    %v3550 = vadd.f32 %v1068, %v2526
    %v3551 = vadd.f32 %v1069, %v2527
    %v3552 = vadd.f32 %v1070, %v2528
    %v3553 = vadd.f32 %v1071, %v2529
    %v3554 = vadd.f32 %v1072, %v2530
    %v3555 = vadd.f32 %v1073, %v2531
    %v3556 = vadd.f32 %v1074, %v2532
    %v3557 = vadd.f32 %v1075, %v2533
    %v3558 = vadd.f32 %v1076, %v2534
    %v3559 = vadd.f32 %v1077, %v2535
    %v3560 = vadd.f32 %v1078, %v2536
    %v3561 = vadd.f32 %v1079, %v2537
    %v3562 = vadd.f32 %v1080, %v2538
    %v3563 = vadd.f32 %v1081, %v2539
    %v3564 = vadd.f32 %v1082, %v2540
    %v3565 = vadd.f32 %v1083, %v2541
    %v3566 = vadd.f32 %v1084, %v2542
    %v3567 = vadd.f32 %v1085, %v2543
    %v3568 = vadd.f32 %v1086, %v2544
    %v3569 = vadd.f32 %v1087, %v2545
    %v3570 = vadd.f32 %v1088, %v2546
    %v3571 = vadd.f32 %v1089, %v2547
    %v3572 = vadd.f32 %v1090, %v2548
    %v3573 = vadd.f32 %v1091, %v2549
    %v3574 = vadd.f32 %v1092, %v2550
    %v3575 = vadd.f32 %v1093, %v2551
    %v3576 = vadd.f32 %v1094, %v2552
    %v3577 = vadd.f32 %v1095, %v2553
    %v3578 = vadd.f32 %v1096, %v2554
    %v3579 = vadd.f32 %v1097, %v2555
    %v3580 = vadd.f32 %v1098, %v2556
    %v3581 = vadd.f32 %v1099, %v2557
    %v3582 = vadd.f32 %v1100, %v2558
    %v3583 = vadd.f32 %v1101, %v2559
    %v3584 = vadd.f32 %v1102, %v2560
    %v3585 = vadd.f32 %v1103, %v2561
    %v3586 = vadd.f32 %v1104, %v2562
    %v3587 = vadd.f32 %v1105, %v2563
    %v3588 = vadd.f32 %v1106, %v2564
    %v3589 = vadd.f32 %v1107, %v2565
    %v3590 = vadd.f32 %v1108, %v2566
    %v3591 = vadd.f32 %v1109, %v2567
    %v3592 = vadd.f32 %v1110, %v2568
    %v3593 = vadd.f32 %v1111, %v2569
    %v3594 = vadd.f32 %v1112, %v2570
    %v3595 = vadd.f32 %v1113, %v2571
    %v3596 = vadd.f32 %v1114, %v2572
    %v3597 = vadd.f32 %v1115, %v2573
    %v3598 = vadd.f32 %v1116, %v2574
    %v3599 = vadd.f32 %v1117, %v2575
    %v3600 = vadd.f32 %v1118, %v2576
    %v3601 = vadd.f32 %v1119, %v2577
    %v3602 = vadd.f32 %v1120, %v2578
    %v3603 = vadd.f32 %v1121, %v2579
    %v3604 = vadd.f32 %v1122, %v2580
    %v3605 = vadd.f32 %v1123, %v2581
    %v3606 = vadd.f32 %v1124, %v2582
    %v3607 = vadd.f32 %v1125, %v2583
    %v3608 = vadd.f32 %v1126, %v2584
    %v3609 = vadd.f32 %v1127, %v2585
    %v3610 = vadd.f32 %v1128, %v2586
    %v3611 = vadd.f32 %v1129, %v2587
    %v3612 = vadd.f32 %v1130, %v2588
    %v3613 = vadd.f32 %v1131, %v2589
    %v3614 = vadd.f32 %v1132, %v2590
    %v3615 = vadd.f32 %v1133, %v2591
    %v3616 = vadd.f32 %v1134, %v2592
    %v3617 = vadd.f32 %v1135, %v2593
    %v3618 = vadd.f32 %v1136, %v2594
    %v3619 = vadd.f32 %v1137, %v2595
    %v3620 = vadd.f32 %v1138, %v2596
    %v3621 = vadd.f32 %v1139, %v2597
    %v3622 = vadd.f32 %v1140, %v2598
    %v3623 = vadd.f32 %v1141, %v2599
    %v3624 = vadd.f32 %v1142, %v2600
    %v3625 = vadd.f32 %v1143, %v2601
    %v3626 = vadd.f32 %v1144, %v2602
    %v3627 = vadd.f32 %v1145, %v2603
    %v3628 = vadd.f32 %v1146, %v2604
    %v3629 = vadd.f32 %v1147, %v2605
    %v3630 = vadd.f32 %v1148, %v2606
    %v3631 = vadd.f32 %v1149, %v2607
    %v3632 = vadd.f32 %v1150, %v2608
    %v3633 = vadd.f32 %v1151, %v2609
    %v3634 = vadd.f32 %v1152, %v2610
    %v3635 = vadd.f32 %v1153, %v2611
    %v3636 = vadd.f32 %v1154, %v2612
    %v3637 = vadd.f32 %v1155, %v2613
    %v3638 = vadd.f32 %v1156, %v2614
    %v3639 = vadd.f32 %v1157, %v2615
    %v3640 = vadd.f32 %v1158, %v2616
    %v3641 = vadd.f32 %v1159, %v2617
    %v3642 = vadd.f32 %v1160, %v2618
    %v3643 = vadd.f32 %v1161, %v2619
    %v3644 = vadd.f32 %v1162, %v2620
    %v3645 = vadd.f32 %v1163, %v2621
    %v3646 = vadd.f32 %v1164, %v2622
    %v3647 = vadd.f32 %v1165, %v2623
    %v3648 = vadd.f32 %v1166, %v2624
    %v3649 = vadd.f32 %v1167, %v2625
    %v3650 = vadd.f32 %v1168, %v2626
    %v3651 = vadd.f32 %v1169, %v2627
    %v3652 = vadd.f32 %v1170, %v2628
    %v3653 = vadd.f32 %v1171, %v2629
    %v3654 = vadd.f32 %v1172, %v2630
    %v3655 = vadd.f32 %v1173, %v2631
    %v3656 = vadd.f32 %v1174, %v2632
    %v3657 = vadd.f32 %v1175, %v2633
    %v3658 = vadd.f32 %v1176, %v2634
    %v3659 = vadd.f32 %v1177, %v2635
    %v3660 = vadd.f32 %v1178, %v2636
    %v3661 = vadd.f32 %v1179, %v2637
    %v3662 = vadd.f32 %v1180, %v2638
    %v3663 = vadd.f32 %v1181, %v2639
    %v3664 = vadd.f32 %v1182, %v2640
    %v3665 = vadd.f32 %v1183, %v2641
    %v3666 = vadd.f32 %v1184, %v2642
    %v3667 = vadd.f32 %v1185, %v2643
    %v3668 = vadd.f32 %v1186, %v2644
    %v3669 = vadd.f32 %v1187, %v2645
    %v3670 = vadd.f32 %v1188, %v2646
    %v3671 = vadd.f32 %v1189, %v2647
    %v3672 = vadd.f32 %v1190, %v2648
    %v3673 = vadd.f32 %v1191, %v2649
    %v3674 = vadd.f32 %v1192, %v2650
    %v3675 = vadd.f32 %v1193, %v2651
    %v3676 = vadd.f32 %v1194, %v2652
    %v3677 = vadd.f32 %v1195, %v2653
    %v3678 = vadd.f32 %v1196, %v2654
    %v3679 = vadd.f32 %v1197, %v2655
    %v3680 = vadd.f32 %v1198, %v2656
    %v3681 = vadd.f32 %v1199, %v2657
    %v3682 = vadd.f32 %v1200, %v2658
    %v3683 = vadd.f32 %v1201, %v2659
    %v3684 = vadd.f32 %v1202, %v2660
    %v3685 = vadd.f32 %v1203, %v2661
    %v3686 = vadd.f32 %v1204, %v2662
    %v3687 = vadd.f32 %v1205, %v2663
    %v3688 = vadd.f32 %v1206, %v2664
    %v3689 = vadd.f32 %v1207, %v2665
    %v3690 = vadd.f32 %v1208, %v2666
    %v3691 = vadd.f32 %v1209, %v2667
    %v3692 = vadd.f32 %v1210, %v2668
    %v3693 = vadd.f32 %v1211, %v2669
    %v3694 = vadd.f32 %v1212, %v2670
    %v3695 = vadd.f32 %v1213, %v2671
    %v3696 = vadd.f32 %v1214, %v2672
    %v3697 = vadd.f32 %v1215, %v2673
    %v3698 = vadd.f32 %v1216, %v2674
    %v3699 = vadd.f32 %v1217, %v2675
    %v3700 = vadd.f32 %v1218, %v2676
    %v3701 = vadd.f32 %v1219, %v2677
    %v3702 = vadd.f32 %v1220, %v2678
    %v3703 = vadd.f32 %v1221, %v2679
    %v3704 = vadd.f32 %v1222, %v2680
    %v3705 = vadd.f32 %v1223, %v2681
    %v3706 = vadd.f32 %v1224, %v2682
    %v3707 = vadd.f32 %v1225, %v2683
    %v3708 = vadd.f32 %v1226, %v2684
    %v3709 = vadd.f32 %v1227, %v2685
    %v3710 = vadd.f32 %v1228, %v2686
    %v3711 = vadd.f32 %v1229, %v2687
    %v3712 = vadd.f32 %v1230, %v2688
    %v3713 = vadd.f32 %v1231, %v2689
    %v3714 = vadd.f32 %v1232, %v2690
    %v3715 = vadd.f32 %v1233, %v2691
    %v3716 = vadd.f32 %v1234, %v2692
    %v3717 = vadd.f32 %v1235, %v2693
    %v3718 = vadd.f32 %v1236, %v2694
    %v3719 = vadd.f32 %v1237, %v2695
    %v3720 = vadd.f32 %v1238, %v2696
    %v3721 = vadd.f32 %v1239, %v2697
    %v3722 = vadd.f32 %v1240, %v2698
    %v3723 = vadd.f32 %v1241, %v2699
    %v3724 = vadd.f32 %v1242, %v2700
    %v3725 = vadd.f32 %v1243, %v2701
    %v3726 = vadd.f32 %v1244, %v2702
    %v3727 = vadd.f32 %v1245, %v2703
    %v3728 = vadd.f32 %v1246, %v2704
    %v3729 = vadd.f32 %v1247, %v2705
    %v3730 = vadd.f32 %v1248, %v2706
    %v3731 = vadd.f32 %v1249, %v2707
    %v3732 = vadd.f32 %v1250, %v2708
    %v3733 = vadd.f32 %v1251, %v2709
    %v3734 = vadd.f32 %v1252, %v2710
    %v3735 = vadd.f32 %v1253, %v2711
    %v3736 = vadd.f32 %v1254, %v2712
    %v3737 = vadd.f32 %v1255, %v2713
    %v3738 = vadd.f32 %v1256, %v2714
    %v3739 = vadd.f32 %v1257, %v2715
    %v3740 = vadd.f32 %v1258, %v2716
    %v3741 = vadd.f32 %v1259, %v2717
    %v3742 = vadd.f32 %v1260, %v2718
    %v3743 = vadd.f32 %v1261, %v2719
    %v3744 = vadd.f32 %v1262, %v2720
    %v3745 = vadd.f32 %v1263, %v2721
    %v3746 = vadd.f32 %v1264, %v2722
    %v3747 = vadd.f32 %v1265, %v2723
    %v3748 = vadd.f32 %v1266, %v2724
    %v3749 = vadd.f32 %v1267, %v2725
    %v3750 = vadd.f32 %v1268, %v2726
    %v3751 = vadd.f32 %v1269, %v2727
    %v3752 = vadd.f32 %v1270, %v2728
    %v3753 = vadd.f32 %v1271, %v2729
    %v3754 = vadd.f32 %v1272, %v2730
    %v3755 = vadd.f32 %v1273, %v2731
    %v3756 = vadd.f32 %v1274, %v2732
    %v3757 = vadd.f32 %v1275, %v2733
    %v3758 = vadd.f32 %v1276, %v2734
    %v3759 = vadd.f32 %v1277, %v2735
    %v3760 = vadd.f32 %v1278, %v2736
    %v3761 = vadd.f32 %v1279, %v2737
    %v3762 = vadd.f32 %v1280, %v2738
    %v3763 = vadd.f32 %v1281, %v2739
    %v3764 = vadd.f32 %v1282, %v2740
    %v3765 = vadd.f32 %v1283, %v2741
    %v3766 = vadd.f32 %v1284, %v2742
    %v3767 = vadd.f32 %v1285, %v2743
    %v3768 = vadd.f32 %v1286, %v2744
    %v3769 = vadd.f32 %v1287, %v2745
    %v3770 = vadd.f32 %v1288, %v2746
    %v3771 = vadd.f32 %v1289, %v2747
    %v3772 = vadd.f32 %v1290, %v2748
    %v3773 = vadd.f32 %v1291, %v2749
    %v3774 = vadd.f32 %v1292, %v2750
    %v3775 = vadd.f32 %v1293, %v2751
    %v3776 = vadd.f32 %v1294, %v2752
    %v3777 = vadd.f32 %v1295, %v2753
    %v3778 = vadd.f32 %v1296, %v2754
    %v3779 = vadd.f32 %v1297, %v2755
    %v3780 = vadd.f32 %v1298, %v2756
    %v3781 = vadd.f32 %v1299, %v2757
    %v3782 = vadd.f32 %v1300, %v2758
    %v3783 = vadd.f32 %v1301, %v2759
    %v3784 = vadd.f32 %v1302, %v2760
    %v3785 = vadd.f32 %v1303, %v2761
    %v3786 = vadd.f32 %v1304, %v2762
    %v3787 = vadd.f32 %v1305, %v2763
    %v3788 = vadd.f32 %v1306, %v2764
    %v3789 = vadd.f32 %v1307, %v2765
    %v3790 = vadd.f32 %v1308, %v2766
    %v3791 = vadd.f32 %v1309, %v2767
    %v3792 = vadd.f32 %v1310, %v2768
    %v3793 = vadd.f32 %v1311, %v2769
    %v3794 = vadd.f32 %v1312, %v2770
    %v3795 = vadd.f32 %v1313, %v2771
    %v3796 = vadd.f32 %v1314, %v2772
    %v3797 = vadd.f32 %v1315, %v2773
    %v3798 = vadd.f32 %v1316, %v2774
    %v3799 = vadd.f32 %v1317, %v2775
    %v3800 = vadd.f32 %v1318, %v2776
    %v3801 = vadd.f32 %v1319, %v2777
    %v3802 = vadd.f32 %v1320, %v2778
    %v3803 = vadd.f32 %v1321, %v2779
    %v3804 = vadd.f32 %v1322, %v2780
    %v3805 = vadd.f32 %v1323, %v2781
    %v3806 = vadd.f32 %v1324, %v2782
    %v3807 = vadd.f32 %v1325, %v2783
    %v3808 = vadd.f32 %v1326, %v2784
    %v3809 = vadd.f32 %v1327, %v2785
    %v3810 = vadd.f32 %v1328, %v2786
    %v3811 = vadd.f32 %v1329, %v2787
    %v3812 = vadd.f32 %v1330, %v2788
    %v3813 = vadd.f32 %v1331, %v2789
    %v3814 = vadd.f32 %v1332, %v2790
    %v3815 = vadd.f32 %v1333, %v2791
    %v3816 = vadd.f32 %v1334, %v2792
    %v3817 = vadd.f32 %v1335, %v2793
    %v3818 = vadd.f32 %v1336, %v2794
    %v3819 = vadd.f32 %v1337, %v2795
    %v3820 = vadd.f32 %v1338, %v2796
    %v3821 = vadd.f32 %v1339, %v2797
    %v3822 = vadd.f32 %v1340, %v2798
    %v3823 = vadd.f32 %v1341, %v2799
    %v3824 = vadd.f32 %v1342, %v2800
    %v3825 = vadd.f32 %v1343, %v2801
    %v3826 = vadd.f32 %v1344, %v2802
    %v3827 = vadd.f32 %v1345, %v2803
    %v3828 = vadd.f32 %v1346, %v2804
    %v3829 = vadd.f32 %v1347, %v2805
    %v3830 = vadd.f32 %v1348, %v2806
    %v3831 = vadd.f32 %v1349, %v2807
    %v3832 = vadd.f32 %v1350, %v2808
    %v3833 = vadd.f32 %v1351, %v2809
    %v3834 = vadd.f32 %v1352, %v2810
    %v3835 = vadd.f32 %v1353, %v2811
    %v3836 = vadd.f32 %v1354, %v2812
    %v3837 = vadd.f32 %v1355, %v2813
    %v3838 = vadd.f32 %v1356, %v2814
    %v3839 = vadd.f32 %v1357, %v2815
    %v3840 = vadd.f32 %v1358, %v2816
    %v3841 = vadd.f32 %v1359, %v2817
    %v3842 = vadd.f32 %v1360, %v2818
    %v3843 = vadd.f32 %v1361, %v2819
    %v3844 = vadd.f32 %v1362, %v2820
    %v3845 = vadd.f32 %v1363, %v2821
    %v3846 = vadd.f32 %v1364, %v2822
    %v3847 = vadd.f32 %v1365, %v2823
    %v3848 = vadd.f32 %v1366, %v2824
    %v3849 = vadd.f32 %v1367, %v2825
    %v3850 = vadd.f32 %v1368, %v2826
    %v3851 = vadd.f32 %v1369, %v2827
    %v3852 = vadd.f32 %v1370, %v2828
    %v3853 = vadd.f32 %v1371, %v2829
    %v3854 = vadd.f32 %v1372, %v2830
    %v3855 = vadd.f32 %v1373, %v2831
    %v3856 = vadd.f32 %v1374, %v2832
    %v3857 = vadd.f32 %v1375, %v2833
    %v3858 = vadd.f32 %v1376, %v2834
    %v3859 = vadd.f32 %v1377, %v2835
    %v3860 = vadd.f32 %v1378, %v2836
    %v3861 = vadd.f32 %v1379, %v2837
    %v3862 = vadd.f32 %v1380, %v2838
    %v3863 = vadd.f32 %v1381, %v2839
    %v3864 = vadd.f32 %v1382, %v2840
    %v3865 = vadd.f32 %v1383, %v2841
    %v3866 = vadd.f32 %v1384, %v2842
    %v3867 = vadd.f32 %v1385, %v2843
    %v3868 = vadd.f32 %v1386, %v2844
    %v3869 = vadd.f32 %v1387, %v2845
    %v3870 = vadd.f32 %v1388, %v2846
    %v3871 = vadd.f32 %v1389, %v2847
    %v3872 = vadd.f32 %v1390, %v2848
    %v3873 = vadd.f32 %v1391, %v2849
    %v3874 = vadd.f32 %v1392, %v2850
    %v3875 = vadd.f32 %v1393, %v2851
    %v3876 = vadd.f32 %v1394, %v2852
    %v3877 = vadd.f32 %v1395, %v2853
    %v3878 = vadd.f32 %v1396, %v2854
    %v3879 = vadd.f32 %v1397, %v2855
    %v3880 = vadd.f32 %v1398, %v2856
    %v3881 = vadd.f32 %v1399, %v2857
    %v3882 = vadd.f32 %v1400, %v2858
    %v3883 = vadd.f32 %v1401, %v2859
    %v3884 = vadd.f32 %v1402, %v2860
    %v3885 = vadd.f32 %v1403, %v2861
    %v3886 = vadd.f32 %v1404, %v2862
    %v3887 = vadd.f32 %v1405, %v2863
    %v3888 = vadd.f32 %v1406, %v2864
    %v3889 = vadd.f32 %v1407, %v2865
    %v3890 = vadd.f32 %v1408, %v2866
    %v3891 = vadd.f32 %v1409, %v2867
    %v3892 = vadd.f32 %v1410, %v2868
    %v3893 = vadd.f32 %v1411, %v2869
    %v3894 = vadd.f32 %v1412, %v2870
    %v3895 = vadd.f32 %v1413, %v2871
    %v3896 = vadd.f32 %v1414, %v2872
    %v3897 = vadd.f32 %v1415, %v2873
    %v3898 = vadd.f32 %v1416, %v2874
    %v3899 = vadd.f32 %v1417, %v2875
    %v3900 = vadd.f32 %v1418, %v2876
    %v3901 = vadd.f32 %v1419, %v2877
    %v3902 = vadd.f32 %v1420, %v2878
    %v3903 = vadd.f32 %v1421, %v2879
    %v3904 = vadd.f32 %v1422, %v2880
    %v3905 = vadd.f32 %v1423, %v2881
    %v3906 = vadd.f32 %v1424, %v2882
    %v3907 = vadd.f32 %v1425, %v2883
    %v3908 = vadd.f32 %v1426, %v2884
    %v3909 = vadd.f32 %v1427, %v2885
    %v3910 = vadd.f32 %v1428, %v2886
    %v3911 = vadd.f32 %v1429, %v2887
    %v3912 = vadd.f32 %v1430, %v2888
    %v3913 = vadd.f32 %v1431, %v2889
    %v3914 = vadd.f32 %v1432, %v2890
    %v3915 = vadd.f32 %v1433, %v2891
    %v3916 = vadd.f32 %v1434, %v2892
    %v3917 = vadd.f32 %v1435, %v2893
    %v3918 = vadd.f32 %v1436, %v2894
    %v3919 = vadd.f32 %v1437, %v2895
    %v3920 = vadd.f32 %v1438, %v2896
    %v3921 = vadd.f32 %v1439, %v2897
    %v3922 = vadd.f32 %v1440, %v2898
    %v3923 = vadd.f32 %v1441, %v2899
    %v3924 = vadd.f32 %v1442, %v2900
    %v3925 = vadd.f32 %v1443, %v2901
    %v3926 = vadd.f32 %v1444, %v2902
    %v3927 = vadd.f32 %v1445, %v2903
    %v3928 = vadd.f32 %v1446, %v2904
    %v3929 = vadd.f32 %v1447, %v2905
    %v3930 = vadd.f32 %v1448, %v2906
    %v3931 = vadd.f32 %v1449, %v2907
    %v3932 = vadd.f32 %v1450, %v2908
    %v3933 = vadd.f32 %v1451, %v2909
    %v3934 = vadd.f32 %v1452, %v2910
    %v3935 = vadd.f32 %v1453, %v2911
    %v3936 = vadd.f32 %v1454, %v2912
    %v3937 = vadd.f32 %v1455, %v2913
    %v3938 = vadd.f32 %v1456, %v2914
    %v3939 = vadd.f32 %v1457, %v2915
    %v3940 = vadd.f32 %v1458, %v2916
    %v3941 = vadd.f32 %v1459, %v2917
    %v3942 = vadd.f32 %v1460, %v2918
    %v3943 = vadd.f32 %v1461, %v2919
    %v3944 = vadd.f32 %v1462, %v2920
    %v3945 = vadd.f32 %v1463, %v2921
    %v3946 = vadd.f32 %v1464, %v2922
    %v3947 = vadd.f32 %v1465, %v2923
    %v3948 = vadd.f32 %v1466, %v2924
    %v3949 = vadd.f32 %v1467, %v2925
    %v3950 = vadd.f32 %v1468, %v2926
    %v3951 = vadd.f32 %v1469, %v2927
    %v3952 = vadd.f32 %v1470, %v2928
    %v3953 = vadd.f32 %v1471, %v2929
    %v3954 = vadd.f32 %v1472, %v2930
    %v3955 = vadd.f32 %v1473, %v2931
    %v3956 = vadd.f32 %v1474, %v2932
    %v3957 = vadd.f32 %v1475, %v2933
    %v3958 = vadd.f32 %v1476, %v2934
    %v3959 = vadd.f32 %v1477, %v2935
    %v3960 = vadd.f32 %v1478, %v2936
    %v3961 = vadd.f32 %v1479, %v2937
    %v3962 = vadd.f32 %v1480, %v2938
    %v3963 = vadd.f32 %v1481, %v2939
    %v3964 = vadd.f32 %v1482, %v2940
    %v3965 = vadd.f32 %v1483, %v2941
    %v3966 = vadd.f32 %v1484, %v2942
    %v3967 = vadd.f32 %v1485, %v2943
    %v3968 = vadd.f32 %v1486, %v2944
    %v3969 = vadd.f32 %v1487, %v2945
    %v3970 = vadd.f32 %v1488, %v2946
    %v3971 = vadd.f32 %v1489, %v2947
    %v3972 = vadd.f32 %v1490, %v2948
    %v3973 = vadd.f32 %v1491, %v2949
    %v3974 = vadd.f32 %v1492, %v2950
    %v3975 = vadd.f32 %v1493, %v2951
    %v3976 = vadd.f32 %v1494, %v2952
    %v3977 = vadd.f32 %v1495, %v2953
    %v3978 = vadd.f32 %v1496, %v2954
    %v3979 = vadd.f32 %v1497, %v2955
    %v3980 = vadd.f32 %v1498, %v2956
    %v3981 = vadd.f32 %v1499, %v2957
    %v3982 = vadd.f32 %v1500, %v2958
    %v3983 = vadd.f32 %v1501, %v2959
    %v3984 = vadd.f32 %v1502, %v2960
    %v3985 = vadd.f32 %v1503, %v2961
    %v3986 = vadd.f32 %v1504, %v2962
    %v3987 = vadd.f32 %v1505, %v2963
    %v3988 = vadd.f32 %v1506, %v2964
    %v3989 = vadd.f32 %v1507, %v2965
    %v3990 = vadd.f32 %v1508, %v2966
    %v3991 = vadd.f32 %v1509, %v2967
    %v3992 = vadd.f32 %v1510, %v2968
    %v3993 = vadd.f32 %v1511, %v2969
    %v3994 = vadd.f32 %v1512, %v2970
    %v3995 = vadd.f32 %v1513, %v2971
    %v3996 = vadd.f32 %v1514, %v2972
    %v3997 = vadd.f32 %v1515, %v2973
    %v3998 = vadd.f32 %v1516, %v2974
    %v3999 = vadd.f32 %v1517, %v2975
    %v4000 = vadd.f32 %v1518, %v2976
    %v4001 = vadd.f32 %v1519, %v2977
    %v4002 = vadd.f32 %v1520, %v2978
    %v4003 = vadd.f32 %v1521, %v2979
    %v4004 = vadd.f32 %v1522, %v2980
    %v4005 = vadd.f32 %v1523, %v2981
    %v4006 = vadd.f32 %v1524, %v2982
    %v4007 = vadd.f32 %v1525, %v2983
    %v4008 = vadd.f32 %v1526, %v2984
    %v4009 = vadd.f32 %v1527, %v2985
    %v4010 = vadd.f32 %v1528, %v2986
    %v4011 = vadd.f32 %v1529, %v2987
    %v4012 = vadd.f32 %v1530, %v2988
    %v4013 = vadd.f32 %v1531, %v2989
    %v4014 = vadd.f32 %v1532, %v2990
    %v4015 = vadd.f32 %v1533, %v2991
    %v4016 = vadd.f32 %v1534, %v2992
    %v4017 = vadd.f32 %v1535, %v2993
    %v4018 = vadd.f32 %v1536, %v2994
    %v4019 = vadd.f32 %v1537, %v2995
    %v4020 = vadd.f32 %v1538, %v2996
    %v4021 = vadd.f32 %v1539, %v2997
    %v4022 = vadd.f32 %v1540, %v2998
    %v4023 = vadd.f32 %v1541, %v2999
    %v4024 = vadd.f32 %v1542, %v3000
    %v4025 = vadd.f32 %v1543, %v3001
    %v4026 = vadd.f32 %v1544, %v3002
    %v4027 = vadd.f32 %v1545, %v3003
    %v4028 = vadd.f32 %v1546, %v3004
    %v4029 = vadd.f32 %v1547, %v3005
    %v4030 = vadd.f32 %v1548, %v3006
    %v4031 = vadd.f32 %v1549, %v3007
    %v4032 = vadd.f32 %v1550, %v3008
    %v4033 = vadd.f32 %v1551, %v3009
    %v4034 = vadd.f32 %v1552, %v3010
    %v4035 = vadd.f32 %v1553, %v3011
    %v4036 = vadd.f32 %v1554, %v3012
    %v4037 = vadd.f32 %v1555, %v3013
    %v4038 = vadd.f32 %v1556, %v3014
    %v4039 = vadd.f32 %v1557, %v3015
    %v4040 = vadd.f32 %v1558, %v3016
    %v4041 = vadd.f32 %v1559, %v3017
    %v4042 = vadd.f32 %v1560, %v3018
    %v4043 = vadd.f32 %v1561, %v3019
    %v4044 = vadd.f32 %v1562, %v3020
    %v4045 = vadd.f32 %v1563, %v3021
    %v4046 = vadd.f32 %v1564, %v3022
    %v4047 = vadd.f32 %v1565, %v3023
    %v4048 = vadd.f32 %v1566, %v3024
    %v4049 = vadd.f32 %v1567, %v3025
    %v4050 = vadd.f32 %v1568, %v3026
    %v4051 = vadd.f32 %v1569, %v3027
    %v4052 = vadd.f32 %v1570, %v3028
    %v4053 = vadd.f32 %v1571, %v3029
    %v4054 = vadd.f32 %v1572, %v3030
    %v4055 = vadd.f32 %v1573, %v3031
    %v4056 = vadd.f32 %v1574, %v3032
    %v4057 = vadd.f32 %v1575, %v3033
    %v4058 = vadd.f32 %v1576, %v3034
    %v4059 = vadd.f32 %v1577, %v3035
    %v4060 = vadd.f32 %v1578, %v3036
    %v4061 = vadd.f32 %v1579, %v3037
    %v4062 = vadd.f32 %v1580, %v3038
    %v4063 = vadd.f32 %v1581, %v3039
    %v4064 = vadd.f32 %v1582, %v3040
    %v4065 = vadd.f32 %v1583, %v3041
    %v4066 = vadd.f32 %v1584, %v3042
    %v4067 = vadd.f32 %v1585, %v3043
    %v4068 = vadd.f32 %v1586, %v3044
    %v4069 = vadd.f32 %v1587, %v3045
    %v4070 = vadd.f32 %v1588, %v3046
    %v4071 = vadd.f32 %v1589, %v3047
    %v4072 = vadd.f32 %v1590, %v3048
    %v4073 = vadd.f32 %v1591, %v3049
    %v4074 = vadd.f32 %v1592, %v3050
    %v4075 = vadd.f32 %v1593, %v3051
    %v4076 = vadd.f32 %v1594, %v3052
    %v4077 = vadd.f32 %v1595, %v3053
    %v4078 = vadd.f32 %v1596, %v3054
    %v4079 = vadd.f32 %v1597, %v3055
    %v4080 = vadd.f32 %v1598, %v3056
    %v4081 = vadd.f32 %v1599, %v3057
    %v4082 = vadd.f32 %v1600, %v3058
    %v4083 = vadd.f32 %v1601, %v3059
    %v4084 = vadd.f32 %v1602, %v3060
    %v4085 = vadd.f32 %v1603, %v3061
    %v4086 = vadd.f32 %v1604, %v3062
    %v4087 = vadd.f32 %v1605, %v3063
    %v4088 = vadd.f32 %v1606, %v3064
    %v4089 = vadd.f32 %v1607, %v3065
    %v4090 = vadd.f32 %v1608, %v3066
    %v4091 = vadd.f32 %v1609, %v3067
    %v4092 = vadd.f32 %v1610, %v3068
    %v4093 = vadd.f32 %v1611, %v3069
    %v4094 = vadd.f32 %v1612, %v3070
    %v4095 = vadd.f32 %v1613, %v3071
    %v4096 = vadd.f32 %v1614, %v3072
    %v4097 = vadd.f32 %v1615, %v3073
    %v4098 = vadd.f32 %v1616, %v3074
    %v4099 = vadd.f32 %v1617, %v3075
    %v4100 = vadd.f32 %v1618, %v3076
    %v4101 = vadd.f32 %v1619, %v3077
    %v4102 = vadd.f32 %v1620, %v3078
    %v4103 = vadd.f32 %v1621, %v3079
    %v4104 = vadd.f32 %v1622, %v3080
    %v4105 = vadd.f32 %v1623, %v3081
    %v4106 = vadd.f32 %v1624, %v3082
    %v4107 = vadd.f32 %v1625, %v3083
    %v4108 = vadd.f32 %v1626, %v3084
    %v4109 = vadd.f32 %v1627, %v3085
    %v4110 = vadd.f32 %v1628, %v3086
    %v4111 = vadd.f32 %v1629, %v3087
    %v4114 = vlaneseq
    %v4115 = vshrl.u32 %v4114, 7
    %v4116 = vsub.s32 0, %v4115
    %v4117 = vrot.slane %v160, %v4116
    %v4118 = vlaneseq
    %v4119 = vshrl.u32 %v4118, 7
    %v4120 = vsub.s32 1, %v4119
    %v4121 = vrot.slane %v160, %v4120
    %v4122 = vlaneseq
    %v4123 = vshrl.u32 %v4122, 7
    %v4124 = vsub.s32 0, %v4123
    %v4125 = vrot.slane %v163, %v4124
    %v4126 = vlaneseq
    %v4127 = vshrl.u32 %v4126, 7
    %v4128 = vsub.s32 1, %v4127
    %v4129 = vrot.slane %v163, %v4128
    %v4134 = vlaneseq
    %v4135 = vshrl.u32 %v4134, 7
    %v4136 = vsub.s32 0, %v4135
    %v4137 = vrot.slane %v4117, %v4136
    %4139 = vbcast.lane.b32.xlu0 %v4137, 256
    %v4140 = vpop.permute.xlu0 %4139
    %s4142 = sor.u32 256, 8
    %4143 = vbcast.lane.b32.xlu0 %v4137, %s4142
    %v4144 = vpop.permute.xlu0 %4143
    %s4146 = sor.u32 256, 16
    %4147 = vbcast.lane.b32.xlu0 %v4137, %s4146
    %v4148 = vpop.permute.xlu0 %4147
    %s4150 = sor.u32 256, 24
    %4151 = vbcast.lane.b32.xlu0 %v4137, %s4150
    %v4152 = vpop.permute.xlu0 %4151
    %s4154 = sor.u32 256, 32
    %4155 = vbcast.lane.b32.xlu0 %v4137, %s4154
    %v4156 = vpop.permute.xlu0 %4155
    %s4158 = sor.u32 256, 40
    %4159 = vbcast.lane.b32.xlu0 %v4137, %s4158
    %v4160 = vpop.permute.xlu0 %4159
    %s4162 = sor.u32 256, 48
    %4163 = vbcast.lane.b32.xlu0 %v4137, %s4162
    %v4164 = vpop.permute.xlu0 %4163
    %s4166 = sor.u32 256, 56
    %4167 = vbcast.lane.b32.xlu0 %v4137, %s4166
    %v4168 = vpop.permute.xlu0 %4167
    %s4170 = sor.u32 256, 64
    %4171 = vbcast.lane.b32.xlu0 %v4137, %s4170
    %v4172 = vpop.permute.xlu0 %4171
    %s4174 = sor.u32 256, 72
    %4175 = vbcast.lane.b32.xlu0 %v4137, %s4174
    %v4176 = vpop.permute.xlu0 %4175
    %s4178 = sor.u32 256, 80
    %4179 = vbcast.lane.b32.xlu0 %v4137, %s4178
    %v4180 = vpop.permute.xlu0 %4179
    %s4182 = sor.u32 256, 88
    %4183 = vbcast.lane.b32.xlu0 %v4137, %s4182
    %v4184 = vpop.permute.xlu0 %4183
    %s4186 = sor.u32 256, 96
    %4187 = vbcast.lane.b32.xlu0 %v4137, %s4186
    %v4188 = vpop.permute.xlu0 %4187
    %s4190 = sor.u32 256, 104
    %4191 = vbcast.lane.b32.xlu0 %v4137, %s4190
    %v4192 = vpop.permute.xlu0 %4191
    %s4194 = sor.u32 256, 112
    %4195 = vbcast.lane.b32.xlu0 %v4137, %s4194
    %v4196 = vpop.permute.xlu0 %4195
    %s4198 = sor.u32 256, 120
    %4199 = vbcast.lane.b32.xlu0 %v4137, %s4198
    %v4200 = vpop.permute.xlu0 %4199
    %v4201 = vlaneseq
    %v4202 = vshrl.u32 %v4201, 7
    %v4203 = vsub.s32 0, %v4202
    %v4204 = vrot.slane %v4121, %v4203
    %4206 = vbcast.lane.b32.xlu0 %v4204, 256
    %v4207 = vpop.permute.xlu0 %4206
    %s4209 = sor.u32 256, 8
    %4210 = vbcast.lane.b32.xlu0 %v4204, %s4209
    %v4211 = vpop.permute.xlu0 %4210
    %s4213 = sor.u32 256, 16
    %4214 = vbcast.lane.b32.xlu0 %v4204, %s4213
    %v4215 = vpop.permute.xlu0 %4214
    %s4217 = sor.u32 256, 24
    %4218 = vbcast.lane.b32.xlu0 %v4204, %s4217
    %v4219 = vpop.permute.xlu0 %4218
    %s4221 = sor.u32 256, 32
    %4222 = vbcast.lane.b32.xlu0 %v4204, %s4221
    %v4223 = vpop.permute.xlu0 %4222
    %s4225 = sor.u32 256, 40
    %4226 = vbcast.lane.b32.xlu0 %v4204, %s4225
    %v4227 = vpop.permute.xlu0 %4226
    %s4229 = sor.u32 256, 48
    %4230 = vbcast.lane.b32.xlu0 %v4204, %s4229
    %v4231 = vpop.permute.xlu0 %4230
    %s4233 = sor.u32 256, 56
    %4234 = vbcast.lane.b32.xlu0 %v4204, %s4233
    %v4235 = vpop.permute.xlu0 %4234
    %s4237 = sor.u32 256, 64
    %4238 = vbcast.lane.b32.xlu0 %v4204, %s4237
    %v4239 = vpop.permute.xlu0 %4238
    %s4241 = sor.u32 256, 72
    %4242 = vbcast.lane.b32.xlu0 %v4204, %s4241
    %v4243 = vpop.permute.xlu0 %4242
    %s4245 = sor.u32 256, 80
    %4246 = vbcast.lane.b32.xlu0 %v4204, %s4245
    %v4247 = vpop.permute.xlu0 %4246
    %s4249 = sor.u32 256, 88
    %4250 = vbcast.lane.b32.xlu0 %v4204, %s4249
    %v4251 = vpop.permute.xlu0 %4250
    %s4253 = sor.u32 256, 96
    %4254 = vbcast.lane.b32.xlu0 %v4204, %s4253
    %v4255 = vpop.permute.xlu0 %4254
    %s4257 = sor.u32 256, 104
    %4258 = vbcast.lane.b32.xlu0 %v4204, %s4257
    %v4259 = vpop.permute.xlu0 %4258
    %s4261 = sor.u32 256, 112
    %4262 = vbcast.lane.b32.xlu0 %v4204, %s4261
    %v4263 = vpop.permute.xlu0 %4262
    %s4265 = sor.u32 256, 120
    %4266 = vbcast.lane.b32.xlu0 %v4204, %s4265
    %v4267 = vpop.permute.xlu0 %4266
    %v4268 = vlaneseq
    %v4269 = vshrl.u32 %v4268, 7
    %v4270 = vsub.s32 0, %v4269
    %v4271 = vrot.slane %v4125, %v4270
    %4273 = vbcast.lane.b32.xlu0 %v4271, 256
    %v4274 = vpop.permute.xlu0 %4273
    %s4276 = sor.u32 256, 8
    %4277 = vbcast.lane.b32.xlu0 %v4271, %s4276
    %v4278 = vpop.permute.xlu0 %4277
    %s4280 = sor.u32 256, 16
    %4281 = vbcast.lane.b32.xlu0 %v4271, %s4280
    %v4282 = vpop.permute.xlu0 %4281
    %s4284 = sor.u32 256, 24
    %4285 = vbcast.lane.b32.xlu0 %v4271, %s4284
    %v4286 = vpop.permute.xlu0 %4285
    %s4288 = sor.u32 256, 32
    %4289 = vbcast.lane.b32.xlu0 %v4271, %s4288
    %v4290 = vpop.permute.xlu0 %4289
    %s4292 = sor.u32 256, 40
    %4293 = vbcast.lane.b32.xlu0 %v4271, %s4292
    %v4294 = vpop.permute.xlu0 %4293
    %s4296 = sor.u32 256, 48
    %4297 = vbcast.lane.b32.xlu0 %v4271, %s4296
    %v4298 = vpop.permute.xlu0 %4297
    %s4300 = sor.u32 256, 56
    %4301 = vbcast.lane.b32.xlu0 %v4271, %s4300
    %v4302 = vpop.permute.xlu0 %4301
    %s4304 = sor.u32 256, 64
    %4305 = vbcast.lane.b32.xlu0 %v4271, %s4304
    %v4306 = vpop.permute.xlu0 %4305
    %s4308 = sor.u32 256, 72
    %4309 = vbcast.lane.b32.xlu0 %v4271, %s4308
    %v4310 = vpop.permute.xlu0 %4309
    %s4312 = sor.u32 256, 80
    %4313 = vbcast.lane.b32.xlu0 %v4271, %s4312
    %v4314 = vpop.permute.xlu0 %4313
    %s4316 = sor.u32 256, 88
    %4317 = vbcast.lane.b32.xlu0 %v4271, %s4316
    %v4318 = vpop.permute.xlu0 %4317
    %s4320 = sor.u32 256, 96
    %4321 = vbcast.lane.b32.xlu0 %v4271, %s4320
    %v4322 = vpop.permute.xlu0 %4321
    %s4324 = sor.u32 256, 104
    %4325 = vbcast.lane.b32.xlu0 %v4271, %s4324
    %v4326 = vpop.permute.xlu0 %4325
    %s4328 = sor.u32 256, 112
    %4329 = vbcast.lane.b32.xlu0 %v4271, %s4328
    %v4330 = vpop.permute.xlu0 %4329
    %s4332 = sor.u32 256, 120
    %4333 = vbcast.lane.b32.xlu0 %v4271, %s4332
    %v4334 = vpop.permute.xlu0 %4333
    %v4335 = vlaneseq
    %v4336 = vshrl.u32 %v4335, 7
    %v4337 = vsub.s32 0, %v4336
    %v4338 = vrot.slane %v4129, %v4337
    %4340 = vbcast.lane.b32.xlu0 %v4338, 256
    %v4341 = vpop.permute.xlu0 %4340
    %s4343 = sor.u32 256, 8
    %4344 = vbcast.lane.b32.xlu0 %v4338, %s4343
    %v4345 = vpop.permute.xlu0 %4344
    %s4347 = sor.u32 256, 16
    %4348 = vbcast.lane.b32.xlu0 %v4338, %s4347
    %v4349 = vpop.permute.xlu0 %4348
    %s4351 = sor.u32 256, 24
    %4352 = vbcast.lane.b32.xlu0 %v4338, %s4351
    %v4353 = vpop.permute.xlu0 %4352
    %s4355 = sor.u32 256, 32
    %4356 = vbcast.lane.b32.xlu0 %v4338, %s4355
    %v4357 = vpop.permute.xlu0 %4356
    %s4359 = sor.u32 256, 40
    %4360 = vbcast.lane.b32.xlu0 %v4338, %s4359
    %v4361 = vpop.permute.xlu0 %4360
    %s4363 = sor.u32 256, 48
    %4364 = vbcast.lane.b32.xlu0 %v4338, %s4363
    %v4365 = vpop.permute.xlu0 %4364
    %s4367 = sor.u32 256, 56
    %4368 = vbcast.lane.b32.xlu0 %v4338, %s4367
    %v4369 = vpop.permute.xlu0 %4368
    %s4371 = sor.u32 256, 64
    %4372 = vbcast.lane.b32.xlu0 %v4338, %s4371
    %v4373 = vpop.permute.xlu0 %4372
    %s4375 = sor.u32 256, 72
    %4376 = vbcast.lane.b32.xlu0 %v4338, %s4375
    %v4377 = vpop.permute.xlu0 %4376
    %s4379 = sor.u32 256, 80
    %4380 = vbcast.lane.b32.xlu0 %v4338, %s4379
    %v4381 = vpop.permute.xlu0 %4380
    %s4383 = sor.u32 256, 88
    %4384 = vbcast.lane.b32.xlu0 %v4338, %s4383
    %v4385 = vpop.permute.xlu0 %4384
    %s4387 = sor.u32 256, 96
    %4388 = vbcast.lane.b32.xlu0 %v4338, %s4387
    %v4389 = vpop.permute.xlu0 %4388
    %s4391 = sor.u32 256, 104
    %4392 = vbcast.lane.b32.xlu0 %v4338, %s4391
    %v4393 = vpop.permute.xlu0 %4392
    %s4395 = sor.u32 256, 112
    %4396 = vbcast.lane.b32.xlu0 %v4338, %s4395
    %v4397 = vpop.permute.xlu0 %4396
    %s4399 = sor.u32 256, 120
    %4400 = vbcast.lane.b32.xlu0 %v4338, %s4399
    %v4401 = vpop.permute.xlu0 %4400
    %v4410 = vlaneseq
    %v4411 = vshrl.u32 %v4410, 7
    %v4412 = vsub.s32 2, %v4411
    %v4413 = vrot.slane %v150, %v4412
    %v4414 = vlaneseq
    %v4415 = vshrl.u32 %v4414, 7
    %v4416 = vsub.s32 6, %v4415
    %v4417 = vrot.slane %v150, %v4416
    %v4418 = vlaneseq
    %v4419 = vshrl.u32 %v4418, 7
    %v4420 = vsub.s32 2, %v4419
    %v4421 = vrot.slane %v151, %v4420
    %v4422 = vlaneseq
    %v4423 = vshrl.u32 %v4422, 7
    %v4424 = vsub.s32 6, %v4423
    %v4425 = vrot.slane %v151, %v4424
    %v4426 = vlaneseq
    %v4427 = vshrl.u32 %v4426, 7
    %v4428 = vsub.s32 2, %v4427
    %v4429 = vrot.slane %v152, %v4428
    %v4430 = vlaneseq
    %v4431 = vshrl.u32 %v4430, 7
    %v4432 = vsub.s32 6, %v4431
    %v4433 = vrot.slane %v152, %v4432
    %v4434 = vlaneseq
    %v4435 = vshrl.u32 %v4434, 7
    %v4436 = vsub.s32 2, %v4435
    %v4437 = vrot.slane %v153, %v4436
    %v4438 = vlaneseq
    %v4439 = vshrl.u32 %v4438, 7
    %v4440 = vsub.s32 6, %v4439
    %v4441 = vrot.slane %v153, %v4440
    %v4442 = vlaneseq
    %v4443 = vshrl.u32 %v4442, 7
    %v4444 = vsub.s32 2, %v4443
    %v4445 = vrot.slane %v154, %v4444
    %v4446 = vlaneseq
    %v4447 = vshrl.u32 %v4446, 7
    %v4448 = vsub.s32 6, %v4447
    %v4449 = vrot.slane %v154, %v4448
    %v4450 = vlaneseq
    %v4451 = vshrl.u32 %v4450, 7
    %v4452 = vsub.s32 2, %v4451
    %v4453 = vrot.slane %v155, %v4452
    %v4454 = vlaneseq
    %v4455 = vshrl.u32 %v4454, 7
    %v4456 = vsub.s32 6, %v4455
    %v4457 = vrot.slane %v155, %v4456
    %v4458 = vlaneseq
    %v4459 = vshrl.u32 %v4458, 7
    %v4460 = vsub.s32 2, %v4459
    %v4461 = vrot.slane %v156, %v4460
    %v4462 = vlaneseq
    %v4463 = vshrl.u32 %v4462, 7
    %v4464 = vsub.s32 6, %v4463
    %v4465 = vrot.slane %v156, %v4464
    %v4466 = vlaneseq
    %v4467 = vshrl.u32 %v4466, 7
    %v4468 = vsub.s32 2, %v4467
    %v4469 = vrot.slane %v157, %v4468
    %v4470 = vlaneseq
    %v4471 = vshrl.u32 %v4470, 7
    %v4472 = vsub.s32 6, %v4471
    %v4473 = vrot.slane %v157, %v4472
    %v4490 = vlaneseq
    %v4491 = vshrl.u32 %v4490, 7
    %v4492 = vsub.s32 2, %v4491
    %v4493 = vrot.slane %v4413, %v4492
    %v4494 = vlaneseq
    %v4495 = vshrl.u32 %v4494, 7
    %v4496 = vsub.s32 2, %v4495
    %v4497 = vrot.slane %v4417, %v4496
    %v4498 = vlaneseq
    %v4499 = vshrl.u32 %v4498, 7
    %v4500 = vsub.s32 2, %v4499
    %v4501 = vrot.slane %v4421, %v4500
    %v4502 = vlaneseq
    %v4503 = vshrl.u32 %v4502, 7
    %v4504 = vsub.s32 2, %v4503
    %v4505 = vrot.slane %v4425, %v4504
    %v4506 = vlaneseq
    %v4507 = vshrl.u32 %v4506, 7
    %v4508 = vsub.s32 2, %v4507
    %v4509 = vrot.slane %v4429, %v4508
    %v4510 = vlaneseq
    %v4511 = vshrl.u32 %v4510, 7
    %v4512 = vsub.s32 2, %v4511
    %v4513 = vrot.slane %v4433, %v4512
    %v4514 = vlaneseq
    %v4515 = vshrl.u32 %v4514, 7
    %v4516 = vsub.s32 2, %v4515
    %v4517 = vrot.slane %v4437, %v4516
    %v4518 = vlaneseq
    %v4519 = vshrl.u32 %v4518, 7
    %v4520 = vsub.s32 2, %v4519
    %v4521 = vrot.slane %v4441, %v4520
    %v4522 = vlaneseq
    %v4523 = vshrl.u32 %v4522, 7
    %v4524 = vsub.s32 2, %v4523
    %v4525 = vrot.slane %v4445, %v4524
    %v4526 = vlaneseq
    %v4527 = vshrl.u32 %v4526, 7
    %v4528 = vsub.s32 2, %v4527
    %v4529 = vrot.slane %v4449, %v4528
    %v4530 = vlaneseq
    %v4531 = vshrl.u32 %v4530, 7
    %v4532 = vsub.s32 2, %v4531
    %v4533 = vrot.slane %v4453, %v4532
    %v4534 = vlaneseq
    %v4535 = vshrl.u32 %v4534, 7
    %v4536 = vsub.s32 2, %v4535
    %v4537 = vrot.slane %v4457, %v4536
    %v4538 = vlaneseq
    %v4539 = vshrl.u32 %v4538, 7
    %v4540 = vsub.s32 2, %v4539
    %v4541 = vrot.slane %v4461, %v4540
    %v4542 = vlaneseq
    %v4543 = vshrl.u32 %v4542, 7
    %v4544 = vsub.s32 2, %v4543
    %v4545 = vrot.slane %v4465, %v4544
    %v4546 = vlaneseq
    %v4547 = vshrl.u32 %v4546, 7
    %v4548 = vsub.s32 2, %v4547
    %v4549 = vrot.slane %v4469, %v4548
    %v4550 = vlaneseq
    %v4551 = vshrl.u32 %v4550, 7
    %v4552 = vsub.s32 2, %v4551
    %v4553 = vrot.slane %v4473, %v4552
    %v4554 = vmul.f32 %v4140, %v4493
    %v4555 = vmul.f32 %v4140, %v4497
    %v4556 = vmul.f32 %v4140, %v4501
    %v4557 = vmul.f32 %v4140, %v4505
    %v4558 = vmul.f32 %v4140, %v4509
    %v4559 = vmul.f32 %v4140, %v4513
    %v4560 = vmul.f32 %v4140, %v4517
    %v4561 = vmul.f32 %v4140, %v4521
    %v4562 = vmul.f32 %v4140, %v4525
    %v4563 = vmul.f32 %v4140, %v4529
    %v4564 = vmul.f32 %v4140, %v4533
    %v4565 = vmul.f32 %v4140, %v4537
    %v4566 = vmul.f32 %v4140, %v4541
    %v4567 = vmul.f32 %v4140, %v4545
    %v4568 = vmul.f32 %v4140, %v4549
    %v4569 = vmul.f32 %v4140, %v4553
    %v4570 = vmul.f32 %v4144, %v4493
    %v4571 = vmul.f32 %v4144, %v4497
    %v4572 = vmul.f32 %v4144, %v4501
    %v4573 = vmul.f32 %v4144, %v4505
    %v4574 = vmul.f32 %v4144, %v4509
    %v4575 = vmul.f32 %v4144, %v4513
    %v4576 = vmul.f32 %v4144, %v4517
    %v4577 = vmul.f32 %v4144, %v4521
    %v4578 = vmul.f32 %v4144, %v4525
    %v4579 = vmul.f32 %v4144, %v4529
    %v4580 = vmul.f32 %v4144, %v4533
    %v4581 = vmul.f32 %v4144, %v4537
    %v4582 = vmul.f32 %v4144, %v4541
    %v4583 = vmul.f32 %v4144, %v4545
    %v4584 = vmul.f32 %v4144, %v4549
    %v4585 = vmul.f32 %v4144, %v4553
    %v4586 = vmul.f32 %v4148, %v4493
    %v4587 = vmul.f32 %v4148, %v4497
    %v4588 = vmul.f32 %v4148, %v4501
    %v4589 = vmul.f32 %v4148, %v4505
    %v4590 = vmul.f32 %v4148, %v4509
    %v4591 = vmul.f32 %v4148, %v4513
    %v4592 = vmul.f32 %v4148, %v4517
    %v4593 = vmul.f32 %v4148, %v4521
    %v4594 = vmul.f32 %v4148, %v4525
    %v4595 = vmul.f32 %v4148, %v4529
    %v4596 = vmul.f32 %v4148, %v4533
    %v4597 = vmul.f32 %v4148, %v4537
    %v4598 = vmul.f32 %v4148, %v4541
    %v4599 = vmul.f32 %v4148, %v4545
    %v4600 = vmul.f32 %v4148, %v4549
    %v4601 = vmul.f32 %v4148, %v4553
    %v4602 = vmul.f32 %v4152, %v4493
    %v4603 = vmul.f32 %v4152, %v4497
    %v4604 = vmul.f32 %v4152, %v4501
    %v4605 = vmul.f32 %v4152, %v4505
    %v4606 = vmul.f32 %v4152, %v4509
    %v4607 = vmul.f32 %v4152, %v4513
    %v4608 = vmul.f32 %v4152, %v4517
    %v4609 = vmul.f32 %v4152, %v4521
    %v4610 = vmul.f32 %v4152, %v4525
    %v4611 = vmul.f32 %v4152, %v4529
    %v4612 = vmul.f32 %v4152, %v4533
    %v4613 = vmul.f32 %v4152, %v4537
    %v4614 = vmul.f32 %v4152, %v4541
    %v4615 = vmul.f32 %v4152, %v4545
    %v4616 = vmul.f32 %v4152, %v4549
    %v4617 = vmul.f32 %v4152, %v4553
    %v4618 = vmul.f32 %v4156, %v4493
    %v4619 = vmul.f32 %v4156, %v4497
    %v4620 = vmul.f32 %v4156, %v4501
    %v4621 = vmul.f32 %v4156, %v4505
    %v4622 = vmul.f32 %v4156, %v4509
    %v4623 = vmul.f32 %v4156, %v4513
    %v4624 = vmul.f32 %v4156, %v4517
    %v4625 = vmul.f32 %v4156, %v4521
    %v4626 = vmul.f32 %v4156, %v4525
    %v4627 = vmul.f32 %v4156, %v4529
    %v4628 = vmul.f32 %v4156, %v4533
    %v4629 = vmul.f32 %v4156, %v4537
    %v4630 = vmul.f32 %v4156, %v4541
    %v4631 = vmul.f32 %v4156, %v4545
    %v4632 = vmul.f32 %v4156, %v4549
    %v4633 = vmul.f32 %v4156, %v4553
    %v4634 = vmul.f32 %v4160, %v4493
    %v4635 = vmul.f32 %v4160, %v4497
    %v4636 = vmul.f32 %v4160, %v4501
    %v4637 = vmul.f32 %v4160, %v4505
    %v4638 = vmul.f32 %v4160, %v4509
    %v4639 = vmul.f32 %v4160, %v4513
    %v4640 = vmul.f32 %v4160, %v4517
    %v4641 = vmul.f32 %v4160, %v4521
    %v4642 = vmul.f32 %v4160, %v4525
    %v4643 = vmul.f32 %v4160, %v4529
    %v4644 = vmul.f32 %v4160, %v4533
    %v4645 = vmul.f32 %v4160, %v4537
    %v4646 = vmul.f32 %v4160, %v4541
    %v4647 = vmul.f32 %v4160, %v4545
    %v4648 = vmul.f32 %v4160, %v4549
    %v4649 = vmul.f32 %v4160, %v4553
    %v4650 = vmul.f32 %v4164, %v4493
    %v4651 = vmul.f32 %v4164, %v4497
    %v4652 = vmul.f32 %v4164, %v4501
    %v4653 = vmul.f32 %v4164, %v4505
    %v4654 = vmul.f32 %v4164, %v4509
    %v4655 = vmul.f32 %v4164, %v4513
    %v4656 = vmul.f32 %v4164, %v4517
    %v4657 = vmul.f32 %v4164, %v4521
    %v4658 = vmul.f32 %v4164, %v4525
    %v4659 = vmul.f32 %v4164, %v4529
    %v4660 = vmul.f32 %v4164, %v4533
    %v4661 = vmul.f32 %v4164, %v4537
    %v4662 = vmul.f32 %v4164, %v4541
    %v4663 = vmul.f32 %v4164, %v4545
    %v4664 = vmul.f32 %v4164, %v4549
    %v4665 = vmul.f32 %v4164, %v4553
    %v4666 = vmul.f32 %v4168, %v4493
    %v4667 = vmul.f32 %v4168, %v4497
    %v4668 = vmul.f32 %v4168, %v4501
    %v4669 = vmul.f32 %v4168, %v4505
    %v4670 = vmul.f32 %v4168, %v4509
    %v4671 = vmul.f32 %v4168, %v4513
    %v4672 = vmul.f32 %v4168, %v4517
    %v4673 = vmul.f32 %v4168, %v4521
    %v4674 = vmul.f32 %v4168, %v4525
    %v4675 = vmul.f32 %v4168, %v4529
    %v4676 = vmul.f32 %v4168, %v4533
    %v4677 = vmul.f32 %v4168, %v4537
    %v4678 = vmul.f32 %v4168, %v4541
    %v4679 = vmul.f32 %v4168, %v4545
    %v4680 = vmul.f32 %v4168, %v4549
    %v4681 = vmul.f32 %v4168, %v4553
    %v4682 = vmul.f32 %v4172, %v4493
    %v4683 = vmul.f32 %v4172, %v4497
    %v4684 = vmul.f32 %v4172, %v4501
    %v4685 = vmul.f32 %v4172, %v4505
    %v4686 = vmul.f32 %v4172, %v4509
    %v4687 = vmul.f32 %v4172, %v4513
    %v4688 = vmul.f32 %v4172, %v4517
    %v4689 = vmul.f32 %v4172, %v4521
    %v4690 = vmul.f32 %v4172, %v4525
    %v4691 = vmul.f32 %v4172, %v4529
    %v4692 = vmul.f32 %v4172, %v4533
    %v4693 = vmul.f32 %v4172, %v4537
    %v4694 = vmul.f32 %v4172, %v4541
    %v4695 = vmul.f32 %v4172, %v4545
    %v4696 = vmul.f32 %v4172, %v4549
    %v4697 = vmul.f32 %v4172, %v4553
    %v4698 = vmul.f32 %v4176, %v4493
    %v4699 = vmul.f32 %v4176, %v4497
    %v4700 = vmul.f32 %v4176, %v4501
    %v4701 = vmul.f32 %v4176, %v4505
    %v4702 = vmul.f32 %v4176, %v4509
    %v4703 = vmul.f32 %v4176, %v4513
    %v4704 = vmul.f32 %v4176, %v4517
    %v4705 = vmul.f32 %v4176, %v4521
    %v4706 = vmul.f32 %v4176, %v4525
    %v4707 = vmul.f32 %v4176, %v4529
    %v4708 = vmul.f32 %v4176, %v4533
    %v4709 = vmul.f32 %v4176, %v4537
    %v4710 = vmul.f32 %v4176, %v4541
    %v4711 = vmul.f32 %v4176, %v4545
    %v4712 = vmul.f32 %v4176, %v4549
    %v4713 = vmul.f32 %v4176, %v4553
    %v4714 = vmul.f32 %v4180, %v4493
    %v4715 = vmul.f32 %v4180, %v4497
    %v4716 = vmul.f32 %v4180, %v4501
    %v4717 = vmul.f32 %v4180, %v4505
    %v4718 = vmul.f32 %v4180, %v4509
    %v4719 = vmul.f32 %v4180, %v4513
    %v4720 = vmul.f32 %v4180, %v4517
    %v4721 = vmul.f32 %v4180, %v4521
    %v4722 = vmul.f32 %v4180, %v4525
    %v4723 = vmul.f32 %v4180, %v4529
    %v4724 = vmul.f32 %v4180, %v4533
    %v4725 = vmul.f32 %v4180, %v4537
    %v4726 = vmul.f32 %v4180, %v4541
    %v4727 = vmul.f32 %v4180, %v4545
    %v4728 = vmul.f32 %v4180, %v4549
    %v4729 = vmul.f32 %v4180, %v4553
    %v4730 = vmul.f32 %v4184, %v4493
    %v4731 = vmul.f32 %v4184, %v4497
    %v4732 = vmul.f32 %v4184, %v4501
    %v4733 = vmul.f32 %v4184, %v4505
    %v4734 = vmul.f32 %v4184, %v4509
    %v4735 = vmul.f32 %v4184, %v4513
    %v4736 = vmul.f32 %v4184, %v4517
    %v4737 = vmul.f32 %v4184, %v4521
    %v4738 = vmul.f32 %v4184, %v4525
    %v4739 = vmul.f32 %v4184, %v4529
    %v4740 = vmul.f32 %v4184, %v4533
    %v4741 = vmul.f32 %v4184, %v4537
    %v4742 = vmul.f32 %v4184, %v4541
    %v4743 = vmul.f32 %v4184, %v4545
    %v4744 = vmul.f32 %v4184, %v4549
    %v4745 = vmul.f32 %v4184, %v4553
    %v4746 = vmul.f32 %v4188, %v4493
    %v4747 = vmul.f32 %v4188, %v4497
    %v4748 = vmul.f32 %v4188, %v4501
    %v4749 = vmul.f32 %v4188, %v4505
    %v4750 = vmul.f32 %v4188, %v4509
    %v4751 = vmul.f32 %v4188, %v4513
    %v4752 = vmul.f32 %v4188, %v4517
    %v4753 = vmul.f32 %v4188, %v4521
    %v4754 = vmul.f32 %v4188, %v4525
    %v4755 = vmul.f32 %v4188, %v4529
    %v4756 = vmul.f32 %v4188, %v4533
    %v4757 = vmul.f32 %v4188, %v4537
    %v4758 = vmul.f32 %v4188, %v4541
    %v4759 = vmul.f32 %v4188, %v4545
    %v4760 = vmul.f32 %v4188, %v4549
    %v4761 = vmul.f32 %v4188, %v4553
    %v4762 = vmul.f32 %v4192, %v4493
    %v4763 = vmul.f32 %v4192, %v4497
    %v4764 = vmul.f32 %v4192, %v4501
    %v4765 = vmul.f32 %v4192, %v4505
    %v4766 = vmul.f32 %v4192, %v4509
    %v4767 = vmul.f32 %v4192, %v4513
    %v4768 = vmul.f32 %v4192, %v4517
    %v4769 = vmul.f32 %v4192, %v4521
    %v4770 = vmul.f32 %v4192, %v4525
    %v4771 = vmul.f32 %v4192, %v4529
    %v4772 = vmul.f32 %v4192, %v4533
    %v4773 = vmul.f32 %v4192, %v4537
    %v4774 = vmul.f32 %v4192, %v4541
    %v4775 = vmul.f32 %v4192, %v4545
    %v4776 = vmul.f32 %v4192, %v4549
    %v4777 = vmul.f32 %v4192, %v4553
    %v4778 = vmul.f32 %v4196, %v4493
    %v4779 = vmul.f32 %v4196, %v4497
    %v4780 = vmul.f32 %v4196, %v4501
    %v4781 = vmul.f32 %v4196, %v4505
    %v4782 = vmul.f32 %v4196, %v4509
    %v4783 = vmul.f32 %v4196, %v4513
    %v4784 = vmul.f32 %v4196, %v4517
    %v4785 = vmul.f32 %v4196, %v4521
    %v4786 = vmul.f32 %v4196, %v4525
    %v4787 = vmul.f32 %v4196, %v4529
    %v4788 = vmul.f32 %v4196, %v4533
    %v4789 = vmul.f32 %v4196, %v4537
    %v4790 = vmul.f32 %v4196, %v4541
    %v4791 = vmul.f32 %v4196, %v4545
    %v4792 = vmul.f32 %v4196, %v4549
    %v4793 = vmul.f32 %v4196, %v4553
    %v4794 = vmul.f32 %v4200, %v4493
    %v4795 = vmul.f32 %v4200, %v4497
    %v4796 = vmul.f32 %v4200, %v4501
    %v4797 = vmul.f32 %v4200, %v4505
    %v4798 = vmul.f32 %v4200, %v4509
    %v4799 = vmul.f32 %v4200, %v4513
    %v4800 = vmul.f32 %v4200, %v4517
    %v4801 = vmul.f32 %v4200, %v4521
    %v4802 = vmul.f32 %v4200, %v4525
    %v4803 = vmul.f32 %v4200, %v4529
    %v4804 = vmul.f32 %v4200, %v4533
    %v4805 = vmul.f32 %v4200, %v4537
    %v4806 = vmul.f32 %v4200, %v4541
    %v4807 = vmul.f32 %v4200, %v4545
    %v4808 = vmul.f32 %v4200, %v4549
    %v4809 = vmul.f32 %v4200, %v4553
    %v4810 = vmul.f32 %v4207, %v4493
    %v4811 = vmul.f32 %v4207, %v4497
    %v4812 = vmul.f32 %v4207, %v4501
    %v4813 = vmul.f32 %v4207, %v4505
    %v4814 = vmul.f32 %v4207, %v4509
    %v4815 = vmul.f32 %v4207, %v4513
    %v4816 = vmul.f32 %v4207, %v4517
    %v4817 = vmul.f32 %v4207, %v4521
    %v4818 = vmul.f32 %v4207, %v4525
    %v4819 = vmul.f32 %v4207, %v4529
    %v4820 = vmul.f32 %v4207, %v4533
    %v4821 = vmul.f32 %v4207, %v4537
    %v4822 = vmul.f32 %v4207, %v4541
    %v4823 = vmul.f32 %v4207, %v4545
    %v4824 = vmul.f32 %v4207, %v4549
    %v4825 = vmul.f32 %v4207, %v4553
    %v4826 = vmul.f32 %v4211, %v4493
    %v4827 = vmul.f32 %v4211, %v4497
    %v4828 = vmul.f32 %v4211, %v4501
    %v4829 = vmul.f32 %v4211, %v4505
    %v4830 = vmul.f32 %v4211, %v4509
    %v4831 = vmul.f32 %v4211, %v4513
    %v4832 = vmul.f32 %v4211, %v4517
    %v4833 = vmul.f32 %v4211, %v4521
    %v4834 = vmul.f32 %v4211, %v4525
    %v4835 = vmul.f32 %v4211, %v4529
    %v4836 = vmul.f32 %v4211, %v4533
    %v4837 = vmul.f32 %v4211, %v4537
    %v4838 = vmul.f32 %v4211, %v4541
    %v4839 = vmul.f32 %v4211, %v4545
    %v4840 = vmul.f32 %v4211, %v4549
    %v4841 = vmul.f32 %v4211, %v4553
    %v4842 = vmul.f32 %v4215, %v4493
    %v4843 = vmul.f32 %v4215, %v4497
    %v4844 = vmul.f32 %v4215, %v4501
    %v4845 = vmul.f32 %v4215, %v4505
    %v4846 = vmul.f32 %v4215, %v4509
    %v4847 = vmul.f32 %v4215, %v4513
    %v4848 = vmul.f32 %v4215, %v4517
    %v4849 = vmul.f32 %v4215, %v4521
    %v4850 = vmul.f32 %v4215, %v4525
    %v4851 = vmul.f32 %v4215, %v4529
    %v4852 = vmul.f32 %v4215, %v4533
    %v4853 = vmul.f32 %v4215, %v4537
    %v4854 = vmul.f32 %v4215, %v4541
    %v4855 = vmul.f32 %v4215, %v4545
    %v4856 = vmul.f32 %v4215, %v4549
    %v4857 = vmul.f32 %v4215, %v4553
    %v4858 = vmul.f32 %v4219, %v4493
    %v4859 = vmul.f32 %v4219, %v4497
    %v4860 = vmul.f32 %v4219, %v4501
    %v4861 = vmul.f32 %v4219, %v4505
    %v4862 = vmul.f32 %v4219, %v4509
    %v4863 = vmul.f32 %v4219, %v4513
    %v4864 = vmul.f32 %v4219, %v4517
    %v4865 = vmul.f32 %v4219, %v4521
    %v4866 = vmul.f32 %v4219, %v4525
    %v4867 = vmul.f32 %v4219, %v4529
    %v4868 = vmul.f32 %v4219, %v4533
    %v4869 = vmul.f32 %v4219, %v4537
    %v4870 = vmul.f32 %v4219, %v4541
    %v4871 = vmul.f32 %v4219, %v4545
    %v4872 = vmul.f32 %v4219, %v4549
    %v4873 = vmul.f32 %v4219, %v4553
    %v4874 = vmul.f32 %v4223, %v4493
    %v4875 = vmul.f32 %v4223, %v4497
    %v4876 = vmul.f32 %v4223, %v4501
    %v4877 = vmul.f32 %v4223, %v4505
    %v4878 = vmul.f32 %v4223, %v4509
    %v4879 = vmul.f32 %v4223, %v4513
    %v4880 = vmul.f32 %v4223, %v4517
    %v4881 = vmul.f32 %v4223, %v4521
    %v4882 = vmul.f32 %v4223, %v4525
    %v4883 = vmul.f32 %v4223, %v4529
    %v4884 = vmul.f32 %v4223, %v4533
    %v4885 = vmul.f32 %v4223, %v4537
    %v4886 = vmul.f32 %v4223, %v4541
    %v4887 = vmul.f32 %v4223, %v4545
    %v4888 = vmul.f32 %v4223, %v4549
    %v4889 = vmul.f32 %v4223, %v4553
    %v4890 = vmul.f32 %v4227, %v4493
    %v4891 = vmul.f32 %v4227, %v4497
    %v4892 = vmul.f32 %v4227, %v4501
    %v4893 = vmul.f32 %v4227, %v4505
    %v4894 = vmul.f32 %v4227, %v4509
    %v4895 = vmul.f32 %v4227, %v4513
    %v4896 = vmul.f32 %v4227, %v4517
    %v4897 = vmul.f32 %v4227, %v4521
    %v4898 = vmul.f32 %v4227, %v4525
    %v4899 = vmul.f32 %v4227, %v4529
    %v4900 = vmul.f32 %v4227, %v4533
    %v4901 = vmul.f32 %v4227, %v4537
    %v4902 = vmul.f32 %v4227, %v4541
    %v4903 = vmul.f32 %v4227, %v4545
    %v4904 = vmul.f32 %v4227, %v4549
    %v4905 = vmul.f32 %v4227, %v4553
    %v4906 = vmul.f32 %v4231, %v4493
    %v4907 = vmul.f32 %v4231, %v4497
    %v4908 = vmul.f32 %v4231, %v4501
    %v4909 = vmul.f32 %v4231, %v4505
    %v4910 = vmul.f32 %v4231, %v4509
    %v4911 = vmul.f32 %v4231, %v4513
    %v4912 = vmul.f32 %v4231, %v4517
    %v4913 = vmul.f32 %v4231, %v4521
    %v4914 = vmul.f32 %v4231, %v4525
    %v4915 = vmul.f32 %v4231, %v4529
    %v4916 = vmul.f32 %v4231, %v4533
    %v4917 = vmul.f32 %v4231, %v4537
    %v4918 = vmul.f32 %v4231, %v4541
    %v4919 = vmul.f32 %v4231, %v4545
    %v4920 = vmul.f32 %v4231, %v4549
    %v4921 = vmul.f32 %v4231, %v4553
    %v4922 = vmul.f32 %v4235, %v4493
    %v4923 = vmul.f32 %v4235, %v4497
    %v4924 = vmul.f32 %v4235, %v4501
    %v4925 = vmul.f32 %v4235, %v4505
    %v4926 = vmul.f32 %v4235, %v4509
    %v4927 = vmul.f32 %v4235, %v4513
    %v4928 = vmul.f32 %v4235, %v4517
    %v4929 = vmul.f32 %v4235, %v4521
    %v4930 = vmul.f32 %v4235, %v4525
    %v4931 = vmul.f32 %v4235, %v4529
    %v4932 = vmul.f32 %v4235, %v4533
    %v4933 = vmul.f32 %v4235, %v4537
    %v4934 = vmul.f32 %v4235, %v4541
    %v4935 = vmul.f32 %v4235, %v4545
    %v4936 = vmul.f32 %v4235, %v4549
    %v4937 = vmul.f32 %v4235, %v4553
    %v4938 = vmul.f32 %v4239, %v4493
    %v4939 = vmul.f32 %v4239, %v4497
    %v4940 = vmul.f32 %v4239, %v4501
    %v4941 = vmul.f32 %v4239, %v4505
    %v4942 = vmul.f32 %v4239, %v4509
    %v4943 = vmul.f32 %v4239, %v4513
    %v4944 = vmul.f32 %v4239, %v4517
    %v4945 = vmul.f32 %v4239, %v4521
    %v4946 = vmul.f32 %v4239, %v4525
    %v4947 = vmul.f32 %v4239, %v4529
    %v4948 = vmul.f32 %v4239, %v4533
    %v4949 = vmul.f32 %v4239, %v4537
    %v4950 = vmul.f32 %v4239, %v4541
    %v4951 = vmul.f32 %v4239, %v4545
    %v4952 = vmul.f32 %v4239, %v4549
    %v4953 = vmul.f32 %v4239, %v4553
    %v4954 = vmul.f32 %v4243, %v4493
    %v4955 = vmul.f32 %v4243, %v4497
    %v4956 = vmul.f32 %v4243, %v4501
    %v4957 = vmul.f32 %v4243, %v4505
    %v4958 = vmul.f32 %v4243, %v4509
    %v4959 = vmul.f32 %v4243, %v4513
    %v4960 = vmul.f32 %v4243, %v4517
    %v4961 = vmul.f32 %v4243, %v4521
    %v4962 = vmul.f32 %v4243, %v4525
    %v4963 = vmul.f32 %v4243, %v4529
    %v4964 = vmul.f32 %v4243, %v4533
    %v4965 = vmul.f32 %v4243, %v4537
    %v4966 = vmul.f32 %v4243, %v4541
    %v4967 = vmul.f32 %v4243, %v4545
    %v4968 = vmul.f32 %v4243, %v4549
    %v4969 = vmul.f32 %v4243, %v4553
    %v4970 = vmul.f32 %v4247, %v4493
    %v4971 = vmul.f32 %v4247, %v4497
    %v4972 = vmul.f32 %v4247, %v4501
    %v4973 = vmul.f32 %v4247, %v4505
    %v4974 = vmul.f32 %v4247, %v4509
    %v4975 = vmul.f32 %v4247, %v4513
    %v4976 = vmul.f32 %v4247, %v4517
    %v4977 = vmul.f32 %v4247, %v4521
    %v4978 = vmul.f32 %v4247, %v4525
    %v4979 = vmul.f32 %v4247, %v4529
    %v4980 = vmul.f32 %v4247, %v4533
    %v4981 = vmul.f32 %v4247, %v4537
    %v4982 = vmul.f32 %v4247, %v4541
    %v4983 = vmul.f32 %v4247, %v4545
    %v4984 = vmul.f32 %v4247, %v4549
    %v4985 = vmul.f32 %v4247, %v4553
    %v4986 = vmul.f32 %v4251, %v4493
    %v4987 = vmul.f32 %v4251, %v4497
    %v4988 = vmul.f32 %v4251, %v4501
    %v4989 = vmul.f32 %v4251, %v4505
    %v4990 = vmul.f32 %v4251, %v4509
    %v4991 = vmul.f32 %v4251, %v4513
    %v4992 = vmul.f32 %v4251, %v4517
    %v4993 = vmul.f32 %v4251, %v4521
    %v4994 = vmul.f32 %v4251, %v4525
    %v4995 = vmul.f32 %v4251, %v4529
    %v4996 = vmul.f32 %v4251, %v4533
    %v4997 = vmul.f32 %v4251, %v4537
    %v4998 = vmul.f32 %v4251, %v4541
    %v4999 = vmul.f32 %v4251, %v4545
    %v5000 = vmul.f32 %v4251, %v4549
    %v5001 = vmul.f32 %v4251, %v4553
    %v5002 = vmul.f32 %v4255, %v4493
    %v5003 = vmul.f32 %v4255, %v4497
    %v5004 = vmul.f32 %v4255, %v4501
    %v5005 = vmul.f32 %v4255, %v4505
    %v5006 = vmul.f32 %v4255, %v4509
    %v5007 = vmul.f32 %v4255, %v4513
    %v5008 = vmul.f32 %v4255, %v4517
    %v5009 = vmul.f32 %v4255, %v4521
    %v5010 = vmul.f32 %v4255, %v4525
    %v5011 = vmul.f32 %v4255, %v4529
    %v5012 = vmul.f32 %v4255, %v4533
    %v5013 = vmul.f32 %v4255, %v4537
    %v5014 = vmul.f32 %v4255, %v4541
    %v5015 = vmul.f32 %v4255, %v4545
    %v5016 = vmul.f32 %v4255, %v4549
    %v5017 = vmul.f32 %v4255, %v4553
    %v5018 = vmul.f32 %v4259, %v4493
    %v5019 = vmul.f32 %v4259, %v4497
    %v5020 = vmul.f32 %v4259, %v4501
    %v5021 = vmul.f32 %v4259, %v4505
    %v5022 = vmul.f32 %v4259, %v4509
    %v5023 = vmul.f32 %v4259, %v4513
    %v5024 = vmul.f32 %v4259, %v4517
    %v5025 = vmul.f32 %v4259, %v4521
    %v5026 = vmul.f32 %v4259, %v4525
    %v5027 = vmul.f32 %v4259, %v4529
    %v5028 = vmul.f32 %v4259, %v4533
    %v5029 = vmul.f32 %v4259, %v4537
    %v5030 = vmul.f32 %v4259, %v4541
    %v5031 = vmul.f32 %v4259, %v4545
    %v5032 = vmul.f32 %v4259, %v4549
    %v5033 = vmul.f32 %v4259, %v4553
    %v5034 = vmul.f32 %v4263, %v4493
    %v5035 = vmul.f32 %v4263, %v4497
    %v5036 = vmul.f32 %v4263, %v4501
    %v5037 = vmul.f32 %v4263, %v4505
    %v5038 = vmul.f32 %v4263, %v4509
    %v5039 = vmul.f32 %v4263, %v4513
    %v5040 = vmul.f32 %v4263, %v4517
    %v5041 = vmul.f32 %v4263, %v4521
    %v5042 = vmul.f32 %v4263, %v4525
    %v5043 = vmul.f32 %v4263, %v4529
    %v5044 = vmul.f32 %v4263, %v4533
    %v5045 = vmul.f32 %v4263, %v4537
    %v5046 = vmul.f32 %v4263, %v4541
    %v5047 = vmul.f32 %v4263, %v4545
    %v5048 = vmul.f32 %v4263, %v4549
    %v5049 = vmul.f32 %v4263, %v4553
    %v5050 = vmul.f32 %v4267, %v4493
    %v5051 = vmul.f32 %v4267, %v4497
    %v5052 = vmul.f32 %v4267, %v4501
    %v5053 = vmul.f32 %v4267, %v4505
    %v5054 = vmul.f32 %v4267, %v4509
    %v5055 = vmul.f32 %v4267, %v4513
    %v5056 = vmul.f32 %v4267, %v4517
    %v5057 = vmul.f32 %v4267, %v4521
    %v5058 = vmul.f32 %v4267, %v4525
    %v5059 = vmul.f32 %v4267, %v4529
    %v5060 = vmul.f32 %v4267, %v4533
    %v5061 = vmul.f32 %v4267, %v4537
    %v5062 = vmul.f32 %v4267, %v4541
    %v5063 = vmul.f32 %v4267, %v4545
    %v5064 = vmul.f32 %v4267, %v4549
    %v5065 = vmul.f32 %v4267, %v4553
    %v5066 = vmul.f32 %v4274, %v4493
    %v5067 = vmul.f32 %v4274, %v4497
    %v5068 = vmul.f32 %v4274, %v4501
    %v5069 = vmul.f32 %v4274, %v4505
    %v5070 = vmul.f32 %v4274, %v4509
    %v5071 = vmul.f32 %v4274, %v4513
    %v5072 = vmul.f32 %v4274, %v4517
    %v5073 = vmul.f32 %v4274, %v4521
    %v5074 = vmul.f32 %v4274, %v4525
    %v5075 = vmul.f32 %v4274, %v4529
    %v5076 = vmul.f32 %v4274, %v4533
    %v5077 = vmul.f32 %v4274, %v4537
    %v5078 = vmul.f32 %v4274, %v4541
    %v5079 = vmul.f32 %v4274, %v4545
    %v5080 = vmul.f32 %v4274, %v4549
    %v5081 = vmul.f32 %v4274, %v4553
    %v5082 = vmul.f32 %v4278, %v4493
    %v5083 = vmul.f32 %v4278, %v4497
    %v5084 = vmul.f32 %v4278, %v4501
    %v5085 = vmul.f32 %v4278, %v4505
    %v5086 = vmul.f32 %v4278, %v4509
    %v5087 = vmul.f32 %v4278, %v4513
    %v5088 = vmul.f32 %v4278, %v4517
    %v5089 = vmul.f32 %v4278, %v4521
    %v5090 = vmul.f32 %v4278, %v4525
    %v5091 = vmul.f32 %v4278, %v4529
    %v5092 = vmul.f32 %v4278, %v4533
    %v5093 = vmul.f32 %v4278, %v4537
    %v5094 = vmul.f32 %v4278, %v4541
    %v5095 = vmul.f32 %v4278, %v4545
    %v5096 = vmul.f32 %v4278, %v4549
    %v5097 = vmul.f32 %v4278, %v4553
    %v5098 = vmul.f32 %v4282, %v4493
    %v5099 = vmul.f32 %v4282, %v4497
    %v5100 = vmul.f32 %v4282, %v4501
    %v5101 = vmul.f32 %v4282, %v4505
    %v5102 = vmul.f32 %v4282, %v4509
    %v5103 = vmul.f32 %v4282, %v4513
    %v5104 = vmul.f32 %v4282, %v4517
    %v5105 = vmul.f32 %v4282, %v4521
    %v5106 = vmul.f32 %v4282, %v4525
    %v5107 = vmul.f32 %v4282, %v4529
    %v5108 = vmul.f32 %v4282, %v4533
    %v5109 = vmul.f32 %v4282, %v4537
    %v5110 = vmul.f32 %v4282, %v4541
    %v5111 = vmul.f32 %v4282, %v4545
    %v5112 = vmul.f32 %v4282, %v4549
    %v5113 = vmul.f32 %v4282, %v4553
    %v5114 = vmul.f32 %v4286, %v4493
    %v5115 = vmul.f32 %v4286, %v4497
    %v5116 = vmul.f32 %v4286, %v4501
    %v5117 = vmul.f32 %v4286, %v4505
    %v5118 = vmul.f32 %v4286, %v4509
    %v5119 = vmul.f32 %v4286, %v4513
    %v5120 = vmul.f32 %v4286, %v4517
    %v5121 = vmul.f32 %v4286, %v4521
    %v5122 = vmul.f32 %v4286, %v4525
    %v5123 = vmul.f32 %v4286, %v4529
    %v5124 = vmul.f32 %v4286, %v4533
    %v5125 = vmul.f32 %v4286, %v4537
    %v5126 = vmul.f32 %v4286, %v4541
    %v5127 = vmul.f32 %v4286, %v4545
    %v5128 = vmul.f32 %v4286, %v4549
    %v5129 = vmul.f32 %v4286, %v4553
    %v5130 = vmul.f32 %v4290, %v4493
    %v5131 = vmul.f32 %v4290, %v4497
    %v5132 = vmul.f32 %v4290, %v4501
    %v5133 = vmul.f32 %v4290, %v4505
    %v5134 = vmul.f32 %v4290, %v4509
    %v5135 = vmul.f32 %v4290, %v4513
    %v5136 = vmul.f32 %v4290, %v4517
    %v5137 = vmul.f32 %v4290, %v4521
    %v5138 = vmul.f32 %v4290, %v4525
    %v5139 = vmul.f32 %v4290, %v4529
    %v5140 = vmul.f32 %v4290, %v4533
    %v5141 = vmul.f32 %v4290, %v4537
    %v5142 = vmul.f32 %v4290, %v4541
    %v5143 = vmul.f32 %v4290, %v4545
    %v5144 = vmul.f32 %v4290, %v4549
    %v5145 = vmul.f32 %v4290, %v4553
    %v5146 = vmul.f32 %v4294, %v4493
    %v5147 = vmul.f32 %v4294, %v4497
    %v5148 = vmul.f32 %v4294, %v4501
    %v5149 = vmul.f32 %v4294, %v4505
    %v5150 = vmul.f32 %v4294, %v4509
    %v5151 = vmul.f32 %v4294, %v4513
    %v5152 = vmul.f32 %v4294, %v4517
    %v5153 = vmul.f32 %v4294, %v4521
    %v5154 = vmul.f32 %v4294, %v4525
    %v5155 = vmul.f32 %v4294, %v4529
    %v5156 = vmul.f32 %v4294, %v4533
    %v5157 = vmul.f32 %v4294, %v4537
    %v5158 = vmul.f32 %v4294, %v4541
    %v5159 = vmul.f32 %v4294, %v4545
    %v5160 = vmul.f32 %v4294, %v4549
    %v5161 = vmul.f32 %v4294, %v4553
    %v5162 = vmul.f32 %v4298, %v4493
    %v5163 = vmul.f32 %v4298, %v4497
    %v5164 = vmul.f32 %v4298, %v4501
    %v5165 = vmul.f32 %v4298, %v4505
    %v5166 = vmul.f32 %v4298, %v4509
    %v5167 = vmul.f32 %v4298, %v4513
    %v5168 = vmul.f32 %v4298, %v4517
    %v5169 = vmul.f32 %v4298, %v4521
    %v5170 = vmul.f32 %v4298, %v4525
    %v5171 = vmul.f32 %v4298, %v4529
    %v5172 = vmul.f32 %v4298, %v4533
    %v5173 = vmul.f32 %v4298, %v4537
    %v5174 = vmul.f32 %v4298, %v4541
    %v5175 = vmul.f32 %v4298, %v4545
    %v5176 = vmul.f32 %v4298, %v4549
    %v5177 = vmul.f32 %v4298, %v4553
    %v5178 = vmul.f32 %v4302, %v4493
    %v5179 = vmul.f32 %v4302, %v4497
    %v5180 = vmul.f32 %v4302, %v4501
    %v5181 = vmul.f32 %v4302, %v4505
    %v5182 = vmul.f32 %v4302, %v4509
    %v5183 = vmul.f32 %v4302, %v4513
    %v5184 = vmul.f32 %v4302, %v4517
    %v5185 = vmul.f32 %v4302, %v4521
    %v5186 = vmul.f32 %v4302, %v4525
    %v5187 = vmul.f32 %v4302, %v4529
    %v5188 = vmul.f32 %v4302, %v4533
    %v5189 = vmul.f32 %v4302, %v4537
    %v5190 = vmul.f32 %v4302, %v4541
    %v5191 = vmul.f32 %v4302, %v4545
    %v5192 = vmul.f32 %v4302, %v4549
    %v5193 = vmul.f32 %v4302, %v4553
    %v5194 = vmul.f32 %v4306, %v4493
    %v5195 = vmul.f32 %v4306, %v4497
    %v5196 = vmul.f32 %v4306, %v4501
    %v5197 = vmul.f32 %v4306, %v4505
    %v5198 = vmul.f32 %v4306, %v4509
    %v5199 = vmul.f32 %v4306, %v4513
    %v5200 = vmul.f32 %v4306, %v4517
    %v5201 = vmul.f32 %v4306, %v4521
    %v5202 = vmul.f32 %v4306, %v4525
    %v5203 = vmul.f32 %v4306, %v4529
    %v5204 = vmul.f32 %v4306, %v4533
    %v5205 = vmul.f32 %v4306, %v4537
    %v5206 = vmul.f32 %v4306, %v4541
    %v5207 = vmul.f32 %v4306, %v4545
    %v5208 = vmul.f32 %v4306, %v4549
    %v5209 = vmul.f32 %v4306, %v4553
    %v5210 = vmul.f32 %v4310, %v4493
    %v5211 = vmul.f32 %v4310, %v4497
    %v5212 = vmul.f32 %v4310, %v4501
    %v5213 = vmul.f32 %v4310, %v4505
    %v5214 = vmul.f32 %v4310, %v4509
    %v5215 = vmul.f32 %v4310, %v4513
    %v5216 = vmul.f32 %v4310, %v4517
    %v5217 = vmul.f32 %v4310, %v4521
    %v5218 = vmul.f32 %v4310, %v4525
    %v5219 = vmul.f32 %v4310, %v4529
    %v5220 = vmul.f32 %v4310, %v4533
    %v5221 = vmul.f32 %v4310, %v4537
    %v5222 = vmul.f32 %v4310, %v4541
    %v5223 = vmul.f32 %v4310, %v4545
    %v5224 = vmul.f32 %v4310, %v4549
    %v5225 = vmul.f32 %v4310, %v4553
    %v5226 = vmul.f32 %v4314, %v4493
    %v5227 = vmul.f32 %v4314, %v4497
    %v5228 = vmul.f32 %v4314, %v4501
    %v5229 = vmul.f32 %v4314, %v4505
    %v5230 = vmul.f32 %v4314, %v4509
    %v5231 = vmul.f32 %v4314, %v4513
    %v5232 = vmul.f32 %v4314, %v4517
    %v5233 = vmul.f32 %v4314, %v4521
    %v5234 = vmul.f32 %v4314, %v4525
    %v5235 = vmul.f32 %v4314, %v4529
    %v5236 = vmul.f32 %v4314, %v4533
    %v5237 = vmul.f32 %v4314, %v4537
    %v5238 = vmul.f32 %v4314, %v4541
    %v5239 = vmul.f32 %v4314, %v4545
    %v5240 = vmul.f32 %v4314, %v4549
    %v5241 = vmul.f32 %v4314, %v4553
    %v5242 = vmul.f32 %v4318, %v4493
    %v5243 = vmul.f32 %v4318, %v4497
    %v5244 = vmul.f32 %v4318, %v4501
    %v5245 = vmul.f32 %v4318, %v4505
    %v5246 = vmul.f32 %v4318, %v4509
    %v5247 = vmul.f32 %v4318, %v4513
    %v5248 = vmul.f32 %v4318, %v4517
    %v5249 = vmul.f32 %v4318, %v4521
    %v5250 = vmul.f32 %v4318, %v4525
    %v5251 = vmul.f32 %v4318, %v4529
    %v5252 = vmul.f32 %v4318, %v4533
    %v5253 = vmul.f32 %v4318, %v4537
    %v5254 = vmul.f32 %v4318, %v4541
    %v5255 = vmul.f32 %v4318, %v4545
    %v5256 = vmul.f32 %v4318, %v4549
    %v5257 = vmul.f32 %v4318, %v4553
    %v5258 = vmul.f32 %v4322, %v4493
    %v5259 = vmul.f32 %v4322, %v4497
    %v5260 = vmul.f32 %v4322, %v4501
    %v5261 = vmul.f32 %v4322, %v4505
    %v5262 = vmul.f32 %v4322, %v4509
    %v5263 = vmul.f32 %v4322, %v4513
    %v5264 = vmul.f32 %v4322, %v4517
    %v5265 = vmul.f32 %v4322, %v4521
    %v5266 = vmul.f32 %v4322, %v4525
    %v5267 = vmul.f32 %v4322, %v4529
    %v5268 = vmul.f32 %v4322, %v4533
    %v5269 = vmul.f32 %v4322, %v4537
    %v5270 = vmul.f32 %v4322, %v4541
    %v5271 = vmul.f32 %v4322, %v4545
    %v5272 = vmul.f32 %v4322, %v4549
    %v5273 = vmul.f32 %v4322, %v4553
    %v5274 = vmul.f32 %v4326, %v4493
    %v5275 = vmul.f32 %v4326, %v4497
    %v5276 = vmul.f32 %v4326, %v4501
    %v5277 = vmul.f32 %v4326, %v4505
    %v5278 = vmul.f32 %v4326, %v4509
    %v5279 = vmul.f32 %v4326, %v4513
    %v5280 = vmul.f32 %v4326, %v4517
    %v5281 = vmul.f32 %v4326, %v4521
    %v5282 = vmul.f32 %v4326, %v4525
    %v5283 = vmul.f32 %v4326, %v4529
    %v5284 = vmul.f32 %v4326, %v4533
    %v5285 = vmul.f32 %v4326, %v4537
    %v5286 = vmul.f32 %v4326, %v4541
    %v5287 = vmul.f32 %v4326, %v4545
    %v5288 = vmul.f32 %v4326, %v4549
    %v5289 = vmul.f32 %v4326, %v4553
    %v5290 = vmul.f32 %v4330, %v4493
    %v5291 = vmul.f32 %v4330, %v4497
    %v5292 = vmul.f32 %v4330, %v4501
    %v5293 = vmul.f32 %v4330, %v4505
    %v5294 = vmul.f32 %v4330, %v4509
    %v5295 = vmul.f32 %v4330, %v4513
    %v5296 = vmul.f32 %v4330, %v4517
    %v5297 = vmul.f32 %v4330, %v4521
    %v5298 = vmul.f32 %v4330, %v4525
    %v5299 = vmul.f32 %v4330, %v4529
    %v5300 = vmul.f32 %v4330, %v4533
    %v5301 = vmul.f32 %v4330, %v4537
    %v5302 = vmul.f32 %v4330, %v4541
    %v5303 = vmul.f32 %v4330, %v4545
    %v5304 = vmul.f32 %v4330, %v4549
    %v5305 = vmul.f32 %v4330, %v4553
    %v5306 = vmul.f32 %v4334, %v4493
    %v5307 = vmul.f32 %v4334, %v4497
    %v5308 = vmul.f32 %v4334, %v4501
    %v5309 = vmul.f32 %v4334, %v4505
    %v5310 = vmul.f32 %v4334, %v4509
    %v5311 = vmul.f32 %v4334, %v4513
    %v5312 = vmul.f32 %v4334, %v4517
    %v5313 = vmul.f32 %v4334, %v4521
    %v5314 = vmul.f32 %v4334, %v4525
    %v5315 = vmul.f32 %v4334, %v4529
    %v5316 = vmul.f32 %v4334, %v4533
    %v5317 = vmul.f32 %v4334, %v4537
    %v5318 = vmul.f32 %v4334, %v4541
    %v5319 = vmul.f32 %v4334, %v4545
    %v5320 = vmul.f32 %v4334, %v4549
    %v5321 = vmul.f32 %v4334, %v4553
    %v5322 = vmul.f32 %v4341, %v4493
    %v5323 = vmul.f32 %v4341, %v4497
    %v5324 = vmul.f32 %v4341, %v4501
    %v5325 = vmul.f32 %v4341, %v4505
    %v5326 = vmul.f32 %v4341, %v4509
    %v5327 = vmul.f32 %v4341, %v4513
    %v5328 = vmul.f32 %v4341, %v4517
    %v5329 = vmul.f32 %v4341, %v4521
    %v5330 = vmul.f32 %v4341, %v4525
    %v5331 = vmul.f32 %v4341, %v4529
    %v5332 = vmul.f32 %v4341, %v4533
    %v5333 = vmul.f32 %v4341, %v4537
    %v5334 = vmul.f32 %v4341, %v4541
    %v5335 = vmul.f32 %v4341, %v4545
    %v5336 = vmul.f32 %v4341, %v4549
    %v5337 = vmul.f32 %v4341, %v4553
    %v5338 = vmul.f32 %v4345, %v4493
    %v5339 = vmul.f32 %v4345, %v4497
    %v5340 = vmul.f32 %v4345, %v4501
    %v5341 = vmul.f32 %v4345, %v4505
    %v5342 = vmul.f32 %v4345, %v4509
    %v5343 = vmul.f32 %v4345, %v4513
    %v5344 = vmul.f32 %v4345, %v4517
    %v5345 = vmul.f32 %v4345, %v4521
    %v5346 = vmul.f32 %v4345, %v4525
    %v5347 = vmul.f32 %v4345, %v4529
    %v5348 = vmul.f32 %v4345, %v4533
    %v5349 = vmul.f32 %v4345, %v4537
    %v5350 = vmul.f32 %v4345, %v4541
    %v5351 = vmul.f32 %v4345, %v4545
    %v5352 = vmul.f32 %v4345, %v4549
    %v5353 = vmul.f32 %v4345, %v4553
    %v5354 = vmul.f32 %v4349, %v4493
    %v5355 = vmul.f32 %v4349, %v4497
    %v5356 = vmul.f32 %v4349, %v4501
    %v5357 = vmul.f32 %v4349, %v4505
    %v5358 = vmul.f32 %v4349, %v4509
    %v5359 = vmul.f32 %v4349, %v4513
    %v5360 = vmul.f32 %v4349, %v4517
    %v5361 = vmul.f32 %v4349, %v4521
    %v5362 = vmul.f32 %v4349, %v4525
    %v5363 = vmul.f32 %v4349, %v4529
    %v5364 = vmul.f32 %v4349, %v4533
    %v5365 = vmul.f32 %v4349, %v4537
    %v5366 = vmul.f32 %v4349, %v4541
    %v5367 = vmul.f32 %v4349, %v4545
    %v5368 = vmul.f32 %v4349, %v4549
    %v5369 = vmul.f32 %v4349, %v4553
    %v5370 = vmul.f32 %v4353, %v4493
    %v5371 = vmul.f32 %v4353, %v4497
    %v5372 = vmul.f32 %v4353, %v4501
    %v5373 = vmul.f32 %v4353, %v4505
    %v5374 = vmul.f32 %v4353, %v4509
    %v5375 = vmul.f32 %v4353, %v4513
    %v5376 = vmul.f32 %v4353, %v4517
    %v5377 = vmul.f32 %v4353, %v4521
    %v5378 = vmul.f32 %v4353, %v4525
    %v5379 = vmul.f32 %v4353, %v4529
    %v5380 = vmul.f32 %v4353, %v4533
    %v5381 = vmul.f32 %v4353, %v4537
    %v5382 = vmul.f32 %v4353, %v4541
    %v5383 = vmul.f32 %v4353, %v4545
    %v5384 = vmul.f32 %v4353, %v4549
    %v5385 = vmul.f32 %v4353, %v4553
    %v5386 = vmul.f32 %v4357, %v4493
    %v5387 = vmul.f32 %v4357, %v4497
    %v5388 = vmul.f32 %v4357, %v4501
    %v5389 = vmul.f32 %v4357, %v4505
    %v5390 = vmul.f32 %v4357, %v4509
    %v5391 = vmul.f32 %v4357, %v4513
    %v5392 = vmul.f32 %v4357, %v4517
    %v5393 = vmul.f32 %v4357, %v4521
    %v5394 = vmul.f32 %v4357, %v4525
    %v5395 = vmul.f32 %v4357, %v4529
    %v5396 = vmul.f32 %v4357, %v4533
    %v5397 = vmul.f32 %v4357, %v4537
    %v5398 = vmul.f32 %v4357, %v4541
    %v5399 = vmul.f32 %v4357, %v4545
    %v5400 = vmul.f32 %v4357, %v4549
    %v5401 = vmul.f32 %v4357, %v4553
    %v5402 = vmul.f32 %v4361, %v4493
    %v5403 = vmul.f32 %v4361, %v4497
    %v5404 = vmul.f32 %v4361, %v4501
    %v5405 = vmul.f32 %v4361, %v4505
    %v5406 = vmul.f32 %v4361, %v4509
    %v5407 = vmul.f32 %v4361, %v4513
    %v5408 = vmul.f32 %v4361, %v4517
    %v5409 = vmul.f32 %v4361, %v4521
    %v5410 = vmul.f32 %v4361, %v4525
    %v5411 = vmul.f32 %v4361, %v4529
    %v5412 = vmul.f32 %v4361, %v4533
    %v5413 = vmul.f32 %v4361, %v4537
    %v5414 = vmul.f32 %v4361, %v4541
    %v5415 = vmul.f32 %v4361, %v4545
    %v5416 = vmul.f32 %v4361, %v4549
    %v5417 = vmul.f32 %v4361, %v4553
    %v5418 = vmul.f32 %v4365, %v4493
    %v5419 = vmul.f32 %v4365, %v4497
    %v5420 = vmul.f32 %v4365, %v4501
    %v5421 = vmul.f32 %v4365, %v4505
    %v5422 = vmul.f32 %v4365, %v4509
    %v5423 = vmul.f32 %v4365, %v4513
    %v5424 = vmul.f32 %v4365, %v4517
    %v5425 = vmul.f32 %v4365, %v4521
    %v5426 = vmul.f32 %v4365, %v4525
    %v5427 = vmul.f32 %v4365, %v4529
    %v5428 = vmul.f32 %v4365, %v4533
    %v5429 = vmul.f32 %v4365, %v4537
    %v5430 = vmul.f32 %v4365, %v4541
    %v5431 = vmul.f32 %v4365, %v4545
    %v5432 = vmul.f32 %v4365, %v4549
    %v5433 = vmul.f32 %v4365, %v4553
    %v5434 = vmul.f32 %v4369, %v4493
    %v5435 = vmul.f32 %v4369, %v4497
    %v5436 = vmul.f32 %v4369, %v4501
    %v5437 = vmul.f32 %v4369, %v4505
    %v5438 = vmul.f32 %v4369, %v4509
    %v5439 = vmul.f32 %v4369, %v4513
    %v5440 = vmul.f32 %v4369, %v4517
    %v5441 = vmul.f32 %v4369, %v4521
    %v5442 = vmul.f32 %v4369, %v4525
    %v5443 = vmul.f32 %v4369, %v4529
    %v5444 = vmul.f32 %v4369, %v4533
    %v5445 = vmul.f32 %v4369, %v4537
    %v5446 = vmul.f32 %v4369, %v4541
    %v5447 = vmul.f32 %v4369, %v4545
    %v5448 = vmul.f32 %v4369, %v4549
    %v5449 = vmul.f32 %v4369, %v4553
    %v5450 = vmul.f32 %v4373, %v4493
    %v5451 = vmul.f32 %v4373, %v4497
    %v5452 = vmul.f32 %v4373, %v4501
    %v5453 = vmul.f32 %v4373, %v4505
    %v5454 = vmul.f32 %v4373, %v4509
    %v5455 = vmul.f32 %v4373, %v4513
    %v5456 = vmul.f32 %v4373, %v4517
    %v5457 = vmul.f32 %v4373, %v4521
    %v5458 = vmul.f32 %v4373, %v4525
    %v5459 = vmul.f32 %v4373, %v4529
    %v5460 = vmul.f32 %v4373, %v4533
    %v5461 = vmul.f32 %v4373, %v4537
    %v5462 = vmul.f32 %v4373, %v4541
    %v5463 = vmul.f32 %v4373, %v4545
    %v5464 = vmul.f32 %v4373, %v4549
    %v5465 = vmul.f32 %v4373, %v4553
    %v5466 = vmul.f32 %v4377, %v4493
    %v5467 = vmul.f32 %v4377, %v4497
    %v5468 = vmul.f32 %v4377, %v4501
    %v5469 = vmul.f32 %v4377, %v4505
    %v5470 = vmul.f32 %v4377, %v4509
    %v5471 = vmul.f32 %v4377, %v4513
    %v5472 = vmul.f32 %v4377, %v4517
    %v5473 = vmul.f32 %v4377, %v4521
    %v5474 = vmul.f32 %v4377, %v4525
    %v5475 = vmul.f32 %v4377, %v4529
    %v5476 = vmul.f32 %v4377, %v4533
    %v5477 = vmul.f32 %v4377, %v4537
    %v5478 = vmul.f32 %v4377, %v4541
    %v5479 = vmul.f32 %v4377, %v4545
    %v5480 = vmul.f32 %v4377, %v4549
    %v5481 = vmul.f32 %v4377, %v4553
    %v5482 = vmul.f32 %v4381, %v4493
    %v5483 = vmul.f32 %v4381, %v4497
    %v5484 = vmul.f32 %v4381, %v4501
    %v5485 = vmul.f32 %v4381, %v4505
    %v5486 = vmul.f32 %v4381, %v4509
    %v5487 = vmul.f32 %v4381, %v4513
    %v5488 = vmul.f32 %v4381, %v4517
    %v5489 = vmul.f32 %v4381, %v4521
    %v5490 = vmul.f32 %v4381, %v4525
    %v5491 = vmul.f32 %v4381, %v4529
    %v5492 = vmul.f32 %v4381, %v4533
    %v5493 = vmul.f32 %v4381, %v4537
    %v5494 = vmul.f32 %v4381, %v4541
    %v5495 = vmul.f32 %v4381, %v4545
    %v5496 = vmul.f32 %v4381, %v4549
    %v5497 = vmul.f32 %v4381, %v4553
    %v5498 = vmul.f32 %v4385, %v4493
    %v5499 = vmul.f32 %v4385, %v4497
    %v5500 = vmul.f32 %v4385, %v4501
    %v5501 = vmul.f32 %v4385, %v4505
    %v5502 = vmul.f32 %v4385, %v4509
    %v5503 = vmul.f32 %v4385, %v4513
    %v5504 = vmul.f32 %v4385, %v4517
    %v5505 = vmul.f32 %v4385, %v4521
    %v5506 = vmul.f32 %v4385, %v4525
    %v5507 = vmul.f32 %v4385, %v4529
    %v5508 = vmul.f32 %v4385, %v4533
    %v5509 = vmul.f32 %v4385, %v4537
    %v5510 = vmul.f32 %v4385, %v4541
    %v5511 = vmul.f32 %v4385, %v4545
    %v5512 = vmul.f32 %v4385, %v4549
    %v5513 = vmul.f32 %v4385, %v4553
    %v5514 = vmul.f32 %v4389, %v4493
    %v5515 = vmul.f32 %v4389, %v4497
    %v5516 = vmul.f32 %v4389, %v4501
    %v5517 = vmul.f32 %v4389, %v4505
    %v5518 = vmul.f32 %v4389, %v4509
    %v5519 = vmul.f32 %v4389, %v4513
    %v5520 = vmul.f32 %v4389, %v4517
    %v5521 = vmul.f32 %v4389, %v4521
    %v5522 = vmul.f32 %v4389, %v4525
    %v5523 = vmul.f32 %v4389, %v4529
    %v5524 = vmul.f32 %v4389, %v4533
    %v5525 = vmul.f32 %v4389, %v4537
    %v5526 = vmul.f32 %v4389, %v4541
    %v5527 = vmul.f32 %v4389, %v4545
    %v5528 = vmul.f32 %v4389, %v4549
    %v5529 = vmul.f32 %v4389, %v4553
    %v5530 = vmul.f32 %v4393, %v4493
    %v5531 = vmul.f32 %v4393, %v4497
    %v5532 = vmul.f32 %v4393, %v4501
    %v5533 = vmul.f32 %v4393, %v4505
    %v5534 = vmul.f32 %v4393, %v4509
    %v5535 = vmul.f32 %v4393, %v4513
    %v5536 = vmul.f32 %v4393, %v4517
    %v5537 = vmul.f32 %v4393, %v4521
    %v5538 = vmul.f32 %v4393, %v4525
    %v5539 = vmul.f32 %v4393, %v4529
    %v5540 = vmul.f32 %v4393, %v4533
    %v5541 = vmul.f32 %v4393, %v4537
    %v5542 = vmul.f32 %v4393, %v4541
    %v5543 = vmul.f32 %v4393, %v4545
    %v5544 = vmul.f32 %v4393, %v4549
    %v5545 = vmul.f32 %v4393, %v4553
    %v5546 = vmul.f32 %v4397, %v4493
    %v5547 = vmul.f32 %v4397, %v4497
    %v5548 = vmul.f32 %v4397, %v4501
    %v5549 = vmul.f32 %v4397, %v4505
    %v5550 = vmul.f32 %v4397, %v4509
    %v5551 = vmul.f32 %v4397, %v4513
    %v5552 = vmul.f32 %v4397, %v4517
    %v5553 = vmul.f32 %v4397, %v4521
    %v5554 = vmul.f32 %v4397, %v4525
    %v5555 = vmul.f32 %v4397, %v4529
    %v5556 = vmul.f32 %v4397, %v4533
    %v5557 = vmul.f32 %v4397, %v4537
    %v5558 = vmul.f32 %v4397, %v4541
    %v5559 = vmul.f32 %v4397, %v4545
    %v5560 = vmul.f32 %v4397, %v4549
    %v5561 = vmul.f32 %v4397, %v4553
    %v5562 = vmul.f32 %v4401, %v4493
    %v5563 = vmul.f32 %v4401, %v4497
    %v5564 = vmul.f32 %v4401, %v4501
    %v5565 = vmul.f32 %v4401, %v4505
    %v5566 = vmul.f32 %v4401, %v4509
    %v5567 = vmul.f32 %v4401, %v4513
    %v5568 = vmul.f32 %v4401, %v4517
    %v5569 = vmul.f32 %v4401, %v4521
    %v5570 = vmul.f32 %v4401, %v4525
    %v5571 = vmul.f32 %v4401, %v4529
    %v5572 = vmul.f32 %v4401, %v4533
    %v5573 = vmul.f32 %v4401, %v4537
    %v5574 = vmul.f32 %v4401, %v4541
    %v5575 = vmul.f32 %v4401, %v4545
    %v5576 = vmul.f32 %v4401, %v4549
    %v5577 = vmul.f32 %v4401, %v4553
    %v5578 = vadd.f32 %v3088, %v4554
    %v5579 = vadd.f32 %v3089, %v4555
    %v5580 = vadd.f32 %v3090, %v4556
    %v5581 = vadd.f32 %v3091, %v4557
    %v5582 = vadd.f32 %v3092, %v4558
    %v5583 = vadd.f32 %v3093, %v4559
    %v5584 = vadd.f32 %v3094, %v4560
    %v5585 = vadd.f32 %v3095, %v4561
    %v5586 = vadd.f32 %v3096, %v4562
    %v5587 = vadd.f32 %v3097, %v4563
    %v5588 = vadd.f32 %v3098, %v4564
    %v5589 = vadd.f32 %v3099, %v4565
    %v5590 = vadd.f32 %v3100, %v4566
    %v5591 = vadd.f32 %v3101, %v4567
    %v5592 = vadd.f32 %v3102, %v4568
    %v5593 = vadd.f32 %v3103, %v4569
    %v5594 = vadd.f32 %v3104, %v4570
    %v5595 = vadd.f32 %v3105, %v4571
    %v5596 = vadd.f32 %v3106, %v4572
    %v5597 = vadd.f32 %v3107, %v4573
    %v5598 = vadd.f32 %v3108, %v4574
    %v5599 = vadd.f32 %v3109, %v4575
    %v5600 = vadd.f32 %v3110, %v4576
    %v5601 = vadd.f32 %v3111, %v4577
    %v5602 = vadd.f32 %v3112, %v4578
    %v5603 = vadd.f32 %v3113, %v4579
    %v5604 = vadd.f32 %v3114, %v4580
    %v5605 = vadd.f32 %v3115, %v4581
    %v5606 = vadd.f32 %v3116, %v4582
    %v5607 = vadd.f32 %v3117, %v4583
    %v5608 = vadd.f32 %v3118, %v4584
    %v5609 = vadd.f32 %v3119, %v4585
    %v5610 = vadd.f32 %v3120, %v4586
    %v5611 = vadd.f32 %v3121, %v4587
    %v5612 = vadd.f32 %v3122, %v4588
    %v5613 = vadd.f32 %v3123, %v4589
    %v5614 = vadd.f32 %v3124, %v4590
    %v5615 = vadd.f32 %v3125, %v4591
    %v5616 = vadd.f32 %v3126, %v4592
    %v5617 = vadd.f32 %v3127, %v4593
    %v5618 = vadd.f32 %v3128, %v4594
    %v5619 = vadd.f32 %v3129, %v4595
    %v5620 = vadd.f32 %v3130, %v4596
    %v5621 = vadd.f32 %v3131, %v4597
    %v5622 = vadd.f32 %v3132, %v4598
    %v5623 = vadd.f32 %v3133, %v4599
    %v5624 = vadd.f32 %v3134, %v4600
    %v5625 = vadd.f32 %v3135, %v4601
    %v5626 = vadd.f32 %v3136, %v4602
    %v5627 = vadd.f32 %v3137, %v4603
    %v5628 = vadd.f32 %v3138, %v4604
    %v5629 = vadd.f32 %v3139, %v4605
    %v5630 = vadd.f32 %v3140, %v4606
    %v5631 = vadd.f32 %v3141, %v4607
    %v5632 = vadd.f32 %v3142, %v4608
    %v5633 = vadd.f32 %v3143, %v4609
    %v5634 = vadd.f32 %v3144, %v4610
    %v5635 = vadd.f32 %v3145, %v4611
    %v5636 = vadd.f32 %v3146, %v4612
    %v5637 = vadd.f32 %v3147, %v4613
    %v5638 = vadd.f32 %v3148, %v4614
    %v5639 = vadd.f32 %v3149, %v4615
    %v5640 = vadd.f32 %v3150, %v4616
    %v5641 = vadd.f32 %v3151, %v4617
    %v5642 = vadd.f32 %v3152, %v4618
    %v5643 = vadd.f32 %v3153, %v4619
    %v5644 = vadd.f32 %v3154, %v4620
    %v5645 = vadd.f32 %v3155, %v4621
    %v5646 = vadd.f32 %v3156, %v4622
    %v5647 = vadd.f32 %v3157, %v4623
    %v5648 = vadd.f32 %v3158, %v4624
    %v5649 = vadd.f32 %v3159, %v4625
    %v5650 = vadd.f32 %v3160, %v4626
    %v5651 = vadd.f32 %v3161, %v4627
    %v5652 = vadd.f32 %v3162, %v4628
    %v5653 = vadd.f32 %v3163, %v4629
    %v5654 = vadd.f32 %v3164, %v4630
    %v5655 = vadd.f32 %v3165, %v4631
    %v5656 = vadd.f32 %v3166, %v4632
    %v5657 = vadd.f32 %v3167, %v4633
    %v5658 = vadd.f32 %v3168, %v4634
    %v5659 = vadd.f32 %v3169, %v4635
    %v5660 = vadd.f32 %v3170, %v4636
    %v5661 = vadd.f32 %v3171, %v4637
    %v5662 = vadd.f32 %v3172, %v4638
    %v5663 = vadd.f32 %v3173, %v4639
    %v5664 = vadd.f32 %v3174, %v4640
    %v5665 = vadd.f32 %v3175, %v4641
    %v5666 = vadd.f32 %v3176, %v4642
    %v5667 = vadd.f32 %v3177, %v4643
    %v5668 = vadd.f32 %v3178, %v4644
    %v5669 = vadd.f32 %v3179, %v4645
    %v5670 = vadd.f32 %v3180, %v4646
    %v5671 = vadd.f32 %v3181, %v4647
    %v5672 = vadd.f32 %v3182, %v4648
    %v5673 = vadd.f32 %v3183, %v4649
    %v5674 = vadd.f32 %v3184, %v4650
    %v5675 = vadd.f32 %v3185, %v4651
    %v5676 = vadd.f32 %v3186, %v4652
    %v5677 = vadd.f32 %v3187, %v4653
    %v5678 = vadd.f32 %v3188, %v4654
    %v5679 = vadd.f32 %v3189, %v4655
    %v5680 = vadd.f32 %v3190, %v4656
    %v5681 = vadd.f32 %v3191, %v4657
    %v5682 = vadd.f32 %v3192, %v4658
    %v5683 = vadd.f32 %v3193, %v4659
    %v5684 = vadd.f32 %v3194, %v4660
    %v5685 = vadd.f32 %v3195, %v4661
    %v5686 = vadd.f32 %v3196, %v4662
    %v5687 = vadd.f32 %v3197, %v4663
    %v5688 = vadd.f32 %v3198, %v4664
    %v5689 = vadd.f32 %v3199, %v4665
    %v5690 = vadd.f32 %v3200, %v4666
    %v5691 = vadd.f32 %v3201, %v4667
    %v5692 = vadd.f32 %v3202, %v4668
    %v5693 = vadd.f32 %v3203, %v4669
    %v5694 = vadd.f32 %v3204, %v4670
    %v5695 = vadd.f32 %v3205, %v4671
    %v5696 = vadd.f32 %v3206, %v4672
    %v5697 = vadd.f32 %v3207, %v4673
    %v5698 = vadd.f32 %v3208, %v4674
    %v5699 = vadd.f32 %v3209, %v4675
    %v5700 = vadd.f32 %v3210, %v4676
    %v5701 = vadd.f32 %v3211, %v4677
    %v5702 = vadd.f32 %v3212, %v4678
    %v5703 = vadd.f32 %v3213, %v4679
    %v5704 = vadd.f32 %v3214, %v4680
    %v5705 = vadd.f32 %v3215, %v4681
    %v5706 = vadd.f32 %v3216, %v4682
    %v5707 = vadd.f32 %v3217, %v4683
    %v5708 = vadd.f32 %v3218, %v4684
    %v5709 = vadd.f32 %v3219, %v4685
    %v5710 = vadd.f32 %v3220, %v4686
    %v5711 = vadd.f32 %v3221, %v4687
    %v5712 = vadd.f32 %v3222, %v4688
    %v5713 = vadd.f32 %v3223, %v4689
    %v5714 = vadd.f32 %v3224, %v4690
    %v5715 = vadd.f32 %v3225, %v4691
    %v5716 = vadd.f32 %v3226, %v4692
    %v5717 = vadd.f32 %v3227, %v4693
    %v5718 = vadd.f32 %v3228, %v4694
    %v5719 = vadd.f32 %v3229, %v4695
    %v5720 = vadd.f32 %v3230, %v4696
    %v5721 = vadd.f32 %v3231, %v4697
    %v5722 = vadd.f32 %v3232, %v4698
    %v5723 = vadd.f32 %v3233, %v4699
    %v5724 = vadd.f32 %v3234, %v4700
    %v5725 = vadd.f32 %v3235, %v4701
    %v5726 = vadd.f32 %v3236, %v4702
    %v5727 = vadd.f32 %v3237, %v4703
    %v5728 = vadd.f32 %v3238, %v4704
    %v5729 = vadd.f32 %v3239, %v4705
    %v5730 = vadd.f32 %v3240, %v4706
    %v5731 = vadd.f32 %v3241, %v4707
    %v5732 = vadd.f32 %v3242, %v4708
    %v5733 = vadd.f32 %v3243, %v4709
    %v5734 = vadd.f32 %v3244, %v4710
    %v5735 = vadd.f32 %v3245, %v4711
    %v5736 = vadd.f32 %v3246, %v4712
    %v5737 = vadd.f32 %v3247, %v4713
    %v5738 = vadd.f32 %v3248, %v4714
    %v5739 = vadd.f32 %v3249, %v4715
    %v5740 = vadd.f32 %v3250, %v4716
    %v5741 = vadd.f32 %v3251, %v4717
    %v5742 = vadd.f32 %v3252, %v4718
    %v5743 = vadd.f32 %v3253, %v4719
    %v5744 = vadd.f32 %v3254, %v4720
    %v5745 = vadd.f32 %v3255, %v4721
    %v5746 = vadd.f32 %v3256, %v4722
    %v5747 = vadd.f32 %v3257, %v4723
    %v5748 = vadd.f32 %v3258, %v4724
    %v5749 = vadd.f32 %v3259, %v4725
    %v5750 = vadd.f32 %v3260, %v4726
    %v5751 = vadd.f32 %v3261, %v4727
    %v5752 = vadd.f32 %v3262, %v4728
    %v5753 = vadd.f32 %v3263, %v4729
    %v5754 = vadd.f32 %v3264, %v4730
    %v5755 = vadd.f32 %v3265, %v4731
    %v5756 = vadd.f32 %v3266, %v4732
    %v5757 = vadd.f32 %v3267, %v4733
    %v5758 = vadd.f32 %v3268, %v4734
    %v5759 = vadd.f32 %v3269, %v4735
    %v5760 = vadd.f32 %v3270, %v4736
    %v5761 = vadd.f32 %v3271, %v4737
    %v5762 = vadd.f32 %v3272, %v4738
    %v5763 = vadd.f32 %v3273, %v4739
    %v5764 = vadd.f32 %v3274, %v4740
    %v5765 = vadd.f32 %v3275, %v4741
    %v5766 = vadd.f32 %v3276, %v4742
    %v5767 = vadd.f32 %v3277, %v4743
    %v5768 = vadd.f32 %v3278, %v4744
    %v5769 = vadd.f32 %v3279, %v4745
    %v5770 = vadd.f32 %v3280, %v4746
    %v5771 = vadd.f32 %v3281, %v4747
    %v5772 = vadd.f32 %v3282, %v4748
    %v5773 = vadd.f32 %v3283, %v4749
    %v5774 = vadd.f32 %v3284, %v4750
    %v5775 = vadd.f32 %v3285, %v4751
    %v5776 = vadd.f32 %v3286, %v4752
    %v5777 = vadd.f32 %v3287, %v4753
    %v5778 = vadd.f32 %v3288, %v4754
    %v5779 = vadd.f32 %v3289, %v4755
    %v5780 = vadd.f32 %v3290, %v4756
    %v5781 = vadd.f32 %v3291, %v4757
    %v5782 = vadd.f32 %v3292, %v4758
    %v5783 = vadd.f32 %v3293, %v4759
    %v5784 = vadd.f32 %v3294, %v4760
    %v5785 = vadd.f32 %v3295, %v4761
    %v5786 = vadd.f32 %v3296, %v4762
    %v5787 = vadd.f32 %v3297, %v4763
    %v5788 = vadd.f32 %v3298, %v4764
    %v5789 = vadd.f32 %v3299, %v4765
    %v5790 = vadd.f32 %v3300, %v4766
    %v5791 = vadd.f32 %v3301, %v4767
    %v5792 = vadd.f32 %v3302, %v4768
    %v5793 = vadd.f32 %v3303, %v4769
    %v5794 = vadd.f32 %v3304, %v4770
    %v5795 = vadd.f32 %v3305, %v4771
    %v5796 = vadd.f32 %v3306, %v4772
    %v5797 = vadd.f32 %v3307, %v4773
    %v5798 = vadd.f32 %v3308, %v4774
    %v5799 = vadd.f32 %v3309, %v4775
    %v5800 = vadd.f32 %v3310, %v4776
    %v5801 = vadd.f32 %v3311, %v4777
    %v5802 = vadd.f32 %v3312, %v4778
    %v5803 = vadd.f32 %v3313, %v4779
    %v5804 = vadd.f32 %v3314, %v4780
    %v5805 = vadd.f32 %v3315, %v4781
    %v5806 = vadd.f32 %v3316, %v4782
    %v5807 = vadd.f32 %v3317, %v4783
    %v5808 = vadd.f32 %v3318, %v4784
    %v5809 = vadd.f32 %v3319, %v4785
    %v5810 = vadd.f32 %v3320, %v4786
    %v5811 = vadd.f32 %v3321, %v4787
    %v5812 = vadd.f32 %v3322, %v4788
    %v5813 = vadd.f32 %v3323, %v4789
    %v5814 = vadd.f32 %v3324, %v4790
    %v5815 = vadd.f32 %v3325, %v4791
    %v5816 = vadd.f32 %v3326, %v4792
    %v5817 = vadd.f32 %v3327, %v4793
    %v5818 = vadd.f32 %v3328, %v4794
    %v5819 = vadd.f32 %v3329, %v4795
    %v5820 = vadd.f32 %v3330, %v4796
    %v5821 = vadd.f32 %v3331, %v4797
    %v5822 = vadd.f32 %v3332, %v4798
    %v5823 = vadd.f32 %v3333, %v4799
    %v5824 = vadd.f32 %v3334, %v4800
    %v5825 = vadd.f32 %v3335, %v4801
    %v5826 = vadd.f32 %v3336, %v4802
    %v5827 = vadd.f32 %v3337, %v4803
    %v5828 = vadd.f32 %v3338, %v4804
    %v5829 = vadd.f32 %v3339, %v4805
    %v5830 = vadd.f32 %v3340, %v4806
    %v5831 = vadd.f32 %v3341, %v4807
    %v5832 = vadd.f32 %v3342, %v4808
    %v5833 = vadd.f32 %v3343, %v4809
    %v5834 = vadd.f32 %v3344, %v4810
    %v5835 = vadd.f32 %v3345, %v4811
    %v5836 = vadd.f32 %v3346, %v4812
    %v5837 = vadd.f32 %v3347, %v4813
    %v5838 = vadd.f32 %v3348, %v4814
    %v5839 = vadd.f32 %v3349, %v4815
    %v5840 = vadd.f32 %v3350, %v4816
    %v5841 = vadd.f32 %v3351, %v4817
    %v5842 = vadd.f32 %v3352, %v4818
    %v5843 = vadd.f32 %v3353, %v4819
    %v5844 = vadd.f32 %v3354, %v4820
    %v5845 = vadd.f32 %v3355, %v4821
    %v5846 = vadd.f32 %v3356, %v4822
    %v5847 = vadd.f32 %v3357, %v4823
    %v5848 = vadd.f32 %v3358, %v4824
    %v5849 = vadd.f32 %v3359, %v4825
    %v5850 = vadd.f32 %v3360, %v4826
    %v5851 = vadd.f32 %v3361, %v4827
    %v5852 = vadd.f32 %v3362, %v4828
    %v5853 = vadd.f32 %v3363, %v4829
    %v5854 = vadd.f32 %v3364, %v4830
    %v5855 = vadd.f32 %v3365, %v4831
    %v5856 = vadd.f32 %v3366, %v4832
    %v5857 = vadd.f32 %v3367, %v4833
    %v5858 = vadd.f32 %v3368, %v4834
    %v5859 = vadd.f32 %v3369, %v4835
    %v5860 = vadd.f32 %v3370, %v4836
    %v5861 = vadd.f32 %v3371, %v4837
    %v5862 = vadd.f32 %v3372, %v4838
    %v5863 = vadd.f32 %v3373, %v4839
    %v5864 = vadd.f32 %v3374, %v4840
    %v5865 = vadd.f32 %v3375, %v4841
    %v5866 = vadd.f32 %v3376, %v4842
    %v5867 = vadd.f32 %v3377, %v4843
    %v5868 = vadd.f32 %v3378, %v4844
    %v5869 = vadd.f32 %v3379, %v4845
    %v5870 = vadd.f32 %v3380, %v4846
    %v5871 = vadd.f32 %v3381, %v4847
    %v5872 = vadd.f32 %v3382, %v4848
    %v5873 = vadd.f32 %v3383, %v4849
    %v5874 = vadd.f32 %v3384, %v4850
    %v5875 = vadd.f32 %v3385, %v4851
    %v5876 = vadd.f32 %v3386, %v4852
    %v5877 = vadd.f32 %v3387, %v4853
    %v5878 = vadd.f32 %v3388, %v4854
    %v5879 = vadd.f32 %v3389, %v4855
    %v5880 = vadd.f32 %v3390, %v4856
    %v5881 = vadd.f32 %v3391, %v4857
    %v5882 = vadd.f32 %v3392, %v4858
    %v5883 = vadd.f32 %v3393, %v4859
    %v5884 = vadd.f32 %v3394, %v4860
    %v5885 = vadd.f32 %v3395, %v4861
    %v5886 = vadd.f32 %v3396, %v4862
    %v5887 = vadd.f32 %v3397, %v4863
    %v5888 = vadd.f32 %v3398, %v4864
    %v5889 = vadd.f32 %v3399, %v4865
    %v5890 = vadd.f32 %v3400, %v4866
    %v5891 = vadd.f32 %v3401, %v4867
    %v5892 = vadd.f32 %v3402, %v4868
    %v5893 = vadd.f32 %v3403, %v4869
    %v5894 = vadd.f32 %v3404, %v4870
    %v5895 = vadd.f32 %v3405, %v4871
    %v5896 = vadd.f32 %v3406, %v4872
    %v5897 = vadd.f32 %v3407, %v4873
    %v5898 = vadd.f32 %v3408, %v4874
    %v5899 = vadd.f32 %v3409, %v4875
    %v5900 = vadd.f32 %v3410, %v4876
    %v5901 = vadd.f32 %v3411, %v4877
    %v5902 = vadd.f32 %v3412, %v4878
    %v5903 = vadd.f32 %v3413, %v4879
    %v5904 = vadd.f32 %v3414, %v4880
    %v5905 = vadd.f32 %v3415, %v4881
    %v5906 = vadd.f32 %v3416, %v4882
    %v5907 = vadd.f32 %v3417, %v4883
    %v5908 = vadd.f32 %v3418, %v4884
    %v5909 = vadd.f32 %v3419, %v4885
    %v5910 = vadd.f32 %v3420, %v4886
    %v5911 = vadd.f32 %v3421, %v4887
    %v5912 = vadd.f32 %v3422, %v4888
    %v5913 = vadd.f32 %v3423, %v4889
    %v5914 = vadd.f32 %v3424, %v4890
    %v5915 = vadd.f32 %v3425, %v4891
    %v5916 = vadd.f32 %v3426, %v4892
    %v5917 = vadd.f32 %v3427, %v4893
    %v5918 = vadd.f32 %v3428, %v4894
    %v5919 = vadd.f32 %v3429, %v4895
    %v5920 = vadd.f32 %v3430, %v4896
    %v5921 = vadd.f32 %v3431, %v4897
    %v5922 = vadd.f32 %v3432, %v4898
    %v5923 = vadd.f32 %v3433, %v4899
    %v5924 = vadd.f32 %v3434, %v4900
    %v5925 = vadd.f32 %v3435, %v4901
    %v5926 = vadd.f32 %v3436, %v4902
    %v5927 = vadd.f32 %v3437, %v4903
    %v5928 = vadd.f32 %v3438, %v4904
    %v5929 = vadd.f32 %v3439, %v4905
    %v5930 = vadd.f32 %v3440, %v4906
    %v5931 = vadd.f32 %v3441, %v4907
    %v5932 = vadd.f32 %v3442, %v4908
    %v5933 = vadd.f32 %v3443, %v4909
    %v5934 = vadd.f32 %v3444, %v4910
    %v5935 = vadd.f32 %v3445, %v4911
    %v5936 = vadd.f32 %v3446, %v4912
    %v5937 = vadd.f32 %v3447, %v4913
    %v5938 = vadd.f32 %v3448, %v4914
    %v5939 = vadd.f32 %v3449, %v4915
    %v5940 = vadd.f32 %v3450, %v4916
    %v5941 = vadd.f32 %v3451, %v4917
    %v5942 = vadd.f32 %v3452, %v4918
    %v5943 = vadd.f32 %v3453, %v4919
    %v5944 = vadd.f32 %v3454, %v4920
    %v5945 = vadd.f32 %v3455, %v4921
    %v5946 = vadd.f32 %v3456, %v4922
    %v5947 = vadd.f32 %v3457, %v4923
    %v5948 = vadd.f32 %v3458, %v4924
    %v5949 = vadd.f32 %v3459, %v4925
    %v5950 = vadd.f32 %v3460, %v4926
    %v5951 = vadd.f32 %v3461, %v4927
    %v5952 = vadd.f32 %v3462, %v4928
    %v5953 = vadd.f32 %v3463, %v4929
    %v5954 = vadd.f32 %v3464, %v4930
    %v5955 = vadd.f32 %v3465, %v4931
    %v5956 = vadd.f32 %v3466, %v4932
    %v5957 = vadd.f32 %v3467, %v4933
    %v5958 = vadd.f32 %v3468, %v4934
    %v5959 = vadd.f32 %v3469, %v4935
    %v5960 = vadd.f32 %v3470, %v4936
    %v5961 = vadd.f32 %v3471, %v4937
    %v5962 = vadd.f32 %v3472, %v4938
    %v5963 = vadd.f32 %v3473, %v4939
    %v5964 = vadd.f32 %v3474, %v4940
    %v5965 = vadd.f32 %v3475, %v4941
    %v5966 = vadd.f32 %v3476, %v4942
    %v5967 = vadd.f32 %v3477, %v4943
    %v5968 = vadd.f32 %v3478, %v4944
    %v5969 = vadd.f32 %v3479, %v4945
    %v5970 = vadd.f32 %v3480, %v4946
    %v5971 = vadd.f32 %v3481, %v4947
    %v5972 = vadd.f32 %v3482, %v4948
    %v5973 = vadd.f32 %v3483, %v4949
    %v5974 = vadd.f32 %v3484, %v4950
    %v5975 = vadd.f32 %v3485, %v4951
    %v5976 = vadd.f32 %v3486, %v4952
    %v5977 = vadd.f32 %v3487, %v4953
    %v5978 = vadd.f32 %v3488, %v4954
    %v5979 = vadd.f32 %v3489, %v4955
    %v5980 = vadd.f32 %v3490, %v4956
    %v5981 = vadd.f32 %v3491, %v4957
    %v5982 = vadd.f32 %v3492, %v4958
    %v5983 = vadd.f32 %v3493, %v4959
    %v5984 = vadd.f32 %v3494, %v4960
    %v5985 = vadd.f32 %v3495, %v4961
    %v5986 = vadd.f32 %v3496, %v4962
    %v5987 = vadd.f32 %v3497, %v4963
    %v5988 = vadd.f32 %v3498, %v4964
    %v5989 = vadd.f32 %v3499, %v4965
    %v5990 = vadd.f32 %v3500, %v4966
    %v5991 = vadd.f32 %v3501, %v4967
    %v5992 = vadd.f32 %v3502, %v4968
    %v5993 = vadd.f32 %v3503, %v4969
    %v5994 = vadd.f32 %v3504, %v4970
    %v5995 = vadd.f32 %v3505, %v4971
    %v5996 = vadd.f32 %v3506, %v4972
    %v5997 = vadd.f32 %v3507, %v4973
    %v5998 = vadd.f32 %v3508, %v4974
    %v5999 = vadd.f32 %v3509, %v4975
    %v6000 = vadd.f32 %v3510, %v4976
    %v6001 = vadd.f32 %v3511, %v4977
    %v6002 = vadd.f32 %v3512, %v4978
    %v6003 = vadd.f32 %v3513, %v4979
    %v6004 = vadd.f32 %v3514, %v4980
    %v6005 = vadd.f32 %v3515, %v4981
    %v6006 = vadd.f32 %v3516, %v4982
    %v6007 = vadd.f32 %v3517, %v4983
    %v6008 = vadd.f32 %v3518, %v4984
    %v6009 = vadd.f32 %v3519, %v4985
    %v6010 = vadd.f32 %v3520, %v4986
    %v6011 = vadd.f32 %v3521, %v4987
    %v6012 = vadd.f32 %v3522, %v4988
    %v6013 = vadd.f32 %v3523, %v4989
    %v6014 = vadd.f32 %v3524, %v4990
    %v6015 = vadd.f32 %v3525, %v4991
    %v6016 = vadd.f32 %v3526, %v4992
    %v6017 = vadd.f32 %v3527, %v4993
    %v6018 = vadd.f32 %v3528, %v4994
    %v6019 = vadd.f32 %v3529, %v4995
    %v6020 = vadd.f32 %v3530, %v4996
    %v6021 = vadd.f32 %v3531, %v4997
    %v6022 = vadd.f32 %v3532, %v4998
    %v6023 = vadd.f32 %v3533, %v4999
    %v6024 = vadd.f32 %v3534, %v5000
    %v6025 = vadd.f32 %v3535, %v5001
    %v6026 = vadd.f32 %v3536, %v5002
    %v6027 = vadd.f32 %v3537, %v5003
    %v6028 = vadd.f32 %v3538, %v5004
    %v6029 = vadd.f32 %v3539, %v5005
    %v6030 = vadd.f32 %v3540, %v5006
    %v6031 = vadd.f32 %v3541, %v5007
    %v6032 = vadd.f32 %v3542, %v5008
    %v6033 = vadd.f32 %v3543, %v5009
    %v6034 = vadd.f32 %v3544, %v5010
    %v6035 = vadd.f32 %v3545, %v5011
    %v6036 = vadd.f32 %v3546, %v5012
    %v6037 = vadd.f32 %v3547, %v5013
    %v6038 = vadd.f32 %v3548, %v5014
    %v6039 = vadd.f32 %v3549, %v5015
    %v6040 = vadd.f32 %v3550, %v5016
    %v6041 = vadd.f32 %v3551, %v5017
    %v6042 = vadd.f32 %v3552, %v5018
    %v6043 = vadd.f32 %v3553, %v5019
    %v6044 = vadd.f32 %v3554, %v5020
    %v6045 = vadd.f32 %v3555, %v5021
    %v6046 = vadd.f32 %v3556, %v5022
    %v6047 = vadd.f32 %v3557, %v5023
    %v6048 = vadd.f32 %v3558, %v5024
    %v6049 = vadd.f32 %v3559, %v5025
    %v6050 = vadd.f32 %v3560, %v5026
    %v6051 = vadd.f32 %v3561, %v5027
    %v6052 = vadd.f32 %v3562, %v5028
    %v6053 = vadd.f32 %v3563, %v5029
    %v6054 = vadd.f32 %v3564, %v5030
    %v6055 = vadd.f32 %v3565, %v5031
    %v6056 = vadd.f32 %v3566, %v5032
    %v6057 = vadd.f32 %v3567, %v5033
    %v6058 = vadd.f32 %v3568, %v5034
    %v6059 = vadd.f32 %v3569, %v5035
    %v6060 = vadd.f32 %v3570, %v5036
    %v6061 = vadd.f32 %v3571, %v5037
    %v6062 = vadd.f32 %v3572, %v5038
    %v6063 = vadd.f32 %v3573, %v5039
    %v6064 = vadd.f32 %v3574, %v5040
    %v6065 = vadd.f32 %v3575, %v5041
    %v6066 = vadd.f32 %v3576, %v5042
    %v6067 = vadd.f32 %v3577, %v5043
    %v6068 = vadd.f32 %v3578, %v5044
    %v6069 = vadd.f32 %v3579, %v5045
    %v6070 = vadd.f32 %v3580, %v5046
    %v6071 = vadd.f32 %v3581, %v5047
    %v6072 = vadd.f32 %v3582, %v5048
    %v6073 = vadd.f32 %v3583, %v5049
    %v6074 = vadd.f32 %v3584, %v5050
    %v6075 = vadd.f32 %v3585, %v5051
    %v6076 = vadd.f32 %v3586, %v5052
    %v6077 = vadd.f32 %v3587, %v5053
    %v6078 = vadd.f32 %v3588, %v5054
    %v6079 = vadd.f32 %v3589, %v5055
    %v6080 = vadd.f32 %v3590, %v5056
    %v6081 = vadd.f32 %v3591, %v5057
    %v6082 = vadd.f32 %v3592, %v5058
    %v6083 = vadd.f32 %v3593, %v5059
    %v6084 = vadd.f32 %v3594, %v5060
    %v6085 = vadd.f32 %v3595, %v5061
    %v6086 = vadd.f32 %v3596, %v5062
    %v6087 = vadd.f32 %v3597, %v5063
    %v6088 = vadd.f32 %v3598, %v5064
    %v6089 = vadd.f32 %v3599, %v5065
    %v6090 = vadd.f32 %v3600, %v5066
    %v6091 = vadd.f32 %v3601, %v5067
    %v6092 = vadd.f32 %v3602, %v5068
    %v6093 = vadd.f32 %v3603, %v5069
    %v6094 = vadd.f32 %v3604, %v5070
    %v6095 = vadd.f32 %v3605, %v5071
    %v6096 = vadd.f32 %v3606, %v5072
    %v6097 = vadd.f32 %v3607, %v5073
    %v6098 = vadd.f32 %v3608, %v5074
    %v6099 = vadd.f32 %v3609, %v5075
    %v6100 = vadd.f32 %v3610, %v5076
    %v6101 = vadd.f32 %v3611, %v5077
    %v6102 = vadd.f32 %v3612, %v5078
    %v6103 = vadd.f32 %v3613, %v5079
    %v6104 = vadd.f32 %v3614, %v5080
    %v6105 = vadd.f32 %v3615, %v5081
    %v6106 = vadd.f32 %v3616, %v5082
    %v6107 = vadd.f32 %v3617, %v5083
    %v6108 = vadd.f32 %v3618, %v5084
    %v6109 = vadd.f32 %v3619, %v5085
    %v6110 = vadd.f32 %v3620, %v5086
    %v6111 = vadd.f32 %v3621, %v5087
    %v6112 = vadd.f32 %v3622, %v5088
    %v6113 = vadd.f32 %v3623, %v5089
    %v6114 = vadd.f32 %v3624, %v5090
    %v6115 = vadd.f32 %v3625, %v5091
    %v6116 = vadd.f32 %v3626, %v5092
    %v6117 = vadd.f32 %v3627, %v5093
    %v6118 = vadd.f32 %v3628, %v5094
    %v6119 = vadd.f32 %v3629, %v5095
    %v6120 = vadd.f32 %v3630, %v5096
    %v6121 = vadd.f32 %v3631, %v5097
    %v6122 = vadd.f32 %v3632, %v5098
    %v6123 = vadd.f32 %v3633, %v5099
    %v6124 = vadd.f32 %v3634, %v5100
    %v6125 = vadd.f32 %v3635, %v5101
    %v6126 = vadd.f32 %v3636, %v5102
    %v6127 = vadd.f32 %v3637, %v5103
    %v6128 = vadd.f32 %v3638, %v5104
    %v6129 = vadd.f32 %v3639, %v5105
    %v6130 = vadd.f32 %v3640, %v5106
    %v6131 = vadd.f32 %v3641, %v5107
    %v6132 = vadd.f32 %v3642, %v5108
    %v6133 = vadd.f32 %v3643, %v5109
    %v6134 = vadd.f32 %v3644, %v5110
    %v6135 = vadd.f32 %v3645, %v5111
    %v6136 = vadd.f32 %v3646, %v5112
    %v6137 = vadd.f32 %v3647, %v5113
    %v6138 = vadd.f32 %v3648, %v5114
    %v6139 = vadd.f32 %v3649, %v5115
    %v6140 = vadd.f32 %v3650, %v5116
    %v6141 = vadd.f32 %v3651, %v5117
    %v6142 = vadd.f32 %v3652, %v5118
    %v6143 = vadd.f32 %v3653, %v5119
    %v6144 = vadd.f32 %v3654, %v5120
    %v6145 = vadd.f32 %v3655, %v5121
    %v6146 = vadd.f32 %v3656, %v5122
    %v6147 = vadd.f32 %v3657, %v5123
    %v6148 = vadd.f32 %v3658, %v5124
    %v6149 = vadd.f32 %v3659, %v5125
    %v6150 = vadd.f32 %v3660, %v5126
    %v6151 = vadd.f32 %v3661, %v5127
    %v6152 = vadd.f32 %v3662, %v5128
    %v6153 = vadd.f32 %v3663, %v5129
    %v6154 = vadd.f32 %v3664, %v5130
    %v6155 = vadd.f32 %v3665, %v5131
    %v6156 = vadd.f32 %v3666, %v5132
    %v6157 = vadd.f32 %v3667, %v5133
    %v6158 = vadd.f32 %v3668, %v5134
    %v6159 = vadd.f32 %v3669, %v5135
    %v6160 = vadd.f32 %v3670, %v5136
    %v6161 = vadd.f32 %v3671, %v5137
    %v6162 = vadd.f32 %v3672, %v5138
    %v6163 = vadd.f32 %v3673, %v5139
    %v6164 = vadd.f32 %v3674, %v5140
    %v6165 = vadd.f32 %v3675, %v5141
    %v6166 = vadd.f32 %v3676, %v5142
    %v6167 = vadd.f32 %v3677, %v5143
    %v6168 = vadd.f32 %v3678, %v5144
    %v6169 = vadd.f32 %v3679, %v5145
    %v6170 = vadd.f32 %v3680, %v5146
    %v6171 = vadd.f32 %v3681, %v5147
    %v6172 = vadd.f32 %v3682, %v5148
    %v6173 = vadd.f32 %v3683, %v5149
    %v6174 = vadd.f32 %v3684, %v5150
    %v6175 = vadd.f32 %v3685, %v5151
    %v6176 = vadd.f32 %v3686, %v5152
    %v6177 = vadd.f32 %v3687, %v5153
    %v6178 = vadd.f32 %v3688, %v5154
    %v6179 = vadd.f32 %v3689, %v5155
    %v6180 = vadd.f32 %v3690, %v5156
    %v6181 = vadd.f32 %v3691, %v5157
    %v6182 = vadd.f32 %v3692, %v5158
    %v6183 = vadd.f32 %v3693, %v5159
    %v6184 = vadd.f32 %v3694, %v5160
    %v6185 = vadd.f32 %v3695, %v5161
    %v6186 = vadd.f32 %v3696, %v5162
    %v6187 = vadd.f32 %v3697, %v5163
    %v6188 = vadd.f32 %v3698, %v5164
    %v6189 = vadd.f32 %v3699, %v5165
    %v6190 = vadd.f32 %v3700, %v5166
    %v6191 = vadd.f32 %v3701, %v5167
    %v6192 = vadd.f32 %v3702, %v5168
    %v6193 = vadd.f32 %v3703, %v5169
    %v6194 = vadd.f32 %v3704, %v5170
    %v6195 = vadd.f32 %v3705, %v5171
    %v6196 = vadd.f32 %v3706, %v5172
    %v6197 = vadd.f32 %v3707, %v5173
    %v6198 = vadd.f32 %v3708, %v5174
    %v6199 = vadd.f32 %v3709, %v5175
    %v6200 = vadd.f32 %v3710, %v5176
    %v6201 = vadd.f32 %v3711, %v5177
    %v6202 = vadd.f32 %v3712, %v5178
    %v6203 = vadd.f32 %v3713, %v5179
    %v6204 = vadd.f32 %v3714, %v5180
    %v6205 = vadd.f32 %v3715, %v5181
    %v6206 = vadd.f32 %v3716, %v5182
    %v6207 = vadd.f32 %v3717, %v5183
    %v6208 = vadd.f32 %v3718, %v5184
    %v6209 = vadd.f32 %v3719, %v5185
    %v6210 = vadd.f32 %v3720, %v5186
    %v6211 = vadd.f32 %v3721, %v5187
    %v6212 = vadd.f32 %v3722, %v5188
    %v6213 = vadd.f32 %v3723, %v5189
    %v6214 = vadd.f32 %v3724, %v5190
    %v6215 = vadd.f32 %v3725, %v5191
    %v6216 = vadd.f32 %v3726, %v5192
    %v6217 = vadd.f32 %v3727, %v5193
    %v6218 = vadd.f32 %v3728, %v5194
    %v6219 = vadd.f32 %v3729, %v5195
    %v6220 = vadd.f32 %v3730, %v5196
    %v6221 = vadd.f32 %v3731, %v5197
    %v6222 = vadd.f32 %v3732, %v5198
    %v6223 = vadd.f32 %v3733, %v5199
    %v6224 = vadd.f32 %v3734, %v5200
    %v6225 = vadd.f32 %v3735, %v5201
    %v6226 = vadd.f32 %v3736, %v5202
    %v6227 = vadd.f32 %v3737, %v5203
    %v6228 = vadd.f32 %v3738, %v5204
    %v6229 = vadd.f32 %v3739, %v5205
    %v6230 = vadd.f32 %v3740, %v5206
    %v6231 = vadd.f32 %v3741, %v5207
    %v6232 = vadd.f32 %v3742, %v5208
    %v6233 = vadd.f32 %v3743, %v5209
    %v6234 = vadd.f32 %v3744, %v5210
    %v6235 = vadd.f32 %v3745, %v5211
    %v6236 = vadd.f32 %v3746, %v5212
    %v6237 = vadd.f32 %v3747, %v5213
    %v6238 = vadd.f32 %v3748, %v5214
    %v6239 = vadd.f32 %v3749, %v5215
    %v6240 = vadd.f32 %v3750, %v5216
    %v6241 = vadd.f32 %v3751, %v5217
    %v6242 = vadd.f32 %v3752, %v5218
    %v6243 = vadd.f32 %v3753, %v5219
    %v6244 = vadd.f32 %v3754, %v5220
    %v6245 = vadd.f32 %v3755, %v5221
    %v6246 = vadd.f32 %v3756, %v5222
    %v6247 = vadd.f32 %v3757, %v5223
    %v6248 = vadd.f32 %v3758, %v5224
    %v6249 = vadd.f32 %v3759, %v5225
    %v6250 = vadd.f32 %v3760, %v5226
    %v6251 = vadd.f32 %v3761, %v5227
    %v6252 = vadd.f32 %v3762, %v5228
    %v6253 = vadd.f32 %v3763, %v5229
    %v6254 = vadd.f32 %v3764, %v5230
    %v6255 = vadd.f32 %v3765, %v5231
    %v6256 = vadd.f32 %v3766, %v5232
    %v6257 = vadd.f32 %v3767, %v5233
    %v6258 = vadd.f32 %v3768, %v5234
    %v6259 = vadd.f32 %v3769, %v5235
    %v6260 = vadd.f32 %v3770, %v5236
    %v6261 = vadd.f32 %v3771, %v5237
    %v6262 = vadd.f32 %v3772, %v5238
    %v6263 = vadd.f32 %v3773, %v5239
    %v6264 = vadd.f32 %v3774, %v5240
    %v6265 = vadd.f32 %v3775, %v5241
    %v6266 = vadd.f32 %v3776, %v5242
    %v6267 = vadd.f32 %v3777, %v5243
    %v6268 = vadd.f32 %v3778, %v5244
    %v6269 = vadd.f32 %v3779, %v5245
    %v6270 = vadd.f32 %v3780, %v5246
    %v6271 = vadd.f32 %v3781, %v5247
    %v6272 = vadd.f32 %v3782, %v5248
    %v6273 = vadd.f32 %v3783, %v5249
    %v6274 = vadd.f32 %v3784, %v5250
    %v6275 = vadd.f32 %v3785, %v5251
    %v6276 = vadd.f32 %v3786, %v5252
    %v6277 = vadd.f32 %v3787, %v5253
    %v6278 = vadd.f32 %v3788, %v5254
    %v6279 = vadd.f32 %v3789, %v5255
    %v6280 = vadd.f32 %v3790, %v5256
    %v6281 = vadd.f32 %v3791, %v5257
    %v6282 = vadd.f32 %v3792, %v5258
    %v6283 = vadd.f32 %v3793, %v5259
    %v6284 = vadd.f32 %v3794, %v5260
    %v6285 = vadd.f32 %v3795, %v5261
    %v6286 = vadd.f32 %v3796, %v5262
    %v6287 = vadd.f32 %v3797, %v5263
    %v6288 = vadd.f32 %v3798, %v5264
    %v6289 = vadd.f32 %v3799, %v5265
    %v6290 = vadd.f32 %v3800, %v5266
    %v6291 = vadd.f32 %v3801, %v5267
    %v6292 = vadd.f32 %v3802, %v5268
    %v6293 = vadd.f32 %v3803, %v5269
    %v6294 = vadd.f32 %v3804, %v5270
    %v6295 = vadd.f32 %v3805, %v5271
    %v6296 = vadd.f32 %v3806, %v5272
    %v6297 = vadd.f32 %v3807, %v5273
    %v6298 = vadd.f32 %v3808, %v5274
    %v6299 = vadd.f32 %v3809, %v5275
    %v6300 = vadd.f32 %v3810, %v5276
    %v6301 = vadd.f32 %v3811, %v5277
    %v6302 = vadd.f32 %v3812, %v5278
    %v6303 = vadd.f32 %v3813, %v5279
    %v6304 = vadd.f32 %v3814, %v5280
    %v6305 = vadd.f32 %v3815, %v5281
    %v6306 = vadd.f32 %v3816, %v5282
    %v6307 = vadd.f32 %v3817, %v5283
    %v6308 = vadd.f32 %v3818, %v5284
    %v6309 = vadd.f32 %v3819, %v5285
    %v6310 = vadd.f32 %v3820, %v5286
    %v6311 = vadd.f32 %v3821, %v5287
    %v6312 = vadd.f32 %v3822, %v5288
    %v6313 = vadd.f32 %v3823, %v5289
    %v6314 = vadd.f32 %v3824, %v5290
    %v6315 = vadd.f32 %v3825, %v5291
    %v6316 = vadd.f32 %v3826, %v5292
    %v6317 = vadd.f32 %v3827, %v5293
    %v6318 = vadd.f32 %v3828, %v5294
    %v6319 = vadd.f32 %v3829, %v5295
    %v6320 = vadd.f32 %v3830, %v5296
    %v6321 = vadd.f32 %v3831, %v5297
    %v6322 = vadd.f32 %v3832, %v5298
    %v6323 = vadd.f32 %v3833, %v5299
    %v6324 = vadd.f32 %v3834, %v5300
    %v6325 = vadd.f32 %v3835, %v5301
    %v6326 = vadd.f32 %v3836, %v5302
    %v6327 = vadd.f32 %v3837, %v5303
    %v6328 = vadd.f32 %v3838, %v5304
    %v6329 = vadd.f32 %v3839, %v5305
    %v6330 = vadd.f32 %v3840, %v5306
    %v6331 = vadd.f32 %v3841, %v5307
    %v6332 = vadd.f32 %v3842, %v5308
    %v6333 = vadd.f32 %v3843, %v5309
    %v6334 = vadd.f32 %v3844, %v5310
    %v6335 = vadd.f32 %v3845, %v5311
    %v6336 = vadd.f32 %v3846, %v5312
    %v6337 = vadd.f32 %v3847, %v5313
    %v6338 = vadd.f32 %v3848, %v5314
    %v6339 = vadd.f32 %v3849, %v5315
    %v6340 = vadd.f32 %v3850, %v5316
    %v6341 = vadd.f32 %v3851, %v5317
    %v6342 = vadd.f32 %v3852, %v5318
    %v6343 = vadd.f32 %v3853, %v5319
    %v6344 = vadd.f32 %v3854, %v5320
    %v6345 = vadd.f32 %v3855, %v5321
    %v6346 = vadd.f32 %v3856, %v5322
    %v6347 = vadd.f32 %v3857, %v5323
    %v6348 = vadd.f32 %v3858, %v5324
    %v6349 = vadd.f32 %v3859, %v5325
    %v6350 = vadd.f32 %v3860, %v5326
    %v6351 = vadd.f32 %v3861, %v5327
    %v6352 = vadd.f32 %v3862, %v5328
    %v6353 = vadd.f32 %v3863, %v5329
    %v6354 = vadd.f32 %v3864, %v5330
    %v6355 = vadd.f32 %v3865, %v5331
    %v6356 = vadd.f32 %v3866, %v5332
    %v6357 = vadd.f32 %v3867, %v5333
    %v6358 = vadd.f32 %v3868, %v5334
    %v6359 = vadd.f32 %v3869, %v5335
    %v6360 = vadd.f32 %v3870, %v5336
    %v6361 = vadd.f32 %v3871, %v5337
    %v6362 = vadd.f32 %v3872, %v5338
    %v6363 = vadd.f32 %v3873, %v5339
    %v6364 = vadd.f32 %v3874, %v5340
    %v6365 = vadd.f32 %v3875, %v5341
    %v6366 = vadd.f32 %v3876, %v5342
    %v6367 = vadd.f32 %v3877, %v5343
    %v6368 = vadd.f32 %v3878, %v5344
    %v6369 = vadd.f32 %v3879, %v5345
    %v6370 = vadd.f32 %v3880, %v5346
    %v6371 = vadd.f32 %v3881, %v5347
    %v6372 = vadd.f32 %v3882, %v5348
    %v6373 = vadd.f32 %v3883, %v5349
    %v6374 = vadd.f32 %v3884, %v5350
    %v6375 = vadd.f32 %v3885, %v5351
    %v6376 = vadd.f32 %v3886, %v5352
    %v6377 = vadd.f32 %v3887, %v5353
    %v6378 = vadd.f32 %v3888, %v5354
    %v6379 = vadd.f32 %v3889, %v5355
    %v6380 = vadd.f32 %v3890, %v5356
    %v6381 = vadd.f32 %v3891, %v5357
    %v6382 = vadd.f32 %v3892, %v5358
    %v6383 = vadd.f32 %v3893, %v5359
    %v6384 = vadd.f32 %v3894, %v5360
    %v6385 = vadd.f32 %v3895, %v5361
    %v6386 = vadd.f32 %v3896, %v5362
    %v6387 = vadd.f32 %v3897, %v5363
    %v6388 = vadd.f32 %v3898, %v5364
    %v6389 = vadd.f32 %v3899, %v5365
    %v6390 = vadd.f32 %v3900, %v5366
    %v6391 = vadd.f32 %v3901, %v5367
    %v6392 = vadd.f32 %v3902, %v5368
    %v6393 = vadd.f32 %v3903, %v5369
    %v6394 = vadd.f32 %v3904, %v5370
    %v6395 = vadd.f32 %v3905, %v5371
    %v6396 = vadd.f32 %v3906, %v5372
    %v6397 = vadd.f32 %v3907, %v5373
    %v6398 = vadd.f32 %v3908, %v5374
    %v6399 = vadd.f32 %v3909, %v5375
    %v6400 = vadd.f32 %v3910, %v5376
    %v6401 = vadd.f32 %v3911, %v5377
    %v6402 = vadd.f32 %v3912, %v5378
    %v6403 = vadd.f32 %v3913, %v5379
    %v6404 = vadd.f32 %v3914, %v5380
    %v6405 = vadd.f32 %v3915, %v5381
    %v6406 = vadd.f32 %v3916, %v5382
    %v6407 = vadd.f32 %v3917, %v5383
    %v6408 = vadd.f32 %v3918, %v5384
    %v6409 = vadd.f32 %v3919, %v5385
    %v6410 = vadd.f32 %v3920, %v5386
    %v6411 = vadd.f32 %v3921, %v5387
    %v6412 = vadd.f32 %v3922, %v5388
    %v6413 = vadd.f32 %v3923, %v5389
    %v6414 = vadd.f32 %v3924, %v5390
    %v6415 = vadd.f32 %v3925, %v5391
    %v6416 = vadd.f32 %v3926, %v5392
    %v6417 = vadd.f32 %v3927, %v5393
    %v6418 = vadd.f32 %v3928, %v5394
    %v6419 = vadd.f32 %v3929, %v5395
    %v6420 = vadd.f32 %v3930, %v5396
    %v6421 = vadd.f32 %v3931, %v5397
    %v6422 = vadd.f32 %v3932, %v5398
    %v6423 = vadd.f32 %v3933, %v5399
    %v6424 = vadd.f32 %v3934, %v5400
    %v6425 = vadd.f32 %v3935, %v5401
    %v6426 = vadd.f32 %v3936, %v5402
    %v6427 = vadd.f32 %v3937, %v5403
    %v6428 = vadd.f32 %v3938, %v5404
    %v6429 = vadd.f32 %v3939, %v5405
    %v6430 = vadd.f32 %v3940, %v5406
    %v6431 = vadd.f32 %v3941, %v5407
    %v6432 = vadd.f32 %v3942, %v5408
    %v6433 = vadd.f32 %v3943, %v5409
    %v6434 = vadd.f32 %v3944, %v5410
    %v6435 = vadd.f32 %v3945, %v5411
    %v6436 = vadd.f32 %v3946, %v5412
    %v6437 = vadd.f32 %v3947, %v5413
    %v6438 = vadd.f32 %v3948, %v5414
    %v6439 = vadd.f32 %v3949, %v5415
    %v6440 = vadd.f32 %v3950, %v5416
    %v6441 = vadd.f32 %v3951, %v5417
    %v6442 = vadd.f32 %v3952, %v5418
    %v6443 = vadd.f32 %v3953, %v5419
    %v6444 = vadd.f32 %v3954, %v5420
    %v6445 = vadd.f32 %v3955, %v5421
    %v6446 = vadd.f32 %v3956, %v5422
    %v6447 = vadd.f32 %v3957, %v5423
    %v6448 = vadd.f32 %v3958, %v5424
    %v6449 = vadd.f32 %v3959, %v5425
    %v6450 = vadd.f32 %v3960, %v5426
    %v6451 = vadd.f32 %v3961, %v5427
    %v6452 = vadd.f32 %v3962, %v5428
    %v6453 = vadd.f32 %v3963, %v5429
    %v6454 = vadd.f32 %v3964, %v5430
    %v6455 = vadd.f32 %v3965, %v5431
    %v6456 = vadd.f32 %v3966, %v5432
    %v6457 = vadd.f32 %v3967, %v5433
    %v6458 = vadd.f32 %v3968, %v5434
    %v6459 = vadd.f32 %v3969, %v5435
    %v6460 = vadd.f32 %v3970, %v5436
    %v6461 = vadd.f32 %v3971, %v5437
    %v6462 = vadd.f32 %v3972, %v5438
    %v6463 = vadd.f32 %v3973, %v5439
    %v6464 = vadd.f32 %v3974, %v5440
    %v6465 = vadd.f32 %v3975, %v5441
    %v6466 = vadd.f32 %v3976, %v5442
    %v6467 = vadd.f32 %v3977, %v5443
    %v6468 = vadd.f32 %v3978, %v5444
    %v6469 = vadd.f32 %v3979, %v5445
    %v6470 = vadd.f32 %v3980, %v5446
    %v6471 = vadd.f32 %v3981, %v5447
    %v6472 = vadd.f32 %v3982, %v5448
    %v6473 = vadd.f32 %v3983, %v5449
    %v6474 = vadd.f32 %v3984, %v5450
    %v6475 = vadd.f32 %v3985, %v5451
    %v6476 = vadd.f32 %v3986, %v5452
    %v6477 = vadd.f32 %v3987, %v5453
    %v6478 = vadd.f32 %v3988, %v5454
    %v6479 = vadd.f32 %v3989, %v5455
    %v6480 = vadd.f32 %v3990, %v5456
    %v6481 = vadd.f32 %v3991, %v5457
    %v6482 = vadd.f32 %v3992, %v5458
    %v6483 = vadd.f32 %v3993, %v5459
    %v6484 = vadd.f32 %v3994, %v5460
    %v6485 = vadd.f32 %v3995, %v5461
    %v6486 = vadd.f32 %v3996, %v5462
    %v6487 = vadd.f32 %v3997, %v5463
    %v6488 = vadd.f32 %v3998, %v5464
    %v6489 = vadd.f32 %v3999, %v5465
    %v6490 = vadd.f32 %v4000, %v5466
    %v6491 = vadd.f32 %v4001, %v5467
    %v6492 = vadd.f32 %v4002, %v5468
    %v6493 = vadd.f32 %v4003, %v5469
    %v6494 = vadd.f32 %v4004, %v5470
    %v6495 = vadd.f32 %v4005, %v5471
    %v6496 = vadd.f32 %v4006, %v5472
    %v6497 = vadd.f32 %v4007, %v5473
    %v6498 = vadd.f32 %v4008, %v5474
    %v6499 = vadd.f32 %v4009, %v5475
    %v6500 = vadd.f32 %v4010, %v5476
    %v6501 = vadd.f32 %v4011, %v5477
    %v6502 = vadd.f32 %v4012, %v5478
    %v6503 = vadd.f32 %v4013, %v5479
    %v6504 = vadd.f32 %v4014, %v5480
    %v6505 = vadd.f32 %v4015, %v5481
    %v6506 = vadd.f32 %v4016, %v5482
    %v6507 = vadd.f32 %v4017, %v5483
    %v6508 = vadd.f32 %v4018, %v5484
    %v6509 = vadd.f32 %v4019, %v5485
    %v6510 = vadd.f32 %v4020, %v5486
    %v6511 = vadd.f32 %v4021, %v5487
    %v6512 = vadd.f32 %v4022, %v5488
    %v6513 = vadd.f32 %v4023, %v5489
    %v6514 = vadd.f32 %v4024, %v5490
    %v6515 = vadd.f32 %v4025, %v5491
    %v6516 = vadd.f32 %v4026, %v5492
    %v6517 = vadd.f32 %v4027, %v5493
    %v6518 = vadd.f32 %v4028, %v5494
    %v6519 = vadd.f32 %v4029, %v5495
    %v6520 = vadd.f32 %v4030, %v5496
    %v6521 = vadd.f32 %v4031, %v5497
    %v6522 = vadd.f32 %v4032, %v5498
    %v6523 = vadd.f32 %v4033, %v5499
    %v6524 = vadd.f32 %v4034, %v5500
    %v6525 = vadd.f32 %v4035, %v5501
    %v6526 = vadd.f32 %v4036, %v5502
    %v6527 = vadd.f32 %v4037, %v5503
    %v6528 = vadd.f32 %v4038, %v5504
    %v6529 = vadd.f32 %v4039, %v5505
    %v6530 = vadd.f32 %v4040, %v5506
    %v6531 = vadd.f32 %v4041, %v5507
    %v6532 = vadd.f32 %v4042, %v5508
    %v6533 = vadd.f32 %v4043, %v5509
    %v6534 = vadd.f32 %v4044, %v5510
    %v6535 = vadd.f32 %v4045, %v5511
    %v6536 = vadd.f32 %v4046, %v5512
    %v6537 = vadd.f32 %v4047, %v5513
    %v6538 = vadd.f32 %v4048, %v5514
    %v6539 = vadd.f32 %v4049, %v5515
    %v6540 = vadd.f32 %v4050, %v5516
    %v6541 = vadd.f32 %v4051, %v5517
    %v6542 = vadd.f32 %v4052, %v5518
    %v6543 = vadd.f32 %v4053, %v5519
    %v6544 = vadd.f32 %v4054, %v5520
    %v6545 = vadd.f32 %v4055, %v5521
    %v6546 = vadd.f32 %v4056, %v5522
    %v6547 = vadd.f32 %v4057, %v5523
    %v6548 = vadd.f32 %v4058, %v5524
    %v6549 = vadd.f32 %v4059, %v5525
    %v6550 = vadd.f32 %v4060, %v5526
    %v6551 = vadd.f32 %v4061, %v5527
    %v6552 = vadd.f32 %v4062, %v5528
    %v6553 = vadd.f32 %v4063, %v5529
    %v6554 = vadd.f32 %v4064, %v5530
    %v6555 = vadd.f32 %v4065, %v5531
    %v6556 = vadd.f32 %v4066, %v5532
    %v6557 = vadd.f32 %v4067, %v5533
    %v6558 = vadd.f32 %v4068, %v5534
    %v6559 = vadd.f32 %v4069, %v5535
    %v6560 = vadd.f32 %v4070, %v5536
    %v6561 = vadd.f32 %v4071, %v5537
    %v6562 = vadd.f32 %v4072, %v5538
    %v6563 = vadd.f32 %v4073, %v5539
    %v6564 = vadd.f32 %v4074, %v5540
    %v6565 = vadd.f32 %v4075, %v5541
    %v6566 = vadd.f32 %v4076, %v5542
    %v6567 = vadd.f32 %v4077, %v5543
    %v6568 = vadd.f32 %v4078, %v5544
    %v6569 = vadd.f32 %v4079, %v5545
    %v6570 = vadd.f32 %v4080, %v5546
    %v6571 = vadd.f32 %v4081, %v5547
    %v6572 = vadd.f32 %v4082, %v5548
    %v6573 = vadd.f32 %v4083, %v5549
    %v6574 = vadd.f32 %v4084, %v5550
    %v6575 = vadd.f32 %v4085, %v5551
    %v6576 = vadd.f32 %v4086, %v5552
    %v6577 = vadd.f32 %v4087, %v5553
    %v6578 = vadd.f32 %v4088, %v5554
    %v6579 = vadd.f32 %v4089, %v5555
    %v6580 = vadd.f32 %v4090, %v5556
    %v6581 = vadd.f32 %v4091, %v5557
    %v6582 = vadd.f32 %v4092, %v5558
    %v6583 = vadd.f32 %v4093, %v5559
    %v6584 = vadd.f32 %v4094, %v5560
    %v6585 = vadd.f32 %v4095, %v5561
    %v6586 = vadd.f32 %v4096, %v5562
    %v6587 = vadd.f32 %v4097, %v5563
    %v6588 = vadd.f32 %v4098, %v5564
    %v6589 = vadd.f32 %v4099, %v5565
    %v6590 = vadd.f32 %v4100, %v5566
    %v6591 = vadd.f32 %v4101, %v5567
    %v6592 = vadd.f32 %v4102, %v5568
    %v6593 = vadd.f32 %v4103, %v5569
    %v6594 = vadd.f32 %v4104, %v5570
    %v6595 = vadd.f32 %v4105, %v5571
    %v6596 = vadd.f32 %v4106, %v5572
    %v6597 = vadd.f32 %v4107, %v5573
    %v6598 = vadd.f32 %v4108, %v5574
    %v6599 = vadd.f32 %v4109, %v5575
    %v6600 = vadd.f32 %v4110, %v5576
    %v6601 = vadd.f32 %v4111, %v5577
    %v6602 = vld [vmem:[#allocation2] sm:$0xff]
    %v6603 = vld [vmem:[#allocation2 + $0x8] sm:$0xff]
    %v6604 = vld [vmem:[#allocation2 + $0x10] sm:$0xff]
    %v6605 = vld [vmem:[#allocation2 + $0x18] sm:$0xff]
    %v6606 = vmax.f32 %v5578, %v5594
    %v6607 = vmax.f32 %v6606, %v5610
    %v6608 = vmax.f32 %v6607, %v5626
    %v6609 = vmax.f32 %v6608, %v5642
    %v6610 = vmax.f32 %v6609, %v5658
    %v6611 = vmax.f32 %v6610, %v5674
    %v6612 = vmax.f32 %v6611, %v5690
    %v6613 = vmax.f32 %v6612, %v5706
    %v6614 = vmax.f32 %v6613, %v5722
    %v6615 = vmax.f32 %v6614, %v5738
    %v6616 = vmax.f32 %v6615, %v5754
    %v6617 = vmax.f32 %v6616, %v5770
    %v6618 = vmax.f32 %v6617, %v5786
    %v6619 = vmax.f32 %v6618, %v5802
    %v6620 = vmax.f32 %v6619, %v5818
    %v6621 = vmax.f32 %v6620, %v5834
    %v6622 = vmax.f32 %v6621, %v5850
    %v6623 = vmax.f32 %v6622, %v5866
    %v6624 = vmax.f32 %v6623, %v5882
    %v6625 = vmax.f32 %v6624, %v5898
    %v6626 = vmax.f32 %v6625, %v5914
    %v6627 = vmax.f32 %v6626, %v5930
    %v6628 = vmax.f32 %v6627, %v5946
    %v6629 = vmax.f32 %v6628, %v5962
    %v6630 = vmax.f32 %v6629, %v5978
    %v6631 = vmax.f32 %v6630, %v5994
    %v6632 = vmax.f32 %v6631, %v6010
    %v6633 = vmax.f32 %v6632, %v6026
    %v6634 = vmax.f32 %v6633, %v6042
    %v6635 = vmax.f32 %v6634, %v6058
    %v6636 = vmax.f32 %v6635, %v6074
    %v6637 = vrot.slane %v6636, 4
    %v6638 = vmax.f32 %v6636, %v6637
    %v6639 = vrot.slane %v6638, 2
    %v6640 = vmax.f32 %v6638, %v6639
    %v6641 = vrot.slane %v6640, 1
    %v6642 = vmax.f32 %v6640, %v6641
    %v6643 = vmax.f32 %v5579, %v5595
    %v6644 = vmax.f32 %v6643, %v5611
    %v6645 = vmax.f32 %v6644, %v5627
    %v6646 = vmax.f32 %v6645, %v5643
    %v6647 = vmax.f32 %v6646, %v5659
    %v6648 = vmax.f32 %v6647, %v5675
    %v6649 = vmax.f32 %v6648, %v5691
    %v6650 = vmax.f32 %v6649, %v5707
    %v6651 = vmax.f32 %v6650, %v5723
    %v6652 = vmax.f32 %v6651, %v5739
    %v6653 = vmax.f32 %v6652, %v5755
    %v6654 = vmax.f32 %v6653, %v5771
    %v6655 = vmax.f32 %v6654, %v5787
    %v6656 = vmax.f32 %v6655, %v5803
    %v6657 = vmax.f32 %v6656, %v5819
    %v6658 = vmax.f32 %v6657, %v5835
    %v6659 = vmax.f32 %v6658, %v5851
    %v6660 = vmax.f32 %v6659, %v5867
    %v6661 = vmax.f32 %v6660, %v5883
    %v6662 = vmax.f32 %v6661, %v5899
    %v6663 = vmax.f32 %v6662, %v5915
    %v6664 = vmax.f32 %v6663, %v5931
    %v6665 = vmax.f32 %v6664, %v5947
    %v6666 = vmax.f32 %v6665, %v5963
    %v6667 = vmax.f32 %v6666, %v5979
    %v6668 = vmax.f32 %v6667, %v5995
    %v6669 = vmax.f32 %v6668, %v6011
    %v6670 = vmax.f32 %v6669, %v6027
    %v6671 = vmax.f32 %v6670, %v6043
    %v6672 = vmax.f32 %v6671, %v6059
    %v6673 = vmax.f32 %v6672, %v6075
    %v6674 = vrot.slane %v6673, 4
    %v6675 = vmax.f32 %v6673, %v6674
    %v6676 = vrot.slane %v6675, 2
    %v6677 = vmax.f32 %v6675, %v6676
    %v6678 = vrot.slane %v6677, 1
    %v6679 = vmax.f32 %v6677, %v6678
    %v6680 = vmax.f32 %v5580, %v5596
    %v6681 = vmax.f32 %v6680, %v5612
    %v6682 = vmax.f32 %v6681, %v5628
    %v6683 = vmax.f32 %v6682, %v5644
    %v6684 = vmax.f32 %v6683, %v5660
    %v6685 = vmax.f32 %v6684, %v5676
    %v6686 = vmax.f32 %v6685, %v5692
    %v6687 = vmax.f32 %v6686, %v5708
    %v6688 = vmax.f32 %v6687, %v5724
    %v6689 = vmax.f32 %v6688, %v5740
    %v6690 = vmax.f32 %v6689, %v5756
    %v6691 = vmax.f32 %v6690, %v5772
    %v6692 = vmax.f32 %v6691, %v5788
    %v6693 = vmax.f32 %v6692, %v5804
    %v6694 = vmax.f32 %v6693, %v5820
    %v6695 = vmax.f32 %v6694, %v5836
    %v6696 = vmax.f32 %v6695, %v5852
    %v6697 = vmax.f32 %v6696, %v5868
    %v6698 = vmax.f32 %v6697, %v5884
    %v6699 = vmax.f32 %v6698, %v5900
    %v6700 = vmax.f32 %v6699, %v5916
    %v6701 = vmax.f32 %v6700, %v5932
    %v6702 = vmax.f32 %v6701, %v5948
    %v6703 = vmax.f32 %v6702, %v5964
    %v6704 = vmax.f32 %v6703, %v5980
    %v6705 = vmax.f32 %v6704, %v5996
    %v6706 = vmax.f32 %v6705, %v6012
    %v6707 = vmax.f32 %v6706, %v6028
    %v6708 = vmax.f32 %v6707, %v6044
    %v6709 = vmax.f32 %v6708, %v6060
    %v6710 = vmax.f32 %v6709, %v6076
    %v6711 = vrot.slane %v6710, 4
    %v6712 = vmax.f32 %v6710, %v6711
    %v6713 = vrot.slane %v6712, 2
    %v6714 = vmax.f32 %v6712, %v6713
    %v6715 = vrot.slane %v6714, 1
    %v6716 = vmax.f32 %v6714, %v6715
    %v6717 = vmax.f32 %v5581, %v5597
    %v6718 = vmax.f32 %v6717, %v5613
    %v6719 = vmax.f32 %v6718, %v5629
    %v6720 = vmax.f32 %v6719, %v5645
    %v6721 = vmax.f32 %v6720, %v5661
    %v6722 = vmax.f32 %v6721, %v5677
    %v6723 = vmax.f32 %v6722, %v5693
    %v6724 = vmax.f32 %v6723, %v5709
    %v6725 = vmax.f32 %v6724, %v5725
    %v6726 = vmax.f32 %v6725, %v5741
    %v6727 = vmax.f32 %v6726, %v5757
    %v6728 = vmax.f32 %v6727, %v5773
    %v6729 = vmax.f32 %v6728, %v5789
    %v6730 = vmax.f32 %v6729, %v5805
    %v6731 = vmax.f32 %v6730, %v5821
    %v6732 = vmax.f32 %v6731, %v5837
    %v6733 = vmax.f32 %v6732, %v5853
    %v6734 = vmax.f32 %v6733, %v5869
    %v6735 = vmax.f32 %v6734, %v5885
    %v6736 = vmax.f32 %v6735, %v5901
    %v6737 = vmax.f32 %v6736, %v5917
    %v6738 = vmax.f32 %v6737, %v5933
    %v6739 = vmax.f32 %v6738, %v5949
    %v6740 = vmax.f32 %v6739, %v5965
    %v6741 = vmax.f32 %v6740, %v5981
    %v6742 = vmax.f32 %v6741, %v5997
    %v6743 = vmax.f32 %v6742, %v6013
    %v6744 = vmax.f32 %v6743, %v6029
    %v6745 = vmax.f32 %v6744, %v6045
    %v6746 = vmax.f32 %v6745, %v6061
    %v6747 = vmax.f32 %v6746, %v6077
    %v6748 = vrot.slane %v6747, 4
    %v6749 = vmax.f32 %v6747, %v6748
    %v6750 = vrot.slane %v6749, 2
    %v6751 = vmax.f32 %v6749, %v6750
    %v6752 = vrot.slane %v6751, 1
    %v6753 = vmax.f32 %v6751, %v6752
    %v6754 = vmax.f32 %v5582, %v5598
    %v6755 = vmax.f32 %v6754, %v5614
    %v6756 = vmax.f32 %v6755, %v5630
    %v6757 = vmax.f32 %v6756, %v5646
    %v6758 = vmax.f32 %v6757, %v5662
    %v6759 = vmax.f32 %v6758, %v5678
    %v6760 = vmax.f32 %v6759, %v5694
    %v6761 = vmax.f32 %v6760, %v5710
    %v6762 = vmax.f32 %v6761, %v5726
    %v6763 = vmax.f32 %v6762, %v5742
    %v6764 = vmax.f32 %v6763, %v5758
    %v6765 = vmax.f32 %v6764, %v5774
    %v6766 = vmax.f32 %v6765, %v5790
    %v6767 = vmax.f32 %v6766, %v5806
    %v6768 = vmax.f32 %v6767, %v5822
    %v6769 = vmax.f32 %v6768, %v5838
    %v6770 = vmax.f32 %v6769, %v5854
    %v6771 = vmax.f32 %v6770, %v5870
    %v6772 = vmax.f32 %v6771, %v5886
    %v6773 = vmax.f32 %v6772, %v5902
    %v6774 = vmax.f32 %v6773, %v5918
    %v6775 = vmax.f32 %v6774, %v5934
    %v6776 = vmax.f32 %v6775, %v5950
    %v6777 = vmax.f32 %v6776, %v5966
    %v6778 = vmax.f32 %v6777, %v5982
    %v6779 = vmax.f32 %v6778, %v5998
    %v6780 = vmax.f32 %v6779, %v6014
    %v6781 = vmax.f32 %v6780, %v6030
    %v6782 = vmax.f32 %v6781, %v6046
    %v6783 = vmax.f32 %v6782, %v6062
    %v6784 = vmax.f32 %v6783, %v6078
    %v6785 = vrot.slane %v6784, 4
    %v6786 = vmax.f32 %v6784, %v6785
    %v6787 = vrot.slane %v6786, 2
    %v6788 = vmax.f32 %v6786, %v6787
    %v6789 = vrot.slane %v6788, 1
    %v6790 = vmax.f32 %v6788, %v6789
    %v6791 = vmax.f32 %v5583, %v5599
    %v6792 = vmax.f32 %v6791, %v5615
    %v6793 = vmax.f32 %v6792, %v5631
    %v6794 = vmax.f32 %v6793, %v5647
    %v6795 = vmax.f32 %v6794, %v5663
    %v6796 = vmax.f32 %v6795, %v5679
    %v6797 = vmax.f32 %v6796, %v5695
    %v6798 = vmax.f32 %v6797, %v5711
    %v6799 = vmax.f32 %v6798, %v5727
    %v6800 = vmax.f32 %v6799, %v5743
    %v6801 = vmax.f32 %v6800, %v5759
    %v6802 = vmax.f32 %v6801, %v5775
    %v6803 = vmax.f32 %v6802, %v5791
    %v6804 = vmax.f32 %v6803, %v5807
    %v6805 = vmax.f32 %v6804, %v5823
    %v6806 = vmax.f32 %v6805, %v5839
    %v6807 = vmax.f32 %v6806, %v5855
    %v6808 = vmax.f32 %v6807, %v5871
    %v6809 = vmax.f32 %v6808, %v5887
    %v6810 = vmax.f32 %v6809, %v5903
    %v6811 = vmax.f32 %v6810, %v5919
    %v6812 = vmax.f32 %v6811, %v5935
    %v6813 = vmax.f32 %v6812, %v5951
    %v6814 = vmax.f32 %v6813, %v5967
    %v6815 = vmax.f32 %v6814, %v5983
    %v6816 = vmax.f32 %v6815, %v5999
    %v6817 = vmax.f32 %v6816, %v6015
    %v6818 = vmax.f32 %v6817, %v6031
    %v6819 = vmax.f32 %v6818, %v6047
    %v6820 = vmax.f32 %v6819, %v6063
    %v6821 = vmax.f32 %v6820, %v6079
    %v6822 = vrot.slane %v6821, 4
    %v6823 = vmax.f32 %v6821, %v6822
    %v6824 = vrot.slane %v6823, 2
    %v6825 = vmax.f32 %v6823, %v6824
    %v6826 = vrot.slane %v6825, 1
    %v6827 = vmax.f32 %v6825, %v6826
    %v6828 = vmax.f32 %v5584, %v5600
    %v6829 = vmax.f32 %v6828, %v5616
    %v6830 = vmax.f32 %v6829, %v5632
    %v6831 = vmax.f32 %v6830, %v5648
    %v6832 = vmax.f32 %v6831, %v5664
    %v6833 = vmax.f32 %v6832, %v5680
    %v6834 = vmax.f32 %v6833, %v5696
    %v6835 = vmax.f32 %v6834, %v5712
    %v6836 = vmax.f32 %v6835, %v5728
    %v6837 = vmax.f32 %v6836, %v5744
    %v6838 = vmax.f32 %v6837, %v5760
    %v6839 = vmax.f32 %v6838, %v5776
    %v6840 = vmax.f32 %v6839, %v5792
    %v6841 = vmax.f32 %v6840, %v5808
    %v6842 = vmax.f32 %v6841, %v5824
    %v6843 = vmax.f32 %v6842, %v5840
    %v6844 = vmax.f32 %v6843, %v5856
    %v6845 = vmax.f32 %v6844, %v5872
    %v6846 = vmax.f32 %v6845, %v5888
    %v6847 = vmax.f32 %v6846, %v5904
    %v6848 = vmax.f32 %v6847, %v5920
    %v6849 = vmax.f32 %v6848, %v5936
    %v6850 = vmax.f32 %v6849, %v5952
    %v6851 = vmax.f32 %v6850, %v5968
    %v6852 = vmax.f32 %v6851, %v5984
    %v6853 = vmax.f32 %v6852, %v6000
    %v6854 = vmax.f32 %v6853, %v6016
    %v6855 = vmax.f32 %v6854, %v6032
    %v6856 = vmax.f32 %v6855, %v6048
    %v6857 = vmax.f32 %v6856, %v6064
    %v6858 = vmax.f32 %v6857, %v6080
    %v6859 = vrot.slane %v6858, 4
    %v6860 = vmax.f32 %v6858, %v6859
    %v6861 = vrot.slane %v6860, 2
    %v6862 = vmax.f32 %v6860, %v6861
    %v6863 = vrot.slane %v6862, 1
    %v6864 = vmax.f32 %v6862, %v6863
    %v6865 = vmax.f32 %v5585, %v5601
    %v6866 = vmax.f32 %v6865, %v5617
    %v6867 = vmax.f32 %v6866, %v5633
    %v6868 = vmax.f32 %v6867, %v5649
    %v6869 = vmax.f32 %v6868, %v5665
    %v6870 = vmax.f32 %v6869, %v5681
    %v6871 = vmax.f32 %v6870, %v5697
    %v6872 = vmax.f32 %v6871, %v5713
    %v6873 = vmax.f32 %v6872, %v5729
    %v6874 = vmax.f32 %v6873, %v5745
    %v6875 = vmax.f32 %v6874, %v5761
    %v6876 = vmax.f32 %v6875, %v5777
    %v6877 = vmax.f32 %v6876, %v5793
    %v6878 = vmax.f32 %v6877, %v5809
    %v6879 = vmax.f32 %v6878, %v5825
    %v6880 = vmax.f32 %v6879, %v5841
    %v6881 = vmax.f32 %v6880, %v5857
    %v6882 = vmax.f32 %v6881, %v5873
    %v6883 = vmax.f32 %v6882, %v5889
    %v6884 = vmax.f32 %v6883, %v5905
    %v6885 = vmax.f32 %v6884, %v5921
    %v6886 = vmax.f32 %v6885, %v5937
    %v6887 = vmax.f32 %v6886, %v5953
    %v6888 = vmax.f32 %v6887, %v5969
    %v6889 = vmax.f32 %v6888, %v5985
    %v6890 = vmax.f32 %v6889, %v6001
    %v6891 = vmax.f32 %v6890, %v6017
    %v6892 = vmax.f32 %v6891, %v6033
    %v6893 = vmax.f32 %v6892, %v6049
    %v6894 = vmax.f32 %v6893, %v6065
    %v6895 = vmax.f32 %v6894, %v6081
    %v6896 = vrot.slane %v6895, 4
    %v6897 = vmax.f32 %v6895, %v6896
    %v6898 = vrot.slane %v6897, 2
    %v6899 = vmax.f32 %v6897, %v6898
    %v6900 = vrot.slane %v6899, 1
    %v6901 = vmax.f32 %v6899, %v6900
    %v6902 = vmax.f32 %v5586, %v5602
    %v6903 = vmax.f32 %v6902, %v5618
    %v6904 = vmax.f32 %v6903, %v5634
    %v6905 = vmax.f32 %v6904, %v5650
    %v6906 = vmax.f32 %v6905, %v5666
    %v6907 = vmax.f32 %v6906, %v5682
    %v6908 = vmax.f32 %v6907, %v5698
    %v6909 = vmax.f32 %v6908, %v5714
    %v6910 = vmax.f32 %v6909, %v5730
    %v6911 = vmax.f32 %v6910, %v5746
    %v6912 = vmax.f32 %v6911, %v5762
    %v6913 = vmax.f32 %v6912, %v5778
    %v6914 = vmax.f32 %v6913, %v5794
    %v6915 = vmax.f32 %v6914, %v5810
    %v6916 = vmax.f32 %v6915, %v5826
    %v6917 = vmax.f32 %v6916, %v5842
    %v6918 = vmax.f32 %v6917, %v5858
    %v6919 = vmax.f32 %v6918, %v5874
    %v6920 = vmax.f32 %v6919, %v5890
    %v6921 = vmax.f32 %v6920, %v5906
    %v6922 = vmax.f32 %v6921, %v5922
    %v6923 = vmax.f32 %v6922, %v5938
    %v6924 = vmax.f32 %v6923, %v5954
    %v6925 = vmax.f32 %v6924, %v5970
    %v6926 = vmax.f32 %v6925, %v5986
    %v6927 = vmax.f32 %v6926, %v6002
    %v6928 = vmax.f32 %v6927, %v6018
    %v6929 = vmax.f32 %v6928, %v6034
    %v6930 = vmax.f32 %v6929, %v6050
    %v6931 = vmax.f32 %v6930, %v6066
    %v6932 = vmax.f32 %v6931, %v6082
    %v6933 = vrot.slane %v6932, 4
    %v6934 = vmax.f32 %v6932, %v6933
    %v6935 = vrot.slane %v6934, 2
    %v6936 = vmax.f32 %v6934, %v6935
    %v6937 = vrot.slane %v6936, 1
    %v6938 = vmax.f32 %v6936, %v6937
    %v6939 = vmax.f32 %v5587, %v5603
    %v6940 = vmax.f32 %v6939, %v5619
    %v6941 = vmax.f32 %v6940, %v5635
    %v6942 = vmax.f32 %v6941, %v5651
    %v6943 = vmax.f32 %v6942, %v5667
    %v6944 = vmax.f32 %v6943, %v5683
    %v6945 = vmax.f32 %v6944, %v5699
    %v6946 = vmax.f32 %v6945, %v5715
    %v6947 = vmax.f32 %v6946, %v5731
    %v6948 = vmax.f32 %v6947, %v5747
    %v6949 = vmax.f32 %v6948, %v5763
    %v6950 = vmax.f32 %v6949, %v5779
    %v6951 = vmax.f32 %v6950, %v5795
    %v6952 = vmax.f32 %v6951, %v5811
    %v6953 = vmax.f32 %v6952, %v5827
    %v6954 = vmax.f32 %v6953, %v5843
    %v6955 = vmax.f32 %v6954, %v5859
    %v6956 = vmax.f32 %v6955, %v5875
    %v6957 = vmax.f32 %v6956, %v5891
    %v6958 = vmax.f32 %v6957, %v5907
    %v6959 = vmax.f32 %v6958, %v5923
    %v6960 = vmax.f32 %v6959, %v5939
    %v6961 = vmax.f32 %v6960, %v5955
    %v6962 = vmax.f32 %v6961, %v5971
    %v6963 = vmax.f32 %v6962, %v5987
    %v6964 = vmax.f32 %v6963, %v6003
    %v6965 = vmax.f32 %v6964, %v6019
    %v6966 = vmax.f32 %v6965, %v6035
    %v6967 = vmax.f32 %v6966, %v6051
    %v6968 = vmax.f32 %v6967, %v6067
    %v6969 = vmax.f32 %v6968, %v6083
    %v6970 = vrot.slane %v6969, 4
    %v6971 = vmax.f32 %v6969, %v6970
    %v6972 = vrot.slane %v6971, 2
    %v6973 = vmax.f32 %v6971, %v6972
    %v6974 = vrot.slane %v6973, 1
    %v6975 = vmax.f32 %v6973, %v6974
    %v6976 = vmax.f32 %v5588, %v5604
    %v6977 = vmax.f32 %v6976, %v5620
    %v6978 = vmax.f32 %v6977, %v5636
    %v6979 = vmax.f32 %v6978, %v5652
    %v6980 = vmax.f32 %v6979, %v5668
    %v6981 = vmax.f32 %v6980, %v5684
    %v6982 = vmax.f32 %v6981, %v5700
    %v6983 = vmax.f32 %v6982, %v5716
    %v6984 = vmax.f32 %v6983, %v5732
    %v6985 = vmax.f32 %v6984, %v5748
    %v6986 = vmax.f32 %v6985, %v5764
    %v6987 = vmax.f32 %v6986, %v5780
    %v6988 = vmax.f32 %v6987, %v5796
    %v6989 = vmax.f32 %v6988, %v5812
    %v6990 = vmax.f32 %v6989, %v5828
    %v6991 = vmax.f32 %v6990, %v5844
    %v6992 = vmax.f32 %v6991, %v5860
    %v6993 = vmax.f32 %v6992, %v5876
    %v6994 = vmax.f32 %v6993, %v5892
    %v6995 = vmax.f32 %v6994, %v5908
    %v6996 = vmax.f32 %v6995, %v5924
    %v6997 = vmax.f32 %v6996, %v5940
    %v6998 = vmax.f32 %v6997, %v5956
    %v6999 = vmax.f32 %v6998, %v5972
    %v7000 = vmax.f32 %v6999, %v5988
    %v7001 = vmax.f32 %v7000, %v6004
    %v7002 = vmax.f32 %v7001, %v6020
    %v7003 = vmax.f32 %v7002, %v6036
    %v7004 = vmax.f32 %v7003, %v6052
    %v7005 = vmax.f32 %v7004, %v6068
    %v7006 = vmax.f32 %v7005, %v6084
    %v7007 = vrot.slane %v7006, 4
    %v7008 = vmax.f32 %v7006, %v7007
    %v7009 = vrot.slane %v7008, 2
    %v7010 = vmax.f32 %v7008, %v7009
    %v7011 = vrot.slane %v7010, 1
    %v7012 = vmax.f32 %v7010, %v7011
    %v7013 = vmax.f32 %v5589, %v5605
    %v7014 = vmax.f32 %v7013, %v5621
    %v7015 = vmax.f32 %v7014, %v5637
    %v7016 = vmax.f32 %v7015, %v5653
    %v7017 = vmax.f32 %v7016, %v5669
    %v7018 = vmax.f32 %v7017, %v5685
    %v7019 = vmax.f32 %v7018, %v5701
    %v7020 = vmax.f32 %v7019, %v5717
    %v7021 = vmax.f32 %v7020, %v5733
    %v7022 = vmax.f32 %v7021, %v5749
    %v7023 = vmax.f32 %v7022, %v5765
    %v7024 = vmax.f32 %v7023, %v5781
    %v7025 = vmax.f32 %v7024, %v5797
    %v7026 = vmax.f32 %v7025, %v5813
    %v7027 = vmax.f32 %v7026, %v5829
    %v7028 = vmax.f32 %v7027, %v5845
    %v7029 = vmax.f32 %v7028, %v5861
    %v7030 = vmax.f32 %v7029, %v5877
    %v7031 = vmax.f32 %v7030, %v5893
    %v7032 = vmax.f32 %v7031, %v5909
    %v7033 = vmax.f32 %v7032, %v5925
    %v7034 = vmax.f32 %v7033, %v5941
    %v7035 = vmax.f32 %v7034, %v5957
    %v7036 = vmax.f32 %v7035, %v5973
    %v7037 = vmax.f32 %v7036, %v5989
    %v7038 = vmax.f32 %v7037, %v6005
    %v7039 = vmax.f32 %v7038, %v6021
    %v7040 = vmax.f32 %v7039, %v6037
    %v7041 = vmax.f32 %v7040, %v6053
    %v7042 = vmax.f32 %v7041, %v6069
    %v7043 = vmax.f32 %v7042, %v6085
    %v7044 = vrot.slane %v7043, 4
    %v7045 = vmax.f32 %v7043, %v7044
    %v7046 = vrot.slane %v7045, 2
    %v7047 = vmax.f32 %v7045, %v7046
    %v7048 = vrot.slane %v7047, 1
    %v7049 = vmax.f32 %v7047, %v7048
    %v7050 = vmax.f32 %v5590, %v5606
    %v7051 = vmax.f32 %v7050, %v5622
    %v7052 = vmax.f32 %v7051, %v5638
    %v7053 = vmax.f32 %v7052, %v5654
    %v7054 = vmax.f32 %v7053, %v5670
    %v7055 = vmax.f32 %v7054, %v5686
    %v7056 = vmax.f32 %v7055, %v5702
    %v7057 = vmax.f32 %v7056, %v5718
    %v7058 = vmax.f32 %v7057, %v5734
    %v7059 = vmax.f32 %v7058, %v5750
    %v7060 = vmax.f32 %v7059, %v5766
    %v7061 = vmax.f32 %v7060, %v5782
    %v7062 = vmax.f32 %v7061, %v5798
    %v7063 = vmax.f32 %v7062, %v5814
    %v7064 = vmax.f32 %v7063, %v5830
    %v7065 = vmax.f32 %v7064, %v5846
    %v7066 = vmax.f32 %v7065, %v5862
    %v7067 = vmax.f32 %v7066, %v5878
    %v7068 = vmax.f32 %v7067, %v5894
    %v7069 = vmax.f32 %v7068, %v5910
    %v7070 = vmax.f32 %v7069, %v5926
    %v7071 = vmax.f32 %v7070, %v5942
    %v7072 = vmax.f32 %v7071, %v5958
    %v7073 = vmax.f32 %v7072, %v5974
    %v7074 = vmax.f32 %v7073, %v5990
    %v7075 = vmax.f32 %v7074, %v6006
    %v7076 = vmax.f32 %v7075, %v6022
    %v7077 = vmax.f32 %v7076, %v6038
    %v7078 = vmax.f32 %v7077, %v6054
    %v7079 = vmax.f32 %v7078, %v6070
    %v7080 = vmax.f32 %v7079, %v6086
    %v7081 = vrot.slane %v7080, 4
    %v7082 = vmax.f32 %v7080, %v7081
    %v7083 = vrot.slane %v7082, 2
    %v7084 = vmax.f32 %v7082, %v7083
    %v7085 = vrot.slane %v7084, 1
    %v7086 = vmax.f32 %v7084, %v7085
    %v7087 = vmax.f32 %v5591, %v5607
    %v7088 = vmax.f32 %v7087, %v5623
    %v7089 = vmax.f32 %v7088, %v5639
    %v7090 = vmax.f32 %v7089, %v5655
    %v7091 = vmax.f32 %v7090, %v5671
    %v7092 = vmax.f32 %v7091, %v5687
    %v7093 = vmax.f32 %v7092, %v5703
    %v7094 = vmax.f32 %v7093, %v5719
    %v7095 = vmax.f32 %v7094, %v5735
    %v7096 = vmax.f32 %v7095, %v5751
    %v7097 = vmax.f32 %v7096, %v5767
    %v7098 = vmax.f32 %v7097, %v5783
    %v7099 = vmax.f32 %v7098, %v5799
    %v7100 = vmax.f32 %v7099, %v5815
    %v7101 = vmax.f32 %v7100, %v5831
    %v7102 = vmax.f32 %v7101, %v5847
    %v7103 = vmax.f32 %v7102, %v5863
    %v7104 = vmax.f32 %v7103, %v5879
    %v7105 = vmax.f32 %v7104, %v5895
    %v7106 = vmax.f32 %v7105, %v5911
    %v7107 = vmax.f32 %v7106, %v5927
    %v7108 = vmax.f32 %v7107, %v5943
    %v7109 = vmax.f32 %v7108, %v5959
    %v7110 = vmax.f32 %v7109, %v5975
    %v7111 = vmax.f32 %v7110, %v5991
    %v7112 = vmax.f32 %v7111, %v6007
    %v7113 = vmax.f32 %v7112, %v6023
    %v7114 = vmax.f32 %v7113, %v6039
    %v7115 = vmax.f32 %v7114, %v6055
    %v7116 = vmax.f32 %v7115, %v6071
    %v7117 = vmax.f32 %v7116, %v6087
    %v7118 = vrot.slane %v7117, 4
    %v7119 = vmax.f32 %v7117, %v7118
    %v7120 = vrot.slane %v7119, 2
    %v7121 = vmax.f32 %v7119, %v7120
    %v7122 = vrot.slane %v7121, 1
    %v7123 = vmax.f32 %v7121, %v7122
    %v7124 = vmax.f32 %v5592, %v5608
    %v7125 = vmax.f32 %v7124, %v5624
    %v7126 = vmax.f32 %v7125, %v5640
    %v7127 = vmax.f32 %v7126, %v5656
    %v7128 = vmax.f32 %v7127, %v5672
    %v7129 = vmax.f32 %v7128, %v5688
    %v7130 = vmax.f32 %v7129, %v5704
    %v7131 = vmax.f32 %v7130, %v5720
    %v7132 = vmax.f32 %v7131, %v5736
    %v7133 = vmax.f32 %v7132, %v5752
    %v7134 = vmax.f32 %v7133, %v5768
    %v7135 = vmax.f32 %v7134, %v5784
    %v7136 = vmax.f32 %v7135, %v5800
    %v7137 = vmax.f32 %v7136, %v5816
    %v7138 = vmax.f32 %v7137, %v5832
    %v7139 = vmax.f32 %v7138, %v5848
    %v7140 = vmax.f32 %v7139, %v5864
    %v7141 = vmax.f32 %v7140, %v5880
    %v7142 = vmax.f32 %v7141, %v5896
    %v7143 = vmax.f32 %v7142, %v5912
    %v7144 = vmax.f32 %v7143, %v5928
    %v7145 = vmax.f32 %v7144, %v5944
    %v7146 = vmax.f32 %v7145, %v5960
    %v7147 = vmax.f32 %v7146, %v5976
    %v7148 = vmax.f32 %v7147, %v5992
    %v7149 = vmax.f32 %v7148, %v6008
    %v7150 = vmax.f32 %v7149, %v6024
    %v7151 = vmax.f32 %v7150, %v6040
    %v7152 = vmax.f32 %v7151, %v6056
    %v7153 = vmax.f32 %v7152, %v6072
    %v7154 = vmax.f32 %v7153, %v6088
    %v7155 = vrot.slane %v7154, 4
    %v7156 = vmax.f32 %v7154, %v7155
    %v7157 = vrot.slane %v7156, 2
    %v7158 = vmax.f32 %v7156, %v7157
    %v7159 = vrot.slane %v7158, 1
    %v7160 = vmax.f32 %v7158, %v7159
    %v7161 = vmax.f32 %v5593, %v5609
    %v7162 = vmax.f32 %v7161, %v5625
    %v7163 = vmax.f32 %v7162, %v5641
    %v7164 = vmax.f32 %v7163, %v5657
    %v7165 = vmax.f32 %v7164, %v5673
    %v7166 = vmax.f32 %v7165, %v5689
    %v7167 = vmax.f32 %v7166, %v5705
    %v7168 = vmax.f32 %v7167, %v5721
    %v7169 = vmax.f32 %v7168, %v5737
    %v7170 = vmax.f32 %v7169, %v5753
    %v7171 = vmax.f32 %v7170, %v5769
    %v7172 = vmax.f32 %v7171, %v5785
    %v7173 = vmax.f32 %v7172, %v5801
    %v7174 = vmax.f32 %v7173, %v5817
    %v7175 = vmax.f32 %v7174, %v5833
    %v7176 = vmax.f32 %v7175, %v5849
    %v7177 = vmax.f32 %v7176, %v5865
    %v7178 = vmax.f32 %v7177, %v5881
    %v7179 = vmax.f32 %v7178, %v5897
    %v7180 = vmax.f32 %v7179, %v5913
    %v7181 = vmax.f32 %v7180, %v5929
    %v7182 = vmax.f32 %v7181, %v5945
    %v7183 = vmax.f32 %v7182, %v5961
    %v7184 = vmax.f32 %v7183, %v5977
    %v7185 = vmax.f32 %v7184, %v5993
    %v7186 = vmax.f32 %v7185, %v6009
    %v7187 = vmax.f32 %v7186, %v6025
    %v7188 = vmax.f32 %v7187, %v6041
    %v7189 = vmax.f32 %v7188, %v6057
    %v7190 = vmax.f32 %v7189, %v6073
    %v7191 = vmax.f32 %v7190, %v6089
    %v7192 = vrot.slane %v7191, 4
    %v7193 = vmax.f32 %v7191, %v7192
    %v7194 = vrot.slane %v7193, 2
    %v7195 = vmax.f32 %v7193, %v7194
    %v7196 = vrot.slane %v7195, 1
    %v7197 = vmax.f32 %v7195, %v7196
    %v7198 = vmax.f32 %v6090, %v6106
    %v7199 = vmax.f32 %v7198, %v6122
    %v7200 = vmax.f32 %v7199, %v6138
    %v7201 = vmax.f32 %v7200, %v6154
    %v7202 = vmax.f32 %v7201, %v6170
    %v7203 = vmax.f32 %v7202, %v6186
    %v7204 = vmax.f32 %v7203, %v6202
    %v7205 = vmax.f32 %v7204, %v6218
    %v7206 = vmax.f32 %v7205, %v6234
    %v7207 = vmax.f32 %v7206, %v6250
    %v7208 = vmax.f32 %v7207, %v6266
    %v7209 = vmax.f32 %v7208, %v6282
    %v7210 = vmax.f32 %v7209, %v6298
    %v7211 = vmax.f32 %v7210, %v6314
    %v7212 = vmax.f32 %v7211, %v6330
    %v7213 = vmax.f32 %v7212, %v6346
    %v7214 = vmax.f32 %v7213, %v6362
    %v7215 = vmax.f32 %v7214, %v6378
    %v7216 = vmax.f32 %v7215, %v6394
    %v7217 = vmax.f32 %v7216, %v6410
    %v7218 = vmax.f32 %v7217, %v6426
    %v7219 = vmax.f32 %v7218, %v6442
    %v7220 = vmax.f32 %v7219, %v6458
    %v7221 = vmax.f32 %v7220, %v6474
    %v7222 = vmax.f32 %v7221, %v6490
    %v7223 = vmax.f32 %v7222, %v6506
    %v7224 = vmax.f32 %v7223, %v6522
    %v7225 = vmax.f32 %v7224, %v6538
    %v7226 = vmax.f32 %v7225, %v6554
    %v7227 = vmax.f32 %v7226, %v6570
    %v7228 = vmax.f32 %v7227, %v6586
    %v7229 = vrot.slane %v7228, 4
    %v7230 = vmax.f32 %v7228, %v7229
    %v7231 = vrot.slane %v7230, 2
    %v7232 = vmax.f32 %v7230, %v7231
    %v7233 = vrot.slane %v7232, 1
    %v7234 = vmax.f32 %v7232, %v7233
    %v7235 = vmax.f32 %v6091, %v6107
    %v7236 = vmax.f32 %v7235, %v6123
    %v7237 = vmax.f32 %v7236, %v6139
    %v7238 = vmax.f32 %v7237, %v6155
    %v7239 = vmax.f32 %v7238, %v6171
    %v7240 = vmax.f32 %v7239, %v6187
    %v7241 = vmax.f32 %v7240, %v6203
    %v7242 = vmax.f32 %v7241, %v6219
    %v7243 = vmax.f32 %v7242, %v6235
    %v7244 = vmax.f32 %v7243, %v6251
    %v7245 = vmax.f32 %v7244, %v6267
    %v7246 = vmax.f32 %v7245, %v6283
    %v7247 = vmax.f32 %v7246, %v6299
    %v7248 = vmax.f32 %v7247, %v6315
    %v7249 = vmax.f32 %v7248, %v6331
    %v7250 = vmax.f32 %v7249, %v6347
    %v7251 = vmax.f32 %v7250, %v6363
    %v7252 = vmax.f32 %v7251, %v6379
    %v7253 = vmax.f32 %v7252, %v6395
    %v7254 = vmax.f32 %v7253, %v6411
    %v7255 = vmax.f32 %v7254, %v6427
    %v7256 = vmax.f32 %v7255, %v6443
    %v7257 = vmax.f32 %v7256, %v6459
    %v7258 = vmax.f32 %v7257, %v6475
    %v7259 = vmax.f32 %v7258, %v6491
    %v7260 = vmax.f32 %v7259, %v6507
    %v7261 = vmax.f32 %v7260, %v6523
    %v7262 = vmax.f32 %v7261, %v6539
    %v7263 = vmax.f32 %v7262, %v6555
    %v7264 = vmax.f32 %v7263, %v6571
    %v7265 = vmax.f32 %v7264, %v6587
    %v7266 = vrot.slane %v7265, 4
    %v7267 = vmax.f32 %v7265, %v7266
    %v7268 = vrot.slane %v7267, 2
    %v7269 = vmax.f32 %v7267, %v7268
    %v7270 = vrot.slane %v7269, 1
    %v7271 = vmax.f32 %v7269, %v7270
    %v7272 = vmax.f32 %v6092, %v6108
    %v7273 = vmax.f32 %v7272, %v6124
    %v7274 = vmax.f32 %v7273, %v6140
    %v7275 = vmax.f32 %v7274, %v6156
    %v7276 = vmax.f32 %v7275, %v6172
    %v7277 = vmax.f32 %v7276, %v6188
    %v7278 = vmax.f32 %v7277, %v6204
    %v7279 = vmax.f32 %v7278, %v6220
    %v7280 = vmax.f32 %v7279, %v6236
    %v7281 = vmax.f32 %v7280, %v6252
    %v7282 = vmax.f32 %v7281, %v6268
    %v7283 = vmax.f32 %v7282, %v6284
    %v7284 = vmax.f32 %v7283, %v6300
    %v7285 = vmax.f32 %v7284, %v6316
    %v7286 = vmax.f32 %v7285, %v6332
    %v7287 = vmax.f32 %v7286, %v6348
    %v7288 = vmax.f32 %v7287, %v6364
    %v7289 = vmax.f32 %v7288, %v6380
    %v7290 = vmax.f32 %v7289, %v6396
    %v7291 = vmax.f32 %v7290, %v6412
    %v7292 = vmax.f32 %v7291, %v6428
    %v7293 = vmax.f32 %v7292, %v6444
    %v7294 = vmax.f32 %v7293, %v6460
    %v7295 = vmax.f32 %v7294, %v6476
    %v7296 = vmax.f32 %v7295, %v6492
    %v7297 = vmax.f32 %v7296, %v6508
    %v7298 = vmax.f32 %v7297, %v6524
    %v7299 = vmax.f32 %v7298, %v6540
    %v7300 = vmax.f32 %v7299, %v6556
    %v7301 = vmax.f32 %v7300, %v6572
    %v7302 = vmax.f32 %v7301, %v6588
    %v7303 = vrot.slane %v7302, 4
    %v7304 = vmax.f32 %v7302, %v7303
    %v7305 = vrot.slane %v7304, 2
    %v7306 = vmax.f32 %v7304, %v7305
    %v7307 = vrot.slane %v7306, 1
    %v7308 = vmax.f32 %v7306, %v7307
    %v7309 = vmax.f32 %v6093, %v6109
    %v7310 = vmax.f32 %v7309, %v6125
    %v7311 = vmax.f32 %v7310, %v6141
    %v7312 = vmax.f32 %v7311, %v6157
    %v7313 = vmax.f32 %v7312, %v6173
    %v7314 = vmax.f32 %v7313, %v6189
    %v7315 = vmax.f32 %v7314, %v6205
    %v7316 = vmax.f32 %v7315, %v6221
    %v7317 = vmax.f32 %v7316, %v6237
    %v7318 = vmax.f32 %v7317, %v6253
    %v7319 = vmax.f32 %v7318, %v6269
    %v7320 = vmax.f32 %v7319, %v6285
    %v7321 = vmax.f32 %v7320, %v6301
    %v7322 = vmax.f32 %v7321, %v6317
    %v7323 = vmax.f32 %v7322, %v6333
    %v7324 = vmax.f32 %v7323, %v6349
    %v7325 = vmax.f32 %v7324, %v6365
    %v7326 = vmax.f32 %v7325, %v6381
    %v7327 = vmax.f32 %v7326, %v6397
    %v7328 = vmax.f32 %v7327, %v6413
    %v7329 = vmax.f32 %v7328, %v6429
    %v7330 = vmax.f32 %v7329, %v6445
    %v7331 = vmax.f32 %v7330, %v6461
    %v7332 = vmax.f32 %v7331, %v6477
    %v7333 = vmax.f32 %v7332, %v6493
    %v7334 = vmax.f32 %v7333, %v6509
    %v7335 = vmax.f32 %v7334, %v6525
    %v7336 = vmax.f32 %v7335, %v6541
    %v7337 = vmax.f32 %v7336, %v6557
    %v7338 = vmax.f32 %v7337, %v6573
    %v7339 = vmax.f32 %v7338, %v6589
    %v7340 = vrot.slane %v7339, 4
    %v7341 = vmax.f32 %v7339, %v7340
    %v7342 = vrot.slane %v7341, 2
    %v7343 = vmax.f32 %v7341, %v7342
    %v7344 = vrot.slane %v7343, 1
    %v7345 = vmax.f32 %v7343, %v7344
    %v7346 = vmax.f32 %v6094, %v6110
    %v7347 = vmax.f32 %v7346, %v6126
    %v7348 = vmax.f32 %v7347, %v6142
    %v7349 = vmax.f32 %v7348, %v6158
    %v7350 = vmax.f32 %v7349, %v6174
    %v7351 = vmax.f32 %v7350, %v6190
    %v7352 = vmax.f32 %v7351, %v6206
    %v7353 = vmax.f32 %v7352, %v6222
    %v7354 = vmax.f32 %v7353, %v6238
    %v7355 = vmax.f32 %v7354, %v6254
    %v7356 = vmax.f32 %v7355, %v6270
    %v7357 = vmax.f32 %v7356, %v6286
    %v7358 = vmax.f32 %v7357, %v6302
    %v7359 = vmax.f32 %v7358, %v6318
    %v7360 = vmax.f32 %v7359, %v6334
    %v7361 = vmax.f32 %v7360, %v6350
    %v7362 = vmax.f32 %v7361, %v6366
    %v7363 = vmax.f32 %v7362, %v6382
    %v7364 = vmax.f32 %v7363, %v6398
    %v7365 = vmax.f32 %v7364, %v6414
    %v7366 = vmax.f32 %v7365, %v6430
    %v7367 = vmax.f32 %v7366, %v6446
    %v7368 = vmax.f32 %v7367, %v6462
    %v7369 = vmax.f32 %v7368, %v6478
    %v7370 = vmax.f32 %v7369, %v6494
    %v7371 = vmax.f32 %v7370, %v6510
    %v7372 = vmax.f32 %v7371, %v6526
    %v7373 = vmax.f32 %v7372, %v6542
    %v7374 = vmax.f32 %v7373, %v6558
    %v7375 = vmax.f32 %v7374, %v6574
    %v7376 = vmax.f32 %v7375, %v6590
    %v7377 = vrot.slane %v7376, 4
    %v7378 = vmax.f32 %v7376, %v7377
    %v7379 = vrot.slane %v7378, 2
    %v7380 = vmax.f32 %v7378, %v7379
    %v7381 = vrot.slane %v7380, 1
    %v7382 = vmax.f32 %v7380, %v7381
    %v7383 = vmax.f32 %v6095, %v6111
    %v7384 = vmax.f32 %v7383, %v6127
    %v7385 = vmax.f32 %v7384, %v6143
    %v7386 = vmax.f32 %v7385, %v6159
    %v7387 = vmax.f32 %v7386, %v6175
    %v7388 = vmax.f32 %v7387, %v6191
    %v7389 = vmax.f32 %v7388, %v6207
    %v7390 = vmax.f32 %v7389, %v6223
    %v7391 = vmax.f32 %v7390, %v6239
    %v7392 = vmax.f32 %v7391, %v6255
    %v7393 = vmax.f32 %v7392, %v6271
    %v7394 = vmax.f32 %v7393, %v6287
    %v7395 = vmax.f32 %v7394, %v6303
    %v7396 = vmax.f32 %v7395, %v6319
    %v7397 = vmax.f32 %v7396, %v6335
    %v7398 = vmax.f32 %v7397, %v6351
    %v7399 = vmax.f32 %v7398, %v6367
    %v7400 = vmax.f32 %v7399, %v6383
    %v7401 = vmax.f32 %v7400, %v6399
    %v7402 = vmax.f32 %v7401, %v6415
    %v7403 = vmax.f32 %v7402, %v6431
    %v7404 = vmax.f32 %v7403, %v6447
    %v7405 = vmax.f32 %v7404, %v6463
    %v7406 = vmax.f32 %v7405, %v6479
    %v7407 = vmax.f32 %v7406, %v6495
    %v7408 = vmax.f32 %v7407, %v6511
    %v7409 = vmax.f32 %v7408, %v6527
    %v7410 = vmax.f32 %v7409, %v6543
    %v7411 = vmax.f32 %v7410, %v6559
    %v7412 = vmax.f32 %v7411, %v6575
    %v7413 = vmax.f32 %v7412, %v6591
    %v7414 = vrot.slane %v7413, 4
    %v7415 = vmax.f32 %v7413, %v7414
    %v7416 = vrot.slane %v7415, 2
    %v7417 = vmax.f32 %v7415, %v7416
    %v7418 = vrot.slane %v7417, 1
    %v7419 = vmax.f32 %v7417, %v7418
    %v7420 = vmax.f32 %v6096, %v6112
    %v7421 = vmax.f32 %v7420, %v6128
    %v7422 = vmax.f32 %v7421, %v6144
    %v7423 = vmax.f32 %v7422, %v6160
    %v7424 = vmax.f32 %v7423, %v6176
    %v7425 = vmax.f32 %v7424, %v6192
    %v7426 = vmax.f32 %v7425, %v6208
    %v7427 = vmax.f32 %v7426, %v6224
    %v7428 = vmax.f32 %v7427, %v6240
    %v7429 = vmax.f32 %v7428, %v6256
    %v7430 = vmax.f32 %v7429, %v6272
    %v7431 = vmax.f32 %v7430, %v6288
    %v7432 = vmax.f32 %v7431, %v6304
    %v7433 = vmax.f32 %v7432, %v6320
    %v7434 = vmax.f32 %v7433, %v6336
    %v7435 = vmax.f32 %v7434, %v6352
    %v7436 = vmax.f32 %v7435, %v6368
    %v7437 = vmax.f32 %v7436, %v6384
    %v7438 = vmax.f32 %v7437, %v6400
    %v7439 = vmax.f32 %v7438, %v6416
    %v7440 = vmax.f32 %v7439, %v6432
    %v7441 = vmax.f32 %v7440, %v6448
    %v7442 = vmax.f32 %v7441, %v6464
    %v7443 = vmax.f32 %v7442, %v6480
    %v7444 = vmax.f32 %v7443, %v6496
    %v7445 = vmax.f32 %v7444, %v6512
    %v7446 = vmax.f32 %v7445, %v6528
    %v7447 = vmax.f32 %v7446, %v6544
    %v7448 = vmax.f32 %v7447, %v6560
    %v7449 = vmax.f32 %v7448, %v6576
    %v7450 = vmax.f32 %v7449, %v6592
    %v7451 = vrot.slane %v7450, 4
    %v7452 = vmax.f32 %v7450, %v7451
    %v7453 = vrot.slane %v7452, 2
    %v7454 = vmax.f32 %v7452, %v7453
    %v7455 = vrot.slane %v7454, 1
    %v7456 = vmax.f32 %v7454, %v7455
    %v7457 = vmax.f32 %v6097, %v6113
    %v7458 = vmax.f32 %v7457, %v6129
    %v7459 = vmax.f32 %v7458, %v6145
    %v7460 = vmax.f32 %v7459, %v6161
    %v7461 = vmax.f32 %v7460, %v6177
    %v7462 = vmax.f32 %v7461, %v6193
    %v7463 = vmax.f32 %v7462, %v6209
    %v7464 = vmax.f32 %v7463, %v6225
    %v7465 = vmax.f32 %v7464, %v6241
    %v7466 = vmax.f32 %v7465, %v6257
    %v7467 = vmax.f32 %v7466, %v6273
    %v7468 = vmax.f32 %v7467, %v6289
    %v7469 = vmax.f32 %v7468, %v6305
    %v7470 = vmax.f32 %v7469, %v6321
    %v7471 = vmax.f32 %v7470, %v6337
    %v7472 = vmax.f32 %v7471, %v6353
    %v7473 = vmax.f32 %v7472, %v6369
    %v7474 = vmax.f32 %v7473, %v6385
    %v7475 = vmax.f32 %v7474, %v6401
    %v7476 = vmax.f32 %v7475, %v6417
    %v7477 = vmax.f32 %v7476, %v6433
    %v7478 = vmax.f32 %v7477, %v6449
    %v7479 = vmax.f32 %v7478, %v6465
    %v7480 = vmax.f32 %v7479, %v6481
    %v7481 = vmax.f32 %v7480, %v6497
    %v7482 = vmax.f32 %v7481, %v6513
    %v7483 = vmax.f32 %v7482, %v6529
    %v7484 = vmax.f32 %v7483, %v6545
    %v7485 = vmax.f32 %v7484, %v6561
    %v7486 = vmax.f32 %v7485, %v6577
    %v7487 = vmax.f32 %v7486, %v6593
    %v7488 = vrot.slane %v7487, 4
    %v7489 = vmax.f32 %v7487, %v7488
    %v7490 = vrot.slane %v7489, 2
    %v7491 = vmax.f32 %v7489, %v7490
    %v7492 = vrot.slane %v7491, 1
    %v7493 = vmax.f32 %v7491, %v7492
    %v7494 = vmax.f32 %v6098, %v6114
    %v7495 = vmax.f32 %v7494, %v6130
    %v7496 = vmax.f32 %v7495, %v6146
    %v7497 = vmax.f32 %v7496, %v6162
    %v7498 = vmax.f32 %v7497, %v6178
    %v7499 = vmax.f32 %v7498, %v6194
    %v7500 = vmax.f32 %v7499, %v6210
    %v7501 = vmax.f32 %v7500, %v6226
    %v7502 = vmax.f32 %v7501, %v6242
    %v7503 = vmax.f32 %v7502, %v6258
    %v7504 = vmax.f32 %v7503, %v6274
    %v7505 = vmax.f32 %v7504, %v6290
    %v7506 = vmax.f32 %v7505, %v6306
    %v7507 = vmax.f32 %v7506, %v6322
    %v7508 = vmax.f32 %v7507, %v6338
    %v7509 = vmax.f32 %v7508, %v6354
    %v7510 = vmax.f32 %v7509, %v6370
    %v7511 = vmax.f32 %v7510, %v6386
    %v7512 = vmax.f32 %v7511, %v6402
    %v7513 = vmax.f32 %v7512, %v6418
    %v7514 = vmax.f32 %v7513, %v6434
    %v7515 = vmax.f32 %v7514, %v6450
    %v7516 = vmax.f32 %v7515, %v6466
    %v7517 = vmax.f32 %v7516, %v6482
    %v7518 = vmax.f32 %v7517, %v6498
    %v7519 = vmax.f32 %v7518, %v6514
    %v7520 = vmax.f32 %v7519, %v6530
    %v7521 = vmax.f32 %v7520, %v6546
    %v7522 = vmax.f32 %v7521, %v6562
    %v7523 = vmax.f32 %v7522, %v6578
    %v7524 = vmax.f32 %v7523, %v6594
    %v7525 = vrot.slane %v7524, 4
    %v7526 = vmax.f32 %v7524, %v7525
    %v7527 = vrot.slane %v7526, 2
    %v7528 = vmax.f32 %v7526, %v7527
    %v7529 = vrot.slane %v7528, 1
    %v7530 = vmax.f32 %v7528, %v7529
    %v7531 = vmax.f32 %v6099, %v6115
    %v7532 = vmax.f32 %v7531, %v6131
    %v7533 = vmax.f32 %v7532, %v6147
    %v7534 = vmax.f32 %v7533, %v6163
    %v7535 = vmax.f32 %v7534, %v6179
    %v7536 = vmax.f32 %v7535, %v6195
    %v7537 = vmax.f32 %v7536, %v6211
    %v7538 = vmax.f32 %v7537, %v6227
    %v7539 = vmax.f32 %v7538, %v6243
    %v7540 = vmax.f32 %v7539, %v6259
    %v7541 = vmax.f32 %v7540, %v6275
    %v7542 = vmax.f32 %v7541, %v6291
    %v7543 = vmax.f32 %v7542, %v6307
    %v7544 = vmax.f32 %v7543, %v6323
    %v7545 = vmax.f32 %v7544, %v6339
    %v7546 = vmax.f32 %v7545, %v6355
    %v7547 = vmax.f32 %v7546, %v6371
    %v7548 = vmax.f32 %v7547, %v6387
    %v7549 = vmax.f32 %v7548, %v6403
    %v7550 = vmax.f32 %v7549, %v6419
    %v7551 = vmax.f32 %v7550, %v6435
    %v7552 = vmax.f32 %v7551, %v6451
    %v7553 = vmax.f32 %v7552, %v6467
    %v7554 = vmax.f32 %v7553, %v6483
    %v7555 = vmax.f32 %v7554, %v6499
    %v7556 = vmax.f32 %v7555, %v6515
    %v7557 = vmax.f32 %v7556, %v6531
    %v7558 = vmax.f32 %v7557, %v6547
    %v7559 = vmax.f32 %v7558, %v6563
    %v7560 = vmax.f32 %v7559, %v6579
    %v7561 = vmax.f32 %v7560, %v6595
    %v7562 = vrot.slane %v7561, 4
    %v7563 = vmax.f32 %v7561, %v7562
    %v7564 = vrot.slane %v7563, 2
    %v7565 = vmax.f32 %v7563, %v7564
    %v7566 = vrot.slane %v7565, 1
    %v7567 = vmax.f32 %v7565, %v7566
    %v7568 = vmax.f32 %v6100, %v6116
    %v7569 = vmax.f32 %v7568, %v6132
    %v7570 = vmax.f32 %v7569, %v6148
    %v7571 = vmax.f32 %v7570, %v6164
    %v7572 = vmax.f32 %v7571, %v6180
    %v7573 = vmax.f32 %v7572, %v6196
    %v7574 = vmax.f32 %v7573, %v6212
    %v7575 = vmax.f32 %v7574, %v6228
    %v7576 = vmax.f32 %v7575, %v6244
    %v7577 = vmax.f32 %v7576, %v6260
    %v7578 = vmax.f32 %v7577, %v6276
    %v7579 = vmax.f32 %v7578, %v6292
    %v7580 = vmax.f32 %v7579, %v6308
    %v7581 = vmax.f32 %v7580, %v6324
    %v7582 = vmax.f32 %v7581, %v6340
    %v7583 = vmax.f32 %v7582, %v6356
    %v7584 = vmax.f32 %v7583, %v6372
    %v7585 = vmax.f32 %v7584, %v6388
    %v7586 = vmax.f32 %v7585, %v6404
    %v7587 = vmax.f32 %v7586, %v6420
    %v7588 = vmax.f32 %v7587, %v6436
    %v7589 = vmax.f32 %v7588, %v6452
    %v7590 = vmax.f32 %v7589, %v6468
    %v7591 = vmax.f32 %v7590, %v6484
    %v7592 = vmax.f32 %v7591, %v6500
    %v7593 = vmax.f32 %v7592, %v6516
    %v7594 = vmax.f32 %v7593, %v6532
    %v7595 = vmax.f32 %v7594, %v6548
    %v7596 = vmax.f32 %v7595, %v6564
    %v7597 = vmax.f32 %v7596, %v6580
    %v7598 = vmax.f32 %v7597, %v6596
    %v7599 = vrot.slane %v7598, 4
    %v7600 = vmax.f32 %v7598, %v7599
    %v7601 = vrot.slane %v7600, 2
    %v7602 = vmax.f32 %v7600, %v7601
    %v7603 = vrot.slane %v7602, 1
    %v7604 = vmax.f32 %v7602, %v7603
    %v7605 = vmax.f32 %v6101, %v6117
    %v7606 = vmax.f32 %v7605, %v6133
    %v7607 = vmax.f32 %v7606, %v6149
    %v7608 = vmax.f32 %v7607, %v6165
    %v7609 = vmax.f32 %v7608, %v6181
    %v7610 = vmax.f32 %v7609, %v6197
    %v7611 = vmax.f32 %v7610, %v6213
    %v7612 = vmax.f32 %v7611, %v6229
    %v7613 = vmax.f32 %v7612, %v6245
    %v7614 = vmax.f32 %v7613, %v6261
    %v7615 = vmax.f32 %v7614, %v6277
    %v7616 = vmax.f32 %v7615, %v6293
    %v7617 = vmax.f32 %v7616, %v6309
    %v7618 = vmax.f32 %v7617, %v6325
    %v7619 = vmax.f32 %v7618, %v6341
    %v7620 = vmax.f32 %v7619, %v6357
    %v7621 = vmax.f32 %v7620, %v6373
    %v7622 = vmax.f32 %v7621, %v6389
    %v7623 = vmax.f32 %v7622, %v6405
    %v7624 = vmax.f32 %v7623, %v6421
    %v7625 = vmax.f32 %v7624, %v6437
    %v7626 = vmax.f32 %v7625, %v6453
    %v7627 = vmax.f32 %v7626, %v6469
    %v7628 = vmax.f32 %v7627, %v6485
    %v7629 = vmax.f32 %v7628, %v6501
    %v7630 = vmax.f32 %v7629, %v6517
    %v7631 = vmax.f32 %v7630, %v6533
    %v7632 = vmax.f32 %v7631, %v6549
    %v7633 = vmax.f32 %v7632, %v6565
    %v7634 = vmax.f32 %v7633, %v6581
    %v7635 = vmax.f32 %v7634, %v6597
    %v7636 = vrot.slane %v7635, 4
    %v7637 = vmax.f32 %v7635, %v7636
    %v7638 = vrot.slane %v7637, 2
    %v7639 = vmax.f32 %v7637, %v7638
    %v7640 = vrot.slane %v7639, 1
    %v7641 = vmax.f32 %v7639, %v7640
    %v7642 = vmax.f32 %v6102, %v6118
    %v7643 = vmax.f32 %v7642, %v6134
    %v7644 = vmax.f32 %v7643, %v6150
    %v7645 = vmax.f32 %v7644, %v6166
    %v7646 = vmax.f32 %v7645, %v6182
    %v7647 = vmax.f32 %v7646, %v6198
    %v7648 = vmax.f32 %v7647, %v6214
    %v7649 = vmax.f32 %v7648, %v6230
    %v7650 = vmax.f32 %v7649, %v6246
    %v7651 = vmax.f32 %v7650, %v6262
    %v7652 = vmax.f32 %v7651, %v6278
    %v7653 = vmax.f32 %v7652, %v6294
    %v7654 = vmax.f32 %v7653, %v6310
    %v7655 = vmax.f32 %v7654, %v6326
    %v7656 = vmax.f32 %v7655, %v6342
    %v7657 = vmax.f32 %v7656, %v6358
    %v7658 = vmax.f32 %v7657, %v6374
    %v7659 = vmax.f32 %v7658, %v6390
    %v7660 = vmax.f32 %v7659, %v6406
    %v7661 = vmax.f32 %v7660, %v6422
    %v7662 = vmax.f32 %v7661, %v6438
    %v7663 = vmax.f32 %v7662, %v6454
    %v7664 = vmax.f32 %v7663, %v6470
    %v7665 = vmax.f32 %v7664, %v6486
    %v7666 = vmax.f32 %v7665, %v6502
    %v7667 = vmax.f32 %v7666, %v6518
    %v7668 = vmax.f32 %v7667, %v6534
    %v7669 = vmax.f32 %v7668, %v6550
    %v7670 = vmax.f32 %v7669, %v6566
    %v7671 = vmax.f32 %v7670, %v6582
    %v7672 = vmax.f32 %v7671, %v6598
    %v7673 = vrot.slane %v7672, 4
    %v7674 = vmax.f32 %v7672, %v7673
    %v7675 = vrot.slane %v7674, 2
    %v7676 = vmax.f32 %v7674, %v7675
    %v7677 = vrot.slane %v7676, 1
    %v7678 = vmax.f32 %v7676, %v7677
    %v7679 = vmax.f32 %v6103, %v6119
    %v7680 = vmax.f32 %v7679, %v6135
    %v7681 = vmax.f32 %v7680, %v6151
    %v7682 = vmax.f32 %v7681, %v6167
    %v7683 = vmax.f32 %v7682, %v6183
    %v7684 = vmax.f32 %v7683, %v6199
    %v7685 = vmax.f32 %v7684, %v6215
    %v7686 = vmax.f32 %v7685, %v6231
    %v7687 = vmax.f32 %v7686, %v6247
    %v7688 = vmax.f32 %v7687, %v6263
    %v7689 = vmax.f32 %v7688, %v6279
    %v7690 = vmax.f32 %v7689, %v6295
    %v7691 = vmax.f32 %v7690, %v6311
    %v7692 = vmax.f32 %v7691, %v6327
    %v7693 = vmax.f32 %v7692, %v6343
    %v7694 = vmax.f32 %v7693, %v6359
    %v7695 = vmax.f32 %v7694, %v6375
    %v7696 = vmax.f32 %v7695, %v6391
    %v7697 = vmax.f32 %v7696, %v6407
    %v7698 = vmax.f32 %v7697, %v6423
    %v7699 = vmax.f32 %v7698, %v6439
    %v7700 = vmax.f32 %v7699, %v6455
    %v7701 = vmax.f32 %v7700, %v6471
    %v7702 = vmax.f32 %v7701, %v6487
    %v7703 = vmax.f32 %v7702, %v6503
    %v7704 = vmax.f32 %v7703, %v6519
    %v7705 = vmax.f32 %v7704, %v6535
    %v7706 = vmax.f32 %v7705, %v6551
    %v7707 = vmax.f32 %v7706, %v6567
    %v7708 = vmax.f32 %v7707, %v6583
    %v7709 = vmax.f32 %v7708, %v6599
    %v7710 = vrot.slane %v7709, 4
    %v7711 = vmax.f32 %v7709, %v7710
    %v7712 = vrot.slane %v7711, 2
    %v7713 = vmax.f32 %v7711, %v7712
    %v7714 = vrot.slane %v7713, 1
    %v7715 = vmax.f32 %v7713, %v7714
    %v7716 = vmax.f32 %v6104, %v6120
    %v7717 = vmax.f32 %v7716, %v6136
    %v7718 = vmax.f32 %v7717, %v6152
    %v7719 = vmax.f32 %v7718, %v6168
    %v7720 = vmax.f32 %v7719, %v6184
    %v7721 = vmax.f32 %v7720, %v6200
    %v7722 = vmax.f32 %v7721, %v6216
    %v7723 = vmax.f32 %v7722, %v6232
    %v7724 = vmax.f32 %v7723, %v6248
    %v7725 = vmax.f32 %v7724, %v6264
    %v7726 = vmax.f32 %v7725, %v6280
    %v7727 = vmax.f32 %v7726, %v6296
    %v7728 = vmax.f32 %v7727, %v6312
    %v7729 = vmax.f32 %v7728, %v6328
    %v7730 = vmax.f32 %v7729, %v6344
    %v7731 = vmax.f32 %v7730, %v6360
    %v7732 = vmax.f32 %v7731, %v6376
    %v7733 = vmax.f32 %v7732, %v6392
    %v7734 = vmax.f32 %v7733, %v6408
    %v7735 = vmax.f32 %v7734, %v6424
    %v7736 = vmax.f32 %v7735, %v6440
    %v7737 = vmax.f32 %v7736, %v6456
    %v7738 = vmax.f32 %v7737, %v6472
    %v7739 = vmax.f32 %v7738, %v6488
    %v7740 = vmax.f32 %v7739, %v6504
    %v7741 = vmax.f32 %v7740, %v6520
    %v7742 = vmax.f32 %v7741, %v6536
    %v7743 = vmax.f32 %v7742, %v6552
    %v7744 = vmax.f32 %v7743, %v6568
    %v7745 = vmax.f32 %v7744, %v6584
    %v7746 = vmax.f32 %v7745, %v6600
    %v7747 = vrot.slane %v7746, 4
    %v7748 = vmax.f32 %v7746, %v7747
    %v7749 = vrot.slane %v7748, 2
    %v7750 = vmax.f32 %v7748, %v7749
    %v7751 = vrot.slane %v7750, 1
    %v7752 = vmax.f32 %v7750, %v7751
    %v7753 = vmax.f32 %v6105, %v6121
    %v7754 = vmax.f32 %v7753, %v6137
    %v7755 = vmax.f32 %v7754, %v6153
    %v7756 = vmax.f32 %v7755, %v6169
    %v7757 = vmax.f32 %v7756, %v6185
    %v7758 = vmax.f32 %v7757, %v6201
    %v7759 = vmax.f32 %v7758, %v6217
    %v7760 = vmax.f32 %v7759, %v6233
    %v7761 = vmax.f32 %v7760, %v6249
    %v7762 = vmax.f32 %v7761, %v6265
    %v7763 = vmax.f32 %v7762, %v6281
    %v7764 = vmax.f32 %v7763, %v6297
    %v7765 = vmax.f32 %v7764, %v6313
    %v7766 = vmax.f32 %v7765, %v6329
    %v7767 = vmax.f32 %v7766, %v6345
    %v7768 = vmax.f32 %v7767, %v6361
    %v7769 = vmax.f32 %v7768, %v6377
    %v7770 = vmax.f32 %v7769, %v6393
    %v7771 = vmax.f32 %v7770, %v6409
    %v7772 = vmax.f32 %v7771, %v6425
    %v7773 = vmax.f32 %v7772, %v6441
    %v7774 = vmax.f32 %v7773, %v6457
    %v7775 = vmax.f32 %v7774, %v6473
    %v7776 = vmax.f32 %v7775, %v6489
    %v7777 = vmax.f32 %v7776, %v6505
    %v7778 = vmax.f32 %v7777, %v6521
    %v7779 = vmax.f32 %v7778, %v6537
    %v7780 = vmax.f32 %v7779, %v6553
    %v7781 = vmax.f32 %v7780, %v6569
    %v7782 = vmax.f32 %v7781, %v6585
    %v7783 = vmax.f32 %v7782, %v6601
    %v7784 = vrot.slane %v7783, 4
    %v7785 = vmax.f32 %v7783, %v7784
    %v7786 = vrot.slane %v7785, 2
    %v7787 = vmax.f32 %v7785, %v7786
    %v7788 = vrot.slane %v7787, 1
    %v7789 = vmax.f32 %v7787, %v7788
    %v7822 = vcombine.low %v6642, %v6679
    %v7823 = vcombine.low %v6716, %v6753
    %v7825 = vunpack.c.l.s4 1983009808
    %v7826 = vunpack.c.0.s8 %v7825
    %v7827 = vlaneseq
    %v7828 = vshrl.u32 %v7827, 7
    %v7829 = vsub.s32 %v7826, %v7828
    %v7830 = vrot.slane %v7822, %v7829
    %v7832 = vunpack.c.l.s4 1983009808
    %v7833 = vunpack.c.0.s8 %v7832
    %v7834 = vlaneseq
    %v7835 = vshrl.u32 %v7834, 7
    %v7836 = vsub.s32 %v7833, %v7835
    %v7837 = vrot.slane %v7823, %v7836
    %v7838 = vcombine.low %v7830, %v7837
    %v7839 = vcombine.low %v6790, %v6827
    %v7840 = vcombine.low %v6864, %v6901
    %v7842 = vunpack.c.l.s4 1983009808
    %v7843 = vunpack.c.0.s8 %v7842
    %v7844 = vlaneseq
    %v7845 = vshrl.u32 %v7844, 7
    %v7846 = vsub.s32 %v7843, %v7845
    %v7847 = vrot.slane %v7839, %v7846
    %v7849 = vunpack.c.l.s4 1983009808
    %v7850 = vunpack.c.0.s8 %v7849
    %v7851 = vlaneseq
    %v7852 = vshrl.u32 %v7851, 7
    %v7853 = vsub.s32 %v7850, %v7852
    %v7854 = vrot.slane %v7840, %v7853
    %v7855 = vcombine.low %v7847, %v7854
    %v7856 = vcombine.low %v6938, %v6975
    %v7857 = vcombine.low %v7012, %v7049
    %v7859 = vunpack.c.l.s4 1983009808
    %v7860 = vunpack.c.0.s8 %v7859
    %v7861 = vlaneseq
    %v7862 = vshrl.u32 %v7861, 7
    %v7863 = vsub.s32 %v7860, %v7862
    %v7864 = vrot.slane %v7856, %v7863
    %v7866 = vunpack.c.l.s4 1983009808
    %v7867 = vunpack.c.0.s8 %v7866
    %v7868 = vlaneseq
    %v7869 = vshrl.u32 %v7868, 7
    %v7870 = vsub.s32 %v7867, %v7869
    %v7871 = vrot.slane %v7857, %v7870
    %v7872 = vcombine.low %v7864, %v7871
    %v7873 = vcombine.low %v7086, %v7123
    %v7874 = vcombine.low %v7160, %v7197
    %v7876 = vunpack.c.l.s4 1983009808
    %v7877 = vunpack.c.0.s8 %v7876
    %v7878 = vlaneseq
    %v7879 = vshrl.u32 %v7878, 7
    %v7880 = vsub.s32 %v7877, %v7879
    %v7881 = vrot.slane %v7873, %v7880
    %v7883 = vunpack.c.l.s4 1983009808
    %v7884 = vunpack.c.0.s8 %v7883
    %v7885 = vlaneseq
    %v7886 = vshrl.u32 %v7885, 7
    %v7887 = vsub.s32 %v7884, %v7886
    %v7888 = vrot.slane %v7874, %v7887
    %v7889 = vcombine.low %v7881, %v7888
    %v7890 = vcombine.low %v7234, %v7271
    %v7891 = vcombine.low %v7308, %v7345
    %v7893 = vunpack.c.l.s4 1983009808
    %v7894 = vunpack.c.0.s8 %v7893
    %v7895 = vlaneseq
    %v7896 = vshrl.u32 %v7895, 7
    %v7897 = vsub.s32 %v7894, %v7896
    %v7898 = vrot.slane %v7890, %v7897
    %v7900 = vunpack.c.l.s4 1983009808
    %v7901 = vunpack.c.0.s8 %v7900
    %v7902 = vlaneseq
    %v7903 = vshrl.u32 %v7902, 7
    %v7904 = vsub.s32 %v7901, %v7903
    %v7905 = vrot.slane %v7891, %v7904
    %v7906 = vcombine.low %v7898, %v7905
    %v7907 = vcombine.low %v7382, %v7419
    %v7908 = vcombine.low %v7456, %v7493
    %v7910 = vunpack.c.l.s4 1983009808
    %v7911 = vunpack.c.0.s8 %v7910
    %v7912 = vlaneseq
    %v7913 = vshrl.u32 %v7912, 7
    %v7914 = vsub.s32 %v7911, %v7913
    %v7915 = vrot.slane %v7907, %v7914
    %v7917 = vunpack.c.l.s4 1983009808
    %v7918 = vunpack.c.0.s8 %v7917
    %v7919 = vlaneseq
    %v7920 = vshrl.u32 %v7919, 7
    %v7921 = vsub.s32 %v7918, %v7920
    %v7922 = vrot.slane %v7908, %v7921
    %v7923 = vcombine.low %v7915, %v7922
    %v7924 = vcombine.low %v7530, %v7567
    %v7925 = vcombine.low %v7604, %v7641
    %v7927 = vunpack.c.l.s4 1983009808
    %v7928 = vunpack.c.0.s8 %v7927
    %v7929 = vlaneseq
    %v7930 = vshrl.u32 %v7929, 7
    %v7931 = vsub.s32 %v7928, %v7930
    %v7932 = vrot.slane %v7924, %v7931
    %v7934 = vunpack.c.l.s4 1983009808
    %v7935 = vunpack.c.0.s8 %v7934
    %v7936 = vlaneseq
    %v7937 = vshrl.u32 %v7936, 7
    %v7938 = vsub.s32 %v7935, %v7937
    %v7939 = vrot.slane %v7925, %v7938
    %v7940 = vcombine.low %v7932, %v7939
    %v7941 = vcombine.low %v7678, %v7715
    %v7942 = vcombine.low %v7752, %v7789
    %v7944 = vunpack.c.l.s4 1983009808
    %v7945 = vunpack.c.0.s8 %v7944
    %v7946 = vlaneseq
    %v7947 = vshrl.u32 %v7946, 7
    %v7948 = vsub.s32 %v7945, %v7947
    %v7949 = vrot.slane %v7941, %v7948
    %v7951 = vunpack.c.l.s4 1983009808
    %v7952 = vunpack.c.0.s8 %v7951
    %v7953 = vlaneseq
    %v7954 = vshrl.u32 %v7953, 7
    %v7955 = vsub.s32 %v7952, %v7954
    %v7956 = vrot.slane %v7942, %v7955
    %v7957 = vcombine.low %v7949, %v7956
    %vm7958 = vcmask 1044484
    %v7959 = vsel %vm7958, %v7838, %v7838
    %vm7960 = vcmask 1046534
    %v7961 = vsel %vm7960, %v7838, %v7959
    %v7962 = vrot.slane %v7906, 7
    %vm7963 = vcmask 1041409
    %v7964 = vsel %vm7963, %v7962, %v7961
    %vm7965 = vcmask 1043459
    %v7966 = vsel %vm7965, %v7962, %v7964
    %vm7967 = vcmask 1045509
    %v7968 = vsel %vm7967, %v7962, %v7966
    %vm7969 = vcmask 1047559
    %v7970 = vsel %vm7969, %v7962, %v7968
    %v7971 = vsel %vm7958, %v7855, %v7855
    %v7972 = vsel %vm7960, %v7855, %v7971
    %v7973 = vrot.slane %v7923, 7
    %v7974 = vsel %vm7963, %v7973, %v7972
    %v7975 = vsel %vm7965, %v7973, %v7974
    %v7976 = vsel %vm7967, %v7973, %v7975
    %v7977 = vsel %vm7969, %v7973, %v7976
    %v7978 = vsel %vm7958, %v7872, %v7872
    %v7979 = vsel %vm7960, %v7872, %v7978
    %v7980 = vrot.slane %v7940, 7
    %v7981 = vsel %vm7963, %v7980, %v7979
    %v7982 = vsel %vm7965, %v7980, %v7981
    %v7983 = vsel %vm7967, %v7980, %v7982
    %v7984 = vsel %vm7969, %v7980, %v7983
    %v7985 = vsel %vm7958, %v7889, %v7889
    %v7986 = vsel %vm7960, %v7889, %v7985
    %v7987 = vrot.slane %v7957, 7
    %v7988 = vsel %vm7963, %v7987, %v7986
    %v7989 = vsel %vm7965, %v7987, %v7988
    %v7990 = vsel %vm7967, %v7987, %v7989
    %v7991 = vsel %vm7969, %v7987, %v7990
    %v7996 = vmax.f32 %v6602, %v7970
    %v7997 = vmax.f32 %v6603, %v7977
    %v7998 = vmax.f32 %v6604, %v7984
    %v7999 = vmax.f32 %v6605, %v7991
    %8000 = vst [vmem:[#allocation2] sm:$0xff] %v7996
    %8001 = vst [vmem:[#allocation2 + $0x8] sm:$0xff] %v7997
    %8002 = vst [vmem:[#allocation2 + $0x10] sm:$0xff] %v7998
    %8003 = vst [vmem:[#allocation2 + $0x18] sm:$0xff] %v7999
    // Predicated region
    $region34: #{tpu_custom_call.1} parent=1 // pred_check
      %p8004 = pneg %p50
    $region35: #{tpu_custom_call.1} parent=1 // pred_check_branch
      %8006 = sbr.rel (%p8004) target = $region37
    $region36: #{tpu_custom_call.1} parent=1 // pred_region
      %v8007 = vld [vmem:[#allocation2] sm:$0xff]
      %v8008 = vld [vmem:[#allocation2 + $0x8] sm:$0xff]
      %v8009 = vld [vmem:[#allocation2 + $0x10] sm:$0xff]
      %v8010 = vld [vmem:[#allocation2 + $0x18] sm:$0xff]
      %v8011 = vld [vmem:[%s2] sm:$0xff]
      %v8012 = vld [vmem:[%s2 + $0x8] sm:$0xff]
      %v8015 = vlaneseq
      %v8016 = vshrl.u32 %v8015, 7
      %v8017 = vsub.s32 0, %v8016
      %v8018 = vrot.slane %v8011, %v8017
      %v8019 = vlaneseq
      %v8020 = vshrl.u32 %v8019, 7
      %v8021 = vsub.s32 1, %v8020
      %v8022 = vrot.slane %v8011, %v8021
      %v8023 = vlaneseq
      %v8024 = vshrl.u32 %v8023, 7
      %v8025 = vsub.s32 2, %v8024
      %v8026 = vrot.slane %v8011, %v8025
      %v8027 = vlaneseq
      %v8028 = vshrl.u32 %v8027, 7
      %v8029 = vsub.s32 3, %v8028
      %v8030 = vrot.slane %v8011, %v8029
      %v8031 = vlaneseq
      %v8032 = vshrl.u32 %v8031, 7
      %v8033 = vsub.s32 4, %v8032
      %v8034 = vrot.slane %v8011, %v8033
      %v8035 = vlaneseq
      %v8036 = vshrl.u32 %v8035, 7
      %v8037 = vsub.s32 5, %v8036
      %v8038 = vrot.slane %v8011, %v8037
      %v8039 = vlaneseq
      %v8040 = vshrl.u32 %v8039, 7
      %v8041 = vsub.s32 6, %v8040
      %v8042 = vrot.slane %v8011, %v8041
      %v8043 = vlaneseq
      %v8044 = vshrl.u32 %v8043, 7
      %v8045 = vsub.s32 7, %v8044
      %v8046 = vrot.slane %v8011, %v8045
      %v8047 = vlaneseq
      %v8048 = vshrl.u32 %v8047, 7
      %v8049 = vsub.s32 0, %v8048
      %v8050 = vrot.slane %v8012, %v8049
      %v8051 = vlaneseq
      %v8052 = vshrl.u32 %v8051, 7
      %v8053 = vsub.s32 1, %v8052
      %v8054 = vrot.slane %v8012, %v8053
      %v8055 = vlaneseq
      %v8056 = vshrl.u32 %v8055, 7
      %v8057 = vsub.s32 2, %v8056
      %v8058 = vrot.slane %v8012, %v8057
      %v8059 = vlaneseq
      %v8060 = vshrl.u32 %v8059, 7
      %v8061 = vsub.s32 3, %v8060
      %v8062 = vrot.slane %v8012, %v8061
      %v8063 = vlaneseq
      %v8064 = vshrl.u32 %v8063, 7
      %v8065 = vsub.s32 4, %v8064
      %v8066 = vrot.slane %v8012, %v8065
      %v8067 = vlaneseq
      %v8068 = vshrl.u32 %v8067, 7
      %v8069 = vsub.s32 5, %v8068
      %v8070 = vrot.slane %v8012, %v8069
      %v8071 = vlaneseq
      %v8072 = vshrl.u32 %v8071, 7
      %v8073 = vsub.s32 6, %v8072
      %v8074 = vrot.slane %v8012, %v8073
      %v8075 = vlaneseq
      %v8076 = vshrl.u32 %v8075, 7
      %v8077 = vsub.s32 7, %v8076
      %v8078 = vrot.slane %v8012, %v8077
      %v8079 = vcombine.low %v8018, %v8022
      %v8080 = vcombine.low %v8026, %v8030
      %v8082 = vunpack.c.l.s4 1983009808
      %v8083 = vunpack.c.0.s8 %v8082
      %v8084 = vlaneseq
      %v8085 = vshrl.u32 %v8084, 7
      %v8086 = vsub.s32 %v8083, %v8085
      %v8087 = vrot.slane %v8079, %v8086
      %v8089 = vunpack.c.l.s4 1983009808
      %v8090 = vunpack.c.0.s8 %v8089
      %v8091 = vlaneseq
      %v8092 = vshrl.u32 %v8091, 7
      %v8093 = vsub.s32 %v8090, %v8092
      %v8094 = vrot.slane %v8080, %v8093
      %v8095 = vcombine.low %v8087, %v8094
      %v8096 = vcombine.low %v8034, %v8038
      %v8097 = vcombine.low %v8042, %v8046
      %v8099 = vunpack.c.l.s4 1983009808
      %v8100 = vunpack.c.0.s8 %v8099
      %v8101 = vlaneseq
      %v8102 = vshrl.u32 %v8101, 7
      %v8103 = vsub.s32 %v8100, %v8102
      %v8104 = vrot.slane %v8096, %v8103
      %v8106 = vunpack.c.l.s4 1983009808
      %v8107 = vunpack.c.0.s8 %v8106
      %v8108 = vlaneseq
      %v8109 = vshrl.u32 %v8108, 7
      %v8110 = vsub.s32 %v8107, %v8109
      %v8111 = vrot.slane %v8097, %v8110
      %v8112 = vcombine.low %v8104, %v8111
      %v8113 = vcombine.low %v8050, %v8054
      %v8114 = vcombine.low %v8058, %v8062
      %v8116 = vunpack.c.l.s4 1983009808
      %v8117 = vunpack.c.0.s8 %v8116
      %v8118 = vlaneseq
      %v8119 = vshrl.u32 %v8118, 7
      %v8120 = vsub.s32 %v8117, %v8119
      %v8121 = vrot.slane %v8113, %v8120
      %v8123 = vunpack.c.l.s4 1983009808
      %v8124 = vunpack.c.0.s8 %v8123
      %v8125 = vlaneseq
      %v8126 = vshrl.u32 %v8125, 7
      %v8127 = vsub.s32 %v8124, %v8126
      %v8128 = vrot.slane %v8114, %v8127
      %v8129 = vcombine.low %v8121, %v8128
      %v8130 = vcombine.low %v8066, %v8070
      %v8131 = vcombine.low %v8074, %v8078
      %v8133 = vunpack.c.l.s4 1983009808
      %v8134 = vunpack.c.0.s8 %v8133
      %v8135 = vlaneseq
      %v8136 = vshrl.u32 %v8135, 7
      %v8137 = vsub.s32 %v8134, %v8136
      %v8138 = vrot.slane %v8130, %v8137
      %v8140 = vunpack.c.l.s4 1983009808
      %v8141 = vunpack.c.0.s8 %v8140
      %v8142 = vlaneseq
      %v8143 = vshrl.u32 %v8142, 7
      %v8144 = vsub.s32 %v8141, %v8143
      %v8145 = vrot.slane %v8131, %v8144
      %v8146 = vcombine.low %v8138, %v8145
      %v8151 = vadd.f32 %v8007, %v8095
      %v8152 = vadd.f32 %v8008, %v8112
      %v8153 = vadd.f32 %v8009, %v8129
      %v8154 = vadd.f32 %v8010, %v8146
      %v8155 = vmax.f32 %v8151, 0.0
      %v8156 = vmax.f32 %v8152, 0.0
      %v8157 = vmax.f32 %v8153, 0.0
      %v8158 = vmax.f32 %v8154, 0.0
      %v8159 = vld [vmem:[#allocation7] sm:$0xff]
      %v8160 = vld [vmem:[#allocation7 + $0x8] sm:$0xff]
      %v8161 = vld [vmem:[#allocation7 + $0x10] sm:$0xff]
      %v8162 = vld [vmem:[#allocation7 + $0x18] sm:$0xff]
      %v8163 = vld [vmem:[#allocation7 + $0x20] sm:$0xff]
      %v8164 = vld [vmem:[#allocation7 + $0x28] sm:$0xff]
      %v8165 = vld [vmem:[#allocation7 + $0x30] sm:$0xff]
      %v8166 = vld [vmem:[#allocation7 + $0x38] sm:$0xff]
      %v8167 = vld [vmem:[#allocation7 + $0x40] sm:$0xff]
      %v8168 = vld [vmem:[#allocation7 + $0x48] sm:$0xff]
      %v8169 = vld [vmem:[#allocation7 + $0x50] sm:$0xff]
      %v8170 = vld [vmem:[#allocation7 + $0x58] sm:$0xff]
      %v8171 = vld [vmem:[#allocation7 + $0x60] sm:$0xff]
      %v8172 = vld [vmem:[#allocation7 + $0x68] sm:$0xff]
      %v8173 = vld [vmem:[#allocation7 + $0x70] sm:$0xff]
      %v8174 = vld [vmem:[#allocation7 + $0x78] sm:$0xff]
      %v8175 = vld [vmem:[#allocation7 + $0x80] sm:$0xff]
      %v8176 = vld [vmem:[#allocation7 + $0x88] sm:$0xff]
      %v8177 = vld [vmem:[#allocation7 + $0x90] sm:$0xff]
      %v8178 = vld [vmem:[#allocation7 + $0x98] sm:$0xff]
      %v8179 = vld [vmem:[#allocation7 + $0xa0] sm:$0xff]
      %v8180 = vld [vmem:[#allocation7 + $0xa8] sm:$0xff]
      %v8181 = vld [vmem:[#allocation7 + $0xb0] sm:$0xff]
      %v8182 = vld [vmem:[#allocation7 + $0xb8] sm:$0xff]
      %v8183 = vld [vmem:[#allocation7 + $0xc0] sm:$0xff]
      %v8184 = vld [vmem:[#allocation7 + $0xc8] sm:$0xff]
      %v8185 = vld [vmem:[#allocation7 + $0xd0] sm:$0xff]
      %v8186 = vld [vmem:[#allocation7 + $0xd8] sm:$0xff]
      %v8187 = vld [vmem:[#allocation7 + $0xe0] sm:$0xff]
      %v8188 = vld [vmem:[#allocation7 + $0xe8] sm:$0xff]
      %v8189 = vld [vmem:[#allocation7 + $0xf0] sm:$0xff]
      %v8190 = vld [vmem:[#allocation7 + $0xf8] sm:$0xff]
      %v8191 = vld [vmem:[#allocation7 + $0x100] sm:$0xff]
      %v8192 = vld [vmem:[#allocation7 + $0x108] sm:$0xff]
      %v8193 = vld [vmem:[#allocation7 + $0x110] sm:$0xff]
      %v8194 = vld [vmem:[#allocation7 + $0x118] sm:$0xff]
      %v8195 = vld [vmem:[#allocation7 + $0x120] sm:$0xff]
      %v8196 = vld [vmem:[#allocation7 + $0x128] sm:$0xff]
      %v8197 = vld [vmem:[#allocation7 + $0x130] sm:$0xff]
      %v8198 = vld [vmem:[#allocation7 + $0x138] sm:$0xff]
      %v8199 = vld [vmem:[#allocation7 + $0x140] sm:$0xff]
      %v8200 = vld [vmem:[#allocation7 + $0x148] sm:$0xff]
      %v8201 = vld [vmem:[#allocation7 + $0x150] sm:$0xff]
      %v8202 = vld [vmem:[#allocation7 + $0x158] sm:$0xff]
      %v8203 = vld [vmem:[#allocation7 + $0x160] sm:$0xff]
      %v8204 = vld [vmem:[#allocation7 + $0x168] sm:$0xff]
      %v8205 = vld [vmem:[#allocation7 + $0x170] sm:$0xff]
      %v8206 = vld [vmem:[#allocation7 + $0x178] sm:$0xff]
      %v8207 = vld [vmem:[#allocation7 + $0x180] sm:$0xff]
      %v8208 = vld [vmem:[#allocation7 + $0x188] sm:$0xff]
      %v8209 = vld [vmem:[#allocation7 + $0x190] sm:$0xff]
      %v8210 = vld [vmem:[#allocation7 + $0x198] sm:$0xff]
      %v8211 = vld [vmem:[#allocation7 + $0x1a0] sm:$0xff]
      %v8212 = vld [vmem:[#allocation7 + $0x1a8] sm:$0xff]
      %v8213 = vld [vmem:[#allocation7 + $0x1b0] sm:$0xff]
      %v8214 = vld [vmem:[#allocation7 + $0x1b8] sm:$0xff]
      %v8215 = vld [vmem:[#allocation7 + $0x1c0] sm:$0xff]
      %v8216 = vld [vmem:[#allocation7 + $0x1c8] sm:$0xff]
      %v8217 = vld [vmem:[#allocation7 + $0x1d0] sm:$0xff]
      %v8218 = vld [vmem:[#allocation7 + $0x1d8] sm:$0xff]
      %v8219 = vld [vmem:[#allocation7 + $0x1e0] sm:$0xff]
      %v8220 = vld [vmem:[#allocation7 + $0x1e8] sm:$0xff]
      %v8221 = vld [vmem:[#allocation7 + $0x1f0] sm:$0xff]
      %v8222 = vld [vmem:[#allocation7 + $0x1f8] sm:$0xff]
      %v8223 = vld [vmem:[#allocation7 + $0x200] sm:$0xff]
      %v8224 = vld [vmem:[#allocation7 + $0x208] sm:$0xff]
      %v8225 = vld [vmem:[#allocation7 + $0x210] sm:$0xff]
      %v8226 = vld [vmem:[#allocation7 + $0x218] sm:$0xff]
      %v8227 = vld [vmem:[#allocation7 + $0x220] sm:$0xff]
      %v8228 = vld [vmem:[#allocation7 + $0x228] sm:$0xff]
      %v8229 = vld [vmem:[#allocation7 + $0x230] sm:$0xff]
      %v8230 = vld [vmem:[#allocation7 + $0x238] sm:$0xff]
      %v8231 = vld [vmem:[#allocation7 + $0x240] sm:$0xff]
      %v8232 = vld [vmem:[#allocation7 + $0x248] sm:$0xff]
      %v8233 = vld [vmem:[#allocation7 + $0x250] sm:$0xff]
      %v8234 = vld [vmem:[#allocation7 + $0x258] sm:$0xff]
      %v8235 = vld [vmem:[#allocation7 + $0x260] sm:$0xff]
      %v8236 = vld [vmem:[#allocation7 + $0x268] sm:$0xff]
      %v8237 = vld [vmem:[#allocation7 + $0x270] sm:$0xff]
      %v8238 = vld [vmem:[#allocation7 + $0x278] sm:$0xff]
      %v8239 = vld [vmem:[#allocation7 + $0x280] sm:$0xff]
      %v8240 = vld [vmem:[#allocation7 + $0x288] sm:$0xff]
      %v8241 = vld [vmem:[#allocation7 + $0x290] sm:$0xff]
      %v8242 = vld [vmem:[#allocation7 + $0x298] sm:$0xff]
      %v8243 = vld [vmem:[#allocation7 + $0x2a0] sm:$0xff]
      %v8244 = vld [vmem:[#allocation7 + $0x2a8] sm:$0xff]
      %v8245 = vld [vmem:[#allocation7 + $0x2b0] sm:$0xff]
      %v8246 = vld [vmem:[#allocation7 + $0x2b8] sm:$0xff]
      %v8247 = vld [vmem:[#allocation7 + $0x2c0] sm:$0xff]
      %v8248 = vld [vmem:[#allocation7 + $0x2c8] sm:$0xff]
      %v8249 = vld [vmem:[#allocation7 + $0x2d0] sm:$0xff]
      %v8250 = vld [vmem:[#allocation7 + $0x2d8] sm:$0xff]
      %v8251 = vld [vmem:[#allocation7 + $0x2e0] sm:$0xff]
      %v8252 = vld [vmem:[#allocation7 + $0x2e8] sm:$0xff]
      %v8253 = vld [vmem:[#allocation7 + $0x2f0] sm:$0xff]
      %v8254 = vld [vmem:[#allocation7 + $0x2f8] sm:$0xff]
      %v8255 = vld [vmem:[#allocation7 + $0x300] sm:$0xff]
      %v8256 = vld [vmem:[#allocation7 + $0x308] sm:$0xff]
      %v8257 = vld [vmem:[#allocation7 + $0x310] sm:$0xff]
      %v8258 = vld [vmem:[#allocation7 + $0x318] sm:$0xff]
      %v8259 = vld [vmem:[#allocation7 + $0x320] sm:$0xff]
      %v8260 = vld [vmem:[#allocation7 + $0x328] sm:$0xff]
      %v8261 = vld [vmem:[#allocation7 + $0x330] sm:$0xff]
      %v8262 = vld [vmem:[#allocation7 + $0x338] sm:$0xff]
      %v8263 = vld [vmem:[#allocation7 + $0x340] sm:$0xff]
      %v8264 = vld [vmem:[#allocation7 + $0x348] sm:$0xff]
      %v8265 = vld [vmem:[#allocation7 + $0x350] sm:$0xff]
      %v8266 = vld [vmem:[#allocation7 + $0x358] sm:$0xff]
      %v8267 = vld [vmem:[#allocation7 + $0x360] sm:$0xff]
      %v8268 = vld [vmem:[#allocation7 + $0x368] sm:$0xff]
      %v8269 = vld [vmem:[#allocation7 + $0x370] sm:$0xff]
      %v8270 = vld [vmem:[#allocation7 + $0x378] sm:$0xff]
      %v8271 = vld [vmem:[#allocation7 + $0x380] sm:$0xff]
      %v8272 = vld [vmem:[#allocation7 + $0x388] sm:$0xff]
      %v8273 = vld [vmem:[#allocation7 + $0x390] sm:$0xff]
      %v8274 = vld [vmem:[#allocation7 + $0x398] sm:$0xff]
      %v8275 = vld [vmem:[#allocation7 + $0x3a0] sm:$0xff]
      %v8276 = vld [vmem:[#allocation7 + $0x3a8] sm:$0xff]
      %v8277 = vld [vmem:[#allocation7 + $0x3b0] sm:$0xff]
      %v8278 = vld [vmem:[#allocation7 + $0x3b8] sm:$0xff]
      %v8279 = vld [vmem:[#allocation7 + $0x3c0] sm:$0xff]
      %v8280 = vld [vmem:[#allocation7 + $0x3c8] sm:$0xff]
      %v8281 = vld [vmem:[#allocation7 + $0x3d0] sm:$0xff]
      %v8282 = vld [vmem:[#allocation7 + $0x3d8] sm:$0xff]
      %v8283 = vld [vmem:[#allocation7 + $0x3e0] sm:$0xff]
      %v8284 = vld [vmem:[#allocation7 + $0x3e8] sm:$0xff]
      %v8285 = vld [vmem:[#allocation7 + $0x3f0] sm:$0xff]
      %v8286 = vld [vmem:[#allocation7 + $0x3f8] sm:$0xff]
      %v8287 = vld [vmem:[#allocation7 + $0x400] sm:$0xff]
      %v8288 = vld [vmem:[#allocation7 + $0x408] sm:$0xff]
      %v8289 = vld [vmem:[#allocation7 + $0x410] sm:$0xff]
      %v8290 = vld [vmem:[#allocation7 + $0x418] sm:$0xff]
      %v8291 = vld [vmem:[#allocation7 + $0x420] sm:$0xff]
      %v8292 = vld [vmem:[#allocation7 + $0x428] sm:$0xff]
      %v8293 = vld [vmem:[#allocation7 + $0x430] sm:$0xff]
      %v8294 = vld [vmem:[#allocation7 + $0x438] sm:$0xff]
      %v8295 = vld [vmem:[#allocation7 + $0x440] sm:$0xff]
      %v8296 = vld [vmem:[#allocation7 + $0x448] sm:$0xff]
      %v8297 = vld [vmem:[#allocation7 + $0x450] sm:$0xff]
      %v8298 = vld [vmem:[#allocation7 + $0x458] sm:$0xff]
      %v8299 = vld [vmem:[#allocation7 + $0x460] sm:$0xff]
      %v8300 = vld [vmem:[#allocation7 + $0x468] sm:$0xff]
      %v8301 = vld [vmem:[#allocation7 + $0x470] sm:$0xff]
      %v8302 = vld [vmem:[#allocation7 + $0x478] sm:$0xff]
      %v8303 = vld [vmem:[#allocation7 + $0x480] sm:$0xff]
      %v8304 = vld [vmem:[#allocation7 + $0x488] sm:$0xff]
      %v8305 = vld [vmem:[#allocation7 + $0x490] sm:$0xff]
      %v8306 = vld [vmem:[#allocation7 + $0x498] sm:$0xff]
      %v8307 = vld [vmem:[#allocation7 + $0x4a0] sm:$0xff]
      %v8308 = vld [vmem:[#allocation7 + $0x4a8] sm:$0xff]
      %v8309 = vld [vmem:[#allocation7 + $0x4b0] sm:$0xff]
      %v8310 = vld [vmem:[#allocation7 + $0x4b8] sm:$0xff]
      %v8311 = vld [vmem:[#allocation7 + $0x4c0] sm:$0xff]
      %v8312 = vld [vmem:[#allocation7 + $0x4c8] sm:$0xff]
      %v8313 = vld [vmem:[#allocation7 + $0x4d0] sm:$0xff]
      %v8314 = vld [vmem:[#allocation7 + $0x4d8] sm:$0xff]
      %v8315 = vld [vmem:[#allocation7 + $0x4e0] sm:$0xff]
      %v8316 = vld [vmem:[#allocation7 + $0x4e8] sm:$0xff]
      %v8317 = vld [vmem:[#allocation7 + $0x4f0] sm:$0xff]
      %v8318 = vld [vmem:[#allocation7 + $0x4f8] sm:$0xff]
      %v8319 = vld [vmem:[#allocation7 + $0x500] sm:$0xff]
      %v8320 = vld [vmem:[#allocation7 + $0x508] sm:$0xff]
      %v8321 = vld [vmem:[#allocation7 + $0x510] sm:$0xff]
      %v8322 = vld [vmem:[#allocation7 + $0x518] sm:$0xff]
      %v8323 = vld [vmem:[#allocation7 + $0x520] sm:$0xff]
      %v8324 = vld [vmem:[#allocation7 + $0x528] sm:$0xff]
      %v8325 = vld [vmem:[#allocation7 + $0x530] sm:$0xff]
      %v8326 = vld [vmem:[#allocation7 + $0x538] sm:$0xff]
      %v8327 = vld [vmem:[#allocation7 + $0x540] sm:$0xff]
      %v8328 = vld [vmem:[#allocation7 + $0x548] sm:$0xff]
      %v8329 = vld [vmem:[#allocation7 + $0x550] sm:$0xff]
      %v8330 = vld [vmem:[#allocation7 + $0x558] sm:$0xff]
      %v8331 = vld [vmem:[#allocation7 + $0x560] sm:$0xff]
      %v8332 = vld [vmem:[#allocation7 + $0x568] sm:$0xff]
      %v8333 = vld [vmem:[#allocation7 + $0x570] sm:$0xff]
      %v8334 = vld [vmem:[#allocation7 + $0x578] sm:$0xff]
      %v8335 = vld [vmem:[#allocation7 + $0x580] sm:$0xff]
      %v8336 = vld [vmem:[#allocation7 + $0x588] sm:$0xff]
      %v8337 = vld [vmem:[#allocation7 + $0x590] sm:$0xff]
      %v8338 = vld [vmem:[#allocation7 + $0x598] sm:$0xff]
      %v8339 = vld [vmem:[#allocation7 + $0x5a0] sm:$0xff]
      %v8340 = vld [vmem:[#allocation7 + $0x5a8] sm:$0xff]
      %v8341 = vld [vmem:[#allocation7 + $0x5b0] sm:$0xff]
      %v8342 = vld [vmem:[#allocation7 + $0x5b8] sm:$0xff]
      %v8343 = vld [vmem:[#allocation7 + $0x5c0] sm:$0xff]
      %v8344 = vld [vmem:[#allocation7 + $0x5c8] sm:$0xff]
      %v8345 = vld [vmem:[#allocation7 + $0x5d0] sm:$0xff]
      %v8346 = vld [vmem:[#allocation7 + $0x5d8] sm:$0xff]
      %v8347 = vld [vmem:[#allocation7 + $0x5e0] sm:$0xff]
      %v8348 = vld [vmem:[#allocation7 + $0x5e8] sm:$0xff]
      %v8349 = vld [vmem:[#allocation7 + $0x5f0] sm:$0xff]
      %v8350 = vld [vmem:[#allocation7 + $0x5f8] sm:$0xff]
      %v8351 = vld [vmem:[#allocation7 + $0x600] sm:$0xff]
      %v8352 = vld [vmem:[#allocation7 + $0x608] sm:$0xff]
      %v8353 = vld [vmem:[#allocation7 + $0x610] sm:$0xff]
      %v8354 = vld [vmem:[#allocation7 + $0x618] sm:$0xff]
      %v8355 = vld [vmem:[#allocation7 + $0x620] sm:$0xff]
      %v8356 = vld [vmem:[#allocation7 + $0x628] sm:$0xff]
      %v8357 = vld [vmem:[#allocation7 + $0x630] sm:$0xff]
      %v8358 = vld [vmem:[#allocation7 + $0x638] sm:$0xff]
      %v8359 = vld [vmem:[#allocation7 + $0x640] sm:$0xff]
      %v8360 = vld [vmem:[#allocation7 + $0x648] sm:$0xff]
      %v8361 = vld [vmem:[#allocation7 + $0x650] sm:$0xff]
      %v8362 = vld [vmem:[#allocation7 + $0x658] sm:$0xff]
      %v8363 = vld [vmem:[#allocation7 + $0x660] sm:$0xff]
      %v8364 = vld [vmem:[#allocation7 + $0x668] sm:$0xff]
      %v8365 = vld [vmem:[#allocation7 + $0x670] sm:$0xff]
      %v8366 = vld [vmem:[#allocation7 + $0x678] sm:$0xff]
      %v8367 = vld [vmem:[#allocation7 + $0x680] sm:$0xff]
      %v8368 = vld [vmem:[#allocation7 + $0x688] sm:$0xff]
      %v8369 = vld [vmem:[#allocation7 + $0x690] sm:$0xff]
      %v8370 = vld [vmem:[#allocation7 + $0x698] sm:$0xff]
      %v8371 = vld [vmem:[#allocation7 + $0x6a0] sm:$0xff]
      %v8372 = vld [vmem:[#allocation7 + $0x6a8] sm:$0xff]
      %v8373 = vld [vmem:[#allocation7 + $0x6b0] sm:$0xff]
      %v8374 = vld [vmem:[#allocation7 + $0x6b8] sm:$0xff]
      %v8375 = vld [vmem:[#allocation7 + $0x6c0] sm:$0xff]
      %v8376 = vld [vmem:[#allocation7 + $0x6c8] sm:$0xff]
      %v8377 = vld [vmem:[#allocation7 + $0x6d0] sm:$0xff]
      %v8378 = vld [vmem:[#allocation7 + $0x6d8] sm:$0xff]
      %v8379 = vld [vmem:[#allocation7 + $0x6e0] sm:$0xff]
      %v8380 = vld [vmem:[#allocation7 + $0x6e8] sm:$0xff]
      %v8381 = vld [vmem:[#allocation7 + $0x6f0] sm:$0xff]
      %v8382 = vld [vmem:[#allocation7 + $0x6f8] sm:$0xff]
      %v8383 = vld [vmem:[#allocation7 + $0x700] sm:$0xff]
      %v8384 = vld [vmem:[#allocation7 + $0x708] sm:$0xff]
      %v8385 = vld [vmem:[#allocation7 + $0x710] sm:$0xff]
      %v8386 = vld [vmem:[#allocation7 + $0x718] sm:$0xff]
      %v8387 = vld [vmem:[#allocation7 + $0x720] sm:$0xff]
      %v8388 = vld [vmem:[#allocation7 + $0x728] sm:$0xff]
      %v8389 = vld [vmem:[#allocation7 + $0x730] sm:$0xff]
      %v8390 = vld [vmem:[#allocation7 + $0x738] sm:$0xff]
      %v8391 = vld [vmem:[#allocation7 + $0x740] sm:$0xff]
      %v8392 = vld [vmem:[#allocation7 + $0x748] sm:$0xff]
      %v8393 = vld [vmem:[#allocation7 + $0x750] sm:$0xff]
      %v8394 = vld [vmem:[#allocation7 + $0x758] sm:$0xff]
      %v8395 = vld [vmem:[#allocation7 + $0x760] sm:$0xff]
      %v8396 = vld [vmem:[#allocation7 + $0x768] sm:$0xff]
      %v8397 = vld [vmem:[#allocation7 + $0x770] sm:$0xff]
      %v8398 = vld [vmem:[#allocation7 + $0x778] sm:$0xff]
      %v8399 = vld [vmem:[#allocation7 + $0x780] sm:$0xff]
      %v8400 = vld [vmem:[#allocation7 + $0x788] sm:$0xff]
      %v8401 = vld [vmem:[#allocation7 + $0x790] sm:$0xff]
      %v8402 = vld [vmem:[#allocation7 + $0x798] sm:$0xff]
      %v8403 = vld [vmem:[#allocation7 + $0x7a0] sm:$0xff]
      %v8404 = vld [vmem:[#allocation7 + $0x7a8] sm:$0xff]
      %v8405 = vld [vmem:[#allocation7 + $0x7b0] sm:$0xff]
      %v8406 = vld [vmem:[#allocation7 + $0x7b8] sm:$0xff]
      %v8407 = vld [vmem:[#allocation7 + $0x7c0] sm:$0xff]
      %v8408 = vld [vmem:[#allocation7 + $0x7c8] sm:$0xff]
      %v8409 = vld [vmem:[#allocation7 + $0x7d0] sm:$0xff]
      %v8410 = vld [vmem:[#allocation7 + $0x7d8] sm:$0xff]
      %v8411 = vld [vmem:[#allocation7 + $0x7e0] sm:$0xff]
      %v8412 = vld [vmem:[#allocation7 + $0x7e8] sm:$0xff]
      %v8413 = vld [vmem:[#allocation7 + $0x7f0] sm:$0xff]
      %v8414 = vld [vmem:[#allocation7 + $0x7f8] sm:$0xff]
      %v8415 = vld [vmem:[%s4] sm:$0x1]
      %v8417 = vlaneseq
      %v8418 = vshrl.u32 %v8417, 7
      %v8419 = vsub.s32 0, %v8418
      %v8420 = vrot.slane %v8415, %v8419
      %v8426 = vcombine.high %v8155, %v8155
      %v8428 = vunpack.c.l.s4 1983009808
      %v8429 = vunpack.c.0.s8 %v8428
      %v8430 = vlaneseq
      %v8431 = vshrl.u32 %v8430, 7
      %v8432 = vsub.s32 %v8429, %v8431
      %v8433 = vrot.slane %v8155, %v8432
      %v8435 = vunpack.c.l.s4 1983009808
      %v8436 = vunpack.c.0.s8 %v8435
      %v8437 = vlaneseq
      %v8438 = vshrl.u32 %v8437, 7
      %v8439 = vsub.s32 %v8436, %v8438
      %v8440 = vrot.slane %v8426, %v8439
      %v8441 = vcombine.high %v8433, %v8433
      %v8442 = vcombine.high %v8440, %v8440
      %v8443 = vcombine.high %v8156, %v8156
      %v8445 = vunpack.c.l.s4 1983009808
      %v8446 = vunpack.c.0.s8 %v8445
      %v8447 = vlaneseq
      %v8448 = vshrl.u32 %v8447, 7
      %v8449 = vsub.s32 %v8446, %v8448
      %v8450 = vrot.slane %v8156, %v8449
      %v8452 = vunpack.c.l.s4 1983009808
      %v8453 = vunpack.c.0.s8 %v8452
      %v8454 = vlaneseq
      %v8455 = vshrl.u32 %v8454, 7
      %v8456 = vsub.s32 %v8453, %v8455
      %v8457 = vrot.slane %v8443, %v8456
      %v8458 = vcombine.high %v8450, %v8450
      %v8459 = vcombine.high %v8457, %v8457
      %v8460 = vcombine.high %v8157, %v8157
      %v8462 = vunpack.c.l.s4 1983009808
      %v8463 = vunpack.c.0.s8 %v8462
      %v8464 = vlaneseq
      %v8465 = vshrl.u32 %v8464, 7
      %v8466 = vsub.s32 %v8463, %v8465
      %v8467 = vrot.slane %v8157, %v8466
      %v8469 = vunpack.c.l.s4 1983009808
      %v8470 = vunpack.c.0.s8 %v8469
      %v8471 = vlaneseq
      %v8472 = vshrl.u32 %v8471, 7
      %v8473 = vsub.s32 %v8470, %v8472
      %v8474 = vrot.slane %v8460, %v8473
      %v8475 = vcombine.high %v8467, %v8467
      %v8476 = vcombine.high %v8474, %v8474
      %v8477 = vcombine.high %v8158, %v8158
      %v8479 = vunpack.c.l.s4 1983009808
      %v8480 = vunpack.c.0.s8 %v8479
      %v8481 = vlaneseq
      %v8482 = vshrl.u32 %v8481, 7
      %v8483 = vsub.s32 %v8480, %v8482
      %v8484 = vrot.slane %v8158, %v8483
      %v8486 = vunpack.c.l.s4 1983009808
      %v8487 = vunpack.c.0.s8 %v8486
      %v8488 = vlaneseq
      %v8489 = vshrl.u32 %v8488, 7
      %v8490 = vsub.s32 %v8487, %v8489
      %v8491 = vrot.slane %v8477, %v8490
      %v8492 = vcombine.high %v8484, %v8484
      %v8493 = vcombine.high %v8491, %v8491
      %8510 = vmatprep.subr.mxu0 0.0
      %8511 = vmatpush1.msra.mxu0 %v8159
      %8512 = vmatprep.subr.mxu0 0.0
      %8513 = vmatpush1.msra.mxu0 %v8160
      %8514 = vmatprep.subr.mxu0 0.0
      %8515 = vmatpush1.msra.mxu0 %v8161
      %8516 = vmatprep.subr.mxu0 0.0
      %8517 = vmatpush1.msra.mxu0 %v8162
      %8518 = vmatprep.subr.mxu0 0.0
      %8519 = vmatpush1.msra.mxu0 %v8163
      %8520 = vmatprep.subr.mxu0 0.0
      %8521 = vmatpush1.msra.mxu0 %v8164
      %8522 = vmatprep.subr.mxu0 0.0
      %8523 = vmatpush1.msra.mxu0 %v8165
      %8524 = vmatprep.subr.mxu0 0.0
      %8525 = vmatpush1.msra.mxu0 %v8166
      %8526 = vmatprep.subr.mxu0 0.0
      %8527 = vmatpush1.msra.mxu0 %v8167
      %8528 = vmatprep.subr.mxu0 0.0
      %8529 = vmatpush1.msra.mxu0 %v8168
      %8530 = vmatprep.subr.mxu0 0.0
      %8531 = vmatpush1.msra.mxu0 %v8169
      %8532 = vmatprep.subr.mxu0 0.0
      %8533 = vmatpush1.msra.mxu0 %v8170
      %8534 = vmatprep.subr.mxu0 0.0
      %8535 = vmatpush1.msra.mxu0 %v8171
      %8536 = vmatprep.subr.mxu0 0.0
      %8537 = vmatpush1.msra.mxu0 %v8172
      %8538 = vmatprep.subr.mxu0 0.0
      %8539 = vmatpush1.msra.mxu0 %v8173
      %8540 = vmatprep.subr.mxu0 0.0
      %8541 = vmatpush1.msra.mxu0 %v8174
      %8542 = vmatprep.subr.mxu0 0.0
      %8543 = vmatpush1.msra.mxu0 %v8175
      %8544 = vmatprep.subr.mxu0 0.0
      %8545 = vmatpush1.msra.mxu0 %v8176
      %8546 = vmatprep.subr.mxu0 0.0
      %8547 = vmatpush1.msra.mxu0 %v8177
      %8548 = vmatprep.subr.mxu0 0.0
      %8549 = vmatpush1.msra.mxu0 %v8178
      %8550 = vmatprep.subr.mxu0 0.0
      %8551 = vmatpush1.msra.mxu0 %v8179
      %8552 = vmatprep.subr.mxu0 0.0
      %8553 = vmatpush1.msra.mxu0 %v8180
      %8554 = vmatprep.subr.mxu0 0.0
      %8555 = vmatpush1.msra.mxu0 %v8181
      %8556 = vmatprep.subr.mxu0 0.0
      %8557 = vmatpush1.msra.mxu0 %v8182
      %8558 = vmatprep.subr.mxu0 0.0
      %8559 = vmatpush1.msra.mxu0 %v8183
      %8560 = vmatprep.subr.mxu0 0.0
      %8561 = vmatpush1.msra.mxu0 %v8184
      %8562 = vmatprep.subr.mxu0 0.0
      %8563 = vmatpush1.msra.mxu0 %v8185
      %8564 = vmatprep.subr.mxu0 0.0
      %8565 = vmatpush1.msra.mxu0 %v8186
      %8566 = vmatprep.subr.mxu0 0.0
      %8567 = vmatpush1.msra.mxu0 %v8187
      %8568 = vmatprep.subr.mxu0 0.0
      %8569 = vmatpush1.msra.mxu0 %v8188
      %8570 = vmatprep.subr.mxu0 0.0
      %8571 = vmatpush1.msra.mxu0 %v8189
      %8572 = vmatprep.subr.mxu0 0.0
      %8573 = vmatpush1.msra.mxu0 %v8190
      %8574 = vmatprep.mubr.f32.mxu0 %v8441
      %8575 = vmatmul.mubr.f32.gmra.mrb[0].mxu0 %v8433
      %v8576 = vpop.f32.mrb[0].mxu0
      %v8577 = vadd.f32 %v8420, %v8576
      %v8578 = vpop.f32.mrb[0].mxu0
      %8579 = vdwg.mxu0
      %8580 = vmatprep.subr.mxu0 0.0
      %8581 = vmatpush1.msra.mxu0 %v8191
      %8582 = vmatprep.subr.mxu0 0.0
      %8583 = vmatpush1.msra.mxu0 %v8192
      %8584 = vmatprep.subr.mxu0 0.0
      %8585 = vmatpush1.msra.mxu0 %v8193
      %8586 = vmatprep.subr.mxu0 0.0
      %8587 = vmatpush1.msra.mxu0 %v8194
      %8588 = vmatprep.subr.mxu0 0.0
      %8589 = vmatpush1.msra.mxu0 %v8195
      %8590 = vmatprep.subr.mxu0 0.0
      %8591 = vmatpush1.msra.mxu0 %v8196
      %8592 = vmatprep.subr.mxu0 0.0
      %8593 = vmatpush1.msra.mxu0 %v8197
      %8594 = vmatprep.subr.mxu0 0.0
      %8595 = vmatpush1.msra.mxu0 %v8198
      %8596 = vmatprep.subr.mxu0 0.0
      %8597 = vmatpush1.msra.mxu0 %v8199
      %8598 = vmatprep.subr.mxu0 0.0
      %8599 = vmatpush1.msra.mxu0 %v8200
      %8600 = vmatprep.subr.mxu0 0.0
      %8601 = vmatpush1.msra.mxu0 %v8201
      %8602 = vmatprep.subr.mxu0 0.0
      %8603 = vmatpush1.msra.mxu0 %v8202
      %8604 = vmatprep.subr.mxu0 0.0
      %8605 = vmatpush1.msra.mxu0 %v8203
      %8606 = vmatprep.subr.mxu0 0.0
      %8607 = vmatpush1.msra.mxu0 %v8204
      %8608 = vmatprep.subr.mxu0 0.0
      %8609 = vmatpush1.msra.mxu0 %v8205
      %8610 = vmatprep.subr.mxu0 0.0
      %8611 = vmatpush1.msra.mxu0 %v8206
      %8612 = vmatprep.subr.mxu0 0.0
      %8613 = vmatpush1.msra.mxu0 %v8207
      %8614 = vmatprep.subr.mxu0 0.0
      %8615 = vmatpush1.msra.mxu0 %v8208
      %8616 = vmatprep.subr.mxu0 0.0
      %8617 = vmatpush1.msra.mxu0 %v8209
      %8618 = vmatprep.subr.mxu0 0.0
      %8619 = vmatpush1.msra.mxu0 %v8210
      %8620 = vmatprep.subr.mxu0 0.0
      %8621 = vmatpush1.msra.mxu0 %v8211
      %8622 = vmatprep.subr.mxu0 0.0
      %8623 = vmatpush1.msra.mxu0 %v8212
      %8624 = vmatprep.subr.mxu0 0.0
      %8625 = vmatpush1.msra.mxu0 %v8213
      %8626 = vmatprep.subr.mxu0 0.0
      %8627 = vmatpush1.msra.mxu0 %v8214
      %8628 = vmatprep.subr.mxu0 0.0
      %8629 = vmatpush1.msra.mxu0 %v8215
      %8630 = vmatprep.subr.mxu0 0.0
      %8631 = vmatpush1.msra.mxu0 %v8216
      %8632 = vmatprep.subr.mxu0 0.0
      %8633 = vmatpush1.msra.mxu0 %v8217
      %8634 = vmatprep.subr.mxu0 0.0
      %8635 = vmatpush1.msra.mxu0 %v8218
      %8636 = vmatprep.subr.mxu0 0.0
      %8637 = vmatpush1.msra.mxu0 %v8219
      %8638 = vmatprep.subr.mxu0 0.0
      %8639 = vmatpush1.msra.mxu0 %v8220
      %8640 = vmatprep.subr.mxu0 0.0
      %8641 = vmatpush1.msra.mxu0 %v8221
      %8642 = vmatprep.subr.mxu0 0.0
      %8643 = vmatpush1.msra.mxu0 %v8222
      %8644 = vmatprep.mubr.f32.mxu0 %v8442
      %8645 = vmatmul.mubr.f32.gmra.mrb[0].mxu0 %v8440
      %v8646 = vpop.f32.mrb[0].mxu0
      %v8647 = vadd.f32 %v8577, %v8646
      %v8648 = vpop.f32.mrb[0].mxu0
      %8649 = vdwg.mxu0
      %8650 = vmatprep.subr.mxu0 0.0
      %8651 = vmatpush1.msra.mxu0 %v8223
      %8652 = vmatprep.subr.mxu0 0.0
      %8653 = vmatpush1.msra.mxu0 %v8224
      %8654 = vmatprep.subr.mxu0 0.0
      %8655 = vmatpush1.msra.mxu0 %v8225
      %8656 = vmatprep.subr.mxu0 0.0
      %8657 = vmatpush1.msra.mxu0 %v8226
      %8658 = vmatprep.subr.mxu0 0.0
      %8659 = vmatpush1.msra.mxu0 %v8227
      %8660 = vmatprep.subr.mxu0 0.0
      %8661 = vmatpush1.msra.mxu0 %v8228
      %8662 = vmatprep.subr.mxu0 0.0
      %8663 = vmatpush1.msra.mxu0 %v8229
      %8664 = vmatprep.subr.mxu0 0.0
      %8665 = vmatpush1.msra.mxu0 %v8230
      %8666 = vmatprep.subr.mxu0 0.0
      %8667 = vmatpush1.msra.mxu0 %v8231
      %8668 = vmatprep.subr.mxu0 0.0
      %8669 = vmatpush1.msra.mxu0 %v8232
      %8670 = vmatprep.subr.mxu0 0.0
      %8671 = vmatpush1.msra.mxu0 %v8233
      %8672 = vmatprep.subr.mxu0 0.0
      %8673 = vmatpush1.msra.mxu0 %v8234
      %8674 = vmatprep.subr.mxu0 0.0
      %8675 = vmatpush1.msra.mxu0 %v8235
      %8676 = vmatprep.subr.mxu0 0.0
      %8677 = vmatpush1.msra.mxu0 %v8236
      %8678 = vmatprep.subr.mxu0 0.0
      %8679 = vmatpush1.msra.mxu0 %v8237
      %8680 = vmatprep.subr.mxu0 0.0
      %8681 = vmatpush1.msra.mxu0 %v8238
      %8682 = vmatprep.subr.mxu0 0.0
      %8683 = vmatpush1.msra.mxu0 %v8239
      %8684 = vmatprep.subr.mxu0 0.0
      %8685 = vmatpush1.msra.mxu0 %v8240
      %8686 = vmatprep.subr.mxu0 0.0
      %8687 = vmatpush1.msra.mxu0 %v8241
      %8688 = vmatprep.subr.mxu0 0.0
      %8689 = vmatpush1.msra.mxu0 %v8242
      %8690 = vmatprep.subr.mxu0 0.0
      %8691 = vmatpush1.msra.mxu0 %v8243
      %8692 = vmatprep.subr.mxu0 0.0
      %8693 = vmatpush1.msra.mxu0 %v8244
      %8694 = vmatprep.subr.mxu0 0.0
      %8695 = vmatpush1.msra.mxu0 %v8245
      %8696 = vmatprep.subr.mxu0 0.0
      %8697 = vmatpush1.msra.mxu0 %v8246
      %8698 = vmatprep.subr.mxu0 0.0
      %8699 = vmatpush1.msra.mxu0 %v8247
      %8700 = vmatprep.subr.mxu0 0.0
      %8701 = vmatpush1.msra.mxu0 %v8248
      %8702 = vmatprep.subr.mxu0 0.0
      %8703 = vmatpush1.msra.mxu0 %v8249
      %8704 = vmatprep.subr.mxu0 0.0
      %8705 = vmatpush1.msra.mxu0 %v8250
      %8706 = vmatprep.subr.mxu0 0.0
      %8707 = vmatpush1.msra.mxu0 %v8251
      %8708 = vmatprep.subr.mxu0 0.0
      %8709 = vmatpush1.msra.mxu0 %v8252
      %8710 = vmatprep.subr.mxu0 0.0
      %8711 = vmatpush1.msra.mxu0 %v8253
      %8712 = vmatprep.subr.mxu0 0.0
      %8713 = vmatpush1.msra.mxu0 %v8254
      %8714 = vmatprep.mubr.f32.mxu0 %v8458
      %8715 = vmatmul.mubr.f32.gmra.mrb[0].mxu0 %v8450
      %v8716 = vpop.f32.mrb[0].mxu0
      %v8717 = vadd.f32 %v8647, %v8716
      %v8718 = vpop.f32.mrb[0].mxu0
      %8719 = vdwg.mxu0
      %8720 = vmatprep.subr.mxu0 0.0
      %8721 = vmatpush1.msra.mxu0 %v8255
      %8722 = vmatprep.subr.mxu0 0.0
      %8723 = vmatpush1.msra.mxu0 %v8256
      %8724 = vmatprep.subr.mxu0 0.0
      %8725 = vmatpush1.msra.mxu0 %v8257
      %8726 = vmatprep.subr.mxu0 0.0
      %8727 = vmatpush1.msra.mxu0 %v8258
      %8728 = vmatprep.subr.mxu0 0.0
      %8729 = vmatpush1.msra.mxu0 %v8259
      %8730 = vmatprep.subr.mxu0 0.0
      %8731 = vmatpush1.msra.mxu0 %v8260
      %8732 = vmatprep.subr.mxu0 0.0
      %8733 = vmatpush1.msra.mxu0 %v8261
      %8734 = vmatprep.subr.mxu0 0.0
      %8735 = vmatpush1.msra.mxu0 %v8262
      %8736 = vmatprep.subr.mxu0 0.0
      %8737 = vmatpush1.msra.mxu0 %v8263
      %8738 = vmatprep.subr.mxu0 0.0
      %8739 = vmatpush1.msra.mxu0 %v8264
      %8740 = vmatprep.subr.mxu0 0.0
      %8741 = vmatpush1.msra.mxu0 %v8265
      %8742 = vmatprep.subr.mxu0 0.0
      %8743 = vmatpush1.msra.mxu0 %v8266
      %8744 = vmatprep.subr.mxu0 0.0
      %8745 = vmatpush1.msra.mxu0 %v8267
      %8746 = vmatprep.subr.mxu0 0.0
      %8747 = vmatpush1.msra.mxu0 %v8268
      %8748 = vmatprep.subr.mxu0 0.0
      %8749 = vmatpush1.msra.mxu0 %v8269
      %8750 = vmatprep.subr.mxu0 0.0
      %8751 = vmatpush1.msra.mxu0 %v8270
      %8752 = vmatprep.subr.mxu0 0.0
      %8753 = vmatpush1.msra.mxu0 %v8271
      %8754 = vmatprep.subr.mxu0 0.0
      %8755 = vmatpush1.msra.mxu0 %v8272
      %8756 = vmatprep.subr.mxu0 0.0
      %8757 = vmatpush1.msra.mxu0 %v8273
      %8758 = vmatprep.subr.mxu0 0.0
      %8759 = vmatpush1.msra.mxu0 %v8274
      %8760 = vmatprep.subr.mxu0 0.0
      %8761 = vmatpush1.msra.mxu0 %v8275
      %8762 = vmatprep.subr.mxu0 0.0
      %8763 = vmatpush1.msra.mxu0 %v8276
      %8764 = vmatprep.subr.mxu0 0.0
      %8765 = vmatpush1.msra.mxu0 %v8277
      %8766 = vmatprep.subr.mxu0 0.0
      %8767 = vmatpush1.msra.mxu0 %v8278
      %8768 = vmatprep.subr.mxu0 0.0
      %8769 = vmatpush1.msra.mxu0 %v8279
      %8770 = vmatprep.subr.mxu0 0.0
      %8771 = vmatpush1.msra.mxu0 %v8280
      %8772 = vmatprep.subr.mxu0 0.0
      %8773 = vmatpush1.msra.mxu0 %v8281
      %8774 = vmatprep.subr.mxu0 0.0
      %8775 = vmatpush1.msra.mxu0 %v8282
      %8776 = vmatprep.subr.mxu0 0.0
      %8777 = vmatpush1.msra.mxu0 %v8283
      %8778 = vmatprep.subr.mxu0 0.0
      %8779 = vmatpush1.msra.mxu0 %v8284
      %8780 = vmatprep.subr.mxu0 0.0
      %8781 = vmatpush1.msra.mxu0 %v8285
      %8782 = vmatprep.subr.mxu0 0.0
      %8783 = vmatpush1.msra.mxu0 %v8286
      %8784 = vmatprep.mubr.f32.mxu0 %v8459
      %8785 = vmatmul.mubr.f32.gmra.mrb[0].mxu0 %v8457
      %v8786 = vpop.f32.mrb[0].mxu0
      %v8787 = vadd.f32 %v8717, %v8786
      %v8788 = vpop.f32.mrb[0].mxu0
      %8789 = vdwg.mxu0
      %8790 = vmatprep.subr.mxu0 0.0
      %8791 = vmatpush1.msra.mxu0 %v8287
      %8792 = vmatprep.subr.mxu0 0.0
      %8793 = vmatpush1.msra.mxu0 %v8288
      %8794 = vmatprep.subr.mxu0 0.0
      %8795 = vmatpush1.msra.mxu0 %v8289
      %8796 = vmatprep.subr.mxu0 0.0
      %8797 = vmatpush1.msra.mxu0 %v8290
      %8798 = vmatprep.subr.mxu0 0.0
      %8799 = vmatpush1.msra.mxu0 %v8291
      %8800 = vmatprep.subr.mxu0 0.0
      %8801 = vmatpush1.msra.mxu0 %v8292
      %8802 = vmatprep.subr.mxu0 0.0
      %8803 = vmatpush1.msra.mxu0 %v8293
      %8804 = vmatprep.subr.mxu0 0.0
      %8805 = vmatpush1.msra.mxu0 %v8294
      %8806 = vmatprep.subr.mxu0 0.0
      %8807 = vmatpush1.msra.mxu0 %v8295
      %8808 = vmatprep.subr.mxu0 0.0
      %8809 = vmatpush1.msra.mxu0 %v8296
      %8810 = vmatprep.subr.mxu0 0.0
      %8811 = vmatpush1.msra.mxu0 %v8297
      %8812 = vmatprep.subr.mxu0 0.0
      %8813 = vmatpush1.msra.mxu0 %v8298
      %8814 = vmatprep.subr.mxu0 0.0
      %8815 = vmatpush1.msra.mxu0 %v8299
      %8816 = vmatprep.subr.mxu0 0.0
      %8817 = vmatpush1.msra.mxu0 %v8300
      %8818 = vmatprep.subr.mxu0 0.0
      %8819 = vmatpush1.msra.mxu0 %v8301
      %8820 = vmatprep.subr.mxu0 0.0
      %8821 = vmatpush1.msra.mxu0 %v8302
      %8822 = vmatprep.subr.mxu0 0.0
      %8823 = vmatpush1.msra.mxu0 %v8303
      %8824 = vmatprep.subr.mxu0 0.0
      %8825 = vmatpush1.msra.mxu0 %v8304
      %8826 = vmatprep.subr.mxu0 0.0
      %8827 = vmatpush1.msra.mxu0 %v8305
      %8828 = vmatprep.subr.mxu0 0.0
      %8829 = vmatpush1.msra.mxu0 %v8306
      %8830 = vmatprep.subr.mxu0 0.0
      %8831 = vmatpush1.msra.mxu0 %v8307
      %8832 = vmatprep.subr.mxu0 0.0
      %8833 = vmatpush1.msra.mxu0 %v8308
      %8834 = vmatprep.subr.mxu0 0.0
      %8835 = vmatpush1.msra.mxu0 %v8309
      %8836 = vmatprep.subr.mxu0 0.0
      %8837 = vmatpush1.msra.mxu0 %v8310
      %8838 = vmatprep.subr.mxu0 0.0
      %8839 = vmatpush1.msra.mxu0 %v8311
      %8840 = vmatprep.subr.mxu0 0.0
      %8841 = vmatpush1.msra.mxu0 %v8312
      %8842 = vmatprep.subr.mxu0 0.0
      %8843 = vmatpush1.msra.mxu0 %v8313
      %8844 = vmatprep.subr.mxu0 0.0
      %8845 = vmatpush1.msra.mxu0 %v8314
      %8846 = vmatprep.subr.mxu0 0.0
      %8847 = vmatpush1.msra.mxu0 %v8315
      %8848 = vmatprep.subr.mxu0 0.0
      %8849 = vmatpush1.msra.mxu0 %v8316
      %8850 = vmatprep.subr.mxu0 0.0
      %8851 = vmatpush1.msra.mxu0 %v8317
      %8852 = vmatprep.subr.mxu0 0.0
      %8853 = vmatpush1.msra.mxu0 %v8318
      %8854 = vmatprep.mubr.f32.mxu0 %v8475
      %8855 = vmatmul.mubr.f32.gmra.mrb[0].mxu0 %v8467
      %v8856 = vpop.f32.mrb[0].mxu0
      %v8857 = vadd.f32 %v8787, %v8856
      %v8858 = vpop.f32.mrb[0].mxu0
      %8859 = vdwg.mxu0
      %8860 = vmatprep.subr.mxu0 0.0
      %8861 = vmatpush1.msra.mxu0 %v8319
      %8862 = vmatprep.subr.mxu0 0.0
      %8863 = vmatpush1.msra.mxu0 %v8320
      %8864 = vmatprep.subr.mxu0 0.0
      %8865 = vmatpush1.msra.mxu0 %v8321
      %8866 = vmatprep.subr.mxu0 0.0
      %8867 = vmatpush1.msra.mxu0 %v8322
      %8868 = vmatprep.subr.mxu0 0.0
      %8869 = vmatpush1.msra.mxu0 %v8323
      %8870 = vmatprep.subr.mxu0 0.0
      %8871 = vmatpush1.msra.mxu0 %v8324
      %8872 = vmatprep.subr.mxu0 0.0
      %8873 = vmatpush1.msra.mxu0 %v8325
      %8874 = vmatprep.subr.mxu0 0.0
      %8875 = vmatpush1.msra.mxu0 %v8326
      %8876 = vmatprep.subr.mxu0 0.0
      %8877 = vmatpush1.msra.mxu0 %v8327
      %8878 = vmatprep.subr.mxu0 0.0
      %8879 = vmatpush1.msra.mxu0 %v8328
      %8880 = vmatprep.subr.mxu0 0.0
      %8881 = vmatpush1.msra.mxu0 %v8329
      %8882 = vmatprep.subr.mxu0 0.0
      %8883 = vmatpush1.msra.mxu0 %v8330
      %8884 = vmatprep.subr.mxu0 0.0
      %8885 = vmatpush1.msra.mxu0 %v8331
      %8886 = vmatprep.subr.mxu0 0.0
      %8887 = vmatpush1.msra.mxu0 %v8332
      %8888 = vmatprep.subr.mxu0 0.0
      %8889 = vmatpush1.msra.mxu0 %v8333
      %8890 = vmatprep.subr.mxu0 0.0
      %8891 = vmatpush1.msra.mxu0 %v8334
      %8892 = vmatprep.subr.mxu0 0.0
      %8893 = vmatpush1.msra.mxu0 %v8335
      %8894 = vmatprep.subr.mxu0 0.0
      %8895 = vmatpush1.msra.mxu0 %v8336
      %8896 = vmatprep.subr.mxu0 0.0
      %8897 = vmatpush1.msra.mxu0 %v8337
      %8898 = vmatprep.subr.mxu0 0.0
      %8899 = vmatpush1.msra.mxu0 %v8338
      %8900 = vmatprep.subr.mxu0 0.0
      %8901 = vmatpush1.msra.mxu0 %v8339
      %8902 = vmatprep.subr.mxu0 0.0
      %8903 = vmatpush1.msra.mxu0 %v8340
      %8904 = vmatprep.subr.mxu0 0.0
      %8905 = vmatpush1.msra.mxu0 %v8341
      %8906 = vmatprep.subr.mxu0 0.0
      %8907 = vmatpush1.msra.mxu0 %v8342
      %8908 = vmatprep.subr.mxu0 0.0
      %8909 = vmatpush1.msra.mxu0 %v8343
      %8910 = vmatprep.subr.mxu0 0.0
      %8911 = vmatpush1.msra.mxu0 %v8344
      %8912 = vmatprep.subr.mxu0 0.0
      %8913 = vmatpush1.msra.mxu0 %v8345
      %8914 = vmatprep.subr.mxu0 0.0
      %8915 = vmatpush1.msra.mxu0 %v8346
      %8916 = vmatprep.subr.mxu0 0.0
      %8917 = vmatpush1.msra.mxu0 %v8347
      %8918 = vmatprep.subr.mxu0 0.0
      %8919 = vmatpush1.msra.mxu0 %v8348
      %8920 = vmatprep.subr.mxu0 0.0
      %8921 = vmatpush1.msra.mxu0 %v8349
      %8922 = vmatprep.subr.mxu0 0.0
      %8923 = vmatpush1.msra.mxu0 %v8350
      %8924 = vmatprep.mubr.f32.mxu0 %v8476
      %8925 = vmatmul.mubr.f32.gmra.mrb[0].mxu0 %v8474
      %v8926 = vpop.f32.mrb[0].mxu0
      %v8927 = vadd.f32 %v8857, %v8926
      %v8928 = vpop.f32.mrb[0].mxu0
      %8929 = vdwg.mxu0
      %8930 = vmatprep.subr.mxu0 0.0
      %8931 = vmatpush1.msra.mxu0 %v8351
      %8932 = vmatprep.subr.mxu0 0.0
      %8933 = vmatpush1.msra.mxu0 %v8352
      %8934 = vmatprep.subr.mxu0 0.0
      %8935 = vmatpush1.msra.mxu0 %v8353
      %8936 = vmatprep.subr.mxu0 0.0
      %8937 = vmatpush1.msra.mxu0 %v8354
      %8938 = vmatprep.subr.mxu0 0.0
      %8939 = vmatpush1.msra.mxu0 %v8355
      %8940 = vmatprep.subr.mxu0 0.0
      %8941 = vmatpush1.msra.mxu0 %v8356
      %8942 = vmatprep.subr.mxu0 0.0
      %8943 = vmatpush1.msra.mxu0 %v8357
      %8944 = vmatprep.subr.mxu0 0.0
      %8945 = vmatpush1.msra.mxu0 %v8358
      %8946 = vmatprep.subr.mxu0 0.0
      %8947 = vmatpush1.msra.mxu0 %v8359
      %8948 = vmatprep.subr.mxu0 0.0
      %8949 = vmatpush1.msra.mxu0 %v8360
      %8950 = vmatprep.subr.mxu0 0.0
      %8951 = vmatpush1.msra.mxu0 %v8361
      %8952 = vmatprep.subr.mxu0 0.0
      %8953 = vmatpush1.msra.mxu0 %v8362
      %8954 = vmatprep.subr.mxu0 0.0
      %8955 = vmatpush1.msra.mxu0 %v8363
      %8956 = vmatprep.subr.mxu0 0.0
      %8957 = vmatpush1.msra.mxu0 %v8364
      %8958 = vmatprep.subr.mxu0 0.0
      %8959 = vmatpush1.msra.mxu0 %v8365
      %8960 = vmatprep.subr.mxu0 0.0
      %8961 = vmatpush1.msra.mxu0 %v8366
      %8962 = vmatprep.subr.mxu0 0.0
      %8963 = vmatpush1.msra.mxu0 %v8367
      %8964 = vmatprep.subr.mxu0 0.0
      %8965 = vmatpush1.msra.mxu0 %v8368
      %8966 = vmatprep.subr.mxu0 0.0
      %8967 = vmatpush1.msra.mxu0 %v8369
      %8968 = vmatprep.subr.mxu0 0.0
      %8969 = vmatpush1.msra.mxu0 %v8370
      %8970 = vmatprep.subr.mxu0 0.0
      %8971 = vmatpush1.msra.mxu0 %v8371
      %8972 = vmatprep.subr.mxu0 0.0
      %8973 = vmatpush1.msra.mxu0 %v8372
      %8974 = vmatprep.subr.mxu0 0.0
      %8975 = vmatpush1.msra.mxu0 %v8373
      %8976 = vmatprep.subr.mxu0 0.0
      %8977 = vmatpush1.msra.mxu0 %v8374
      %8978 = vmatprep.subr.mxu0 0.0
      %8979 = vmatpush1.msra.mxu0 %v8375
      %8980 = vmatprep.subr.mxu0 0.0
      %8981 = vmatpush1.msra.mxu0 %v8376
      %8982 = vmatprep.subr.mxu0 0.0
      %8983 = vmatpush1.msra.mxu0 %v8377
      %8984 = vmatprep.subr.mxu0 0.0
      %8985 = vmatpush1.msra.mxu0 %v8378
      %8986 = vmatprep.subr.mxu0 0.0
      %8987 = vmatpush1.msra.mxu0 %v8379
      %8988 = vmatprep.subr.mxu0 0.0
      %8989 = vmatpush1.msra.mxu0 %v8380
      %8990 = vmatprep.subr.mxu0 0.0
      %8991 = vmatpush1.msra.mxu0 %v8381
      %8992 = vmatprep.subr.mxu0 0.0
      %8993 = vmatpush1.msra.mxu0 %v8382
      %8994 = vmatprep.mubr.f32.mxu0 %v8492
      %8995 = vmatmul.mubr.f32.gmra.mrb[0].mxu0 %v8484
      %v8996 = vpop.f32.mrb[0].mxu0
      %v8997 = vadd.f32 %v8927, %v8996
      %v8998 = vpop.f32.mrb[0].mxu0
      %8999 = vdwg.mxu0
      %9000 = vmatprep.subr.mxu0 0.0
      %9001 = vmatpush1.msra.mxu0 %v8383
      %9002 = vmatprep.subr.mxu0 0.0
      %9003 = vmatpush1.msra.mxu0 %v8384
      %9004 = vmatprep.subr.mxu0 0.0
      %9005 = vmatpush1.msra.mxu0 %v8385
      %9006 = vmatprep.subr.mxu0 0.0
      %9007 = vmatpush1.msra.mxu0 %v8386
      %9008 = vmatprep.subr.mxu0 0.0
      %9009 = vmatpush1.msra.mxu0 %v8387
      %9010 = vmatprep.subr.mxu0 0.0
      %9011 = vmatpush1.msra.mxu0 %v8388
      %9012 = vmatprep.subr.mxu0 0.0
      %9013 = vmatpush1.msra.mxu0 %v8389
      %9014 = vmatprep.subr.mxu0 0.0
      %9015 = vmatpush1.msra.mxu0 %v8390
      %9016 = vmatprep.subr.mxu0 0.0
      %9017 = vmatpush1.msra.mxu0 %v8391
      %9018 = vmatprep.subr.mxu0 0.0
      %9019 = vmatpush1.msra.mxu0 %v8392
      %9020 = vmatprep.subr.mxu0 0.0
      %9021 = vmatpush1.msra.mxu0 %v8393
      %9022 = vmatprep.subr.mxu0 0.0
      %9023 = vmatpush1.msra.mxu0 %v8394
      %9024 = vmatprep.subr.mxu0 0.0
      %9025 = vmatpush1.msra.mxu0 %v8395
      %9026 = vmatprep.subr.mxu0 0.0
      %9027 = vmatpush1.msra.mxu0 %v8396
      %9028 = vmatprep.subr.mxu0 0.0
      %9029 = vmatpush1.msra.mxu0 %v8397
      %9030 = vmatprep.subr.mxu0 0.0
      %9031 = vmatpush1.msra.mxu0 %v8398
      %9032 = vmatprep.subr.mxu0 0.0
      %9033 = vmatpush1.msra.mxu0 %v8399
      %9034 = vmatprep.subr.mxu0 0.0
      %9035 = vmatpush1.msra.mxu0 %v8400
      %9036 = vmatprep.subr.mxu0 0.0
      %9037 = vmatpush1.msra.mxu0 %v8401
      %9038 = vmatprep.subr.mxu0 0.0
      %9039 = vmatpush1.msra.mxu0 %v8402
      %9040 = vmatprep.subr.mxu0 0.0
      %9041 = vmatpush1.msra.mxu0 %v8403
      %9042 = vmatprep.subr.mxu0 0.0
      %9043 = vmatpush1.msra.mxu0 %v8404
      %9044 = vmatprep.subr.mxu0 0.0
      %9045 = vmatpush1.msra.mxu0 %v8405
      %9046 = vmatprep.subr.mxu0 0.0
      %9047 = vmatpush1.msra.mxu0 %v8406
      %9048 = vmatprep.subr.mxu0 0.0
      %9049 = vmatpush1.msra.mxu0 %v8407
      %9050 = vmatprep.subr.mxu0 0.0
      %9051 = vmatpush1.msra.mxu0 %v8408
      %9052 = vmatprep.subr.mxu0 0.0
      %9053 = vmatpush1.msra.mxu0 %v8409
      %9054 = vmatprep.subr.mxu0 0.0
      %9055 = vmatpush1.msra.mxu0 %v8410
      %9056 = vmatprep.subr.mxu0 0.0
      %9057 = vmatpush1.msra.mxu0 %v8411
      %9058 = vmatprep.subr.mxu0 0.0
      %9059 = vmatpush1.msra.mxu0 %v8412
      %9060 = vmatprep.subr.mxu0 0.0
      %9061 = vmatpush1.msra.mxu0 %v8413
      %9062 = vmatprep.subr.mxu0 0.0
      %9063 = vmatpush1.msra.mxu0 %v8414
      %9064 = vmatprep.mubr.f32.mxu0 %v8493
      %9065 = vmatmul.mubr.f32.gmra.mrb[0].mxu0 %v8491
      %v9066 = vpop.f32.mrb[0].mxu0
      %v9067 = vadd.f32 %v8997, %v9066
      %v9068 = vpop.f32.mrb[0].mxu0
      %9069 = vdwg.mxu0
      %v9070 = vmul.f32 %v8155, %v8155
      %v9071 = vmul.f32 %v8156, %v8156
      %v9072 = vmul.f32 %v8157, %v8157
      %v9073 = vmul.f32 %v8158, %v8158
      %v9078 = vcombine.high %v9070, %v9070
      %v9080 = vunpack.c.l.s4 1983009808
      %v9081 = vunpack.c.0.s8 %v9080
      %v9082 = vlaneseq
      %v9083 = vshrl.u32 %v9082, 7
      %v9084 = vsub.s32 %v9081, %v9083
      %v9085 = vrot.slane %v9070, %v9084
      %v9087 = vunpack.c.l.s4 1983009808
      %v9088 = vunpack.c.0.s8 %v9087
      %v9089 = vlaneseq
      %v9090 = vshrl.u32 %v9089, 7
      %v9091 = vsub.s32 %v9088, %v9090
      %v9092 = vrot.slane %v9078, %v9091
      %v9093 = vcombine.high %v9085, %v9085
      %v9094 = vcombine.high %v9092, %v9092
      %v9095 = vcombine.high %v9071, %v9071
      %v9097 = vunpack.c.l.s4 1983009808
      %v9098 = vunpack.c.0.s8 %v9097
      %v9099 = vlaneseq
      %v9100 = vshrl.u32 %v9099, 7
      %v9101 = vsub.s32 %v9098, %v9100
      %v9102 = vrot.slane %v9071, %v9101
      %v9104 = vunpack.c.l.s4 1983009808
      %v9105 = vunpack.c.0.s8 %v9104
      %v9106 = vlaneseq
      %v9107 = vshrl.u32 %v9106, 7
      %v9108 = vsub.s32 %v9105, %v9107
      %v9109 = vrot.slane %v9095, %v9108
      %v9110 = vcombine.high %v9102, %v9102
      %v9111 = vcombine.high %v9109, %v9109
      %v9112 = vcombine.high %v9072, %v9072
      %v9114 = vunpack.c.l.s4 1983009808
      %v9115 = vunpack.c.0.s8 %v9114
      %v9116 = vlaneseq
      %v9117 = vshrl.u32 %v9116, 7
      %v9118 = vsub.s32 %v9115, %v9117
      %v9119 = vrot.slane %v9072, %v9118
      %v9121 = vunpack.c.l.s4 1983009808
      %v9122 = vunpack.c.0.s8 %v9121
      %v9123 = vlaneseq
      %v9124 = vshrl.u32 %v9123, 7
      %v9125 = vsub.s32 %v9122, %v9124
      %v9126 = vrot.slane %v9112, %v9125
      %v9127 = vcombine.high %v9119, %v9119
      %v9128 = vcombine.high %v9126, %v9126
      %v9129 = vcombine.high %v9073, %v9073
      %v9131 = vunpack.c.l.s4 1983009808
      %v9132 = vunpack.c.0.s8 %v9131
      %v9133 = vlaneseq
      %v9134 = vshrl.u32 %v9133, 7
      %v9135 = vsub.s32 %v9132, %v9134
      %v9136 = vrot.slane %v9073, %v9135
      %v9138 = vunpack.c.l.s4 1983009808
      %v9139 = vunpack.c.0.s8 %v9138
      %v9140 = vlaneseq
      %v9141 = vshrl.u32 %v9140, 7
      %v9142 = vsub.s32 %v9139, %v9141
      %v9143 = vrot.slane %v9129, %v9142
      %v9144 = vcombine.high %v9136, %v9136
      %v9145 = vcombine.high %v9143, %v9143
      %vm9162 = vcmask 1041408
      %v9163 = vsel %vm9162, %v9085, 0.0
      %v9164 = vsel %vm9162, %v9093, 0.0
      %v9165 = vadd.f32 %v9163, %v9164
      %v9166 = vsel %vm9162, %v9092, 0.0
      %v9167 = vadd.f32 %v9165, %v9166
      %v9168 = vsel %vm9162, %v9094, 0.0
      %v9169 = vadd.f32 %v9167, %v9168
      %v9170 = vsel %vm9162, %v9102, 0.0
      %v9171 = vadd.f32 %v9169, %v9170
      %v9172 = vsel %vm9162, %v9110, 0.0
      %v9173 = vadd.f32 %v9171, %v9172
      %v9174 = vsel %vm9162, %v9109, 0.0
      %v9175 = vadd.f32 %v9173, %v9174
      %v9176 = vsel %vm9162, %v9111, 0.0
      %v9177 = vadd.f32 %v9175, %v9176
      %v9178 = vsel %vm9162, %v9119, 0.0
      %v9179 = vadd.f32 %v9177, %v9178
      %v9180 = vsel %vm9162, %v9127, 0.0
      %v9181 = vadd.f32 %v9179, %v9180
      %v9182 = vsel %vm9162, %v9126, 0.0
      %v9183 = vadd.f32 %v9181, %v9182
      %v9184 = vsel %vm9162, %v9128, 0.0
      %v9185 = vadd.f32 %v9183, %v9184
      %v9186 = vsel %vm9162, %v9136, 0.0
      %v9187 = vadd.f32 %v9185, %v9186
      %v9188 = vsel %vm9162, %v9144, 0.0
      %v9189 = vadd.f32 %v9187, %v9188
      %v9190 = vsel %vm9162, %v9143, 0.0
      %v9191 = vadd.f32 %v9189, %v9190
      %v9192 = vsel %vm9162, %v9145, 0.0
      %v9193 = vadd.f32 %v9191, %v9192
      %9194 = vadd.xlane.f32.xlu0 %v9193
      %v9195 = vpop.xlane.xlu0 %9194
      %v9196 = vadd.f32 %v9195, 1e-12
      %v9197 = vrsqrt.pop %v9196
      %v9200 = vunpack.c.l.s4 269488144
      %v9201 = vunpack.c.0.s8 %v9200
      %v9202 = vlaneseq
      %v9203 = vshrl.u32 %v9202, 7
      %v9204 = vsub.s32 %v9201, %v9203
      %v9205 = vrot.slane %v9197, %v9204
      %v9207 = vmul.f32 %v8155, %v9205
      %v9208 = vmul.f32 %v8156, %v9205
      %v9209 = vmul.f32 %v8157, %v9205
      %v9210 = vmul.f32 %v8158, %v9205
      %9211 = vst [vmem:[#allocation9] sm:$0xff] %v9207
      %9212 = vst [vmem:[#allocation9 + $0x8] sm:$0xff] %v9208
      %9213 = vst [vmem:[#allocation9 + $0x10] sm:$0xff] %v9209
      %9214 = vst [vmem:[#allocation9 + $0x18] sm:$0xff] %v9210
      %v9215 = vmul.f32 %v9067, %v9067
      %v9216 = vsel %vm9162, %v9215, 0.0
      %9217 = vadd.xlane.f32.xlu0 %v9216
      %v9218 = vpop.xlane.xlu0 %9217
      %v9219 = vadd.f32 %v9218, 1e-12
      %v9220 = vrsqrt.pop %v9219
      %v9221 = vmul.f32 %v9067, %v9220
      %9222 = vst [vmem:[#allocation10] sm:$0x3] %v9221
    $region37: #{tpu_custom_call.1} parent=1 // pred_fallthru
      _
    // Predicated region
    $region38: #{tpu_custom_call.1} parent=1 // pred_check
      _
    $region39: #{tpu_custom_call.1} parent=1 // pred_check_branch
      %9224 = sbr.rel (0) target = $region41
    $region40: #{tpu_custom_call.1} parent=1 // pred_region
      %s9226 = ssub.s32 512, 512
      %9227 = vsyncadd [#allocation6], %s9226
      %s9229 = sshll.u32 [#allocation9], 4
      %s9230 = int_to_ptr.vmem [resolvable:$true] %s9229
      %9232 = dma.vmem_to_hbm [thread:$0]  %s9230, 512, %s5, [#allocation6]
    $region41: #{tpu_custom_call.1} parent=1 // pred_fallthru
      _
    // Predicated region
    $region42: #{tpu_custom_call.1} parent=1 // pred_check
      _
    $region43: #{tpu_custom_call.1} parent=1 // pred_check_branch
      %9234 = sbr.rel (0) target = $region45
    $region44: #{tpu_custom_call.1} parent=1 // pred_region
      %s9236 = ssub.s32 32, 32
      %9237 = vsyncadd [#allocation11], %s9236
      %s9239 = sshll.u32 [#allocation10], 4
      %s9240 = int_to_ptr.vmem [resolvable:$true] %s9239
      %9242 = dma.vmem_to_hbm [thread:$0]  %s9240, 32, %s6, [#allocation11]
    $region45: #{tpu_custom_call.1} parent=1 // pred_fallthru
      _
    // Predicated region
    $region46: #{tpu_custom_call.1} parent=1 // pred_check
      _
    $region47: #{tpu_custom_call.1} parent=1 // pred_check_branch
      %9244 = sbr.rel (0) target = $region49
    $region48: #{tpu_custom_call.1} parent=1 // pred_region
      %9245 = dma.done [#allocation6], 512
    $region49: #{tpu_custom_call.1} parent=1 // pred_fallthru
      _
    // Predicated region
    $region50: #{tpu_custom_call.1} parent=1 // pred_check
      _
    $region51: #{tpu_custom_call.1} parent=1 // pred_check_branch
      %9247 = sbr.rel (0) target = $region53
    $region52: #{tpu_custom_call.1} parent=1 // pred_region
      %9248 = dma.done [#allocation11], 32
    $region53: #{tpu_custom_call.1} parent=1 // pred_fallthru
      _
    %9249 = vsyncpa [#allocation5], 1
    %9250 = vsyncpa [#allocation8], 1
    %9251 = vsyncpa [#allocation6], 1
    %9252 = vsyncpa [#allocation11], 1

</llo_original>
